<compile_context>
chip_gen: v6e
topology: v6e:2x2x1
jax: 0.10.0
libtpu: 0.0.40
codegen_flags: <defaults>
</compile_context>

<pallas_src>
import functools

import jax
import jax.numpy as jnp
from jax import lax
from jax.experimental import pallas as pl
from jax.experimental.pallas import tpu as pltpu

BN_EPS = 1e-5
NEG_PAD_BIAS = -1e30   # bias for padded classifier columns (keeps log-softmax exact)
LSTM_HIDDEN = 32


def _round_up(x, m):
    return ((x + m - 1) // m) * m


def _sigmoid(x):
    return 1.0 / (1.0 + jnp.exp(-x))


# ----------------------------------------------------------------------------
# Fused SA kernel: N x (matmul -> folded-BN scale/shift -> ReLU) -> max-pool over
# the nsample dim (rows are k-major) -> optional post-pool dense layers (fc1/fc2).
# ----------------------------------------------------------------------------


def _sa_mlp_pool_kernel(*refs, n_pre, n_post, K):
    x_ref = refs[0]
    o_ref = refs[-1]
    wrefs = refs[1:-1]

    def dense_bn_relu(h, idx):
        w, s, t = wrefs[3 * idx], wrefs[3 * idx + 1], wrefs[3 * idx + 2]
        y = jnp.dot(h.astype(jnp.bfloat16), w[...],
                    preferred_element_type=jnp.float32)
        return jnp.maximum(y * s[...] + t[...], 0.0)

    h = x_ref[...]
    for li in range(n_pre):
        h = dense_bn_relu(h, li)

    # Max-pool over the K group members: rows are k-major, G = rows // K is a
    # multiple of 8, so these are aligned static slices + elementwise max (VPU).
    G = h.shape[0] // K
    pooled = h[0:G]
    for k in range(1, K):
        pooled = jnp.maximum(pooled, h[k * G:(k + 1) * G])
    h = pooled

    for li in range(n_post):
        h = dense_bn_relu(h, n_pre + li)
    o_ref[...] = h


def sa_mlp_pool(x, pre_layers, K, post_layers=()):
    """x: [K*Gp, C] f32, k-major rows (Gp multiple of 8).

    Runs pre_layers (conv1x1+BN+ReLU chain), max-pools over K, then post_layers.
    Returns [Gp, out_dim]. The contraction dim C is zero-padded to a multiple of 8.
    """
    M, C = x.shape
    G = M // K
    pre_layers = list(pre_layers)
    Cp = _round_up(C, 8)
    if Cp != C:
        x = jnp.pad(x, ((0, 0), (0, Cp - C)))
        w0, s0, t0 = pre_layers[0]
        pre_layers[0] = (jnp.pad(w0, ((0, Cp - C), (0, 0))), s0, t0)

    layers = pre_layers + list(post_layers)
    out_dim = layers[-1][0].shape[1]
    operands = [x] + [a for layer in layers for a in layer]

    return pl.pallas_call(
        functools.partial(_sa_mlp_pool_kernel, n_pre=len(pre_layers),
                          n_post=len(post_layers), K=K),
        out_shape=jax.ShapeDtypeStruct((G, out_dim), jnp.float32),
    )(*operands)


def _k_major_flatten(new_points):
    """[Bf, S, K, C] -> ([K*Gp, C], G) with rows k-major and Gp = round_up(Bf*S, 8)."""
    Bf, S, K, C = new_points.shape
    G = Bf * S
    Gp = _round_up(G, 8)
    x = jnp.transpose(new_points, (2, 0, 1, 3)).reshape(K, G, C)
    if Gp != G:
        x = jnp.pad(x, ((0, 0), (0, Gp - G), (0, 0)))
    return x.reshape(K * Gp, C), G


# ----------------------------------------------------------------------------
# One-kernel 2-layer BiLSTM + classifier head (fc4 -> fc5 -> fc6 + log-softmax).
#   * input projections (x @ W_ih) hoisted out of the recurrence,
#   * h/c carried as values through a fully-unrolled time loop,
#   * per-layer hidden sequence kept in a small VMEM scratch (never in HBM),
#   * only the padded log-probabilities are written back.
# ----------------------------------------------------------------------------


def _bilstm_head_kernel(x_ref, wih1, whhf1, whhb1, bf1, bb1,
                        wih2, whhf2, whhb2, bf2, bb2,
                        w4, s4, t4, w5, s5, t5, w6, b6,
                        logp_ref, seq_scr, net_scr, *, T, Bp, H):
    H4 = 4 * H

    def gate_math(g, c):
        ig = _sigmoid(g[:, 0 * H:1 * H])     # PyTorch gate order i, f, g, o
        fg = _sigmoid(g[:, 1 * H:2 * H])
        gg = jnp.tanh(g[:, 2 * H:3 * H])
        og = _sigmoid(g[:, 3 * H:4 * H])
        c_new = fg * c + ig * gg
        return og * jnp.tanh(c_new), c_new

    def lstm_step(pre_f, pre_b, carry, whhf, whhb, bf, bb):
        h_f, c_f, h_b, c_b = carry
        rec_f = jnp.dot(h_f.astype(jnp.bfloat16), whhf[...],
                        preferred_element_type=jnp.float32)
        rec_b = jnp.dot(h_b.astype(jnp.bfloat16), whhb[...],
                        preferred_element_type=jnp.float32)
        h_f, c_f = gate_math(pre_f + rec_f + bf[...], c_f)
        h_b, c_b = gate_math(pre_b + rec_b + bb[...], c_b)
        return h_f, c_f, h_b, c_b

    zeros = jnp.zeros((Bp, H), jnp.float32)

    # ---- layer 1: hoisted input projection, then unrolled recurrence ----
    x = x_ref[...]                                                   # [T*Bp, D1]
    pre1 = jnp.dot(x.astype(jnp.bfloat16), wih1[...],
                   preferred_element_type=jnp.float32)               # [T*Bp, 8H]
    carry = (zeros, zeros, zeros, zeros)
    for i in range(T):
        tf, tb = i, T - 1 - i
        pre_f = pre1[tf * Bp:(tf + 1) * Bp, 0:H4]
        pre_b = pre1[tb * Bp:(tb + 1) * Bp, H4:2 * H4]
        carry = lstm_step(pre_f, pre_b, carry, whhf1, whhb1, bf1, bb1)
        h_f, _, h_b, _ = carry
        seq_scr[tf * Bp:(tf + 1) * Bp, 0:H] = h_f
        seq_scr[tb * Bp:(tb + 1) * Bp, H:2 * H] = h_b

    # ---- layer 2 ----
    x2 = seq_scr[...]                                                # [T*Bp, 2H]
    pre2 = jnp.dot(x2.astype(jnp.bfloat16), wih2[...],
                   preferred_element_type=jnp.float32)               # [T*Bp, 8H]
    carry = (zeros, zeros, zeros, zeros)
    for i in range(T):
        tf, tb = i, T - 1 - i
        pre_f = pre2[tf * Bp:(tf + 1) * Bp, 0:H4]
        pre_b = pre2[tb * Bp:(tb + 1) * Bp, H4:2 * H4]
        carry = lstm_step(pre_f, pre_b, carry, whhf2, whhb2, bf2, bb2)
        h_f, _, h_b, _ = carry
        if tb == T - 1:                     # bwd hidden at the last timestep
            net_scr[:, H:2 * H] = h_b
    net_scr[:, 0:H] = h_f                   # final fwd hidden (t = T-1)

    # ---- head: fc4 -> fc5 -> fc6 + log-softmax (lane-dense, padded classes) ----
    net = net_scr[...]                                               # [Bp, 2H]
    h4 = jnp.maximum(
        jnp.dot(net.astype(jnp.bfloat16), w4[...],
                preferred_element_type=jnp.float32) * s4[...] + t4[...], 0.0)
    h5 = jnp.maximum(
        jnp.dot(h4.astype(jnp.bfloat16), w5[...],
                preferred_element_type=jnp.float32) * s5[...] + t5[...], 0.0)
    y = jnp.dot(h5.astype(jnp.bfloat16), w6[...],
                preferred_element_type=jnp.float32) + b6[...]
    m = jnp.max(y, axis=-1, keepdims=True)
    z = y - m
    lse = jnp.log(jnp.sum(jnp.exp(z), axis=-1, keepdims=True))
    logp_ref[...] = z - lse


def bilstm_head(x2d, lstm1, lstm2, fc4, fc5, w6, b6, *, T, Bp, H):
    out_dim = w6.shape[1]
    return pl.pallas_call(
        functools.partial(_bilstm_head_kernel, T=T, Bp=Bp, H=H),
        out_shape=jax.ShapeDtypeStruct((Bp, out_dim), jnp.float32),
        scratch_shapes=[pltpu.VMEM((T * Bp, 2 * H), jnp.float32),
                        pltpu.VMEM((Bp, 2 * H), jnp.float32)],
    )(x2d,
      lstm1["w_ih"], lstm1["w_hh_f"], lstm1["w_hh_b"], lstm1["b_f"], lstm1["b_b"],
      lstm2["w_ih"], lstm2["w_hh_f"], lstm2["w_hh_b"], lstm2["b_f"], lstm2["b_b"],
      *fc4, *fc5, w6, b6)


# ----------------------------------------------------------------------------
# get_loss:  F.nll_loss(pred, target)  as a Pallas kernel (the spec module).
# Operates on a zero-padded lane-dense [B, 128k] slab; padded columns are never
# selected because target < num_classes.
# ----------------------------------------------------------------------------


def _nll_kernel(pred_ref, tgt_ref, o_ref):
    Bq, C = pred_ref.shape
    cols = lax.broadcasted_iota(jnp.int32, (Bq, C), 1)
    mask = cols == tgt_ref[...]                 # tgt: [Bq, 1] int32
    picked = jnp.where(mask, pred_ref[...], 0.0)
    s = jnp.sum(picked, axis=1, keepdims=True)  # [Bq, 1]
    s = jnp.sum(s, axis=0, keepdims=True)       # [1, 1]
    o_ref[...] = -s / float(Bq)


def get_loss(pred, target, trans_feat=None):
    """Equivalent of the PyTorch get_loss module: mean NLL, trans_feat ignored."""
    del trans_feat
    Bq, C = pred.shape
    Cp = _round_up(max(C, 128), 128)
    pred_pad = jnp.pad(pred, ((0, 0), (0, Cp - C)))
    out = pl.pallas_call(
        _nll_kernel,
        out_shape=jax.ShapeDtypeStruct((1, 1), jnp.float32),
    )(pred_pad, target.reshape(Bq, 1).astype(jnp.int32))
    return out[0, 0]


# ----------------------------------------------------------------------------
# PointNet++ glue (FPS / ball query / gather) in plain JAX
# TODO(synk): this sequential argmax loop + sort + gathers is the largest remaining
# wall-clock contributor; fusing it into a Pallas kernel (one-hot-matmul gathers with
# the [B*T,32,3] cloud resident in VMEM) is the next structural step.
# ----------------------------------------------------------------------------


def square_distance(src, dst):
    dist = -2.0 * jnp.einsum("bnc,bmc->bnm", src, dst)
    dist = dist + jnp.sum(src**2, -1)[:, :, None]
    dist = dist + jnp.sum(dst**2, -1)[:, None, :]
    return dist


def index_points(points, idx):
    return jax.vmap(lambda p, i: p[i])(points, idx)


def farthest_point_sample(xyz, npoint):
    # TODO(synk): torch picks a random initial farthest index; we use index 0.
    B, N, _ = xyz.shape

    def body(i, state):
        centroids, distance, farthest = state
        centroids = centroids.at[:, i].set(farthest)
        centroid = index_points(xyz, farthest[:, None])
        dist = jnp.sum((xyz - centroid) ** 2, -1)
        distance = jnp.minimum(distance, dist)
        farthest = jnp.argmax(distance, -1).astype(jnp.int32)
        return centroids, distance, farthest

    init = (jnp.zeros((B, npoint), jnp.int32),
            jnp.full((B, N), 1e10, jnp.float32),
            jnp.zeros((B,), jnp.int32))
    centroids, _, _ = lax.fori_loop(0, npoint, body, init)
    return centroids


def query_ball_point(radius, nsample, xyz, new_xyz):
    B, N, _ = xyz.shape
    S = new_xyz.shape[1]
    sqrdists = square_distance(new_xyz, xyz)
    group_idx = jnp.broadcast_to(
        jnp.arange(N, dtype=jnp.int32)[None, None, :], (B, S, N))
    group_idx = jnp.where(sqrdists > radius**2, N, group_idx)
    group_idx = jnp.sort(group_idx, axis=-1)[:, :, :nsample]
    group_first = jnp.broadcast_to(group_idx[:, :, :1], (B, S, nsample))
    group_idx = jnp.where(group_idx == N, group_first, group_idx)
    return group_idx


def sample_and_group(npoint, radius, nsample, xyz, points):
    fps_idx = farthest_point_sample(xyz, npoint)
    new_xyz = index_points(xyz, fps_idx)
    idx = query_ball_point(radius, nsample, xyz, new_xyz)
    grouped_xyz = index_points(xyz, idx)
    grouped_xyz_norm = grouped_xyz - new_xyz[:, :, None, :]
    if points is not None:
        # TODO(synk): lane-alignment repack (big feature block first) skipped to keep
        # weight-row ordering identical to the reference layout.
        grouped_points = index_points(points, idx)
        new_points = jnp.concatenate([grouped_xyz_norm, grouped_points], axis=-1)
    else:
        new_points = grouped_xyz_norm
    return new_xyz, new_points


def sample_and_group_all(xyz, points):
    B, N, C = xyz.shape
    new_xyz = jnp.zeros((B, 1, C), jnp.float32)
    grouped_xyz = xyz[:, None, :, :]
    if points is not None:
        new_points = jnp.concatenate([grouped_xyz, points[:, None, :, :]], axis=-1)
    else:
        new_points = grouped_xyz
    return new_xyz, new_points


# ----------------------------------------------------------------------------
# Parameter initialization (deterministic, synthetic)
# ----------------------------------------------------------------------------


def _bn_fold(bias, dout):
    # TODO(synk): eval-mode BN with default running stats; a trained-weight loader
    # must use gamma/sqrt(running_var+eps) and beta + (bias-mean)*scale instead.
    scale = jnp.full((dout,), 1.0 / jnp.sqrt(1.0 + BN_EPS), jnp.float32)
    shift = bias * scale
    return scale[None, :], shift[None, :]


def _init_linear(key, din, dout, std=0.05):
    kw, kb = jax.random.split(key)
    w = jax.random.normal(kw, (din, dout), jnp.float32) * std
    b = jax.random.normal(kb, (dout,), jnp.float32) * std
    return w, b


def _init_dense_bn(key, din, dout):
    w, b = _init_linear(key, din, dout)
    scale, shift = _bn_fold(b, dout)
    return (w.astype(jnp.bfloat16), scale, shift)


def _init_mlp(key, din, widths):
    layers = []
    for dout in widths:
        key, sub = jax.random.split(key)
        layers.append(_init_dense_bn(sub, din, dout))
        din = dout
    return layers


def _init_classifier_padded(key, din, num_classes):
    w, b = _init_linear(key, din, num_classes)
    padded = _round_up(max(num_classes, 128), 128)
    n_pad = padded - num_classes
    w = jnp.pad(w, ((0, 0), (0, n_pad)))
    b = jnp.pad(b, (0, n_pad), constant_values=NEG_PAD_BIAS)
    return w.astype(jnp.bfloat16), b[None, :].astype(jnp.float32)


def _init_bilstm(key, din, hidden, std=0.05):
    # TODO(synk): weights are [D, 4H]; PyTorch nn.LSTM stores [4H, D] — a real-weight
    # loader must transpose (and concat fwd/bwd input weights along the output dim).
    ks = jax.random.split(key, 8)

    def mk(k, shape):
        return jax.random.normal(k, shape, jnp.float32) * std

    w_ih = jnp.concatenate([mk(ks[0], (din, 4 * hidden)),
                            mk(ks[1], (din, 4 * hidden))], axis=1)  # [D, 8H] fwd|bwd
    return dict(
        w_ih=w_ih.astype(jnp.bfloat16),
        w_hh_f=mk(ks[2], (hidden, 4 * hidden)).astype(jnp.bfloat16),
        w_hh_b=mk(ks[3], (hidden, 4 * hidden)).astype(jnp.bfloat16),
        b_f=(mk(ks[4], (4 * hidden,)) + mk(ks[5], (4 * hidden,)))[None, :],
        b_b=(mk(ks[6], (4 * hidden,)) + mk(ks[7], (4 * hidden,)))[None, :],
    )


def init_params(key, num_classes):
    ks = jax.random.split(key, 10)
    pointnet = dict(
        sa1=_init_mlp(ks[0], 3, [64, 64, 128]),
        sa2=_init_mlp(ks[1], 128 + 3, [128, 128, 256]),
        sa3=_init_mlp(ks[2], 256 + 3, [256, 512, 1024]),
    )
    w6, b6 = _init_classifier_padded(ks[9], 256, num_classes)
    return dict(
        pointnet=pointnet,
        fc1=_init_dense_bn(ks[3], 1024, 512),
        fc2=_init_dense_bn(ks[4], 512, 256),
        lstm1=_init_bilstm(ks[5], 256, LSTM_HIDDEN),
        lstm2=_init_bilstm(ks[6], 2 * LSTM_HIDDEN, LSTM_HIDDEN),
        fc4=_init_dense_bn(ks[7], 2 * LSTM_HIDDEN, 512),
        fc5=_init_dense_bn(ks[8], 512, 256),
        fc6_w=w6, fc6_b=b6,
        # NOTE: fc3/bn3 of the original module are unused in forward, skipped.
    )


# ----------------------------------------------------------------------------
# Full forward pass (produces `pred` for get_loss) — 4 Pallas kernels total.
# ----------------------------------------------------------------------------


def forward(params, point_cloud, num_classes):
    B, T, N, _ = point_cloud.shape
    Bf = B * T
    xyz = point_cloud.reshape(Bf, N, 3)                     # batch all T frames
    pn = params["pointnet"]

    # SA1: MLP chain + nsample max-pool in one kernel.
    l1_xyz, np1 = sample_and_group(16, 0.2, 4, xyz, None)
    x1, g1 = _k_major_flatten(np1)
    l1_points = sa_mlp_pool(x1, pn["sa1"], K=np1.shape[2])[:g1]
    l1_points = l1_points.reshape(Bf, np1.shape[1], -1)

    # SA2: same.
    l2_xyz, np2 = sample_and_group(4, 0.4, 2, l1_xyz, l1_points)
    x2, g2 = _k_major_flatten(np2)
    l2_points = sa_mlp_pool(x2, pn["sa2"], K=np2.shape[2])[:g2]
    l2_points = l2_points.reshape(Bf, np2.shape[1], -1)

    # SA3 (group-all) + max-pool + fc1 + fc2: one kernel (rows padded to 8).
    _, np3 = sample_and_group_all(l2_xyz, l2_points)
    x3, g3 = _k_major_flatten(np3)
    feat = sa_mlp_pool(x3, pn["sa3"], K=np3.shape[2],
                       post_layers=(params["fc1"], params["fc2"]))[:g3]  # [B*T, 256]

    # Whole 2-layer BiLSTM + classifier head: one kernel (batch padded to 8,
    # timesteps laid out t-major so the per-step slices stay sublane-aligned).
    Bp = _round_up(B, 8)
    seq = feat.reshape(B, T, -1).transpose(1, 0, 2)          # [T, B, 256]
    seq = jnp.pad(seq, ((0, 0), (0, Bp - B), (0, 0))).reshape(T * Bp, -1)
    logp_pad = bilstm_head(seq, params["lstm1"], params["lstm2"],
                           params["fc4"], params["fc5"],
                           params["fc6_w"], params["fc6_b"],
                           T=T, Bp=Bp, H=LSTM_HIDDEN)        # [Bp, 128]
    pred = logp_pad[:B, :num_classes]                        # drop pad rows / lanes
    return pred


if __name__ == "__main__":
    key = jax.random.PRNGKey(0)
    kp, kx, kt = jax.random.split(key, 3)
    num_classes = 10
    B, T, N = 2, 3, 32
    params = init_params(kp, num_classes)
    point_cloud = jax.random.normal(kx, (B, T, N, 3), jnp.float32)
    target = jax.random.randint(kt, (B,), 0, num_classes, dtype=jnp.int32)

    fwd = jax.jit(functools.partial(forward, num_classes=num_classes))
    pred = fwd(params, point_cloud)

    loss_fn = jax.jit(get_loss)
    loss = loss_fn(pred, target, None)      # trans_feat ignored, like the torch module
    jax.block_until_ready((pred, loss))

    assert pred.shape == (B, num_classes)
    assert loss.shape == ()
    assert bool(jnp.isfinite(loss))
    print("KERNEL_OK")
</pallas_src>

<mosaic_0001>
module attributes {stable_mosaic.version = 11 : i64} {
  func.func @_sa_mlp_pool_kernel(%arg0: memref<384x8xf32, #tpu.memory_space<vmem>>, %arg1: memref<8x64xbf16, #tpu.memory_space<vmem>>, %arg2: memref<1x64xf32, #tpu.memory_space<vmem>>, %arg3: memref<1x64xf32, #tpu.memory_space<vmem>>, %arg4: memref<64x64xbf16, #tpu.memory_space<vmem>>, %arg5: memref<1x64xf32, #tpu.memory_space<vmem>>, %arg6: memref<1x64xf32, #tpu.memory_space<vmem>>, %arg7: memref<64x128xbf16, #tpu.memory_space<vmem>>, %arg8: memref<1x128xf32, #tpu.memory_space<vmem>>, %arg9: memref<1x128xf32, #tpu.memory_space<vmem>>, %arg10: memref<96x128xf32, #tpu.memory_space<vmem>>) attributes {dimension_semantics = [], scalar_prefetch = 0 : i64, scratch_operands = 0 : i64, tpu.core_type = #tpu.core_type<tc>} {
    %c0 = arith.constant 0 : index
    %c0_0 = arith.constant 0 : index
    %0 = vector.load %arg0[%c0, %c0_0] : memref<384x8xf32, #tpu.memory_space<vmem>>, vector<384x8xf32>
    %1 = arith.truncf %0 : vector<384x8xf32> to vector<384x8xbf16>
    %c0_1 = arith.constant 0 : index
    %c0_2 = arith.constant 0 : index
    %2 = vector.load %arg1[%c0_1, %c0_2] : memref<8x64xbf16, #tpu.memory_space<vmem>>, vector<8x64xbf16>
    %cst = arith.constant dense<0.000000e+00> : vector<384x64xf32>
    %3 = tpu.matmul %1, %2, %cst {dimension_numbers = #tpu.dot_dimension_numbers<[1], [0], [0], [1], [0, 0, 1, 1], [], []>} : vector<384x8xbf16>, vector<8x64xbf16>, vector<384x64xf32> -> vector<384x64xf32>
    %c0_3 = arith.constant 0 : index
    %c0_4 = arith.constant 0 : index
    %4 = vector.load %arg2[%c0_3, %c0_4] : memref<1x64xf32, #tpu.memory_space<vmem>>, vector<1x64xf32>
    %5 = vector.broadcast %4 : vector<1x64xf32> to vector<384x64xf32>
    %6 = arith.mulf %3, %5 : vector<384x64xf32>
    %c0_5 = arith.constant 0 : index
    %c0_6 = arith.constant 0 : index
    %7 = vector.load %arg3[%c0_5, %c0_6] : memref<1x64xf32, #tpu.memory_space<vmem>>, vector<1x64xf32>
    %8 = vector.broadcast %7 : vector<1x64xf32> to vector<384x64xf32>
    %9 = arith.addf %6, %8 : vector<384x64xf32>
    %cst_7 = arith.constant 0.000000e+00 : f32
    %10 = vector.broadcast %cst_7 : f32 to vector<384x64xf32>
    %11 = arith.maximumf %9, %10 : vector<384x64xf32>
    %12 = arith.truncf %11 : vector<384x64xf32> to vector<384x64xbf16>
    %c0_8 = arith.constant 0 : index
    %c0_9 = arith.constant 0 : index
    %13 = vector.load %arg4[%c0_8, %c0_9] : memref<64x64xbf16, #tpu.memory_space<vmem>>, vector<64x64xbf16>
    %cst_10 = arith.constant dense<0.000000e+00> : vector<384x64xf32>
    %14 = tpu.matmul %12, %13, %cst_10 {dimension_numbers = #tpu.dot_dimension_numbers<[1], [0], [0], [1], [0, 0, 1, 1], [], []>} : vector<384x64xbf16>, vector<64x64xbf16>, vector<384x64xf32> -> vector<384x64xf32>
    %c0_11 = arith.constant 0 : index
    %c0_12 = arith.constant 0 : index
    %15 = vector.load %arg5[%c0_11, %c0_12] : memref<1x64xf32, #tpu.memory_space<vmem>>, vector<1x64xf32>
    %16 = vector.broadcast %15 : vector<1x64xf32> to vector<384x64xf32>
    %17 = arith.mulf %14, %16 : vector<384x64xf32>
    %c0_13 = arith.constant 0 : index
    %c0_14 = arith.constant 0 : index
    %18 = vector.load %arg6[%c0_13, %c0_14] : memref<1x64xf32, #tpu.memory_space<vmem>>, vector<1x64xf32>
    %19 = vector.broadcast %18 : vector<1x64xf32> to vector<384x64xf32>
    %20 = arith.addf %17, %19 : vector<384x64xf32>
    %cst_15 = arith.constant 0.000000e+00 : f32
    %21 = vector.broadcast %cst_15 : f32 to vector<384x64xf32>
    %22 = arith.maximumf %20, %21 : vector<384x64xf32>
    %23 = arith.truncf %22 : vector<384x64xf32> to vector<384x64xbf16>
    %c0_16 = arith.constant 0 : index
    %c0_17 = arith.constant 0 : index
    %24 = vector.load %arg7[%c0_16, %c0_17] : memref<64x128xbf16, #tpu.memory_space<vmem>>, vector<64x128xbf16>
    %cst_18 = arith.constant dense<0.000000e+00> : vector<384x128xf32>
    %25 = tpu.matmul %23, %24, %cst_18 {dimension_numbers = #tpu.dot_dimension_numbers<[1], [0], [0], [1], [0, 0, 1, 1], [], []>} : vector<384x64xbf16>, vector<64x128xbf16>, vector<384x128xf32> -> vector<384x128xf32>
    %c0_19 = arith.constant 0 : index
    %c0_20 = arith.constant 0 : index
    %26 = vector.load %arg8[%c0_19, %c0_20] : memref<1x128xf32, #tpu.memory_space<vmem>>, vector<1x128xf32>
    %27 = vector.broadcast %26 : vector<1x128xf32> to vector<384x128xf32>
    %28 = arith.mulf %25, %27 : vector<384x128xf32>
    %c0_21 = arith.constant 0 : index
    %c0_22 = arith.constant 0 : index
    %29 = vector.load %arg9[%c0_21, %c0_22] : memref<1x128xf32, #tpu.memory_space<vmem>>, vector<1x128xf32>
    %30 = vector.broadcast %29 : vector<1x128xf32> to vector<384x128xf32>
    %31 = arith.addf %28, %30 : vector<384x128xf32>
    %cst_23 = arith.constant 0.000000e+00 : f32
    %32 = vector.broadcast %cst_23 : f32 to vector<384x128xf32>
    %33 = arith.maximumf %31, %32 : vector<384x128xf32>
    %34 = vector.extract_strided_slice %33 {offsets = [0, 0], sizes = [96, 128], strides = [1, 1]} : vector<384x128xf32> to vector<96x128xf32>
    %35 = vector.extract_strided_slice %33 {offsets = [96, 0], sizes = [96, 128], strides = [1, 1]} : vector<384x128xf32> to vector<96x128xf32>
    %36 = arith.maximumf %34, %35 : vector<96x128xf32>
    %37 = vector.extract_strided_slice %33 {offsets = [192, 0], sizes = [96, 128], strides = [1, 1]} : vector<384x128xf32> to vector<96x128xf32>
    %38 = arith.maximumf %36, %37 : vector<96x128xf32>
    %39 = vector.extract_strided_slice %33 {offsets = [288, 0], sizes = [96, 128], strides = [1, 1]} : vector<384x128xf32> to vector<96x128xf32>
    %40 = arith.maximumf %38, %39 : vector<96x128xf32>
    %c0_24 = arith.constant 0 : index
    %c0_25 = arith.constant 0 : index
    %41 = vector.load %arg10[%c0_24, %c0_25] : memref<96x128xf32, #tpu.memory_space<vmem>>, vector<96x128xf32>
    tpu.vector_store %arg10[%c0_24, %c0_25], %40 {strides = array<i32>} : memref<96x128xf32, #tpu.memory_space<vmem>>, vector<96x128xf32>,
    return
  }
}

module attributes {stable_mosaic.version = 11 : i64} {
  func.func @_sa_mlp_pool_kernel(%arg0: memref<48x136xf32, #tpu.memory_space<vmem>>, %arg1: memref<136x128xbf16, #tpu.memory_space<vmem>>, %arg2: memref<1x128xf32, #tpu.memory_space<vmem>>, %arg3: memref<1x128xf32, #tpu.memory_space<vmem>>, %arg4: memref<128x128xbf16, #tpu.memory_space<vmem>>, %arg5: memref<1x128xf32, #tpu.memory_space<vmem>>, %arg6: memref<1x128xf32, #tpu.memory_space<vmem>>, %arg7: memref<128x256xbf16, #tpu.memory_space<vmem>>, %arg8: memref<1x256xf32, #tpu.memory_space<vmem>>, %arg9: memref<1x256xf32, #tpu.memory_space<vmem>>, %arg10: memref<24x256xf32, #tpu.memory_space<vmem>>) attributes {dimension_semantics = [], scalar_prefetch = 0 : i64, scratch_operands = 0 : i64, tpu.core_type = #tpu.core_type<tc>} {
    %c0 = arith.constant 0 : index
    %c0_0 = arith.constant 0 : index
    %0 = vector.load %arg0[%c0, %c0_0] : memref<48x136xf32, #tpu.memory_space<vmem>>, vector<48x136xf32>
    %1 = arith.truncf %0 : vector<48x136xf32> to vector<48x136xbf16>
    %c0_1 = arith.constant 0 : index
    %c0_2 = arith.constant 0 : index
    %2 = vector.load %arg1[%c0_1, %c0_2] : memref<136x128xbf16, #tpu.memory_space<vmem>>, vector<136x128xbf16>
    %cst = arith.constant dense<0.000000e+00> : vector<48x128xf32>
    %3 = tpu.matmul %1, %2, %cst {dimension_numbers = #tpu.dot_dimension_numbers<[1], [0], [0], [1], [0, 0, 1, 1], [], []>} : vector<48x136xbf16>, vector<136x128xbf16>, vector<48x128xf32> -> vector<48x128xf32>
    %c0_3 = arith.constant 0 : index
    %c0_4 = arith.constant 0 : index
    %4 = vector.load %arg2[%c0_3, %c0_4] : memref<1x128xf32, #tpu.memory_space<vmem>>, vector<1x128xf32>
    %5 = vector.broadcast %4 : vector<1x128xf32> to vector<48x128xf32>
    %6 = arith.mulf %3, %5 : vector<48x128xf32>
    %c0_5 = arith.constant 0 : index
    %c0_6 = arith.constant 0 : index
    %7 = vector.load %arg3[%c0_5, %c0_6] : memref<1x128xf32, #tpu.memory_space<vmem>>, vector<1x128xf32>
    %8 = vector.broadcast %7 : vector<1x128xf32> to vector<48x128xf32>
    %9 = arith.addf %6, %8 : vector<48x128xf32>
    %cst_7 = arith.constant 0.000000e+00 : f32
    %10 = vector.broadcast %cst_7 : f32 to vector<48x128xf32>
    %11 = arith.maximumf %9, %10 : vector<48x128xf32>
    %12 = arith.truncf %11 : vector<48x128xf32> to vector<48x128xbf16>
    %c0_8 = arith.constant 0 : index
    %c0_9 = arith.constant 0 : index
    %13 = vector.load %arg4[%c0_8, %c0_9] : memref<128x128xbf16, #tpu.memory_space<vmem>>, vector<128x128xbf16>
    %cst_10 = arith.constant dense<0.000000e+00> : vector<48x128xf32>
    %14 = tpu.matmul %12, %13, %cst_10 {dimension_numbers = #tpu.dot_dimension_numbers<[1], [0], [0], [1], [0, 0, 1, 1], [], []>} : vector<48x128xbf16>, vector<128x128xbf16>, vector<48x128xf32> -> vector<48x128xf32>
    %c0_11 = arith.constant 0 : index
    %c0_12 = arith.constant 0 : index
    %15 = vector.load %arg5[%c0_11, %c0_12] : memref<1x128xf32, #tpu.memory_space<vmem>>, vector<1x128xf32>
    %16 = vector.broadcast %15 : vector<1x128xf32> to vector<48x128xf32>
    %17 = arith.mulf %14, %16 : vector<48x128xf32>
    %c0_13 = arith.constant 0 : index
    %c0_14 = arith.constant 0 : index
    %18 = vector.load %arg6[%c0_13, %c0_14] : memref<1x128xf32, #tpu.memory_space<vmem>>, vector<1x128xf32>
    %19 = vector.broadcast %18 : vector<1x128xf32> to vector<48x128xf32>
    %20 = arith.addf %17, %19 : vector<48x128xf32>
    %cst_15 = arith.constant 0.000000e+00 : f32
    %21 = vector.broadcast %cst_15 : f32 to vector<48x128xf32>
    %22 = arith.maximumf %20, %21 : vector<48x128xf32>
    %23 = arith.truncf %22 : vector<48x128xf32> to vector<48x128xbf16>
    %c0_16 = arith.constant 0 : index
    %c0_17 = arith.constant 0 : index
    %24 = vector.load %arg7[%c0_16, %c0_17] : memref<128x256xbf16, #tpu.memory_space<vmem>>, vector<128x256xbf16>
    %cst_18 = arith.constant dense<0.000000e+00> : vector<48x256xf32>
    %25 = tpu.matmul %23, %24, %cst_18 {dimension_numbers = #tpu.dot_dimension_numbers<[1], [0], [0], [1], [0, 0, 1, 1], [], []>} : vector<48x128xbf16>, vector<128x256xbf16>, vector<48x256xf32> -> vector<48x256xf32>
    %c0_19 = arith.constant 0 : index
    %c0_20 = arith.constant 0 : index
    %26 = vector.load %arg8[%c0_19, %c0_20] : memref<1x256xf32, #tpu.memory_space<vmem>>, vector<1x256xf32>
    %27 = vector.broadcast %26 : vector<1x256xf32> to vector<48x256xf32>
    %28 = arith.mulf %25, %27 : vector<48x256xf32>
    %c0_21 = arith.constant 0 : index
    %c0_22 = arith.constant 0 : index
    %29 = vector.load %arg9[%c0_21, %c0_22] : memref<1x256xf32, #tpu.memory_space<vmem>>, vector<1x256xf32>
    %30 = vector.broadcast %29 : vector<1x256xf32> to vector<48x256xf32>
    %31 = arith.addf %28, %30 : vector<48x256xf32>
    %cst_23 = arith.constant 0.000000e+00 : f32
    %32 = vector.broadcast %cst_23 : f32 to vector<48x256xf32>
    %33 = arith.maximumf %31, %32 : vector<48x256xf32>
    %34 = vector.extract_strided_slice %33 {offsets = [0, 0], sizes = [24, 256], strides = [1, 1]} : vector<48x256xf32> to vector<24x256xf32>
    %35 = vector.extract_strided_slice %33 {offsets = [24, 0], sizes = [24, 256], strides = [1, 1]} : vector<48x256xf32> to vector<24x256xf32>
    %36 = arith.maximumf %34, %35 : vector<24x256xf32>
    %c0_24 = arith.constant 0 : index
    %c0_25 = arith.constant 0 : index
    %37 = vector.load %arg10[%c0_24, %c0_25] : memref<24x256xf32, #tpu.memory_space<vmem>>, vector<24x256xf32>
    tpu.vector_store %arg10[%c0_24, %c0_25], %36 {strides = array<i32>} : memref<24x256xf32, #tpu.memory_space<vmem>>, vector<24x256xf32>,
    return
  }
}

module attributes {stable_mosaic.version = 11 : i64} {
  func.func @_sa_mlp_pool_kernel(%arg0: memref<32x264xf32, #tpu.memory_space<vmem>>, %arg1: memref<264x256xbf16, #tpu.memory_space<vmem>>, %arg2: memref<1x256xf32, #tpu.memory_space<vmem>>, %arg3: memref<1x256xf32, #tpu.memory_space<vmem>>, %arg4: memref<256x512xbf16, #tpu.memory_space<vmem>>, %arg5: memref<1x512xf32, #tpu.memory_space<vmem>>, %arg6: memref<1x512xf32, #tpu.memory_space<vmem>>, %arg7: memref<512x1024xbf16, #tpu.memory_space<vmem>>, %arg8: memref<1x1024xf32, #tpu.memory_space<vmem>>, %arg9: memref<1x1024xf32, #tpu.memory_space<vmem>>, %arg10: memref<1024x512xbf16, #tpu.memory_space<vmem>>, %arg11: memref<1x512xf32, #tpu.memory_space<vmem>>, %arg12: memref<1x512xf32, #tpu.memory_space<vmem>>, %arg13: memref<512x256xbf16, #tpu.memory_space<vmem>>, %arg14: memref<1x256xf32, #tpu.memory_space<vmem>>, %arg15: memref<1x256xf32, #tpu.memory_space<vmem>>, %arg16: memref<8x256xf32, #tpu.memory_space<vmem>>) attributes {dimension_semantics = [], scalar_prefetch = 0 : i64, scratch_operands = 0 : i64, tpu.core_type = #tpu.core_type<tc>} {
    %c0 = arith.constant 0 : index
    %c0_0 = arith.constant 0 : index
    %0 = vector.load %arg0[%c0, %c0_0] : memref<32x264xf32, #tpu.memory_space<vmem>>, vector<32x264xf32>
    %1 = arith.truncf %0 : vector<32x264xf32> to vector<32x264xbf16>
    %c0_1 = arith.constant 0 : index
    %c0_2 = arith.constant 0 : index
    %2 = vector.load %arg1[%c0_1, %c0_2] : memref<264x256xbf16, #tpu.memory_space<vmem>>, vector<264x256xbf16>
    %cst = arith.constant dense<0.000000e+00> : vector<32x256xf32>
    %3 = tpu.matmul %1, %2, %cst {dimension_numbers = #tpu.dot_dimension_numbers<[1], [0], [0], [1], [0, 0, 1, 1], [], []>} : vector<32x264xbf16>, vector<264x256xbf16>, vector<32x256xf32> -> vector<32x256xf32>
    %c0_3 = arith.constant 0 : index
    %c0_4 = arith.constant 0 : index
    %4 = vector.load %arg2[%c0_3, %c0_4] : memref<1x256xf32, #tpu.memory_space<vmem>>, vector<1x256xf32>
    %5 = vector.broadcast %4 : vector<1x256xf32> to vector<32x256xf32>
    %6 = arith.mulf %3, %5 : vector<32x256xf32>
    %c0_5 = arith.constant 0 : index
    %c0_6 = arith.constant 0 : index
    %7 = vector.load %arg3[%c0_5, %c0_6] : memref<1x256xf32, #tpu.memory_space<vmem>>, vector<1x256xf32>
    %8 = vector.broadcast %7 : vector<1x256xf32> to vector<32x256xf32>
    %9 = arith.addf %6, %8 : vector<32x256xf32>
    %cst_7 = arith.constant 0.000000e+00 : f32
    %10 = vector.broadcast %cst_7 : f32 to vector<32x256xf32>
    %11 = arith.maximumf %9, %10 : vector<32x256xf32>
    %12 = arith.truncf %11 : vector<32x256xf32> to vector<32x256xbf16>
    %c0_8 = arith.constant 0 : index
    %c0_9 = arith.constant 0 : index
    %13 = vector.load %arg4[%c0_8, %c0_9] : memref<256x512xbf16, #tpu.memory_space<vmem>>, vector<256x512xbf16>
    %cst_10 = arith.constant dense<0.000000e+00> : vector<32x512xf32>
    %14 = tpu.matmul %12, %13, %cst_10 {dimension_numbers = #tpu.dot_dimension_numbers<[1], [0], [0], [1], [0, 0, 1, 1], [], []>} : vector<32x256xbf16>, vector<256x512xbf16>, vector<32x512xf32> -> vector<32x512xf32>
    %c0_11 = arith.constant 0 : index
    %c0_12 = arith.constant 0 : index
    %15 = vector.load %arg5[%c0_11, %c0_12] : memref<1x512xf32, #tpu.memory_space<vmem>>, vector<1x512xf32>
    %16 = vector.broadcast %15 : vector<1x512xf32> to vector<32x512xf32>
    %17 = arith.mulf %14, %16 : vector<32x512xf32>
    %c0_13 = arith.constant 0 : index
    %c0_14 = arith.constant 0 : index
    %18 = vector.load %arg6[%c0_13, %c0_14] : memref<1x512xf32, #tpu.memory_space<vmem>>, vector<1x512xf32>
    %19 = vector.broadcast %18 : vector<1x512xf32> to vector<32x512xf32>
    %20 = arith.addf %17, %19 : vector<32x512xf32>
    %cst_15 = arith.constant 0.000000e+00 : f32
    %21 = vector.broadcast %cst_15 : f32 to vector<32x512xf32>
    %22 = arith.maximumf %20, %21 : vector<32x512xf32>
    %23 = arith.truncf %22 : vector<32x512xf32> to vector<32x512xbf16>
    %c0_16 = arith.constant 0 : index
    %c0_17 = arith.constant 0 : index
    %24 = vector.load %arg7[%c0_16, %c0_17] : memref<512x1024xbf16, #tpu.memory_space<vmem>>, vector<512x1024xbf16>
    %cst_18 = arith.constant dense<0.000000e+00> : vector<32x1024xf32>
    %25 = tpu.matmul %23, %24, %cst_18 {dimension_numbers = #tpu.dot_dimension_numbers<[1], [0], [0], [1], [0, 0, 1, 1], [], []>} : vector<32x512xbf16>, vector<512x1024xbf16>, vector<32x1024xf32> -> vector<32x1024xf32>
    %c0_19 = arith.constant 0 : index
    %c0_20 = arith.constant 0 : index
    %26 = vector.load %arg8[%c0_19, %c0_20] : memref<1x1024xf32, #tpu.memory_space<vmem>>, vector<1x1024xf32>
    %27 = vector.broadcast %26 : vector<1x1024xf32> to vector<32x1024xf32>
    %28 = arith.mulf %25, %27 : vector<32x1024xf32>
    %c0_21 = arith.constant 0 : index
    %c0_22 = arith.constant 0 : index
    %29 = vector.load %arg9[%c0_21, %c0_22] : memref<1x1024xf32, #tpu.memory_space<vmem>>, vector<1x1024xf32>
    %30 = vector.broadcast %29 : vector<1x1024xf32> to vector<32x1024xf32>
    %31 = arith.addf %28, %30 : vector<32x1024xf32>
    %cst_23 = arith.constant 0.000000e+00 : f32
    %32 = vector.broadcast %cst_23 : f32 to vector<32x1024xf32>
    %33 = arith.maximumf %31, %32 : vector<32x1024xf32>
    %34 = vector.extract_strided_slice %33 {offsets = [0, 0], sizes = [8, 1024], strides = [1, 1]} : vector<32x1024xf32> to vector<8x1024xf32>
    %35 = vector.extract_strided_slice %33 {offsets = [8, 0], sizes = [8, 1024], strides = [1, 1]} : vector<32x1024xf32> to vector<8x1024xf32>
    %36 = arith.maximumf %34, %35 : vector<8x1024xf32>
    %37 = vector.extract_strided_slice %33 {offsets = [16, 0], sizes = [8, 1024], strides = [1, 1]} : vector<32x1024xf32> to vector<8x1024xf32>
    %38 = arith.maximumf %36, %37 : vector<8x1024xf32>
    %39 = vector.extract_strided_slice %33 {offsets = [24, 0], sizes = [8, 1024], strides = [1, 1]} : vector<32x1024xf32> to vector<8x1024xf32>
    %40 = arith.maximumf %38, %39 : vector<8x1024xf32>
    %41 = arith.truncf %40 : vector<8x1024xf32> to vector<8x1024xbf16>
    %c0_24 = arith.constant 0 : index
    %c0_25 = arith.constant 0 : index
    %42 = vector.load %arg10[%c0_24, %c0_25] : memref<1024x512xbf16, #tpu.memory_space<vmem>>, vector<1024x512xbf16>
    %cst_26 = arith.constant dense<0.000000e+00> : vector<8x512xf32>
    %43 = tpu.matmul %41, %42, %cst_26 {dimension_numbers = #tpu.dot_dimension_numbers<[1], [0], [0], [1], [0, 0, 1, 1], [], []>} : vector<8x1024xbf16>, vector<1024x512xbf16>, vector<8x512xf32> -> vector<8x512xf32>
    %c0_27 = arith.constant 0 : index
    %c0_28 = arith.constant 0 : index
    %44 = vector.load %arg11[%c0_27, %c0_28] : memref<1x512xf32, #tpu.memory_space<vmem>>, vector<1x512xf32>
    %45 = vector.broadcast %44 : vector<1x512xf32> to vector<8x512xf32>
    %46 = arith.mulf %43, %45 : vector<8x512xf32>
    %c0_29 = arith.constant 0 : index
    %c0_30 = arith.constant 0 : index
    %47 = vector.load %arg12[%c0_29, %c0_30] : memref<1x512xf32, #tpu.memory_space<vmem>>, vector<1x512xf32>
    %48 = vector.broadcast %47 : vector<1x512xf32> to vector<8x512xf32>
    %49 = arith.addf %46, %48 : vector<8x512xf32>
    %cst_31 = arith.constant 0.000000e+00 : f32
    %50 = vector.broadcast %cst_31 : f32 to vector<8x512xf32>
    %51 = arith.maximumf %49, %50 : vector<8x512xf32>
    %52 = arith.truncf %51 : vector<8x512xf32> to vector<8x512xbf16>
    %c0_32 = arith.constant 0 : index
    %c0_33 = arith.constant 0 : index
    %53 = vector.load %arg13[%c0_32, %c0_33] : memref<512x256xbf16, #tpu.memory_space<vmem>>, vector<512x256xbf16>
    %cst_34 = arith.constant dense<0.000000e+00> : vector<8x256xf32>
    %54 = tpu.matmul %52, %53, %cst_34 {dimension_numbers = #tpu.dot_dimension_numbers<[1], [0], [0], [1], [0, 0, 1, 1], [], []>} : vector<8x512xbf16>, vector<512x256xbf16>, vector<8x256xf32> -> vector<8x256xf32>
    %c0_35 = arith.constant 0 : index
    %c0_36 = arith.constant 0 : index
    %55 = vector.load %arg14[%c0_35, %c0_36] : memref<1x256xf32, #tpu.memory_space<vmem>>, vector<1x256xf32>
    %56 = vector.broadcast %55 : vector<1x256xf32> to vector<8x256xf32>
    %57 = arith.mulf %54, %56 : vector<8x256xf32>
    %c0_37 = arith.constant 0 : index
    %c0_38 = arith.constant 0 : index
    %58 = vector.load %arg15[%c0_37, %c0_38] : memref<1x256xf32, #tpu.memory_space<vmem>>, vector<1x256xf32>
    %59 = vector.broadcast %58 : vector<1x256xf32> to vector<8x256xf32>
    %60 = arith.addf %57, %59 : vector<8x256xf32>
    %cst_39 = arith.constant 0.000000e+00 : f32
    %61 = vector.broadcast %cst_39 : f32 to vector<8x256xf32>
    %62 = arith.maximumf %60, %61 : vector<8x256xf32>
    %c0_40 = arith.constant 0 : index
    %c0_41 = arith.constant 0 : index
    %63 = vector.load %arg16[%c0_40, %c0_41] : memref<8x256xf32, #tpu.memory_space<vmem>>, vector<8x256xf32>
    tpu.vector_store %arg16[%c0_40, %c0_41], %62 {strides = array<i32>} : memref<8x256xf32, #tpu.memory_space<vmem>>, vector<8x256xf32>,
    return
  }
}

module attributes {stable_mosaic.version = 11 : i64} {
  func.func @_bilstm_head_kernel(%arg0: memref<24x256xf32, #tpu.memory_space<vmem>>, %arg1: memref<256x256xbf16, #tpu.memory_space<vmem>>, %arg2: memref<32x128xbf16, #tpu.memory_space<vmem>>, %arg3: memref<32x128xbf16, #tpu.memory_space<vmem>>, %arg4: memref<1x128xf32, #tpu.memory_space<vmem>>, %arg5: memref<1x128xf32, #tpu.memory_space<vmem>>, %arg6: memref<64x256xbf16, #tpu.memory_space<vmem>>, %arg7: memref<32x128xbf16, #tpu.memory_space<vmem>>, %arg8: memref<32x128xbf16, #tpu.memory_space<vmem>>, %arg9: memref<1x128xf32, #tpu.memory_space<vmem>>, %arg10: memref<1x128xf32, #tpu.memory_space<vmem>>, %arg11: memref<64x512xbf16, #tpu.memory_space<vmem>>, %arg12: memref<1x512xf32, #tpu.memory_space<vmem>>, %arg13: memref<1x512xf32, #tpu.memory_space<vmem>>, %arg14: memref<512x256xbf16, #tpu.memory_space<vmem>>, %arg15: memref<1x256xf32, #tpu.memory_space<vmem>>, %arg16: memref<1x256xf32, #tpu.memory_space<vmem>>, %arg17: memref<256x128xbf16, #tpu.memory_space<vmem>>, %arg18: memref<1x128xf32, #tpu.memory_space<vmem>>, %arg19: memref<8x128xf32, #tpu.memory_space<vmem>>, %arg20: memref<24x64xf32, #tpu.memory_space<vmem>>, %arg21: memref<8x64xf32, #tpu.memory_space<vmem>>) attributes {dimension_semantics = [], scalar_prefetch = 0 : i64, scratch_operands = 2 : i64, tpu.core_type = #tpu.core_type<tc>} {
    %cst = arith.constant 0.000000e+00 : f32
    %0 = vector.broadcast %cst : f32 to vector<8x32xf32>
    %c0 = arith.constant 0 : index
    %c0_0 = arith.constant 0 : index
    %1 = vector.load %arg0[%c0, %c0_0] : memref<24x256xf32, #tpu.memory_space<vmem>>, vector<24x256xf32>
    %2 = arith.truncf %1 : vector<24x256xf32> to vector<24x256xbf16>
    %c0_1 = arith.constant 0 : index
    %c0_2 = arith.constant 0 : index
    %3 = vector.load %arg1[%c0_1, %c0_2] : memref<256x256xbf16, #tpu.memory_space<vmem>>, vector<256x256xbf16>
    %cst_3 = arith.constant dense<0.000000e+00> : vector<24x256xf32>
    %4 = tpu.matmul %2, %3, %cst_3 {dimension_numbers = #tpu.dot_dimension_numbers<[1], [0], [0], [1], [0, 0, 1, 1], [], []>} : vector<24x256xbf16>, vector<256x256xbf16>, vector<24x256xf32> -> vector<24x256xf32>
    %5 = vector.extract_strided_slice %4 {offsets = [0, 0], sizes = [8, 128], strides = [1, 1]} : vector<24x256xf32> to vector<8x128xf32>
    %6 = vector.extract_strided_slice %4 {offsets = [16, 128], sizes = [8, 128], strides = [1, 1]} : vector<24x256xf32> to vector<8x128xf32>
    %7 = arith.truncf %0 : vector<8x32xf32> to vector<8x32xbf16>
    %c0_4 = arith.constant 0 : index
    %c0_5 = arith.constant 0 : index
    %8 = vector.load %arg2[%c0_4, %c0_5] : memref<32x128xbf16, #tpu.memory_space<vmem>>, vector<32x128xbf16>
    %cst_6 = arith.constant dense<0.000000e+00> : vector<8x128xf32>
    %9 = tpu.matmul %7, %8, %cst_6 {dimension_numbers = #tpu.dot_dimension_numbers<[1], [0], [0], [1], [0, 0, 1, 1], [], []>} : vector<8x32xbf16>, vector<32x128xbf16>, vector<8x128xf32> -> vector<8x128xf32>
    %10 = arith.truncf %0 : vector<8x32xf32> to vector<8x32xbf16>
    %c0_7 = arith.constant 0 : index
    %c0_8 = arith.constant 0 : index
    %11 = vector.load %arg3[%c0_7, %c0_8] : memref<32x128xbf16, #tpu.memory_space<vmem>>, vector<32x128xbf16>
    %cst_9 = arith.constant dense<0.000000e+00> : vector<8x128xf32>
    %12 = tpu.matmul %10, %11, %cst_9 {dimension_numbers = #tpu.dot_dimension_numbers<[1], [0], [0], [1], [0, 0, 1, 1], [], []>} : vector<8x32xbf16>, vector<32x128xbf16>, vector<8x128xf32> -> vector<8x128xf32>
    %13 = arith.addf %5, %9 : vector<8x128xf32>
    %c0_10 = arith.constant 0 : index
    %c0_11 = arith.constant 0 : index
    %14 = vector.load %arg4[%c0_10, %c0_11] : memref<1x128xf32, #tpu.memory_space<vmem>>, vector<1x128xf32>
    %15 = vector.broadcast %14 : vector<1x128xf32> to vector<8x128xf32>
    %16 = arith.addf %13, %15 : vector<8x128xf32>
    %17 = vector.extract_strided_slice %16 {offsets = [0, 0], sizes = [8, 32], strides = [1, 1]} : vector<8x128xf32> to vector<8x32xf32>
    %cst_12 = arith.constant 0.000000e+00 : f32
    %18 = vector.broadcast %cst_12 : f32 to vector<8x32xf32>
    %19 = arith.subf %18, %17 : vector<8x32xf32>
    %20 = math.exp %19 : vector<8x32xf32>
    %cst_13 = arith.constant 1.000000e+00 : f32
    %21 = vector.broadcast %cst_13 : f32 to vector<8x32xf32>
    %22 = arith.addf %21, %20 : vector<8x32xf32>
    %cst_14 = arith.constant 1.000000e+00 : f32
    %23 = vector.broadcast %cst_14 : f32 to vector<8x32xf32>
    %24 = arith.divf %23, %22 : vector<8x32xf32>
    %25 = vector.extract_strided_slice %16 {offsets = [0, 32], sizes = [8, 32], strides = [1, 1]} : vector<8x128xf32> to vector<8x32xf32>
    %cst_15 = arith.constant 0.000000e+00 : f32
    %26 = vector.broadcast %cst_15 : f32 to vector<8x32xf32>
    %27 = arith.subf %26, %25 : vector<8x32xf32>
    %28 = math.exp %27 : vector<8x32xf32>
    %cst_16 = arith.constant 1.000000e+00 : f32
    %29 = vector.broadcast %cst_16 : f32 to vector<8x32xf32>
    %30 = arith.addf %29, %28 : vector<8x32xf32>
    %cst_17 = arith.constant 1.000000e+00 : f32
    %31 = vector.broadcast %cst_17 : f32 to vector<8x32xf32>
    %32 = arith.divf %31, %30 : vector<8x32xf32>
    %33 = vector.extract_strided_slice %16 {offsets = [0, 64], sizes = [8, 32], strides = [1, 1]} : vector<8x128xf32> to vector<8x32xf32>
    %34 = math.tanh %33 : vector<8x32xf32>
    %35 = vector.extract_strided_slice %16 {offsets = [0, 96], sizes = [8, 32], strides = [1, 1]} : vector<8x128xf32> to vector<8x32xf32>
    %cst_18 = arith.constant 0.000000e+00 : f32
    %36 = vector.broadcast %cst_18 : f32 to vector<8x32xf32>
    %37 = arith.subf %36, %35 : vector<8x32xf32>
    %38 = math.exp %37 : vector<8x32xf32>
    %cst_19 = arith.constant 1.000000e+00 : f32
    %39 = vector.broadcast %cst_19 : f32 to vector<8x32xf32>
    %40 = arith.addf %39, %38 : vector<8x32xf32>
    %cst_20 = arith.constant 1.000000e+00 : f32
    %41 = vector.broadcast %cst_20 : f32 to vector<8x32xf32>
    %42 = arith.divf %41, %40 : vector<8x32xf32>
    %43 = arith.mulf %32, %0 : vector<8x32xf32>
    %44 = arith.mulf %24, %34 : vector<8x32xf32>
    %45 = arith.addf %43, %44 : vector<8x32xf32>
    %46 = math.tanh %45 : vector<8x32xf32>
    %47 = arith.mulf %42, %46 : vector<8x32xf32>
    %48 = arith.addf %6, %12 : vector<8x128xf32>
    %c0_21 = arith.constant 0 : index
    %c0_22 = arith.constant 0 : index
    %49 = vector.load %arg5[%c0_21, %c0_22] : memref<1x128xf32, #tpu.memory_space<vmem>>, vector<1x128xf32>
    %50 = vector.broadcast %49 : vector<1x128xf32> to vector<8x128xf32>
    %51 = arith.addf %48, %50 : vector<8x128xf32>
    %52 = vector.extract_strided_slice %51 {offsets = [0, 0], sizes = [8, 32], strides = [1, 1]} : vector<8x128xf32> to vector<8x32xf32>
    %cst_23 = arith.constant 0.000000e+00 : f32
    %53 = vector.broadcast %cst_23 : f32 to vector<8x32xf32>
    %54 = arith.subf %53, %52 : vector<8x32xf32>
    %55 = math.exp %54 : vector<8x32xf32>
    %cst_24 = arith.constant 1.000000e+00 : f32
    %56 = vector.broadcast %cst_24 : f32 to vector<8x32xf32>
    %57 = arith.addf %56, %55 : vector<8x32xf32>
    %cst_25 = arith.constant 1.000000e+00 : f32
    %58 = vector.broadcast %cst_25 : f32 to vector<8x32xf32>
    %59 = arith.divf %58, %57 : vector<8x32xf32>
    %60 = vector.extract_strided_slice %51 {offsets = [0, 32], sizes = [8, 32], strides = [1, 1]} : vector<8x128xf32> to vector<8x32xf32>
    %cst_26 = arith.constant 0.000000e+00 : f32
    %61 = vector.broadcast %cst_26 : f32 to vector<8x32xf32>
    %62 = arith.subf %61, %60 : vector<8x32xf32>
    %63 = math.exp %62 : vector<8x32xf32>
    %cst_27 = arith.constant 1.000000e+00 : f32
    %64 = vector.broadcast %cst_27 : f32 to vector<8x32xf32>
    %65 = arith.addf %64, %63 : vector<8x32xf32>
    %cst_28 = arith.constant 1.000000e+00 : f32
    %66 = vector.broadcast %cst_28 : f32 to vector<8x32xf32>
    %67 = arith.divf %66, %65 : vector<8x32xf32>
    %68 = vector.extract_strided_slice %51 {offsets = [0, 64], sizes = [8, 32], strides = [1, 1]} : vector<8x128xf32> to vector<8x32xf32>
    %69 = math.tanh %68 : vector<8x32xf32>
    %70 = vector.extract_strided_slice %51 {offsets = [0, 96], sizes = [8, 32], strides = [1, 1]} : vector<8x128xf32> to vector<8x32xf32>
    %cst_29 = arith.constant 0.000000e+00 : f32
    %71 = vector.broadcast %cst_29 : f32 to vector<8x32xf32>
    %72 = arith.subf %71, %70 : vector<8x32xf32>
    %73 = math.exp %72 : vector<8x32xf32>
    %cst_30 = arith.constant 1.000000e+00 : f32
    %74 = vector.broadcast %cst_30 : f32 to vector<8x32xf32>
    %75 = arith.addf %74, %73 : vector<8x32xf32>
    %cst_31 = arith.constant 1.000000e+00 : f32
    %76 = vector.broadcast %cst_31 : f32 to vector<8x32xf32>
    %77 = arith.divf %76, %75 : vector<8x32xf32>
    %78 = arith.mulf %67, %0 : vector<8x32xf32>
    %79 = arith.mulf %59, %69 : vector<8x32xf32>
    %80 = arith.addf %78, %79 : vector<8x32xf32>
    %81 = math.tanh %80 : vector<8x32xf32>
    %82 = arith.mulf %77, %81 : vector<8x32xf32>
    %c0_32 = arith.constant 0 : index
    %c0_33 = arith.constant 0 : index
    %83 = vector.load %arg20[%c0_32, %c0_33] : memref<24x64xf32, #tpu.memory_space<vmem>>, vector<8x32xf32>
    tpu.vector_store %arg20[%c0_32, %c0_33], %47 {strides = array<i32>} : memref<24x64xf32, #tpu.memory_space<vmem>>, vector<8x32xf32>,
    %c16 = arith.constant 16 : index
    %c32 = arith.constant 32 : index
    %84 = vector.load %arg20[%c16, %c32] : memref<24x64xf32, #tpu.memory_space<vmem>>, vector<8x32xf32>
    tpu.vector_store %arg20[%c16, %c32], %82 {strides = array<i32>} : memref<24x64xf32, #tpu.memory_space<vmem>>, vector<8x32xf32>,
    %85 = vector.extract_strided_slice %4 {offsets = [8, 0], sizes = [8, 128], strides = [1, 1]} : vector<24x256xf32> to vector<8x128xf32>
    %86 = vector.extract_strided_slice %4 {offsets = [8, 128], sizes = [8, 128], strides = [1, 1]} : vector<24x256xf32> to vector<8x128xf32>
    %87 = arith.truncf %47 : vector<8x32xf32> to vector<8x32xbf16>
    %c0_34 = arith.constant 0 : index
    %c0_35 = arith.constant 0 : index
    %88 = vector.load %arg2[%c0_34, %c0_35] : memref<32x128xbf16, #tpu.memory_space<vmem>>, vector<32x128xbf16>
    %cst_36 = arith.constant dense<0.000000e+00> : vector<8x128xf32>
    %89 = tpu.matmul %87, %88, %cst_36 {dimension_numbers = #tpu.dot_dimension_numbers<[1], [0], [0], [1], [0, 0, 1, 1], [], []>} : vector<8x32xbf16>, vector<32x128xbf16>, vector<8x128xf32> -> vector<8x128xf32>
    %90 = arith.truncf %82 : vector<8x32xf32> to vector<8x32xbf16>
    %c0_37 = arith.constant 0 : index
    %c0_38 = arith.constant 0 : index
    %91 = vector.load %arg3[%c0_37, %c0_38] : memref<32x128xbf16, #tpu.memory_space<vmem>>, vector<32x128xbf16>
    %cst_39 = arith.constant dense<0.000000e+00> : vector<8x128xf32>
    %92 = tpu.matmul %90, %91, %cst_39 {dimension_numbers = #tpu.dot_dimension_numbers<[1], [0], [0], [1], [0, 0, 1, 1], [], []>} : vector<8x32xbf16>, vector<32x128xbf16>, vector<8x128xf32> -> vector<8x128xf32>
    %93 = arith.addf %85, %89 : vector<8x128xf32>
    %c0_40 = arith.constant 0 : index
    %c0_41 = arith.constant 0 : index
    %94 = vector.load %arg4[%c0_40, %c0_41] : memref<1x128xf32, #tpu.memory_space<vmem>>, vector<1x128xf32>
    %95 = vector.broadcast %94 : vector<1x128xf32> to vector<8x128xf32>
    %96 = arith.addf %93, %95 : vector<8x128xf32>
    %97 = vector.extract_strided_slice %96 {offsets = [0, 0], sizes = [8, 32], strides = [1, 1]} : vector<8x128xf32> to vector<8x32xf32>
    %cst_42 = arith.constant 0.000000e+00 : f32
    %98 = vector.broadcast %cst_42 : f32 to vector<8x32xf32>
    %99 = arith.subf %98, %97 : vector<8x32xf32>
    %100 = math.exp %99 : vector<8x32xf32>
    %cst_43 = arith.constant 1.000000e+00 : f32
    %101 = vector.broadcast %cst_43 : f32 to vector<8x32xf32>
    %102 = arith.addf %101, %100 : vector<8x32xf32>
    %cst_44 = arith.constant 1.000000e+00 : f32
    %103 = vector.broadcast %cst_44 : f32 to vector<8x32xf32>
    %104 = arith.divf %103, %102 : vector<8x32xf32>
    %105 = vector.extract_strided_slice %96 {offsets = [0, 32], sizes = [8, 32], strides = [1, 1]} : vector<8x128xf32> to vector<8x32xf32>
    %cst_45 = arith.constant 0.000000e+00 : f32
    %106 = vector.broadcast %cst_45 : f32 to vector<8x32xf32>
    %107 = arith.subf %106, %105 : vector<8x32xf32>
    %108 = math.exp %107 : vector<8x32xf32>
    %cst_46 = arith.constant 1.000000e+00 : f32
    %109 = vector.broadcast %cst_46 : f32 to vector<8x32xf32>
    %110 = arith.addf %109, %108 : vector<8x32xf32>
    %cst_47 = arith.constant 1.000000e+00 : f32
    %111 = vector.broadcast %cst_47 : f32 to vector<8x32xf32>
    %112 = arith.divf %111, %110 : vector<8x32xf32>
    %113 = vector.extract_strided_slice %96 {offsets = [0, 64], sizes = [8, 32], strides = [1, 1]} : vector<8x128xf32> to vector<8x32xf32>
    %114 = math.tanh %113 : vector<8x32xf32>
    %115 = vector.extract_strided_slice %96 {offsets = [0, 96], sizes = [8, 32], strides = [1, 1]} : vector<8x128xf32> to vector<8x32xf32>
    %cst_48 = arith.constant 0.000000e+00 : f32
    %116 = vector.broadcast %cst_48 : f32 to vector<8x32xf32>
    %117 = arith.subf %116, %115 : vector<8x32xf32>
    %118 = math.exp %117 : vector<8x32xf32>
    %cst_49 = arith.constant 1.000000e+00 : f32
    %119 = vector.broadcast %cst_49 : f32 to vector<8x32xf32>
    %120 = arith.addf %119, %118 : vector<8x32xf32>
    %cst_50 = arith.constant 1.000000e+00 : f32
    %121 = vector.broadcast %cst_50 : f32 to vector<8x32xf32>
    %122 = arith.divf %121, %120 : vector<8x32xf32>
    %123 = arith.mulf %112, %45 : vector<8x32xf32>
    %124 = arith.mulf %104, %114 : vector<8x32xf32>
    %125 = arith.addf %123, %124 : vector<8x32xf32>
    %126 = math.tanh %125 : vector<8x32xf32>
    %127 = arith.mulf %122, %126 : vector<8x32xf32>
    %128 = arith.addf %86, %92 : vector<8x128xf32>
    %c0_51 = arith.constant 0 : index
    %c0_52 = arith.constant 0 : index
    %129 = vector.load %arg5[%c0_51, %c0_52] : memref<1x128xf32, #tpu.memory_space<vmem>>, vector<1x128xf32>
    %130 = vector.broadcast %129 : vector<1x128xf32> to vector<8x128xf32>
    %131 = arith.addf %128, %130 : vector<8x128xf32>
    %132 = vector.extract_strided_slice %131 {offsets = [0, 0], sizes = [8, 32], strides = [1, 1]} : vector<8x128xf32> to vector<8x32xf32>
    %cst_53 = arith.constant 0.000000e+00 : f32
    %133 = vector.broadcast %cst_53 : f32 to vector<8x32xf32>
    %134 = arith.subf %133, %132 : vector<8x32xf32>
    %135 = math.exp %134 : vector<8x32xf32>
    %cst_54 = arith.constant 1.000000e+00 : f32
    %136 = vector.broadcast %cst_54 : f32 to vector<8x32xf32>
    %137 = arith.addf %136, %135 : vector<8x32xf32>
    %cst_55 = arith.constant 1.000000e+00 : f32
    %138 = vector.broadcast %cst_55 : f32 to vector<8x32xf32>
    %139 = arith.divf %138, %137 : vector<8x32xf32>
    %140 = vector.extract_strided_slice %131 {offsets = [0, 32], sizes = [8, 32], strides = [1, 1]} : vector<8x128xf32> to vector<8x32xf32>
    %cst_56 = arith.constant 0.000000e+00 : f32
    %141 = vector.broadcast %cst_56 : f32 to vector<8x32xf32>
    %142 = arith.subf %141, %140 : vector<8x32xf32>
    %143 = math.exp %142 : vector<8x32xf32>
    %cst_57 = arith.constant 1.000000e+00 : f32
    %144 = vector.broadcast %cst_57 : f32 to vector<8x32xf32>
    %145 = arith.addf %144, %143 : vector<8x32xf32>
    %cst_58 = arith.constant 1.000000e+00 : f32
    %146 = vector.broadcast %cst_58 : f32 to vector<8x32xf32>
    %147 = arith.divf %146, %145 : vector<8x32xf32>
    %148 = vector.extract_strided_slice %131 {offsets = [0, 64], sizes = [8, 32], strides = [1, 1]} : vector<8x128xf32> to vector<8x32xf32>
    %149 = math.tanh %148 : vector<8x32xf32>
    %150 = vector.extract_strided_slice %131 {offsets = [0, 96], sizes = [8, 32], strides = [1, 1]} : vector<8x128xf32> to vector<8x32xf32>
    %cst_59 = arith.constant 0.000000e+00 : f32
    %151 = vector.broadcast %cst_59 : f32 to vector<8x32xf32>
    %152 = arith.subf %151, %150 : vector<8x32xf32>
    %153 = math.exp %152 : vector<8x32xf32>
    %cst_60 = arith.constant 1.000000e+00 : f32
    %154 = vector.broadcast %cst_60 : f32 to vector<8x32xf32>
    %155 = arith.addf %154, %153 : vector<8x32xf32>
    %cst_61 = arith.constant 1.000000e+00 : f32
    %156 = vector.broadcast %cst_61 : f32 to vector<8x32xf32>
    %157 = arith.divf %156, %155 : vector<8x32xf32>
    %158 = arith.mulf %147, %80 : vector<8x32xf32>
    %159 = arith.mulf %139, %149 : vector<8x32xf32>
    %160 = arith.addf %158, %159 : vector<8x32xf32>
    %161 = math.tanh %160 : vector<8x32xf32>
    %162 = arith.mulf %157, %161 : vector<8x32xf32>
    %c8 = arith.constant 8 : index
    %c0_62 = arith.constant 0 : index
    %163 = vector.load %arg20[%c8, %c0_62] : memref<24x64xf32, #tpu.memory_space<vmem>>, vector<8x32xf32>
    tpu.vector_store %arg20[%c8, %c0_62], %127 {strides = array<i32>} : memref<24x64xf32, #tpu.memory_space<vmem>>, vector<8x32xf32>,
    %c8_63 = arith.constant 8 : index
    %c32_64 = arith.constant 32 : index
    %164 = vector.load %arg20[%c8_63, %c32_64] : memref<24x64xf32, #tpu.memory_space<vmem>>, vector<8x32xf32>
    tpu.vector_store %arg20[%c8_63, %c32_64], %162 {strides = array<i32>} : memref<24x64xf32, #tpu.memory_space<vmem>>, vector<8x32xf32>,
    %165 = vector.extract_strided_slice %4 {offsets = [16, 0], sizes = [8, 128], strides = [1, 1]} : vector<24x256xf32> to vector<8x128xf32>
    %166 = vector.extract_strided_slice %4 {offsets = [0, 128], sizes = [8, 128], strides = [1, 1]} : vector<24x256xf32> to vector<8x128xf32>
    %167 = arith.truncf %127 : vector<8x32xf32> to vector<8x32xbf16>
    %c0_65 = arith.constant 0 : index
    %c0_66 = arith.constant 0 : index
    %168 = vector.load %arg2[%c0_65, %c0_66] : memref<32x128xbf16, #tpu.memory_space<vmem>>, vector<32x128xbf16>
    %cst_67 = arith.constant dense<0.000000e+00> : vector<8x128xf32>
    %169 = tpu.matmul %167, %168, %cst_67 {dimension_numbers = #tpu.dot_dimension_numbers<[1], [0], [0], [1], [0, 0, 1, 1], [], []>} : vector<8x32xbf16>, vector<32x128xbf16>, vector<8x128xf32> -> vector<8x128xf32>
    %170 = arith.truncf %162 : vector<8x32xf32> to vector<8x32xbf16>
    %c0_68 = arith.constant 0 : index
    %c0_69 = arith.constant 0 : index
    %171 = vector.load %arg3[%c0_68, %c0_69] : memref<32x128xbf16, #tpu.memory_space<vmem>>, vector<32x128xbf16>
    %cst_70 = arith.constant dense<0.000000e+00> : vector<8x128xf32>
    %172 = tpu.matmul %170, %171, %cst_70 {dimension_numbers = #tpu.dot_dimension_numbers<[1], [0], [0], [1], [0, 0, 1, 1], [], []>} : vector<8x32xbf16>, vector<32x128xbf16>, vector<8x128xf32> -> vector<8x128xf32>
    %173 = arith.addf %165, %169 : vector<8x128xf32>
    %c0_71 = arith.constant 0 : index
    %c0_72 = arith.constant 0 : index
    %174 = vector.load %arg4[%c0_71, %c0_72] : memref<1x128xf32, #tpu.memory_space<vmem>>, vector<1x128xf32>
    %175 = vector.broadcast %174 : vector<1x128xf32> to vector<8x128xf32>
    %176 = arith.addf %173, %175 : vector<8x128xf32>
    %177 = vector.extract_strided_slice %176 {offsets = [0, 0], sizes = [8, 32], strides = [1, 1]} : vector<8x128xf32> to vector<8x32xf32>
    %cst_73 = arith.constant 0.000000e+00 : f32
    %178 = vector.broadcast %cst_73 : f32 to vector<8x32xf32>
    %179 = arith.subf %178, %177 : vector<8x32xf32>
    %180 = math.exp %179 : vector<8x32xf32>
    %cst_74 = arith.constant 1.000000e+00 : f32
    %181 = vector.broadcast %cst_74 : f32 to vector<8x32xf32>
    %182 = arith.addf %181, %180 : vector<8x32xf32>
    %cst_75 = arith.constant 1.000000e+00 : f32
    %183 = vector.broadcast %cst_75 : f32 to vector<8x32xf32>
    %184 = arith.divf %183, %182 : vector<8x32xf32>
    %185 = vector.extract_strided_slice %176 {offsets = [0, 32], sizes = [8, 32], strides = [1, 1]} : vector<8x128xf32> to vector<8x32xf32>
    %cst_76 = arith.constant 0.000000e+00 : f32
    %186 = vector.broadcast %cst_76 : f32 to vector<8x32xf32>
    %187 = arith.subf %186, %185 : vector<8x32xf32>
    %188 = math.exp %187 : vector<8x32xf32>
    %cst_77 = arith.constant 1.000000e+00 : f32
    %189 = vector.broadcast %cst_77 : f32 to vector<8x32xf32>
    %190 = arith.addf %189, %188 : vector<8x32xf32>
    %cst_78 = arith.constant 1.000000e+00 : f32
    %191 = vector.broadcast %cst_78 : f32 to vector<8x32xf32>
    %192 = arith.divf %191, %190 : vector<8x32xf32>
    %193 = vector.extract_strided_slice %176 {offsets = [0, 64], sizes = [8, 32], strides = [1, 1]} : vector<8x128xf32> to vector<8x32xf32>
    %194 = math.tanh %193 : vector<8x32xf32>
    %195 = vector.extract_strided_slice %176 {offsets = [0, 96], sizes = [8, 32], strides = [1, 1]} : vector<8x128xf32> to vector<8x32xf32>
    %cst_79 = arith.constant 0.000000e+00 : f32
    %196 = vector.broadcast %cst_79 : f32 to vector<8x32xf32>
    %197 = arith.subf %196, %195 : vector<8x32xf32>
    %198 = math.exp %197 : vector<8x32xf32>
    %cst_80 = arith.constant 1.000000e+00 : f32
    %199 = vector.broadcast %cst_80 : f32 to vector<8x32xf32>
    %200 = arith.addf %199, %198 : vector<8x32xf32>
    %cst_81 = arith.constant 1.000000e+00 : f32
    %201 = vector.broadcast %cst_81 : f32 to vector<8x32xf32>
    %202 = arith.divf %201, %200 : vector<8x32xf32>
    %203 = arith.mulf %192, %125 : vector<8x32xf32>
    %204 = arith.mulf %184, %194 : vector<8x32xf32>
    %205 = arith.addf %203, %204 : vector<8x32xf32>
    %206 = math.tanh %205 : vector<8x32xf32>
    %207 = arith.mulf %202, %206 : vector<8x32xf32>
    %208 = arith.addf %166, %172 : vector<8x128xf32>
    %c0_82 = arith.constant 0 : index
    %c0_83 = arith.constant 0 : index
    %209 = vector.load %arg5[%c0_82, %c0_83] : memref<1x128xf32, #tpu.memory_space<vmem>>, vector<1x128xf32>
    %210 = vector.broadcast %209 : vector<1x128xf32> to vector<8x128xf32>
    %211 = arith.addf %208, %210 : vector<8x128xf32>
    %212 = vector.extract_strided_slice %211 {offsets = [0, 0], sizes = [8, 32], strides = [1, 1]} : vector<8x128xf32> to vector<8x32xf32>
    %cst_84 = arith.constant 0.000000e+00 : f32
    %213 = vector.broadcast %cst_84 : f32 to vector<8x32xf32>
    %214 = arith.subf %213, %212 : vector<8x32xf32>
    %215 = math.exp %214 : vector<8x32xf32>
    %cst_85 = arith.constant 1.000000e+00 : f32
    %216 = vector.broadcast %cst_85 : f32 to vector<8x32xf32>
    %217 = arith.addf %216, %215 : vector<8x32xf32>
    %cst_86 = arith.constant 1.000000e+00 : f32
    %218 = vector.broadcast %cst_86 : f32 to vector<8x32xf32>
    %219 = arith.divf %218, %217 : vector<8x32xf32>
    %220 = vector.extract_strided_slice %211 {offsets = [0, 32], sizes = [8, 32], strides = [1, 1]} : vector<8x128xf32> to vector<8x32xf32>
    %cst_87 = arith.constant 0.000000e+00 : f32
    %221 = vector.broadcast %cst_87 : f32 to vector<8x32xf32>
    %222 = arith.subf %221, %220 : vector<8x32xf32>
    %223 = math.exp %222 : vector<8x32xf32>
    %cst_88 = arith.constant 1.000000e+00 : f32
    %224 = vector.broadcast %cst_88 : f32 to vector<8x32xf32>
    %225 = arith.addf %224, %223 : vector<8x32xf32>
    %cst_89 = arith.constant 1.000000e+00 : f32
    %226 = vector.broadcast %cst_89 : f32 to vector<8x32xf32>
    %227 = arith.divf %226, %225 : vector<8x32xf32>
    %228 = vector.extract_strided_slice %211 {offsets = [0, 64], sizes = [8, 32], strides = [1, 1]} : vector<8x128xf32> to vector<8x32xf32>
    %229 = math.tanh %228 : vector<8x32xf32>
    %230 = vector.extract_strided_slice %211 {offsets = [0, 96], sizes = [8, 32], strides = [1, 1]} : vector<8x128xf32> to vector<8x32xf32>
    %cst_90 = arith.constant 0.000000e+00 : f32
    %231 = vector.broadcast %cst_90 : f32 to vector<8x32xf32>
    %232 = arith.subf %231, %230 : vector<8x32xf32>
    %233 = math.exp %232 : vector<8x32xf32>
    %cst_91 = arith.constant 1.000000e+00 : f32
    %234 = vector.broadcast %cst_91 : f32 to vector<8x32xf32>
    %235 = arith.addf %234, %233 : vector<8x32xf32>
    %cst_92 = arith.constant 1.000000e+00 : f32
    %236 = vector.broadcast %cst_92 : f32 to vector<8x32xf32>
    %237 = arith.divf %236, %235 : vector<8x32xf32>
    %238 = arith.mulf %227, %160 : vector<8x32xf32>
    %239 = arith.mulf %219, %229 : vector<8x32xf32>
    %240 = arith.addf %238, %239 : vector<8x32xf32>
    %241 = math.tanh %240 : vector<8x32xf32>
    %242 = arith.mulf %237, %241 : vector<8x32xf32>
    %c16_93 = arith.constant 16 : index
    %c0_94 = arith.constant 0 : index
    %243 = vector.load %arg20[%c16_93, %c0_94] : memref<24x64xf32, #tpu.memory_space<vmem>>, vector<8x32xf32>
    tpu.vector_store %arg20[%c16_93, %c0_94], %207 {strides = array<i32>} : memref<24x64xf32, #tpu.memory_space<vmem>>, vector<8x32xf32>,
    %c0_95 = arith.constant 0 : index
    %c32_96 = arith.constant 32 : index
    %244 = vector.load %arg20[%c0_95, %c32_96] : memref<24x64xf32, #tpu.memory_space<vmem>>, vector<8x32xf32>
    tpu.vector_store %arg20[%c0_95, %c32_96], %242 {strides = array<i32>} : memref<24x64xf32, #tpu.memory_space<vmem>>, vector<8x32xf32>,
    %c0_97 = arith.constant 0 : index
    %c0_98 = arith.constant 0 : index
    %245 = vector.load %arg20[%c0_97, %c0_98] : memref<24x64xf32, #tpu.memory_space<vmem>>, vector<24x64xf32>
    %246 = arith.truncf %245 : vector<24x64xf32> to vector<24x64xbf16>
    %c0_99 = arith.constant 0 : index
    %c0_100 = arith.constant 0 : index
    %247 = vector.load %arg6[%c0_99, %c0_100] : memref<64x256xbf16, #tpu.memory_space<vmem>>, vector<64x256xbf16>
    %cst_101 = arith.constant dense<0.000000e+00> : vector<24x256xf32>
    %248 = tpu.matmul %246, %247, %cst_101 {dimension_numbers = #tpu.dot_dimension_numbers<[1], [0], [0], [1], [0, 0, 1, 1], [], []>} : vector<24x64xbf16>, vector<64x256xbf16>, vector<24x256xf32> -> vector<24x256xf32>
    %249 = vector.extract_strided_slice %248 {offsets = [0, 0], sizes = [8, 128], strides = [1, 1]} : vector<24x256xf32> to vector<8x128xf32>
    %250 = vector.extract_strided_slice %248 {offsets = [16, 128], sizes = [8, 128], strides = [1, 1]} : vector<24x256xf32> to vector<8x128xf32>
    %251 = arith.truncf %0 : vector<8x32xf32> to vector<8x32xbf16>
    %c0_102 = arith.constant 0 : index
    %c0_103 = arith.constant 0 : index
    %252 = vector.load %arg7[%c0_102, %c0_103] : memref<32x128xbf16, #tpu.memory_space<vmem>>, vector<32x128xbf16>
    %cst_104 = arith.constant dense<0.000000e+00> : vector<8x128xf32>
    %253 = tpu.matmul %251, %252, %cst_104 {dimension_numbers = #tpu.dot_dimension_numbers<[1], [0], [0], [1], [0, 0, 1, 1], [], []>} : vector<8x32xbf16>, vector<32x128xbf16>, vector<8x128xf32> -> vector<8x128xf32>
    %254 = arith.truncf %0 : vector<8x32xf32> to vector<8x32xbf16>
    %c0_105 = arith.constant 0 : index
    %c0_106 = arith.constant 0 : index
    %255 = vector.load %arg8[%c0_105, %c0_106] : memref<32x128xbf16, #tpu.memory_space<vmem>>, vector<32x128xbf16>
    %cst_107 = arith.constant dense<0.000000e+00> : vector<8x128xf32>
    %256 = tpu.matmul %254, %255, %cst_107 {dimension_numbers = #tpu.dot_dimension_numbers<[1], [0], [0], [1], [0, 0, 1, 1], [], []>} : vector<8x32xbf16>, vector<32x128xbf16>, vector<8x128xf32> -> vector<8x128xf32>
    %257 = arith.addf %249, %253 : vector<8x128xf32>
    %c0_108 = arith.constant 0 : index
    %c0_109 = arith.constant 0 : index
    %258 = vector.load %arg9[%c0_108, %c0_109] : memref<1x128xf32, #tpu.memory_space<vmem>>, vector<1x128xf32>
    %259 = vector.broadcast %258 : vector<1x128xf32> to vector<8x128xf32>
    %260 = arith.addf %257, %259 : vector<8x128xf32>
    %261 = vector.extract_strided_slice %260 {offsets = [0, 0], sizes = [8, 32], strides = [1, 1]} : vector<8x128xf32> to vector<8x32xf32>
    %cst_110 = arith.constant 0.000000e+00 : f32
    %262 = vector.broadcast %cst_110 : f32 to vector<8x32xf32>
    %263 = arith.subf %262, %261 : vector<8x32xf32>
    %264 = math.exp %263 : vector<8x32xf32>
    %cst_111 = arith.constant 1.000000e+00 : f32
    %265 = vector.broadcast %cst_111 : f32 to vector<8x32xf32>
    %266 = arith.addf %265, %264 : vector<8x32xf32>
    %cst_112 = arith.constant 1.000000e+00 : f32
    %267 = vector.broadcast %cst_112 : f32 to vector<8x32xf32>
    %268 = arith.divf %267, %266 : vector<8x32xf32>
    %269 = vector.extract_strided_slice %260 {offsets = [0, 32], sizes = [8, 32], strides = [1, 1]} : vector<8x128xf32> to vector<8x32xf32>
    %cst_113 = arith.constant 0.000000e+00 : f32
    %270 = vector.broadcast %cst_113 : f32 to vector<8x32xf32>
    %271 = arith.subf %270, %269 : vector<8x32xf32>
    %272 = math.exp %271 : vector<8x32xf32>
    %cst_114 = arith.constant 1.000000e+00 : f32
    %273 = vector.broadcast %cst_114 : f32 to vector<8x32xf32>
    %274 = arith.addf %273, %272 : vector<8x32xf32>
    %cst_115 = arith.constant 1.000000e+00 : f32
    %275 = vector.broadcast %cst_115 : f32 to vector<8x32xf32>
    %276 = arith.divf %275, %274 : vector<8x32xf32>
    %277 = vector.extract_strided_slice %260 {offsets = [0, 64], sizes = [8, 32], strides = [1, 1]} : vector<8x128xf32> to vector<8x32xf32>
    %278 = math.tanh %277 : vector<8x32xf32>
    %279 = vector.extract_strided_slice %260 {offsets = [0, 96], sizes = [8, 32], strides = [1, 1]} : vector<8x128xf32> to vector<8x32xf32>
    %cst_116 = arith.constant 0.000000e+00 : f32
    %280 = vector.broadcast %cst_116 : f32 to vector<8x32xf32>
    %281 = arith.subf %280, %279 : vector<8x32xf32>
    %282 = math.exp %281 : vector<8x32xf32>
    %cst_117 = arith.constant 1.000000e+00 : f32
    %283 = vector.broadcast %cst_117 : f32 to vector<8x32xf32>
    %284 = arith.addf %283, %282 : vector<8x32xf32>
    %cst_118 = arith.constant 1.000000e+00 : f32
    %285 = vector.broadcast %cst_118 : f32 to vector<8x32xf32>
    %286 = arith.divf %285, %284 : vector<8x32xf32>
    %287 = arith.mulf %276, %0 : vector<8x32xf32>
    %288 = arith.mulf %268, %278 : vector<8x32xf32>
    %289 = arith.addf %287, %288 : vector<8x32xf32>
    %290 = math.tanh %289 : vector<8x32xf32>
    %291 = arith.mulf %286, %290 : vector<8x32xf32>
    %292 = arith.addf %250, %256 : vector<8x128xf32>
    %c0_119 = arith.constant 0 : index
    %c0_120 = arith.constant 0 : index
    %293 = vector.load %arg10[%c0_119, %c0_120] : memref<1x128xf32, #tpu.memory_space<vmem>>, vector<1x128xf32>
    %294 = vector.broadcast %293 : vector<1x128xf32> to vector<8x128xf32>
    %295 = arith.addf %292, %294 : vector<8x128xf32>
    %296 = vector.extract_strided_slice %295 {offsets = [0, 0], sizes = [8, 32], strides = [1, 1]} : vector<8x128xf32> to vector<8x32xf32>
    %cst_121 = arith.constant 0.000000e+00 : f32
    %297 = vector.broadcast %cst_121 : f32 to vector<8x32xf32>
    %298 = arith.subf %297, %296 : vector<8x32xf32>
    %299 = math.exp %298 : vector<8x32xf32>
    %cst_122 = arith.constant 1.000000e+00 : f32
    %300 = vector.broadcast %cst_122 : f32 to vector<8x32xf32>
    %301 = arith.addf %300, %299 : vector<8x32xf32>
    %cst_123 = arith.constant 1.000000e+00 : f32
    %302 = vector.broadcast %cst_123 : f32 to vector<8x32xf32>
    %303 = arith.divf %302, %301 : vector<8x32xf32>
    %304 = vector.extract_strided_slice %295 {offsets = [0, 32], sizes = [8, 32], strides = [1, 1]} : vector<8x128xf32> to vector<8x32xf32>
    %cst_124 = arith.constant 0.000000e+00 : f32
    %305 = vector.broadcast %cst_124 : f32 to vector<8x32xf32>
    %306 = arith.subf %305, %304 : vector<8x32xf32>
    %307 = math.exp %306 : vector<8x32xf32>
    %cst_125 = arith.constant 1.000000e+00 : f32
    %308 = vector.broadcast %cst_125 : f32 to vector<8x32xf32>
    %309 = arith.addf %308, %307 : vector<8x32xf32>
    %cst_126 = arith.constant 1.000000e+00 : f32
    %310 = vector.broadcast %cst_126 : f32 to vector<8x32xf32>
    %311 = arith.divf %310, %309 : vector<8x32xf32>
    %312 = vector.extract_strided_slice %295 {offsets = [0, 64], sizes = [8, 32], strides = [1, 1]} : vector<8x128xf32> to vector<8x32xf32>
    %313 = math.tanh %312 : vector<8x32xf32>
    %314 = vector.extract_strided_slice %295 {offsets = [0, 96], sizes = [8, 32], strides = [1, 1]} : vector<8x128xf32> to vector<8x32xf32>
    %cst_127 = arith.constant 0.000000e+00 : f32
    %315 = vector.broadcast %cst_127 : f32 to vector<8x32xf32>
    %316 = arith.subf %315, %314 : vector<8x32xf32>
    %317 = math.exp %316 : vector<8x32xf32>
    %cst_128 = arith.constant 1.000000e+00 : f32
    %318 = vector.broadcast %cst_128 : f32 to vector<8x32xf32>
    %319 = arith.addf %318, %317 : vector<8x32xf32>
    %cst_129 = arith.constant 1.000000e+00 : f32
    %320 = vector.broadcast %cst_129 : f32 to vector<8x32xf32>
    %321 = arith.divf %320, %319 : vector<8x32xf32>
    %322 = arith.mulf %311, %0 : vector<8x32xf32>
    %323 = arith.mulf %303, %313 : vector<8x32xf32>
    %324 = arith.addf %322, %323 : vector<8x32xf32>
    %325 = math.tanh %324 : vector<8x32xf32>
    %326 = arith.mulf %321, %325 : vector<8x32xf32>
    %c0_130 = arith.constant 0 : index
    %c32_131 = arith.constant 32 : index
    %327 = vector.load %arg21[%c0_130, %c32_131] : memref<8x64xf32, #tpu.memory_space<vmem>>, vector<8x32xf32>
    tpu.vector_store %arg21[%c0_130, %c32_131], %326 {strides = array<i32>} : memref<8x64xf32, #tpu.memory_space<vmem>>, vector<8x32xf32>,
    %328 = vector.extract_strided_slice %248 {offsets = [8, 0], sizes = [8, 128], strides = [1, 1]} : vector<24x256xf32> to vector<8x128xf32>
    %329 = arith.truncf %291 : vector<8x32xf32> to vector<8x32xbf16>
    %c0_132 = arith.constant 0 : index
    %c0_133 = arith.constant 0 : index
    %330 = vector.load %arg7[%c0_132, %c0_133] : memref<32x128xbf16, #tpu.memory_space<vmem>>, vector<32x128xbf16>
    %cst_134 = arith.constant dense<0.000000e+00> : vector<8x128xf32>
    %331 = tpu.matmul %329, %330, %cst_134 {dimension_numbers = #tpu.dot_dimension_numbers<[1], [0], [0], [1], [0, 0, 1, 1], [], []>} : vector<8x32xbf16>, vector<32x128xbf16>, vector<8x128xf32> -> vector<8x128xf32>
    %332 = arith.addf %328, %331 : vector<8x128xf32>
    %c0_135 = arith.constant 0 : index
    %c0_136 = arith.constant 0 : index
    %333 = vector.load %arg9[%c0_135, %c0_136] : memref<1x128xf32, #tpu.memory_space<vmem>>, vector<1x128xf32>
    %334 = vector.broadcast %333 : vector<1x128xf32> to vector<8x128xf32>
    %335 = arith.addf %332, %334 : vector<8x128xf32>
    %336 = vector.extract_strided_slice %335 {offsets = [0, 0], sizes = [8, 32], strides = [1, 1]} : vector<8x128xf32> to vector<8x32xf32>
    %cst_137 = arith.constant 0.000000e+00 : f32
    %337 = vector.broadcast %cst_137 : f32 to vector<8x32xf32>
    %338 = arith.subf %337, %336 : vector<8x32xf32>
    %339 = math.exp %338 : vector<8x32xf32>
    %cst_138 = arith.constant 1.000000e+00 : f32
    %340 = vector.broadcast %cst_138 : f32 to vector<8x32xf32>
    %341 = arith.addf %340, %339 : vector<8x32xf32>
    %cst_139 = arith.constant 1.000000e+00 : f32
    %342 = vector.broadcast %cst_139 : f32 to vector<8x32xf32>
    %343 = arith.divf %342, %341 : vector<8x32xf32>
    %344 = vector.extract_strided_slice %335 {offsets = [0, 32], sizes = [8, 32], strides = [1, 1]} : vector<8x128xf32> to vector<8x32xf32>
    %cst_140 = arith.constant 0.000000e+00 : f32
    %345 = vector.broadcast %cst_140 : f32 to vector<8x32xf32>
    %346 = arith.subf %345, %344 : vector<8x32xf32>
    %347 = math.exp %346 : vector<8x32xf32>
    %cst_141 = arith.constant 1.000000e+00 : f32
    %348 = vector.broadcast %cst_141 : f32 to vector<8x32xf32>
    %349 = arith.addf %348, %347 : vector<8x32xf32>
    %cst_142 = arith.constant 1.000000e+00 : f32
    %350 = vector.broadcast %cst_142 : f32 to vector<8x32xf32>
    %351 = arith.divf %350, %349 : vector<8x32xf32>
    %352 = vector.extract_strided_slice %335 {offsets = [0, 64], sizes = [8, 32], strides = [1, 1]} : vector<8x128xf32> to vector<8x32xf32>
    %353 = math.tanh %352 : vector<8x32xf32>
    %354 = vector.extract_strided_slice %335 {offsets = [0, 96], sizes = [8, 32], strides = [1, 1]} : vector<8x128xf32> to vector<8x32xf32>
    %cst_143 = arith.constant 0.000000e+00 : f32
    %355 = vector.broadcast %cst_143 : f32 to vector<8x32xf32>
    %356 = arith.subf %355, %354 : vector<8x32xf32>
    %357 = math.exp %356 : vector<8x32xf32>
    %cst_144 = arith.constant 1.000000e+00 : f32
    %358 = vector.broadcast %cst_144 : f32 to vector<8x32xf32>
    %359 = arith.addf %358, %357 : vector<8x32xf32>
    %cst_145 = arith.constant 1.000000e+00 : f32
    %360 = vector.broadcast %cst_145 : f32 to vector<8x32xf32>
    %361 = arith.divf %360, %359 : vector<8x32xf32>
    %362 = arith.mulf %351, %289 : vector<8x32xf32>
    %363 = arith.mulf %343, %353 : vector<8x32xf32>
    %364 = arith.addf %362, %363 : vector<8x32xf32>
    %365 = math.tanh %364 : vector<8x32xf32>
    %366 = arith.mulf %361, %365 : vector<8x32xf32>
    %367 = vector.extract_strided_slice %248 {offsets = [16, 0], sizes = [8, 128], strides = [1, 1]} : vector<24x256xf32> to vector<8x128xf32>
    %368 = arith.truncf %366 : vector<8x32xf32> to vector<8x32xbf16>
    %c0_146 = arith.constant 0 : index
    %c0_147 = arith.constant 0 : index
    %369 = vector.load %arg7[%c0_146, %c0_147] : memref<32x128xbf16, #tpu.memory_space<vmem>>, vector<32x128xbf16>
    %cst_148 = arith.constant dense<0.000000e+00> : vector<8x128xf32>
    %370 = tpu.matmul %368, %369, %cst_148 {dimension_numbers = #tpu.dot_dimension_numbers<[1], [0], [0], [1], [0, 0, 1, 1], [], []>} : vector<8x32xbf16>, vector<32x128xbf16>, vector<8x128xf32> -> vector<8x128xf32>
    %371 = arith.addf %367, %370 : vector<8x128xf32>
    %c0_149 = arith.constant 0 : index
    %c0_150 = arith.constant 0 : index
    %372 = vector.load %arg9[%c0_149, %c0_150] : memref<1x128xf32, #tpu.memory_space<vmem>>, vector<1x128xf32>
    %373 = vector.broadcast %372 : vector<1x128xf32> to vector<8x128xf32>
    %374 = arith.addf %371, %373 : vector<8x128xf32>
    %375 = vector.extract_strided_slice %374 {offsets = [0, 0], sizes = [8, 32], strides = [1, 1]} : vector<8x128xf32> to vector<8x32xf32>
    %cst_151 = arith.constant 0.000000e+00 : f32
    %376 = vector.broadcast %cst_151 : f32 to vector<8x32xf32>
    %377 = arith.subf %376, %375 : vector<8x32xf32>
    %378 = math.exp %377 : vector<8x32xf32>
    %cst_152 = arith.constant 1.000000e+00 : f32
    %379 = vector.broadcast %cst_152 : f32 to vector<8x32xf32>
    %380 = arith.addf %379, %378 : vector<8x32xf32>
    %cst_153 = arith.constant 1.000000e+00 : f32
    %381 = vector.broadcast %cst_153 : f32 to vector<8x32xf32>
    %382 = arith.divf %381, %380 : vector<8x32xf32>
    %383 = vector.extract_strided_slice %374 {offsets = [0, 32], sizes = [8, 32], strides = [1, 1]} : vector<8x128xf32> to vector<8x32xf32>
    %cst_154 = arith.constant 0.000000e+00 : f32
    %384 = vector.broadcast %cst_154 : f32 to vector<8x32xf32>
    %385 = arith.subf %384, %383 : vector<8x32xf32>
    %386 = math.exp %385 : vector<8x32xf32>
    %cst_155 = arith.constant 1.000000e+00 : f32
    %387 = vector.broadcast %cst_155 : f32 to vector<8x32xf32>
    %388 = arith.addf %387, %386 : vector<8x32xf32>
    %cst_156 = arith.constant 1.000000e+00 : f32
    %389 = vector.broadcast %cst_156 : f32 to vector<8x32xf32>
    %390 = arith.divf %389, %388 : vector<8x32xf32>
    %391 = vector.extract_strided_slice %374 {offsets = [0, 64], sizes = [8, 32], strides = [1, 1]} : vector<8x128xf32> to vector<8x32xf32>
    %392 = math.tanh %391 : vector<8x32xf32>
    %393 = vector.extract_strided_slice %374 {offsets = [0, 96], sizes = [8, 32], strides = [1, 1]} : vector<8x128xf32> to vector<8x32xf32>
    %cst_157 = arith.constant 0.000000e+00 : f32
    %394 = vector.broadcast %cst_157 : f32 to vector<8x32xf32>
    %395 = arith.subf %394, %393 : vector<8x32xf32>
    %396 = math.exp %395 : vector<8x32xf32>
    %cst_158 = arith.constant 1.000000e+00 : f32
    %397 = vector.broadcast %cst_158 : f32 to vector<8x32xf32>
    %398 = arith.addf %397, %396 : vector<8x32xf32>
    %cst_159 = arith.constant 1.000000e+00 : f32
    %399 = vector.broadcast %cst_159 : f32 to vector<8x32xf32>
    %400 = arith.divf %399, %398 : vector<8x32xf32>
    %401 = arith.mulf %390, %364 : vector<8x32xf32>
    %402 = arith.mulf %382, %392 : vector<8x32xf32>
    %403 = arith.addf %401, %402 : vector<8x32xf32>
    %404 = math.tanh %403 : vector<8x32xf32>
    %405 = arith.mulf %400, %404 : vector<8x32xf32>
    %c0_160 = arith.constant 0 : index
    %c0_161 = arith.constant 0 : index
    %406 = vector.load %arg21[%c0_160, %c0_161] : memref<8x64xf32, #tpu.memory_space<vmem>>, vector<8x32xf32>
    tpu.vector_store %arg21[%c0_160, %c0_161], %405 {strides = array<i32>} : memref<8x64xf32, #tpu.memory_space<vmem>>, vector<8x32xf32>,
    %c0_162 = arith.constant 0 : index
    %c0_163 = arith.constant 0 : index
    %407 = vector.load %arg21[%c0_162, %c0_163] : memref<8x64xf32, #tpu.memory_space<vmem>>, vector<8x64xf32>
    %408 = arith.truncf %407 : vector<8x64xf32> to vector<8x64xbf16>
    %c0_164 = arith.constant 0 : index
    %c0_165 = arith.constant 0 : index
    %409 = vector.load %arg11[%c0_164, %c0_165] : memref<64x512xbf16, #tpu.memory_space<vmem>>, vector<64x512xbf16>
    %cst_166 = arith.constant dense<0.000000e+00> : vector<8x512xf32>
    %410 = tpu.matmul %408, %409, %cst_166 {dimension_numbers = #tpu.dot_dimension_numbers<[1], [0], [0], [1], [0, 0, 1, 1], [], []>} : vector<8x64xbf16>, vector<64x512xbf16>, vector<8x512xf32> -> vector<8x512xf32>
    %c0_167 = arith.constant 0 : index
    %c0_168 = arith.constant 0 : index
    %411 = vector.load %arg12[%c0_167, %c0_168] : memref<1x512xf32, #tpu.memory_space<vmem>>, vector<1x512xf32>
    %412 = vector.broadcast %411 : vector<1x512xf32> to vector<8x512xf32>
    %413 = arith.mulf %410, %412 : vector<8x512xf32>
    %c0_169 = arith.constant 0 : index
    %c0_170 = arith.constant 0 : index
    %414 = vector.load %arg13[%c0_169, %c0_170] : memref<1x512xf32, #tpu.memory_space<vmem>>, vector<1x512xf32>
    %415 = vector.broadcast %414 : vector<1x512xf32> to vector<8x512xf32>
    %416 = arith.addf %413, %415 : vector<8x512xf32>
    %cst_171 = arith.constant 0.000000e+00 : f32
    %417 = vector.broadcast %cst_171 : f32 to vector<8x512xf32>
    %418 = arith.maximumf %416, %417 : vector<8x512xf32>
    %419 = arith.truncf %418 : vector<8x512xf32> to vector<8x512xbf16>
    %c0_172 = arith.constant 0 : index
    %c0_173 = arith.constant 0 : index
    %420 = vector.load %arg14[%c0_172, %c0_173] : memref<512x256xbf16, #tpu.memory_space<vmem>>, vector<512x256xbf16>
    %cst_174 = arith.constant dense<0.000000e+00> : vector<8x256xf32>
    %421 = tpu.matmul %419, %420, %cst_174 {dimension_numbers = #tpu.dot_dimension_numbers<[1], [0], [0], [1], [0, 0, 1, 1], [], []>} : vector<8x512xbf16>, vector<512x256xbf16>, vector<8x256xf32> -> vector<8x256xf32>
    %c0_175 = arith.constant 0 : index
    %c0_176 = arith.constant 0 : index
    %422 = vector.load %arg15[%c0_175, %c0_176] : memref<1x256xf32, #tpu.memory_space<vmem>>, vector<1x256xf32>
    %423 = vector.broadcast %422 : vector<1x256xf32> to vector<8x256xf32>
    %424 = arith.mulf %421, %423 : vector<8x256xf32>
    %c0_177 = arith.constant 0 : index
    %c0_178 = arith.constant 0 : index
    %425 = vector.load %arg16[%c0_177, %c0_178] : memref<1x256xf32, #tpu.memory_space<vmem>>, vector<1x256xf32>
    %426 = vector.broadcast %425 : vector<1x256xf32> to vector<8x256xf32>
    %427 = arith.addf %424, %426 : vector<8x256xf32>
    %cst_179 = arith.constant 0.000000e+00 : f32
    %428 = vector.broadcast %cst_179 : f32 to vector<8x256xf32>
    %429 = arith.maximumf %427, %428 : vector<8x256xf32>
    %430 = arith.truncf %429 : vector<8x256xf32> to vector<8x256xbf16>
    %c0_180 = arith.constant 0 : index
    %c0_181 = arith.constant 0 : index
    %431 = vector.load %arg17[%c0_180, %c0_181] : memref<256x128xbf16, #tpu.memory_space<vmem>>, vector<256x128xbf16>
    %cst_182 = arith.constant dense<0.000000e+00> : vector<8x128xf32>
    %432 = tpu.matmul %430, %431, %cst_182 {dimension_numbers = #tpu.dot_dimension_numbers<[1], [0], [0], [1], [0, 0, 1, 1], [], []>} : vector<8x256xbf16>, vector<256x128xbf16>, vector<8x128xf32> -> vector<8x128xf32>
    %c0_183 = arith.constant 0 : index
    %c0_184 = arith.constant 0 : index
    %433 = vector.load %arg18[%c0_183, %c0_184] : memref<1x128xf32, #tpu.memory_space<vmem>>, vector<1x128xf32>
    %434 = vector.broadcast %433 : vector<1x128xf32> to vector<8x128xf32>
    %435 = arith.addf %432, %434 : vector<8x128xf32>
    %cst_185 = arith.constant dense<0xFF800000> : vector<8xf32>
    %436 = vector.multi_reduction <maximumf>, %435, %cst_185 [1] : vector<8x128xf32> to vector<8xf32>
    %437 = vector.shape_cast %436 : vector<8xf32> to vector<8x1xf32>
    %438 = vector.broadcast %437 : vector<8x1xf32> to vector<8x128xf32>
    %439 = arith.subf %435, %438 : vector<8x128xf32>
    %440 = math.exp %439 : vector<8x128xf32>
    %cst_186 = arith.constant dense<0.000000e+00> : vector<8xf32>
    %441 = vector.multi_reduction <add>, %440, %cst_186 [1] : vector<8x128xf32> to vector<8xf32>
    %442 = vector.shape_cast %441 : vector<8xf32> to vector<8x1xf32>
    %443 = math.log %442 : vector<8x1xf32>
    %444 = vector.broadcast %443 : vector<8x1xf32> to vector<8x128xf32>
    %445 = arith.subf %439, %444 : vector<8x128xf32>
    %c0_187 = arith.constant 0 : index
    %c0_188 = arith.constant 0 : index
    %446 = vector.load %arg19[%c0_187, %c0_188] : memref<8x128xf32, #tpu.memory_space<vmem>>, vector<8x128xf32>
    tpu.vector_store %arg19[%c0_187, %c0_188], %445 {strides = array<i32>} : memref<8x128xf32, #tpu.memory_space<vmem>>, vector<8x128xf32>,
    return
  }
}

</mosaic_0001>

<llo_original>
// kernel: custom-call.14
$region0: #{custom-call.14}
  %s0 = inlined_call_operand.vmem [shape: f32[6,32], index: 0, kind: output, shape index: {}]

// kernel: custom-call.15
$region0: #{custom-call.15}
  %s0 = inlined_call_operand.vmem [shape: f32[6,16], index: 0, kind: output, shape index: {}]

// kernel: forward.4
$region0: #{forward.4}
  #allocation0 [shape = 'u32[]', space=smem, size = 0x4, offset = 0x4, fixed_abs, tag = 'smem constant byte address 0x4 - core index']
  #allocation1 [shape = 'u32[144,128]{1,0:T(1,128)}', space=vmem, size = 0x12000, scoped, tag = 'internal scratch']
  %s0 = inlined_call_operand.vmem [shape: f32[384,8], index: 0, kind: input, shape index: {}]
  %s1 = inlined_call_operand.vmem [shape: bf16[8,64], index: 1, kind: input, shape index: {}]
  %s2 = inlined_call_operand.vmem [shape: f32[1,64], index: 2, kind: input, shape index: {}]
  %s3 = inlined_call_operand.vmem [shape: f32[1,64], index: 3, kind: input, shape index: {}]
  %s4 = inlined_call_operand.vmem [shape: bf16[64,64], index: 4, kind: input, shape index: {}]
  %s5 = inlined_call_operand.vmem [shape: f32[1,64], index: 5, kind: input, shape index: {}]
  %s6 = inlined_call_operand.vmem [shape: f32[1,64], index: 6, kind: input, shape index: {}]
  %s7 = inlined_call_operand.vmem [shape: bf16[64,128], index: 7, kind: input, shape index: {}]
  %s8 = inlined_call_operand.vmem [shape: f32[1,128], index: 8, kind: input, shape index: {}]
  %s9 = inlined_call_operand.vmem [shape: f32[1,128], index: 9, kind: input, shape index: {}]
  %s10 = inlined_call_operand.vmem [shape: f32[96,128], index: 10, kind: output, shape index: {}]
  %s11 = sld [smem:[#allocation0]]
  $region50: #{forward.4} parent=0
    _
  %s13 = ssub.s32 1, %s11
  %s14 = scalar_select 0, %s13, %s11
  // Predicated region
  $region2: #{forward.4} parent=0 // pred_check
    _
  $region3: #{forward.4} parent=0 // pred_check_branch
    %16 = sbr.rel (0) target = $region5
  $region4: #{forward.4} parent=0 // pred_region
    _
  $region5: #{forward.4} parent=0 // pred_fallthru
    _
  // Predicated region
  $region6: #{forward.4} parent=0 // pred_check
    _
  $region7: #{forward.4} parent=0 // pred_check_branch
    %18 = sbr.rel (0) target = $region9
  $region8: #{forward.4} parent=0 // pred_region
    _
  $region9: #{forward.4} parent=0 // pred_fallthru
    _
  // Predicated region
  $region10: #{forward.4} parent=0 // pred_check
    _
  $region11: #{forward.4} parent=0 // pred_check_branch
    %20 = sbr.rel (0) target = $region13
  $region12: #{forward.4} parent=0 // pred_region
    _
  $region13: #{forward.4} parent=0 // pred_fallthru
    _
  // Predicated region
  $region14: #{forward.4} parent=0 // pred_check
    _
  $region15: #{forward.4} parent=0 // pred_check_branch
    %22 = sbr.rel (0) target = $region17
  $region16: #{forward.4} parent=0 // pred_region
    _
  $region17: #{forward.4} parent=0 // pred_fallthru
    _
  // Predicated region
  $region18: #{forward.4} parent=0 // pred_check
    _
  $region19: #{forward.4} parent=0 // pred_check_branch
    %24 = sbr.rel (0) target = $region21
  $region20: #{forward.4} parent=0 // pred_region
    _
  $region21: #{forward.4} parent=0 // pred_fallthru
    _
  // Predicated region
  $region22: #{forward.4} parent=0 // pred_check
    _
  $region23: #{forward.4} parent=0 // pred_check_branch
    %26 = sbr.rel (0) target = $region25
  $region24: #{forward.4} parent=0 // pred_region
    _
  $region25: #{forward.4} parent=0 // pred_fallthru
    _
  // Predicated region
  $region26: #{forward.4} parent=0 // pred_check
    _
  $region27: #{forward.4} parent=0 // pred_check_branch
    %28 = sbr.rel (0) target = $region29
  $region28: #{forward.4} parent=0 // pred_region
    _
  $region29: #{forward.4} parent=0 // pred_fallthru
    _
  // Predicated region
  $region30: #{forward.4} parent=0 // pred_check
    _
  $region31: #{forward.4} parent=0 // pred_check_branch
    %30 = sbr.rel (0) target = $region33
  $region32: #{forward.4} parent=0 // pred_region
    _
  $region33: #{forward.4} parent=0 // pred_fallthru
    _
  // Predicated region
  $region34: #{forward.4} parent=0 // pred_check
    _
  $region35: #{forward.4} parent=0 // pred_check_branch
    %32 = sbr.rel (0) target = $region37
  $region36: #{forward.4} parent=0 // pred_region
    _
  $region37: #{forward.4} parent=0 // pred_fallthru
    _
  // Predicated region
  $region38: #{forward.4} parent=0 // pred_check
    _
  $region39: #{forward.4} parent=0 // pred_check_branch
    %34 = sbr.rel (0) target = $region41
  $region40: #{forward.4} parent=0 // pred_region
    _
  $region41: #{forward.4} parent=0 // pred_fallthru
    _
  %v36 = vld [vmem:[%s0] sm:$0xff]
  %v37 = vld [vmem:[%s0 + $0x8] sm:$0xff]
  %v38 = vld [vmem:[%s0 + $0x10] sm:$0xff]
  %v39 = vld [vmem:[%s0 + $0x18] sm:$0xff]
  %v40 = vld [vmem:[%s0 + $0x20] sm:$0xff]
  %v41 = vld [vmem:[%s0 + $0x28] sm:$0xff]
  %v42 = vld [vmem:[%s0 + $0x30] sm:$0xff]
  %v43 = vld [vmem:[%s0 + $0x38] sm:$0xff]
  %v44 = vld [vmem:[%s0 + $0x40] sm:$0xff]
  %v45 = vld [vmem:[%s0 + $0x48] sm:$0xff]
  %v46 = vld [vmem:[%s0 + $0x50] sm:$0xff]
  %v47 = vld [vmem:[%s0 + $0x58] sm:$0xff]
  %v48 = vld [vmem:[%s0 + $0x60] sm:$0xff]
  %v49 = vld [vmem:[%s0 + $0x68] sm:$0xff]
  %v50 = vld [vmem:[%s0 + $0x70] sm:$0xff]
  %v51 = vld [vmem:[%s0 + $0x78] sm:$0xff]
  %v52 = vld [vmem:[%s0 + $0x80] sm:$0xff]
  %v53 = vld [vmem:[%s0 + $0x88] sm:$0xff]
  %v54 = vld [vmem:[%s0 + $0x90] sm:$0xff]
  %v55 = vld [vmem:[%s0 + $0x98] sm:$0xff]
  %v56 = vld [vmem:[%s0 + $0xa0] sm:$0xff]
  %v57 = vld [vmem:[%s0 + $0xa8] sm:$0xff]
  %v58 = vld [vmem:[%s0 + $0xb0] sm:$0xff]
  %v59 = vld [vmem:[%s0 + $0xb8] sm:$0xff]
  %v60 = vld [vmem:[%s0 + $0xc0] sm:$0xff]
  %v61 = vld [vmem:[%s0 + $0xc8] sm:$0xff]
  %v62 = vld [vmem:[%s0 + $0xd0] sm:$0xff]
  %v63 = vld [vmem:[%s0 + $0xd8] sm:$0xff]
  %v64 = vld [vmem:[%s0 + $0xe0] sm:$0xff]
  %v65 = vld [vmem:[%s0 + $0xe8] sm:$0xff]
  %v66 = vld [vmem:[%s0 + $0xf0] sm:$0xff]
  %v67 = vld [vmem:[%s0 + $0xf8] sm:$0xff]
  %v68 = vld [vmem:[%s0 + $0x100] sm:$0xff]
  %v69 = vld [vmem:[%s0 + $0x108] sm:$0xff]
  %v70 = vld [vmem:[%s0 + $0x110] sm:$0xff]
  %v71 = vld [vmem:[%s0 + $0x118] sm:$0xff]
  %v72 = vld [vmem:[%s0 + $0x120] sm:$0xff]
  %v73 = vld [vmem:[%s0 + $0x128] sm:$0xff]
  %v74 = vld [vmem:[%s0 + $0x130] sm:$0xff]
  %v75 = vld [vmem:[%s0 + $0x138] sm:$0xff]
  %v76 = vld [vmem:[%s0 + $0x140] sm:$0xff]
  %v77 = vld [vmem:[%s0 + $0x148] sm:$0xff]
  %v78 = vld [vmem:[%s0 + $0x150] sm:$0xff]
  %v79 = vld [vmem:[%s0 + $0x158] sm:$0xff]
  %v80 = vld [vmem:[%s0 + $0x160] sm:$0xff]
  %v81 = vld [vmem:[%s0 + $0x168] sm:$0xff]
  %v82 = vld [vmem:[%s0 + $0x170] sm:$0xff]
  %v83 = vld [vmem:[%s0 + $0x178] sm:$0xff]
  %v84 = vpack.c.bf16 %v37, %v36
  %v85 = vpack.c.bf16 %v39, %v38
  %v86 = vpack.c.bf16 %v41, %v40
  %v87 = vpack.c.bf16 %v43, %v42
  %v88 = vpack.c.bf16 %v45, %v44
  %v89 = vpack.c.bf16 %v47, %v46
  %v90 = vpack.c.bf16 %v49, %v48
  %v91 = vpack.c.bf16 %v51, %v50
  %v92 = vpack.c.bf16 %v53, %v52
  %v93 = vpack.c.bf16 %v55, %v54
  %v94 = vpack.c.bf16 %v57, %v56
  %v95 = vpack.c.bf16 %v59, %v58
  %v96 = vpack.c.bf16 %v61, %v60
  %v97 = vpack.c.bf16 %v63, %v62
  %v98 = vpack.c.bf16 %v65, %v64
  %v99 = vpack.c.bf16 %v67, %v66
  %v100 = vpack.c.bf16 %v69, %v68
  %v101 = vpack.c.bf16 %v71, %v70
  %v102 = vpack.c.bf16 %v73, %v72
  %v103 = vpack.c.bf16 %v75, %v74
  %v104 = vpack.c.bf16 %v77, %v76
  %v105 = vpack.c.bf16 %v79, %v78
  %v106 = vpack.c.bf16 %v81, %v80
  %v107 = vpack.c.bf16 %v83, %v82
  %v108 = vld [vmem:[%s1] sm:$0xf]
  %vm109 = vcmask 64512
  %v111 = vsel %vm109, %v84, 0
  %v114 = vsel %vm109, %v85, 0
  %v117 = vsel %vm109, %v86, 0
  %v120 = vsel %vm109, %v87, 0
  %v123 = vsel %vm109, %v88, 0
  %v126 = vsel %vm109, %v89, 0
  %v129 = vsel %vm109, %v90, 0
  %v132 = vsel %vm109, %v91, 0
  %v135 = vsel %vm109, %v92, 0
  %v138 = vsel %vm109, %v93, 0
  %v141 = vsel %vm109, %v94, 0
  %v144 = vsel %vm109, %v95, 0
  %v147 = vsel %vm109, %v96, 0
  %v150 = vsel %vm109, %v97, 0
  %v153 = vsel %vm109, %v98, 0
  %v156 = vsel %vm109, %v99, 0
  %v159 = vsel %vm109, %v100, 0
  %v162 = vsel %vm109, %v101, 0
  %v165 = vsel %vm109, %v102, 0
  %v168 = vsel %vm109, %v103, 0
  %v171 = vsel %vm109, %v104, 0
  %v174 = vsel %vm109, %v105, 0
  %v177 = vsel %vm109, %v106, 0
  %v180 = vsel %vm109, %v107, 0
  %vm182 = vcmask 1043456
  %v184 = vsel %vm182, %v108, 0
  %186 = vmatprep.subr.bf16.mxu0 0
  %187 = vmatpush1.bf16.msra.mxu0 0
  %188 = vmatprep.subr.bf16.mxu0 0
  %189 = vmatpush1.bf16.msra.mxu0 0
  %190 = vmatprep.subr.bf16.mxu0 0
  %191 = vmatpush1.bf16.msra.mxu0 0
  %192 = vmatprep.subr.bf16.mxu0 0
  %193 = vmatpush1.bf16.msra.mxu0 0
  %194 = vmatprep.subr.bf16.mxu0 0
  %195 = vmatpush1.bf16.msra.mxu0 0
  %196 = vmatprep.subr.bf16.mxu0 0
  %197 = vmatpush1.bf16.msra.mxu0 0
  %198 = vmatprep.subr.bf16.mxu0 0
  %199 = vmatpush1.bf16.msra.mxu0 0
  %200 = vmatprep.subr.bf16.mxu0 0
  %201 = vmatpush1.bf16.msra.mxu0 %v184
  %202 = vmatprep.subr.bf16.mxu0 0
  %203 = vmatpush2.bf16.msra.mxu0 0
  %204 = vmatprep.subr.bf16.mxu0 0
  %205 = vmatpush2.bf16.msra.mxu0 0
  %206 = vmatprep.subr.bf16.mxu0 0
  %207 = vmatpush2.bf16.msra.mxu0 0
  %208 = vmatprep.subr.bf16.mxu0 0
  %209 = vmatpush2.bf16.msra.mxu0 0
  %210 = vmatprep.subr.bf16.mxu0 0
  %211 = vmatpush2.bf16.msra.mxu0 0
  %212 = vmatprep.subr.bf16.mxu0 0
  %213 = vmatpush2.bf16.msra.mxu0 0
  %214 = vmatprep.subr.bf16.mxu0 0
  %215 = vmatpush2.bf16.msra.mxu0 0
  %216 = vmatprep.subr.bf16.mxu0 0
  %217 = vmatpush2.bf16.msra.mxu0 0
  %218 = vmatprep.mubr.bf16.mxu0 0
  %219 = vmatmul.mubr.bf16.gmra.mxu0 %v111
  %v220 = vpop.f32.mrf.mxu0
  %v221 = vadd.f32 0.0, %v220
  %v222 = vpop.f32.mrf.mxu0
  %v223 = vpop.f32.mrf.mxu0
  %v224 = vadd.f32 0.0, %v223
  %v225 = vpop.f32.mrf.mxu0
  %226 = vmatprep.mubr.bf16.mxu0 0
  %227 = vmatmul.mubr.bf16.gmra.mxu0 %v114
  %v228 = vpop.f32.mrf.mxu0
  %v229 = vadd.f32 0.0, %v228
  %v230 = vpop.f32.mrf.mxu0
  %v231 = vpop.f32.mrf.mxu0
  %v232 = vadd.f32 0.0, %v231
  %v233 = vpop.f32.mrf.mxu0
  %234 = vmatprep.mubr.bf16.mxu0 0
  %235 = vmatmul.mubr.bf16.gmra.mxu0 %v117
  %v236 = vpop.f32.mrf.mxu0
  %v237 = vadd.f32 0.0, %v236
  %v238 = vpop.f32.mrf.mxu0
  %v239 = vpop.f32.mrf.mxu0
  %v240 = vadd.f32 0.0, %v239
  %v241 = vpop.f32.mrf.mxu0
  %242 = vmatprep.mubr.bf16.mxu0 0
  %243 = vmatmul.mubr.bf16.gmra.mxu0 %v120
  %v244 = vpop.f32.mrf.mxu0
  %v245 = vadd.f32 0.0, %v244
  %v246 = vpop.f32.mrf.mxu0
  %v247 = vpop.f32.mrf.mxu0
  %v248 = vadd.f32 0.0, %v247
  %v249 = vpop.f32.mrf.mxu0
  %250 = vmatprep.mubr.bf16.mxu0 0
  %251 = vmatmul.mubr.bf16.gmra.mxu0 %v123
  %v252 = vpop.f32.mrf.mxu0
  %v253 = vadd.f32 0.0, %v252
  %v254 = vpop.f32.mrf.mxu0
  %v255 = vpop.f32.mrf.mxu0
  %v256 = vadd.f32 0.0, %v255
  %v257 = vpop.f32.mrf.mxu0
  %258 = vmatprep.mubr.bf16.mxu0 0
  %259 = vmatmul.mubr.bf16.gmra.mxu0 %v126
  %v260 = vpop.f32.mrf.mxu0
  %v261 = vadd.f32 0.0, %v260
  %v262 = vpop.f32.mrf.mxu0
  %v263 = vpop.f32.mrf.mxu0
  %v264 = vadd.f32 0.0, %v263
  %v265 = vpop.f32.mrf.mxu0
  %266 = vmatprep.mubr.bf16.mxu0 0
  %267 = vmatmul.mubr.bf16.gmra.mxu0 %v129
  %v268 = vpop.f32.mrf.mxu0
  %v269 = vadd.f32 0.0, %v268
  %v270 = vpop.f32.mrf.mxu0
  %v271 = vpop.f32.mrf.mxu0
  %v272 = vadd.f32 0.0, %v271
  %v273 = vpop.f32.mrf.mxu0
  %274 = vmatprep.mubr.bf16.mxu0 0
  %275 = vmatmul.mubr.bf16.gmra.mxu0 %v132
  %v276 = vpop.f32.mrf.mxu0
  %v277 = vadd.f32 0.0, %v276
  %v278 = vpop.f32.mrf.mxu0
  %v279 = vpop.f32.mrf.mxu0
  %v280 = vadd.f32 0.0, %v279
  %v281 = vpop.f32.mrf.mxu0
  %282 = vmatprep.mubr.bf16.mxu0 0
  %283 = vmatmul.mubr.bf16.gmra.mxu0 %v135
  %v284 = vpop.f32.mrf.mxu0
  %v285 = vadd.f32 0.0, %v284
  %v286 = vpop.f32.mrf.mxu0
  %v287 = vpop.f32.mrf.mxu0
  %v288 = vadd.f32 0.0, %v287
  %v289 = vpop.f32.mrf.mxu0
  %290 = vmatprep.mubr.bf16.mxu0 0
  %291 = vmatmul.mubr.bf16.gmra.mxu0 %v138
  %v292 = vpop.f32.mrf.mxu0
  %v293 = vadd.f32 0.0, %v292
  %v294 = vpop.f32.mrf.mxu0
  %v295 = vpop.f32.mrf.mxu0
  %v296 = vadd.f32 0.0, %v295
  %v297 = vpop.f32.mrf.mxu0
  %298 = vmatprep.mubr.bf16.mxu0 0
  %299 = vmatmul.mubr.bf16.gmra.mxu0 %v141
  %v300 = vpop.f32.mrf.mxu0
  %v301 = vadd.f32 0.0, %v300
  %v302 = vpop.f32.mrf.mxu0
  %v303 = vpop.f32.mrf.mxu0
  %v304 = vadd.f32 0.0, %v303
  %v305 = vpop.f32.mrf.mxu0
  %306 = vmatprep.mubr.bf16.mxu0 0
  %307 = vmatmul.mubr.bf16.gmra.mxu0 %v144
  %v308 = vpop.f32.mrf.mxu0
  %v309 = vadd.f32 0.0, %v308
  %v310 = vpop.f32.mrf.mxu0
  %v311 = vpop.f32.mrf.mxu0
  %v312 = vadd.f32 0.0, %v311
  %v313 = vpop.f32.mrf.mxu0
  %314 = vmatprep.mubr.bf16.mxu0 0
  %315 = vmatmul.mubr.bf16.gmra.mxu0 %v147
  %v316 = vpop.f32.mrf.mxu0
  %v317 = vadd.f32 0.0, %v316
  %v318 = vpop.f32.mrf.mxu0
  %v319 = vpop.f32.mrf.mxu0
  %v320 = vadd.f32 0.0, %v319
  %v321 = vpop.f32.mrf.mxu0
  %322 = vmatprep.mubr.bf16.mxu0 0
  %323 = vmatmul.mubr.bf16.gmra.mxu0 %v150
  %v324 = vpop.f32.mrf.mxu0
  %v325 = vadd.f32 0.0, %v324
  %v326 = vpop.f32.mrf.mxu0
  %v327 = vpop.f32.mrf.mxu0
  %v328 = vadd.f32 0.0, %v327
  %v329 = vpop.f32.mrf.mxu0
  %330 = vmatprep.mubr.bf16.mxu0 0
  %331 = vmatmul.mubr.bf16.gmra.mxu0 %v153
  %v332 = vpop.f32.mrf.mxu0
  %v333 = vadd.f32 0.0, %v332
  %v334 = vpop.f32.mrf.mxu0
  %v335 = vpop.f32.mrf.mxu0
  %v336 = vadd.f32 0.0, %v335
  %v337 = vpop.f32.mrf.mxu0
  %338 = vmatprep.mubr.bf16.mxu0 0
  %339 = vmatmul.mubr.bf16.gmra.mxu0 %v156
  %v340 = vpop.f32.mrf.mxu0
  %v341 = vadd.f32 0.0, %v340
  %v342 = vpop.f32.mrf.mxu0
  %v343 = vpop.f32.mrf.mxu0
  %v344 = vadd.f32 0.0, %v343
  %v345 = vpop.f32.mrf.mxu0
  %346 = vmatprep.mubr.bf16.mxu0 0
  %347 = vmatmul.mubr.bf16.gmra.mxu0 %v159
  %v348 = vpop.f32.mrf.mxu0
  %v349 = vadd.f32 0.0, %v348
  %v350 = vpop.f32.mrf.mxu0
  %v351 = vpop.f32.mrf.mxu0
  %v352 = vadd.f32 0.0, %v351
  %v353 = vpop.f32.mrf.mxu0
  %354 = vmatprep.mubr.bf16.mxu0 0
  %355 = vmatmul.mubr.bf16.gmra.mxu0 %v162
  %v356 = vpop.f32.mrf.mxu0
  %v357 = vadd.f32 0.0, %v356
  %v358 = vpop.f32.mrf.mxu0
  %v359 = vpop.f32.mrf.mxu0
  %v360 = vadd.f32 0.0, %v359
  %v361 = vpop.f32.mrf.mxu0
  %362 = vmatprep.mubr.bf16.mxu0 0
  %363 = vmatmul.mubr.bf16.gmra.mxu0 %v165
  %v364 = vpop.f32.mrf.mxu0
  %v365 = vadd.f32 0.0, %v364
  %v366 = vpop.f32.mrf.mxu0
  %v367 = vpop.f32.mrf.mxu0
  %v368 = vadd.f32 0.0, %v367
  %v369 = vpop.f32.mrf.mxu0
  %370 = vmatprep.mubr.bf16.mxu0 0
  %371 = vmatmul.mubr.bf16.gmra.mxu0 %v168
  %v372 = vpop.f32.mrf.mxu0
  %v373 = vadd.f32 0.0, %v372
  %v374 = vpop.f32.mrf.mxu0
  %v375 = vpop.f32.mrf.mxu0
  %v376 = vadd.f32 0.0, %v375
  %v377 = vpop.f32.mrf.mxu0
  %378 = vmatprep.mubr.bf16.mxu0 0
  %379 = vmatmul.mubr.bf16.gmra.mxu0 %v171
  %v380 = vpop.f32.mrf.mxu0
  %v381 = vadd.f32 0.0, %v380
  %v382 = vpop.f32.mrf.mxu0
  %v383 = vpop.f32.mrf.mxu0
  %v384 = vadd.f32 0.0, %v383
  %v385 = vpop.f32.mrf.mxu0
  %386 = vmatprep.mubr.bf16.mxu0 0
  %387 = vmatmul.mubr.bf16.gmra.mxu0 %v174
  %v388 = vpop.f32.mrf.mxu0
  %v389 = vadd.f32 0.0, %v388
  %v390 = vpop.f32.mrf.mxu0
  %v391 = vpop.f32.mrf.mxu0
  %v392 = vadd.f32 0.0, %v391
  %v393 = vpop.f32.mrf.mxu0
  %394 = vmatprep.mubr.bf16.mxu0 0
  %395 = vmatmul.mubr.bf16.gmra.mxu0 %v177
  %v396 = vpop.f32.mrf.mxu0
  %v397 = vadd.f32 0.0, %v396
  %v398 = vpop.f32.mrf.mxu0
  %v399 = vpop.f32.mrf.mxu0
  %v400 = vadd.f32 0.0, %v399
  %v401 = vpop.f32.mrf.mxu0
  %402 = vmatprep.mubr.bf16.mxu0 0
  %403 = vmatmul.mubr.bf16.gmra.mxu0 %v180
  %v404 = vpop.f32.mrf.mxu0
  %v405 = vadd.f32 0.0, %v404
  %v406 = vpop.f32.mrf.mxu0
  %v407 = vpop.f32.mrf.mxu0
  %v408 = vadd.f32 0.0, %v407
  %v409 = vpop.f32.mrf.mxu0
  %410 = vdwg.mxu0
  %v411 = vld [vmem:[%s2] sm:$0x1]
  %v413 = vlaneseq
  %v414 = vshrl.u32 %v413, 7
  %v415 = vsub.s32 0, %v414
  %v416 = vrot.slane %v411, %v415
  %v418 = vmul.f32 %v221, %v416
  %v419 = vmul.f32 %v224, %v416
  %v420 = vmul.f32 %v229, %v416
  %v421 = vmul.f32 %v232, %v416
  %v422 = vmul.f32 %v237, %v416
  %v423 = vmul.f32 %v240, %v416
  %v424 = vmul.f32 %v245, %v416
  %v425 = vmul.f32 %v248, %v416
  %v426 = vmul.f32 %v253, %v416
  %v427 = vmul.f32 %v256, %v416
  %v428 = vmul.f32 %v261, %v416
  %v429 = vmul.f32 %v264, %v416
  %v430 = vmul.f32 %v269, %v416
  %v431 = vmul.f32 %v272, %v416
  %v432 = vmul.f32 %v277, %v416
  %v433 = vmul.f32 %v280, %v416
  %v434 = vmul.f32 %v285, %v416
  %v435 = vmul.f32 %v288, %v416
  %v436 = vmul.f32 %v293, %v416
  %v437 = vmul.f32 %v296, %v416
  %v438 = vmul.f32 %v301, %v416
  %v439 = vmul.f32 %v304, %v416
  %v440 = vmul.f32 %v309, %v416
  %v441 = vmul.f32 %v312, %v416
  %v442 = vmul.f32 %v317, %v416
  %v443 = vmul.f32 %v320, %v416
  %v444 = vmul.f32 %v325, %v416
  %v445 = vmul.f32 %v328, %v416
  %v446 = vmul.f32 %v333, %v416
  %v447 = vmul.f32 %v336, %v416
  %v448 = vmul.f32 %v341, %v416
  %v449 = vmul.f32 %v344, %v416
  %v450 = vmul.f32 %v349, %v416
  %v451 = vmul.f32 %v352, %v416
  %v452 = vmul.f32 %v357, %v416
  %v453 = vmul.f32 %v360, %v416
  %v454 = vmul.f32 %v365, %v416
  %v455 = vmul.f32 %v368, %v416
  %v456 = vmul.f32 %v373, %v416
  %v457 = vmul.f32 %v376, %v416
  %v458 = vmul.f32 %v381, %v416
  %v459 = vmul.f32 %v384, %v416
  %v460 = vmul.f32 %v389, %v416
  %v461 = vmul.f32 %v392, %v416
  %v462 = vmul.f32 %v397, %v416
  %v463 = vmul.f32 %v400, %v416
  %v464 = vmul.f32 %v405, %v416
  %v465 = vmul.f32 %v408, %v416
  %v466 = vld [vmem:[%s3] sm:$0x1]
  %v468 = vlaneseq
  %v469 = vshrl.u32 %v468, 7
  %v470 = vsub.s32 0, %v469
  %v471 = vrot.slane %v466, %v470
  %v473 = vadd.f32 %v418, %v471
  %v474 = vadd.f32 %v419, %v471
  %v475 = vadd.f32 %v420, %v471
  %v476 = vadd.f32 %v421, %v471
  %v477 = vadd.f32 %v422, %v471
  %v478 = vadd.f32 %v423, %v471
  %v479 = vadd.f32 %v424, %v471
  %v480 = vadd.f32 %v425, %v471
  %v481 = vadd.f32 %v426, %v471
  %v482 = vadd.f32 %v427, %v471
  %v483 = vadd.f32 %v428, %v471
  %v484 = vadd.f32 %v429, %v471
  %v485 = vadd.f32 %v430, %v471
  %v486 = vadd.f32 %v431, %v471
  %v487 = vadd.f32 %v432, %v471
  %v488 = vadd.f32 %v433, %v471
  %v489 = vadd.f32 %v434, %v471
  %v490 = vadd.f32 %v435, %v471
  %v491 = vadd.f32 %v436, %v471
  %v492 = vadd.f32 %v437, %v471
  %v493 = vadd.f32 %v438, %v471
  %v494 = vadd.f32 %v439, %v471
  %v495 = vadd.f32 %v440, %v471
  %v496 = vadd.f32 %v441, %v471
  %v497 = vadd.f32 %v442, %v471
  %v498 = vadd.f32 %v443, %v471
  %v499 = vadd.f32 %v444, %v471
  %v500 = vadd.f32 %v445, %v471
  %v501 = vadd.f32 %v446, %v471
  %v502 = vadd.f32 %v447, %v471
  %v503 = vadd.f32 %v448, %v471
  %v504 = vadd.f32 %v449, %v471
  %v505 = vadd.f32 %v450, %v471
  %v506 = vadd.f32 %v451, %v471
  %v507 = vadd.f32 %v452, %v471
  %v508 = vadd.f32 %v453, %v471
  %v509 = vadd.f32 %v454, %v471
  %v510 = vadd.f32 %v455, %v471
  %v511 = vadd.f32 %v456, %v471
  %v512 = vadd.f32 %v457, %v471
  %v513 = vadd.f32 %v458, %v471
  %v514 = vadd.f32 %v459, %v471
  %v515 = vadd.f32 %v460, %v471
  %v516 = vadd.f32 %v461, %v471
  %v517 = vadd.f32 %v462, %v471
  %v518 = vadd.f32 %v463, %v471
  %v519 = vadd.f32 %v464, %v471
  %v520 = vadd.f32 %v465, %v471
  %v521 = vmax.f32 %v473, 0.0
  %v522 = vmax.f32 %v474, 0.0
  %v523 = vmax.f32 %v475, 0.0
  %v524 = vmax.f32 %v476, 0.0
  %v525 = vmax.f32 %v477, 0.0
  %v526 = vmax.f32 %v478, 0.0
  %v527 = vmax.f32 %v479, 0.0
  %v528 = vmax.f32 %v480, 0.0
  %v529 = vmax.f32 %v481, 0.0
  %v530 = vmax.f32 %v482, 0.0
  %v531 = vmax.f32 %v483, 0.0
  %v532 = vmax.f32 %v484, 0.0
  %v533 = vmax.f32 %v485, 0.0
  %v534 = vmax.f32 %v486, 0.0
  %v535 = vmax.f32 %v487, 0.0
  %v536 = vmax.f32 %v488, 0.0
  %v537 = vmax.f32 %v489, 0.0
  %v538 = vmax.f32 %v490, 0.0
  %v539 = vmax.f32 %v491, 0.0
  %v540 = vmax.f32 %v492, 0.0
  %v541 = vmax.f32 %v493, 0.0
  %v542 = vmax.f32 %v494, 0.0
  %v543 = vmax.f32 %v495, 0.0
  %v544 = vmax.f32 %v496, 0.0
  %v545 = vmax.f32 %v497, 0.0
  %v546 = vmax.f32 %v498, 0.0
  %v547 = vmax.f32 %v499, 0.0
  %v548 = vmax.f32 %v500, 0.0
  %v549 = vmax.f32 %v501, 0.0
  %v550 = vmax.f32 %v502, 0.0
  %v551 = vmax.f32 %v503, 0.0
  %v552 = vmax.f32 %v504, 0.0
  %v553 = vmax.f32 %v505, 0.0
  %v554 = vmax.f32 %v506, 0.0
  %v555 = vmax.f32 %v507, 0.0
  %v556 = vmax.f32 %v508, 0.0
  %v557 = vmax.f32 %v509, 0.0
  %v558 = vmax.f32 %v510, 0.0
  %v559 = vmax.f32 %v511, 0.0
  %v560 = vmax.f32 %v512, 0.0
  %v561 = vmax.f32 %v513, 0.0
  %v562 = vmax.f32 %v514, 0.0
  %v563 = vmax.f32 %v515, 0.0
  %v564 = vmax.f32 %v516, 0.0
  %v565 = vmax.f32 %v517, 0.0
  %v566 = vmax.f32 %v518, 0.0
  %v567 = vmax.f32 %v519, 0.0
  %v568 = vmax.f32 %v520, 0.0
  %v569 = vpack.c.bf16 %v522, %v521
  %v570 = vpack.c.bf16 %v524, %v523
  %v571 = vpack.c.bf16 %v526, %v525
  %v572 = vpack.c.bf16 %v528, %v527
  %v573 = vpack.c.bf16 %v530, %v529
  %v574 = vpack.c.bf16 %v532, %v531
  %v575 = vpack.c.bf16 %v534, %v533
  %v576 = vpack.c.bf16 %v536, %v535
  %v577 = vpack.c.bf16 %v538, %v537
  %v578 = vpack.c.bf16 %v540, %v539
  %v579 = vpack.c.bf16 %v542, %v541
  %v580 = vpack.c.bf16 %v544, %v543
  %v581 = vpack.c.bf16 %v546, %v545
  %v582 = vpack.c.bf16 %v548, %v547
  %v583 = vpack.c.bf16 %v550, %v549
  %v584 = vpack.c.bf16 %v552, %v551
  %v585 = vpack.c.bf16 %v554, %v553
  %v586 = vpack.c.bf16 %v556, %v555
  %v587 = vpack.c.bf16 %v558, %v557
  %v588 = vpack.c.bf16 %v560, %v559
  %v589 = vpack.c.bf16 %v562, %v561
  %v590 = vpack.c.bf16 %v564, %v563
  %v591 = vpack.c.bf16 %v566, %v565
  %v592 = vpack.c.bf16 %v568, %v567
  %v593 = vld [vmem:[%s4] sm:$0xf]
  %v594 = vld [vmem:[%s4 + $0x4] sm:$0xf]
  %v595 = vld [vmem:[%s4 + $0x8] sm:$0xf]
  %v596 = vld [vmem:[%s4 + $0xc] sm:$0xf]
  %v597 = vld [vmem:[%s4 + $0x10] sm:$0xf]
  %v598 = vld [vmem:[%s4 + $0x14] sm:$0xf]
  %v599 = vld [vmem:[%s4 + $0x18] sm:$0xf]
  %v600 = vld [vmem:[%s4 + $0x1c] sm:$0xf]
  %v609 = vunpack.c.l.b16 %v593
  %v610 = vunpack.c.l.b16 %v594
  %v611 = vunpack.c.l.b16 %v595
  %v612 = vunpack.c.l.b16 %v596
  %v613 = vunpack.c.l.b16 %v597
  %v614 = vunpack.c.l.b16 %v598
  %v615 = vunpack.c.l.b16 %v599
  %v616 = vunpack.c.l.b16 %v600
  %v617 = vpack.c.b16 %v610, %v609
  %v618 = vpack.c.b16 %v612, %v611
  %v619 = vpack.c.b16 %v614, %v613
  %v620 = vpack.c.b16 %v616, %v615
  %vm625 = vcmask 523264
  %v627 = vsel %vm625, %v569, 0
  %v630 = vsel %vm625, %v570, 0
  %v633 = vsel %vm625, %v571, 0
  %v636 = vsel %vm625, %v572, 0
  %v639 = vsel %vm625, %v573, 0
  %v642 = vsel %vm625, %v574, 0
  %v645 = vsel %vm625, %v575, 0
  %v648 = vsel %vm625, %v576, 0
  %v651 = vsel %vm625, %v577, 0
  %v654 = vsel %vm625, %v578, 0
  %v657 = vsel %vm625, %v579, 0
  %v660 = vsel %vm625, %v580, 0
  %v663 = vsel %vm625, %v581, 0
  %v666 = vsel %vm625, %v582, 0
  %v669 = vsel %vm625, %v583, 0
  %v672 = vsel %vm625, %v584, 0
  %v675 = vsel %vm625, %v585, 0
  %v678 = vsel %vm625, %v586, 0
  %v681 = vsel %vm625, %v587, 0
  %v684 = vsel %vm625, %v588, 0
  %v687 = vsel %vm625, %v589, 0
  %v690 = vsel %vm625, %v590, 0
  %v693 = vsel %vm625, %v591, 0
  %v696 = vsel %vm625, %v592, 0
  %698 = vmatprep.subr.bf16.mxu0 0
  %699 = vmatpush1.bf16.msra.mxu0 0
  %700 = vmatprep.subr.bf16.mxu0 0
  %701 = vmatpush1.bf16.msra.mxu0 0
  %702 = vmatprep.subr.bf16.mxu0 0
  %703 = vmatpush1.bf16.msra.mxu0 0
  %704 = vmatprep.subr.bf16.mxu0 0
  %705 = vmatpush1.bf16.msra.mxu0 0
  %706 = vmatprep.subr.bf16.mxu0 0
  %707 = vmatpush1.bf16.msra.mxu0 %v620
  %708 = vmatprep.subr.bf16.mxu0 0
  %709 = vmatpush1.bf16.msra.mxu0 %v619
  %710 = vmatprep.subr.bf16.mxu0 0
  %711 = vmatpush1.bf16.msra.mxu0 %v618
  %712 = vmatprep.subr.bf16.mxu0 0
  %713 = vmatpush1.bf16.msra.mxu0 %v617
  %714 = vmatprep.subr.bf16.mxu0 0
  %715 = vmatpush2.bf16.msra.mxu0 0
  %716 = vmatprep.subr.bf16.mxu0 0
  %717 = vmatpush2.bf16.msra.mxu0 0
  %718 = vmatprep.subr.bf16.mxu0 0
  %719 = vmatpush2.bf16.msra.mxu0 0
  %720 = vmatprep.subr.bf16.mxu0 0
  %721 = vmatpush2.bf16.msra.mxu0 0
  %722 = vmatprep.subr.bf16.mxu0 0
  %723 = vmatpush2.bf16.msra.mxu0 0
  %724 = vmatprep.subr.bf16.mxu0 0
  %725 = vmatpush2.bf16.msra.mxu0 0
  %726 = vmatprep.subr.bf16.mxu0 0
  %727 = vmatpush2.bf16.msra.mxu0 0
  %728 = vmatprep.subr.bf16.mxu0 0
  %729 = vmatpush2.bf16.msra.mxu0 0
  %730 = vmatprep.mubr.bf16.mxu0 0
  %731 = vmatmul.mubr.bf16.gmra.mxu0 %v627
  %v732 = vpop.f32.mrf.mxu0
  %v733 = vadd.f32 0.0, %v732
  %v734 = vpop.f32.mrf.mxu0
  %v735 = vpop.f32.mrf.mxu0
  %v736 = vadd.f32 0.0, %v735
  %v737 = vpop.f32.mrf.mxu0
  %738 = vmatprep.mubr.bf16.mxu0 0
  %739 = vmatmul.mubr.bf16.gmra.mxu0 %v630
  %v740 = vpop.f32.mrf.mxu0
  %v741 = vadd.f32 0.0, %v740
  %v742 = vpop.f32.mrf.mxu0
  %v743 = vpop.f32.mrf.mxu0
  %v744 = vadd.f32 0.0, %v743
  %v745 = vpop.f32.mrf.mxu0
  %746 = vmatprep.mubr.bf16.mxu0 0
  %747 = vmatmul.mubr.bf16.gmra.mxu0 %v633
  %v748 = vpop.f32.mrf.mxu0
  %v749 = vadd.f32 0.0, %v748
  %v750 = vpop.f32.mrf.mxu0
  %v751 = vpop.f32.mrf.mxu0
  %v752 = vadd.f32 0.0, %v751
  %v753 = vpop.f32.mrf.mxu0
  %754 = vmatprep.mubr.bf16.mxu0 0
  %755 = vmatmul.mubr.bf16.gmra.mxu0 %v636
  %v756 = vpop.f32.mrf.mxu0
  %v757 = vadd.f32 0.0, %v756
  %v758 = vpop.f32.mrf.mxu0
  %v759 = vpop.f32.mrf.mxu0
  %v760 = vadd.f32 0.0, %v759
  %v761 = vpop.f32.mrf.mxu0
  %762 = vmatprep.mubr.bf16.mxu0 0
  %763 = vmatmul.mubr.bf16.gmra.mxu0 %v639
  %v764 = vpop.f32.mrf.mxu0
  %v765 = vadd.f32 0.0, %v764
  %v766 = vpop.f32.mrf.mxu0
  %v767 = vpop.f32.mrf.mxu0
  %v768 = vadd.f32 0.0, %v767
  %v769 = vpop.f32.mrf.mxu0
  %770 = vmatprep.mubr.bf16.mxu0 0
  %771 = vmatmul.mubr.bf16.gmra.mxu0 %v642
  %v772 = vpop.f32.mrf.mxu0
  %v773 = vadd.f32 0.0, %v772
  %v774 = vpop.f32.mrf.mxu0
  %v775 = vpop.f32.mrf.mxu0
  %v776 = vadd.f32 0.0, %v775
  %v777 = vpop.f32.mrf.mxu0
  %778 = vmatprep.mubr.bf16.mxu0 0
  %779 = vmatmul.mubr.bf16.gmra.mxu0 %v645
  %v780 = vpop.f32.mrf.mxu0
  %v781 = vadd.f32 0.0, %v780
  %v782 = vpop.f32.mrf.mxu0
  %v783 = vpop.f32.mrf.mxu0
  %v784 = vadd.f32 0.0, %v783
  %v785 = vpop.f32.mrf.mxu0
  %786 = vmatprep.mubr.bf16.mxu0 0
  %787 = vmatmul.mubr.bf16.gmra.mxu0 %v648
  %v788 = vpop.f32.mrf.mxu0
  %v789 = vadd.f32 0.0, %v788
  %v790 = vpop.f32.mrf.mxu0
  %v791 = vpop.f32.mrf.mxu0
  %v792 = vadd.f32 0.0, %v791
  %v793 = vpop.f32.mrf.mxu0
  %794 = vmatprep.mubr.bf16.mxu0 0
  %795 = vmatmul.mubr.bf16.gmra.mxu0 %v651
  %v796 = vpop.f32.mrf.mxu0
  %v797 = vadd.f32 0.0, %v796
  %v798 = vpop.f32.mrf.mxu0
  %v799 = vpop.f32.mrf.mxu0
  %v800 = vadd.f32 0.0, %v799
  %v801 = vpop.f32.mrf.mxu0
  %802 = vmatprep.mubr.bf16.mxu0 0
  %803 = vmatmul.mubr.bf16.gmra.mxu0 %v654
  %v804 = vpop.f32.mrf.mxu0
  %v805 = vadd.f32 0.0, %v804
  %v806 = vpop.f32.mrf.mxu0
  %v807 = vpop.f32.mrf.mxu0
  %v808 = vadd.f32 0.0, %v807
  %v809 = vpop.f32.mrf.mxu0
  %810 = vmatprep.mubr.bf16.mxu0 0
  %811 = vmatmul.mubr.bf16.gmra.mxu0 %v657
  %v812 = vpop.f32.mrf.mxu0
  %v813 = vadd.f32 0.0, %v812
  %v814 = vpop.f32.mrf.mxu0
  %v815 = vpop.f32.mrf.mxu0
  %v816 = vadd.f32 0.0, %v815
  %v817 = vpop.f32.mrf.mxu0
  %818 = vmatprep.mubr.bf16.mxu0 0
  %819 = vmatmul.mubr.bf16.gmra.mxu0 %v660
  %v820 = vpop.f32.mrf.mxu0
  %v821 = vadd.f32 0.0, %v820
  %v822 = vpop.f32.mrf.mxu0
  %v823 = vpop.f32.mrf.mxu0
  %v824 = vadd.f32 0.0, %v823
  %v825 = vpop.f32.mrf.mxu0
  %826 = vmatprep.mubr.bf16.mxu0 0
  %827 = vmatmul.mubr.bf16.gmra.mxu0 %v663
  %v828 = vpop.f32.mrf.mxu0
  %v829 = vadd.f32 0.0, %v828
  %v830 = vpop.f32.mrf.mxu0
  %v831 = vpop.f32.mrf.mxu0
  %v832 = vadd.f32 0.0, %v831
  %v833 = vpop.f32.mrf.mxu0
  %834 = vmatprep.mubr.bf16.mxu0 0
  %835 = vmatmul.mubr.bf16.gmra.mxu0 %v666
  %v836 = vpop.f32.mrf.mxu0
  %v837 = vadd.f32 0.0, %v836
  %v838 = vpop.f32.mrf.mxu0
  %v839 = vpop.f32.mrf.mxu0
  %v840 = vadd.f32 0.0, %v839
  %v841 = vpop.f32.mrf.mxu0
  %842 = vmatprep.mubr.bf16.mxu0 0
  %843 = vmatmul.mubr.bf16.gmra.mxu0 %v669
  %v844 = vpop.f32.mrf.mxu0
  %v845 = vadd.f32 0.0, %v844
  %v846 = vpop.f32.mrf.mxu0
  %v847 = vpop.f32.mrf.mxu0
  %v848 = vadd.f32 0.0, %v847
  %v849 = vpop.f32.mrf.mxu0
  %850 = vmatprep.mubr.bf16.mxu0 0
  %851 = vmatmul.mubr.bf16.gmra.mxu0 %v672
  %v852 = vpop.f32.mrf.mxu0
  %v853 = vadd.f32 0.0, %v852
  %v854 = vpop.f32.mrf.mxu0
  %v855 = vpop.f32.mrf.mxu0
  %v856 = vadd.f32 0.0, %v855
  %v857 = vpop.f32.mrf.mxu0
  %858 = vmatprep.mubr.bf16.mxu0 0
  %859 = vmatmul.mubr.bf16.gmra.mxu0 %v675
  %v860 = vpop.f32.mrf.mxu0
  %v861 = vadd.f32 0.0, %v860
  %v862 = vpop.f32.mrf.mxu0
  %v863 = vpop.f32.mrf.mxu0
  %v864 = vadd.f32 0.0, %v863
  %v865 = vpop.f32.mrf.mxu0
  %866 = vmatprep.mubr.bf16.mxu0 0
  %867 = vmatmul.mubr.bf16.gmra.mxu0 %v678
  %v868 = vpop.f32.mrf.mxu0
  %v869 = vadd.f32 0.0, %v868
  %v870 = vpop.f32.mrf.mxu0
  %v871 = vpop.f32.mrf.mxu0
  %v872 = vadd.f32 0.0, %v871
  %v873 = vpop.f32.mrf.mxu0
  %874 = vmatprep.mubr.bf16.mxu0 0
  %875 = vmatmul.mubr.bf16.gmra.mxu0 %v681
  %v876 = vpop.f32.mrf.mxu0
  %v877 = vadd.f32 0.0, %v876
  %v878 = vpop.f32.mrf.mxu0
  %v879 = vpop.f32.mrf.mxu0
  %v880 = vadd.f32 0.0, %v879
  %v881 = vpop.f32.mrf.mxu0
  %882 = vmatprep.mubr.bf16.mxu0 0
  %883 = vmatmul.mubr.bf16.gmra.mxu0 %v684
  %v884 = vpop.f32.mrf.mxu0
  %v885 = vadd.f32 0.0, %v884
  %v886 = vpop.f32.mrf.mxu0
  %v887 = vpop.f32.mrf.mxu0
  %v888 = vadd.f32 0.0, %v887
  %v889 = vpop.f32.mrf.mxu0
  %890 = vmatprep.mubr.bf16.mxu0 0
  %891 = vmatmul.mubr.bf16.gmra.mxu0 %v687
  %v892 = vpop.f32.mrf.mxu0
  %v893 = vadd.f32 0.0, %v892
  %v894 = vpop.f32.mrf.mxu0
  %v895 = vpop.f32.mrf.mxu0
  %v896 = vadd.f32 0.0, %v895
  %v897 = vpop.f32.mrf.mxu0
  %898 = vmatprep.mubr.bf16.mxu0 0
  %899 = vmatmul.mubr.bf16.gmra.mxu0 %v690
  %v900 = vpop.f32.mrf.mxu0
  %v901 = vadd.f32 0.0, %v900
  %v902 = vpop.f32.mrf.mxu0
  %v903 = vpop.f32.mrf.mxu0
  %v904 = vadd.f32 0.0, %v903
  %v905 = vpop.f32.mrf.mxu0
  %906 = vmatprep.mubr.bf16.mxu0 0
  %907 = vmatmul.mubr.bf16.gmra.mxu0 %v693
  %v908 = vpop.f32.mrf.mxu0
  %v909 = vadd.f32 0.0, %v908
  %v910 = vpop.f32.mrf.mxu0
  %v911 = vpop.f32.mrf.mxu0
  %v912 = vadd.f32 0.0, %v911
  %v913 = vpop.f32.mrf.mxu0
  %914 = vmatprep.mubr.bf16.mxu0 0
  %915 = vmatmul.mubr.bf16.gmra.mxu0 %v696
  %v916 = vpop.f32.mrf.mxu0
  %v917 = vadd.f32 0.0, %v916
  %v918 = vpop.f32.mrf.mxu0
  %v919 = vpop.f32.mrf.mxu0
  %v920 = vadd.f32 0.0, %v919
  %v921 = vpop.f32.mrf.mxu0
  %922 = vdwg.mxu0
  %v923 = vld [vmem:[%s5] sm:$0x1]
  %v925 = vlaneseq
  %v926 = vshrl.u32 %v925, 7
  %v927 = vsub.s32 0, %v926
  %v928 = vrot.slane %v923, %v927
  %v930 = vmul.f32 %v733, %v928
  %v931 = vmul.f32 %v736, %v928
  %v932 = vmul.f32 %v741, %v928
  %v933 = vmul.f32 %v744, %v928
  %v934 = vmul.f32 %v749, %v928
  %v935 = vmul.f32 %v752, %v928
  %v936 = vmul.f32 %v757, %v928
  %v937 = vmul.f32 %v760, %v928
  %v938 = vmul.f32 %v765, %v928
  %v939 = vmul.f32 %v768, %v928
  %v940 = vmul.f32 %v773, %v928
  %v941 = vmul.f32 %v776, %v928
  %v942 = vmul.f32 %v781, %v928
  %v943 = vmul.f32 %v784, %v928
  %v944 = vmul.f32 %v789, %v928
  %v945 = vmul.f32 %v792, %v928
  %v946 = vmul.f32 %v797, %v928
  %v947 = vmul.f32 %v800, %v928
  %v948 = vmul.f32 %v805, %v928
  %v949 = vmul.f32 %v808, %v928
  %v950 = vmul.f32 %v813, %v928
  %v951 = vmul.f32 %v816, %v928
  %v952 = vmul.f32 %v821, %v928
  %v953 = vmul.f32 %v824, %v928
  %v954 = vmul.f32 %v829, %v928
  %v955 = vmul.f32 %v832, %v928
  %v956 = vmul.f32 %v837, %v928
  %v957 = vmul.f32 %v840, %v928
  %v958 = vmul.f32 %v845, %v928
  %v959 = vmul.f32 %v848, %v928
  %v960 = vmul.f32 %v853, %v928
  %v961 = vmul.f32 %v856, %v928
  %v962 = vmul.f32 %v861, %v928
  %v963 = vmul.f32 %v864, %v928
  %v964 = vmul.f32 %v869, %v928
  %v965 = vmul.f32 %v872, %v928
  %v966 = vmul.f32 %v877, %v928
  %v967 = vmul.f32 %v880, %v928
  %v968 = vmul.f32 %v885, %v928
  %v969 = vmul.f32 %v888, %v928
  %v970 = vmul.f32 %v893, %v928
  %v971 = vmul.f32 %v896, %v928
  %v972 = vmul.f32 %v901, %v928
  %v973 = vmul.f32 %v904, %v928
  %v974 = vmul.f32 %v909, %v928
  %v975 = vmul.f32 %v912, %v928
  %v976 = vmul.f32 %v917, %v928
  %v977 = vmul.f32 %v920, %v928
  %v978 = vld [vmem:[%s6] sm:$0x1]
  %v980 = vlaneseq
  %v981 = vshrl.u32 %v980, 7
  %v982 = vsub.s32 0, %v981
  %v983 = vrot.slane %v978, %v982
  %v985 = vadd.f32 %v930, %v983
  %v986 = vadd.f32 %v931, %v983
  %v987 = vadd.f32 %v932, %v983
  %v988 = vadd.f32 %v933, %v983
  %v989 = vadd.f32 %v934, %v983
  %v990 = vadd.f32 %v935, %v983
  %v991 = vadd.f32 %v936, %v983
  %v992 = vadd.f32 %v937, %v983
  %v993 = vadd.f32 %v938, %v983
  %v994 = vadd.f32 %v939, %v983
  %v995 = vadd.f32 %v940, %v983
  %v996 = vadd.f32 %v941, %v983
  %v997 = vadd.f32 %v942, %v983
  %v998 = vadd.f32 %v943, %v983
  %v999 = vadd.f32 %v944, %v983
  %v1000 = vadd.f32 %v945, %v983
  %v1001 = vadd.f32 %v946, %v983
  %v1002 = vadd.f32 %v947, %v983
  %v1003 = vadd.f32 %v948, %v983
  %v1004 = vadd.f32 %v949, %v983
  %v1005 = vadd.f32 %v950, %v983
  %v1006 = vadd.f32 %v951, %v983
  %v1007 = vadd.f32 %v952, %v983
  %v1008 = vadd.f32 %v953, %v983
  %v1009 = vadd.f32 %v954, %v983
  %v1010 = vadd.f32 %v955, %v983
  %v1011 = vadd.f32 %v956, %v983
  %v1012 = vadd.f32 %v957, %v983
  %v1013 = vadd.f32 %v958, %v983
  %v1014 = vadd.f32 %v959, %v983
  %v1015 = vadd.f32 %v960, %v983
  %v1016 = vadd.f32 %v961, %v983
  %v1017 = vadd.f32 %v962, %v983
  %v1018 = vadd.f32 %v963, %v983
  %v1019 = vadd.f32 %v964, %v983
  %v1020 = vadd.f32 %v965, %v983
  %v1021 = vadd.f32 %v966, %v983
  %v1022 = vadd.f32 %v967, %v983
  %v1023 = vadd.f32 %v968, %v983
  %v1024 = vadd.f32 %v969, %v983
  %v1025 = vadd.f32 %v970, %v983
  %v1026 = vadd.f32 %v971, %v983
  %v1027 = vadd.f32 %v972, %v983
  %v1028 = vadd.f32 %v973, %v983
  %v1029 = vadd.f32 %v974, %v983
  %v1030 = vadd.f32 %v975, %v983
  %v1031 = vadd.f32 %v976, %v983
  %v1032 = vadd.f32 %v977, %v983
  %v1033 = vmax.f32 %v985, 0.0
  %v1034 = vmax.f32 %v986, 0.0
  %v1035 = vmax.f32 %v987, 0.0
  %v1036 = vmax.f32 %v988, 0.0
  %v1037 = vmax.f32 %v989, 0.0
  %v1038 = vmax.f32 %v990, 0.0
  %v1039 = vmax.f32 %v991, 0.0
  %v1040 = vmax.f32 %v992, 0.0
  %v1041 = vmax.f32 %v993, 0.0
  %v1042 = vmax.f32 %v994, 0.0
  %v1043 = vmax.f32 %v995, 0.0
  %v1044 = vmax.f32 %v996, 0.0
  %v1045 = vmax.f32 %v997, 0.0
  %v1046 = vmax.f32 %v998, 0.0
  %v1047 = vmax.f32 %v999, 0.0
  %v1048 = vmax.f32 %v1000, 0.0
  %v1049 = vmax.f32 %v1001, 0.0
  %v1050 = vmax.f32 %v1002, 0.0
  %v1051 = vmax.f32 %v1003, 0.0
  %v1052 = vmax.f32 %v1004, 0.0
  %v1053 = vmax.f32 %v1005, 0.0
  %v1054 = vmax.f32 %v1006, 0.0
  %v1055 = vmax.f32 %v1007, 0.0
  %v1056 = vmax.f32 %v1008, 0.0
  %v1057 = vmax.f32 %v1009, 0.0
  %v1058 = vmax.f32 %v1010, 0.0
  %v1059 = vmax.f32 %v1011, 0.0
  %v1060 = vmax.f32 %v1012, 0.0
  %v1061 = vmax.f32 %v1013, 0.0
  %v1062 = vmax.f32 %v1014, 0.0
  %v1063 = vmax.f32 %v1015, 0.0
  %v1064 = vmax.f32 %v1016, 0.0
  %v1065 = vmax.f32 %v1017, 0.0
  %v1066 = vmax.f32 %v1018, 0.0
  %v1067 = vmax.f32 %v1019, 0.0
  %v1068 = vmax.f32 %v1020, 0.0
  %v1069 = vmax.f32 %v1021, 0.0
  %v1070 = vmax.f32 %v1022, 0.0
  %v1071 = vmax.f32 %v1023, 0.0
  %v1072 = vmax.f32 %v1024, 0.0
  %v1073 = vmax.f32 %v1025, 0.0
  %v1074 = vmax.f32 %v1026, 0.0
  %v1075 = vmax.f32 %v1027, 0.0
  %v1076 = vmax.f32 %v1028, 0.0
  %v1077 = vmax.f32 %v1029, 0.0
  %v1078 = vmax.f32 %v1030, 0.0
  %v1079 = vmax.f32 %v1031, 0.0
  %v1080 = vmax.f32 %v1032, 0.0
  %v1081 = vpack.c.bf16 %v1034, %v1033
  %v1082 = vpack.c.bf16 %v1036, %v1035
  %v1083 = vpack.c.bf16 %v1038, %v1037
  %v1084 = vpack.c.bf16 %v1040, %v1039
  %v1085 = vpack.c.bf16 %v1042, %v1041
  %v1086 = vpack.c.bf16 %v1044, %v1043
  %v1087 = vpack.c.bf16 %v1046, %v1045
  %v1088 = vpack.c.bf16 %v1048, %v1047
  %v1089 = vpack.c.bf16 %v1050, %v1049
  %v1090 = vpack.c.bf16 %v1052, %v1051
  %v1091 = vpack.c.bf16 %v1054, %v1053
  %v1092 = vpack.c.bf16 %v1056, %v1055
  %v1093 = vpack.c.bf16 %v1058, %v1057
  %v1094 = vpack.c.bf16 %v1060, %v1059
  %v1095 = vpack.c.bf16 %v1062, %v1061
  %v1096 = vpack.c.bf16 %v1064, %v1063
  %v1097 = vpack.c.bf16 %v1066, %v1065
  %v1098 = vpack.c.bf16 %v1068, %v1067
  %v1099 = vpack.c.bf16 %v1070, %v1069
  %v1100 = vpack.c.bf16 %v1072, %v1071
  %v1101 = vpack.c.bf16 %v1074, %v1073
  %v1102 = vpack.c.bf16 %v1076, %v1075
  %v1103 = vpack.c.bf16 %v1078, %v1077
  %v1104 = vpack.c.bf16 %v1080, %v1079
  %v1105 = vld [vmem:[%s7] sm:$0xf]
  %v1106 = vld [vmem:[%s7 + $0x4] sm:$0xf]
  %v1107 = vld [vmem:[%s7 + $0x8] sm:$0xf]
  %v1108 = vld [vmem:[%s7 + $0xc] sm:$0xf]
  %v1109 = vld [vmem:[%s7 + $0x10] sm:$0xf]
  %v1110 = vld [vmem:[%s7 + $0x14] sm:$0xf]
  %v1111 = vld [vmem:[%s7 + $0x18] sm:$0xf]
  %v1112 = vld [vmem:[%s7 + $0x1c] sm:$0xf]
  %v1121 = vunpack.c.l.b16 %v1105
  %v1122 = vunpack.c.l.b16 %v1106
  %v1123 = vunpack.c.l.b16 %v1107
  %v1124 = vunpack.c.l.b16 %v1108
  %v1125 = vunpack.c.l.b16 %v1109
  %v1126 = vunpack.c.l.b16 %v1110
  %v1127 = vunpack.c.l.b16 %v1111
  %v1128 = vunpack.c.l.b16 %v1112
  %v1129 = vpack.c.b16 %v1122, %v1121
  %v1130 = vpack.c.b16 %v1124, %v1123
  %v1131 = vpack.c.b16 %v1126, %v1125
  %v1132 = vpack.c.b16 %v1128, %v1127
  %v1138 = vsel %vm625, %v1081, 0
  %v1141 = vsel %vm625, %v1082, 0
  %v1144 = vsel %vm625, %v1083, 0
  %v1147 = vsel %vm625, %v1084, 0
  %v1150 = vsel %vm625, %v1085, 0
  %v1153 = vsel %vm625, %v1086, 0
  %v1156 = vsel %vm625, %v1087, 0
  %v1159 = vsel %vm625, %v1088, 0
  %v1162 = vsel %vm625, %v1089, 0
  %v1165 = vsel %vm625, %v1090, 0
  %v1168 = vsel %vm625, %v1091, 0
  %v1171 = vsel %vm625, %v1092, 0
  %v1174 = vsel %vm625, %v1093, 0
  %v1177 = vsel %vm625, %v1094, 0
  %v1180 = vsel %vm625, %v1095, 0
  %v1183 = vsel %vm625, %v1096, 0
  %v1186 = vsel %vm625, %v1097, 0
  %v1189 = vsel %vm625, %v1098, 0
  %v1192 = vsel %vm625, %v1099, 0
  %v1195 = vsel %vm625, %v1100, 0
  %v1198 = vsel %vm625, %v1101, 0
  %v1201 = vsel %vm625, %v1102, 0
  %v1204 = vsel %vm625, %v1103, 0
  %v1207 = vsel %vm625, %v1104, 0
  %1209 = vmatprep.subr.bf16.mxu0 0
  %1210 = vmatpush1.bf16.msra.mxu0 0
  %1211 = vmatprep.subr.bf16.mxu0 0
  %1212 = vmatpush1.bf16.msra.mxu0 0
  %1213 = vmatprep.subr.bf16.mxu0 0
  %1214 = vmatpush1.bf16.msra.mxu0 0
  %1215 = vmatprep.subr.bf16.mxu0 0
  %1216 = vmatpush1.bf16.msra.mxu0 0
  %1217 = vmatprep.subr.bf16.mxu0 0
  %1218 = vmatpush1.bf16.msra.mxu0 %v1132
  %1219 = vmatprep.subr.bf16.mxu0 0
  %1220 = vmatpush1.bf16.msra.mxu0 %v1131
  %1221 = vmatprep.subr.bf16.mxu0 0
  %1222 = vmatpush1.bf16.msra.mxu0 %v1130
  %1223 = vmatprep.subr.bf16.mxu0 0
  %1224 = vmatpush1.bf16.msra.mxu0 %v1129
  %1225 = vmatprep.subr.bf16.mxu0 0
  %1226 = vmatpush2.bf16.msra.mxu0 0
  %1227 = vmatprep.subr.bf16.mxu0 0
  %1228 = vmatpush2.bf16.msra.mxu0 0
  %1229 = vmatprep.subr.bf16.mxu0 0
  %1230 = vmatpush2.bf16.msra.mxu0 0
  %1231 = vmatprep.subr.bf16.mxu0 0
  %1232 = vmatpush2.bf16.msra.mxu0 0
  %1233 = vmatprep.subr.bf16.mxu0 0
  %1234 = vmatpush2.bf16.msra.mxu0 0
  %1235 = vmatprep.subr.bf16.mxu0 0
  %1236 = vmatpush2.bf16.msra.mxu0 0
  %1237 = vmatprep.subr.bf16.mxu0 0
  %1238 = vmatpush2.bf16.msra.mxu0 0
  %1239 = vmatprep.subr.bf16.mxu0 0
  %1240 = vmatpush2.bf16.msra.mxu0 0
  %1241 = vmatprep.mubr.bf16.mxu0 0
  %1242 = vmatmul.mubr.bf16.gmra.mxu0 %v1138
  %v1243 = vpop.f32.mrf.mxu0
  %v1244 = vadd.f32 0.0, %v1243
  %v1245 = vpop.f32.mrf.mxu0
  %v1246 = vpop.f32.mrf.mxu0
  %v1247 = vadd.f32 0.0, %v1246
  %v1248 = vpop.f32.mrf.mxu0
  %1249 = vmatprep.mubr.bf16.mxu0 0
  %1250 = vmatmul.mubr.bf16.gmra.mxu0 %v1141
  %v1251 = vpop.f32.mrf.mxu0
  %v1252 = vadd.f32 0.0, %v1251
  %v1253 = vpop.f32.mrf.mxu0
  %v1254 = vpop.f32.mrf.mxu0
  %v1255 = vadd.f32 0.0, %v1254
  %v1256 = vpop.f32.mrf.mxu0
  %1257 = vmatprep.mubr.bf16.mxu0 0
  %1258 = vmatmul.mubr.bf16.gmra.mxu0 %v1144
  %v1259 = vpop.f32.mrf.mxu0
  %v1260 = vadd.f32 0.0, %v1259
  %v1261 = vpop.f32.mrf.mxu0
  %v1262 = vpop.f32.mrf.mxu0
  %v1263 = vadd.f32 0.0, %v1262
  %v1264 = vpop.f32.mrf.mxu0
  %1265 = vmatprep.mubr.bf16.mxu0 0
  %1266 = vmatmul.mubr.bf16.gmra.mxu0 %v1147
  %v1267 = vpop.f32.mrf.mxu0
  %v1268 = vadd.f32 0.0, %v1267
  %v1269 = vpop.f32.mrf.mxu0
  %v1270 = vpop.f32.mrf.mxu0
  %v1271 = vadd.f32 0.0, %v1270
  %v1272 = vpop.f32.mrf.mxu0
  %1273 = vmatprep.mubr.bf16.mxu0 0
  %1274 = vmatmul.mubr.bf16.gmra.mxu0 %v1150
  %v1275 = vpop.f32.mrf.mxu0
  %v1276 = vadd.f32 0.0, %v1275
  %v1277 = vpop.f32.mrf.mxu0
  %v1278 = vpop.f32.mrf.mxu0
  %v1279 = vadd.f32 0.0, %v1278
  %v1280 = vpop.f32.mrf.mxu0
  %1281 = vmatprep.mubr.bf16.mxu0 0
  %1282 = vmatmul.mubr.bf16.gmra.mxu0 %v1153
  %v1283 = vpop.f32.mrf.mxu0
  %v1284 = vadd.f32 0.0, %v1283
  %v1285 = vpop.f32.mrf.mxu0
  %v1286 = vpop.f32.mrf.mxu0
  %v1287 = vadd.f32 0.0, %v1286
  %v1288 = vpop.f32.mrf.mxu0
  %1289 = vmatprep.mubr.bf16.mxu0 0
  %1290 = vmatmul.mubr.bf16.gmra.mxu0 %v1156
  %v1291 = vpop.f32.mrf.mxu0
  %v1292 = vadd.f32 0.0, %v1291
  %v1293 = vpop.f32.mrf.mxu0
  %v1294 = vpop.f32.mrf.mxu0
  %v1295 = vadd.f32 0.0, %v1294
  %v1296 = vpop.f32.mrf.mxu0
  %1297 = vmatprep.mubr.bf16.mxu0 0
  %1298 = vmatmul.mubr.bf16.gmra.mxu0 %v1159
  %v1299 = vpop.f32.mrf.mxu0
  %v1300 = vadd.f32 0.0, %v1299
  %v1301 = vpop.f32.mrf.mxu0
  %v1302 = vpop.f32.mrf.mxu0
  %v1303 = vadd.f32 0.0, %v1302
  %v1304 = vpop.f32.mrf.mxu0
  %1305 = vmatprep.mubr.bf16.mxu0 0
  %1306 = vmatmul.mubr.bf16.gmra.mxu0 %v1162
  %v1307 = vpop.f32.mrf.mxu0
  %v1308 = vadd.f32 0.0, %v1307
  %v1309 = vpop.f32.mrf.mxu0
  %v1310 = vpop.f32.mrf.mxu0
  %v1311 = vadd.f32 0.0, %v1310
  %v1312 = vpop.f32.mrf.mxu0
  %1313 = vmatprep.mubr.bf16.mxu0 0
  %1314 = vmatmul.mubr.bf16.gmra.mxu0 %v1165
  %v1315 = vpop.f32.mrf.mxu0
  %v1316 = vadd.f32 0.0, %v1315
  %v1317 = vpop.f32.mrf.mxu0
  %v1318 = vpop.f32.mrf.mxu0
  %v1319 = vadd.f32 0.0, %v1318
  %v1320 = vpop.f32.mrf.mxu0
  %1321 = vmatprep.mubr.bf16.mxu0 0
  %1322 = vmatmul.mubr.bf16.gmra.mxu0 %v1168
  %v1323 = vpop.f32.mrf.mxu0
  %v1324 = vadd.f32 0.0, %v1323
  %v1325 = vpop.f32.mrf.mxu0
  %v1326 = vpop.f32.mrf.mxu0
  %v1327 = vadd.f32 0.0, %v1326
  %v1328 = vpop.f32.mrf.mxu0
  %1329 = vmatprep.mubr.bf16.mxu0 0
  %1330 = vmatmul.mubr.bf16.gmra.mxu0 %v1171
  %v1331 = vpop.f32.mrf.mxu0
  %v1332 = vadd.f32 0.0, %v1331
  %v1333 = vpop.f32.mrf.mxu0
  %v1334 = vpop.f32.mrf.mxu0
  %v1335 = vadd.f32 0.0, %v1334
  %v1336 = vpop.f32.mrf.mxu0
  %1337 = vmatprep.mubr.bf16.mxu0 0
  %1338 = vmatmul.mubr.bf16.gmra.mxu0 %v1174
  %v1339 = vpop.f32.mrf.mxu0
  %v1340 = vadd.f32 0.0, %v1339
  %v1341 = vpop.f32.mrf.mxu0
  %v1342 = vpop.f32.mrf.mxu0
  %v1343 = vadd.f32 0.0, %v1342
  %v1344 = vpop.f32.mrf.mxu0
  %1345 = vmatprep.mubr.bf16.mxu0 0
  %1346 = vmatmul.mubr.bf16.gmra.mxu0 %v1177
  %v1347 = vpop.f32.mrf.mxu0
  %v1348 = vadd.f32 0.0, %v1347
  %v1349 = vpop.f32.mrf.mxu0
  %v1350 = vpop.f32.mrf.mxu0
  %v1351 = vadd.f32 0.0, %v1350
  %v1352 = vpop.f32.mrf.mxu0
  %1353 = vmatprep.mubr.bf16.mxu0 0
  %1354 = vmatmul.mubr.bf16.gmra.mxu0 %v1180
  %v1355 = vpop.f32.mrf.mxu0
  %v1356 = vadd.f32 0.0, %v1355
  %v1357 = vpop.f32.mrf.mxu0
  %v1358 = vpop.f32.mrf.mxu0
  %v1359 = vadd.f32 0.0, %v1358
  %v1360 = vpop.f32.mrf.mxu0
  %1361 = vmatprep.mubr.bf16.mxu0 0
  %1362 = vmatmul.mubr.bf16.gmra.mxu0 %v1183
  %v1363 = vpop.f32.mrf.mxu0
  %v1364 = vadd.f32 0.0, %v1363
  %v1365 = vpop.f32.mrf.mxu0
  %v1366 = vpop.f32.mrf.mxu0
  %v1367 = vadd.f32 0.0, %v1366
  %v1368 = vpop.f32.mrf.mxu0
  %1369 = vmatprep.mubr.bf16.mxu0 0
  %1370 = vmatmul.mubr.bf16.gmra.mxu0 %v1186
  %v1371 = vpop.f32.mrf.mxu0
  %v1372 = vadd.f32 0.0, %v1371
  %v1373 = vpop.f32.mrf.mxu0
  %v1374 = vpop.f32.mrf.mxu0
  %v1375 = vadd.f32 0.0, %v1374
  %v1376 = vpop.f32.mrf.mxu0
  %1377 = vmatprep.mubr.bf16.mxu0 0
  %1378 = vmatmul.mubr.bf16.gmra.mxu0 %v1189
  %v1379 = vpop.f32.mrf.mxu0
  %v1380 = vadd.f32 0.0, %v1379
  %v1381 = vpop.f32.mrf.mxu0
  %v1382 = vpop.f32.mrf.mxu0
  %v1383 = vadd.f32 0.0, %v1382
  %v1384 = vpop.f32.mrf.mxu0
  %1385 = vmatprep.mubr.bf16.mxu0 0
  %1386 = vmatmul.mubr.bf16.gmra.mxu0 %v1192
  %v1387 = vpop.f32.mrf.mxu0
  %v1388 = vadd.f32 0.0, %v1387
  %v1389 = vpop.f32.mrf.mxu0
  %v1390 = vpop.f32.mrf.mxu0
  %v1391 = vadd.f32 0.0, %v1390
  %v1392 = vpop.f32.mrf.mxu0
  %1393 = vmatprep.mubr.bf16.mxu0 0
  %1394 = vmatmul.mubr.bf16.gmra.mxu0 %v1195
  %v1395 = vpop.f32.mrf.mxu0
  %v1396 = vadd.f32 0.0, %v1395
  %v1397 = vpop.f32.mrf.mxu0
  %v1398 = vpop.f32.mrf.mxu0
  %v1399 = vadd.f32 0.0, %v1398
  %v1400 = vpop.f32.mrf.mxu0
  %1401 = vmatprep.mubr.bf16.mxu0 0
  %1402 = vmatmul.mubr.bf16.gmra.mxu0 %v1198
  %v1403 = vpop.f32.mrf.mxu0
  %v1404 = vadd.f32 0.0, %v1403
  %v1405 = vpop.f32.mrf.mxu0
  %v1406 = vpop.f32.mrf.mxu0
  %v1407 = vadd.f32 0.0, %v1406
  %v1408 = vpop.f32.mrf.mxu0
  %1409 = vmatprep.mubr.bf16.mxu0 0
  %1410 = vmatmul.mubr.bf16.gmra.mxu0 %v1201
  %v1411 = vpop.f32.mrf.mxu0
  %v1412 = vadd.f32 0.0, %v1411
  %v1413 = vpop.f32.mrf.mxu0
  %v1414 = vpop.f32.mrf.mxu0
  %v1415 = vadd.f32 0.0, %v1414
  %v1416 = vpop.f32.mrf.mxu0
  %1417 = vmatprep.mubr.bf16.mxu0 0
  %1418 = vmatmul.mubr.bf16.gmra.mxu0 %v1204
  %v1419 = vpop.f32.mrf.mxu0
  %v1420 = vadd.f32 0.0, %v1419
  %v1421 = vpop.f32.mrf.mxu0
  %v1422 = vpop.f32.mrf.mxu0
  %v1423 = vadd.f32 0.0, %v1422
  %v1424 = vpop.f32.mrf.mxu0
  %1425 = vmatprep.mubr.bf16.mxu0 0
  %1426 = vmatmul.mubr.bf16.gmra.mxu0 %v1207
  %v1427 = vpop.f32.mrf.mxu0
  %v1428 = vadd.f32 0.0, %v1427
  %v1429 = vpop.f32.mrf.mxu0
  %v1430 = vpop.f32.mrf.mxu0
  %v1431 = vadd.f32 0.0, %v1430
  %v1432 = vpop.f32.mrf.mxu0
  %1433 = vdwg.mxu0
  %v1434 = vld [vmem:[%s8] sm:$0x1]
  %v1436 = vlaneseq
  %v1437 = vshrl.u32 %v1436, 7
  %v1438 = vsub.s32 0, %v1437
  %v1439 = vrot.slane %v1434, %v1438
  %v1441 = vmul.f32 %v1244, %v1439
  %v1442 = vmul.f32 %v1247, %v1439
  %v1443 = vmul.f32 %v1252, %v1439
  %v1444 = vmul.f32 %v1255, %v1439
  %v1445 = vmul.f32 %v1260, %v1439
  %v1446 = vmul.f32 %v1263, %v1439
  %v1447 = vmul.f32 %v1268, %v1439
  %v1448 = vmul.f32 %v1271, %v1439
  %v1449 = vmul.f32 %v1276, %v1439
  %v1450 = vmul.f32 %v1279, %v1439
  %v1451 = vmul.f32 %v1284, %v1439
  %v1452 = vmul.f32 %v1287, %v1439
  %v1453 = vmul.f32 %v1292, %v1439
  %v1454 = vmul.f32 %v1295, %v1439
  %v1455 = vmul.f32 %v1300, %v1439
  %v1456 = vmul.f32 %v1303, %v1439
  %v1457 = vmul.f32 %v1308, %v1439
  %v1458 = vmul.f32 %v1311, %v1439
  %v1459 = vmul.f32 %v1316, %v1439
  %v1460 = vmul.f32 %v1319, %v1439
  %v1461 = vmul.f32 %v1324, %v1439
  %v1462 = vmul.f32 %v1327, %v1439
  %v1463 = vmul.f32 %v1332, %v1439
  %v1464 = vmul.f32 %v1335, %v1439
  %v1465 = vmul.f32 %v1340, %v1439
  %v1466 = vmul.f32 %v1343, %v1439
  %v1467 = vmul.f32 %v1348, %v1439
  %v1468 = vmul.f32 %v1351, %v1439
  %v1469 = vmul.f32 %v1356, %v1439
  %v1470 = vmul.f32 %v1359, %v1439
  %v1471 = vmul.f32 %v1364, %v1439
  %v1472 = vmul.f32 %v1367, %v1439
  %v1473 = vmul.f32 %v1372, %v1439
  %v1474 = vmul.f32 %v1375, %v1439
  %v1475 = vmul.f32 %v1380, %v1439
  %v1476 = vmul.f32 %v1383, %v1439
  %v1477 = vmul.f32 %v1388, %v1439
  %v1478 = vmul.f32 %v1391, %v1439
  %v1479 = vmul.f32 %v1396, %v1439
  %v1480 = vmul.f32 %v1399, %v1439
  %v1481 = vmul.f32 %v1404, %v1439
  %v1482 = vmul.f32 %v1407, %v1439
  %v1483 = vmul.f32 %v1412, %v1439
  %v1484 = vmul.f32 %v1415, %v1439
  %v1485 = vmul.f32 %v1420, %v1439
  %v1486 = vmul.f32 %v1423, %v1439
  %v1487 = vmul.f32 %v1428, %v1439
  %v1488 = vmul.f32 %v1431, %v1439
  %v1489 = vld [vmem:[%s9] sm:$0x1]
  %v1491 = vlaneseq
  %v1492 = vshrl.u32 %v1491, 7
  %v1493 = vsub.s32 0, %v1492
  %v1494 = vrot.slane %v1489, %v1493
  %v1496 = vadd.f32 %v1441, %v1494
  %v1497 = vadd.f32 %v1442, %v1494
  %v1498 = vadd.f32 %v1443, %v1494
  %v1499 = vadd.f32 %v1444, %v1494
  %v1500 = vadd.f32 %v1445, %v1494
  %v1501 = vadd.f32 %v1446, %v1494
  %v1502 = vadd.f32 %v1447, %v1494
  %v1503 = vadd.f32 %v1448, %v1494
  %v1504 = vadd.f32 %v1449, %v1494
  %v1505 = vadd.f32 %v1450, %v1494
  %v1506 = vadd.f32 %v1451, %v1494
  %v1507 = vadd.f32 %v1452, %v1494
  %v1508 = vadd.f32 %v1453, %v1494
  %v1509 = vadd.f32 %v1454, %v1494
  %v1510 = vadd.f32 %v1455, %v1494
  %v1511 = vadd.f32 %v1456, %v1494
  %v1512 = vadd.f32 %v1457, %v1494
  %v1513 = vadd.f32 %v1458, %v1494
  %v1514 = vadd.f32 %v1459, %v1494
  %v1515 = vadd.f32 %v1460, %v1494
  %v1516 = vadd.f32 %v1461, %v1494
  %v1517 = vadd.f32 %v1462, %v1494
  %v1518 = vadd.f32 %v1463, %v1494
  %v1519 = vadd.f32 %v1464, %v1494
  %v1520 = vadd.f32 %v1465, %v1494
  %v1521 = vadd.f32 %v1466, %v1494
  %v1522 = vadd.f32 %v1467, %v1494
  %v1523 = vadd.f32 %v1468, %v1494
  %v1524 = vadd.f32 %v1469, %v1494
  %v1525 = vadd.f32 %v1470, %v1494
  %v1526 = vadd.f32 %v1471, %v1494
  %v1527 = vadd.f32 %v1472, %v1494
  %v1528 = vadd.f32 %v1473, %v1494
  %v1529 = vadd.f32 %v1474, %v1494
  %v1530 = vadd.f32 %v1475, %v1494
  %v1531 = vadd.f32 %v1476, %v1494
  %v1532 = vadd.f32 %v1477, %v1494
  %v1533 = vadd.f32 %v1478, %v1494
  %v1534 = vadd.f32 %v1479, %v1494
  %v1535 = vadd.f32 %v1480, %v1494
  %v1536 = vadd.f32 %v1481, %v1494
  %v1537 = vadd.f32 %v1482, %v1494
  %v1538 = vadd.f32 %v1483, %v1494
  %v1539 = vadd.f32 %v1484, %v1494
  %v1540 = vadd.f32 %v1485, %v1494
  %v1541 = vadd.f32 %v1486, %v1494
  %v1542 = vadd.f32 %v1487, %v1494
  %v1543 = vadd.f32 %v1488, %v1494
  %v1544 = vmax.f32 %v1496, 0.0
  %v1545 = vmax.f32 %v1497, 0.0
  %v1546 = vmax.f32 %v1498, 0.0
  %v1547 = vmax.f32 %v1499, 0.0
  %v1548 = vmax.f32 %v1500, 0.0
  %v1549 = vmax.f32 %v1501, 0.0
  %v1550 = vmax.f32 %v1502, 0.0
  %v1551 = vmax.f32 %v1503, 0.0
  %v1552 = vmax.f32 %v1504, 0.0
  %v1553 = vmax.f32 %v1505, 0.0
  %v1554 = vmax.f32 %v1506, 0.0
  %v1555 = vmax.f32 %v1507, 0.0
  %v1556 = vmax.f32 %v1508, 0.0
  %v1557 = vmax.f32 %v1509, 0.0
  %v1558 = vmax.f32 %v1510, 0.0
  %v1559 = vmax.f32 %v1511, 0.0
  %v1560 = vmax.f32 %v1512, 0.0
  %v1561 = vmax.f32 %v1513, 0.0
  %v1562 = vmax.f32 %v1514, 0.0
  %v1563 = vmax.f32 %v1515, 0.0
  %v1564 = vmax.f32 %v1516, 0.0
  %v1565 = vmax.f32 %v1517, 0.0
  %v1566 = vmax.f32 %v1518, 0.0
  %v1567 = vmax.f32 %v1519, 0.0
  %v1568 = vmax.f32 %v1520, 0.0
  %v1569 = vmax.f32 %v1521, 0.0
  %v1570 = vmax.f32 %v1522, 0.0
  %v1571 = vmax.f32 %v1523, 0.0
  %v1572 = vmax.f32 %v1524, 0.0
  %v1573 = vmax.f32 %v1525, 0.0
  %v1574 = vmax.f32 %v1526, 0.0
  %v1575 = vmax.f32 %v1527, 0.0
  %v1576 = vmax.f32 %v1528, 0.0
  %v1577 = vmax.f32 %v1529, 0.0
  %v1578 = vmax.f32 %v1530, 0.0
  %v1579 = vmax.f32 %v1531, 0.0
  %v1580 = vmax.f32 %v1532, 0.0
  %v1581 = vmax.f32 %v1533, 0.0
  %v1582 = vmax.f32 %v1534, 0.0
  %v1583 = vmax.f32 %v1535, 0.0
  %v1584 = vmax.f32 %v1536, 0.0
  %v1585 = vmax.f32 %v1537, 0.0
  %v1586 = vmax.f32 %v1538, 0.0
  %v1587 = vmax.f32 %v1539, 0.0
  %v1588 = vmax.f32 %v1540, 0.0
  %v1589 = vmax.f32 %v1541, 0.0
  %v1590 = vmax.f32 %v1542, 0.0
  %v1591 = vmax.f32 %v1543, 0.0
  %v1592 = vmax.f32 %v1544, %v1556
  %v1593 = vmax.f32 %v1545, %v1557
  %v1594 = vmax.f32 %v1546, %v1558
  %v1595 = vmax.f32 %v1547, %v1559
  %v1596 = vmax.f32 %v1548, %v1560
  %v1597 = vmax.f32 %v1549, %v1561
  %v1598 = vmax.f32 %v1550, %v1562
  %v1599 = vmax.f32 %v1551, %v1563
  %v1600 = vmax.f32 %v1552, %v1564
  %v1601 = vmax.f32 %v1553, %v1565
  %v1602 = vmax.f32 %v1554, %v1566
  %v1603 = vmax.f32 %v1555, %v1567
  %v1604 = vmax.f32 %v1592, %v1568
  %v1605 = vmax.f32 %v1593, %v1569
  %v1606 = vmax.f32 %v1594, %v1570
  %v1607 = vmax.f32 %v1595, %v1571
  %v1608 = vmax.f32 %v1596, %v1572
  %v1609 = vmax.f32 %v1597, %v1573
  %v1610 = vmax.f32 %v1598, %v1574
  %v1611 = vmax.f32 %v1599, %v1575
  %v1612 = vmax.f32 %v1600, %v1576
  %v1613 = vmax.f32 %v1601, %v1577
  %v1614 = vmax.f32 %v1602, %v1578
  %v1615 = vmax.f32 %v1603, %v1579
  %v1616 = vmax.f32 %v1604, %v1580
  %v1617 = vmax.f32 %v1605, %v1581
  %v1618 = vmax.f32 %v1606, %v1582
  %v1619 = vmax.f32 %v1607, %v1583
  %v1620 = vmax.f32 %v1608, %v1584
  %v1621 = vmax.f32 %v1609, %v1585
  %v1622 = vmax.f32 %v1610, %v1586
  %v1623 = vmax.f32 %v1611, %v1587
  %v1624 = vmax.f32 %v1612, %v1588
  %v1625 = vmax.f32 %v1613, %v1589
  %v1626 = vmax.f32 %v1614, %v1590
  %v1627 = vmax.f32 %v1615, %v1591
  %1628 = vst [vmem:[%s10] sm:$0xff] %v1616
  %1629 = vst [vmem:[%s10 + $0x8] sm:$0xff] %v1617
  %1630 = vst [vmem:[%s10 + $0x10] sm:$0xff] %v1618
  %1631 = vst [vmem:[%s10 + $0x18] sm:$0xff] %v1619
  %1632 = vst [vmem:[%s10 + $0x20] sm:$0xff] %v1620
  %1633 = vst [vmem:[%s10 + $0x28] sm:$0xff] %v1621
  %1634 = vst [vmem:[%s10 + $0x30] sm:$0xff] %v1622
  %1635 = vst [vmem:[%s10 + $0x38] sm:$0xff] %v1623
  %1636 = vst [vmem:[%s10 + $0x40] sm:$0xff] %v1624
  %1637 = vst [vmem:[%s10 + $0x48] sm:$0xff] %v1625
  %1638 = vst [vmem:[%s10 + $0x50] sm:$0xff] %v1626
  %1639 = vst [vmem:[%s10 + $0x58] sm:$0xff] %v1627
  // Predicated region
  $region42: #{forward.4} parent=0 // pred_check
    _
  $region43: #{forward.4} parent=0 // pred_check_branch
    %1641 = sbr.rel (0) target = $region45
  $region44: #{forward.4} parent=0 // pred_region
    _
  $region45: #{forward.4} parent=0 // pred_fallthru
    _
  // Predicated region
  $region46: #{forward.4} parent=0 // pred_check
    _
  $region47: #{forward.4} parent=0 // pred_check_branch
    %1643 = sbr.rel (0) target = $region49
  $region48: #{forward.4} parent=0 // pred_region
    _
  $region49: #{forward.4} parent=0 // pred_fallthru
    _

// kernel: forward.5
$region0: #{forward.5}
  #allocation0 [shape = 'u32[]', space=smem, size = 0x4, offset = 0x4, fixed_abs, tag = 'smem constant byte address 0x4 - core index']
  #allocation1 [shape = 'u32[144,128]{1,0:T(1,128)}', space=vmem, size = 0x12000, scoped, tag = 'internal scratch']
  %s0 = inlined_call_operand.vmem [shape: f32[48,136], index: 0, kind: input, shape index: {}]
  %s1 = inlined_call_operand.vmem [shape: bf16[136,128], index: 1, kind: input, shape index: {}]
  %s2 = inlined_call_operand.vmem [shape: f32[1,128], index: 2, kind: input, shape index: {}]
  %s3 = inlined_call_operand.vmem [shape: f32[1,128], index: 3, kind: input, shape index: {}]
  %s4 = inlined_call_operand.vmem [shape: bf16[128,128], index: 4, kind: input, shape index: {}]
  %s5 = inlined_call_operand.vmem [shape: f32[1,128], index: 5, kind: input, shape index: {}]
  %s6 = inlined_call_operand.vmem [shape: f32[1,128], index: 6, kind: input, shape index: {}]
  %s7 = inlined_call_operand.vmem [shape: bf16[128,256], index: 7, kind: input, shape index: {}]
  %s8 = inlined_call_operand.vmem [shape: f32[1,256], index: 8, kind: input, shape index: {}]
  %s9 = inlined_call_operand.vmem [shape: f32[1,256], index: 9, kind: input, shape index: {}]
  %s10 = inlined_call_operand.vmem [shape: f32[24,256], index: 10, kind: output, shape index: {}]
  %s11 = sld [smem:[#allocation0]]
  $region50: #{forward.5} parent=0
    _
  %s13 = ssub.s32 1, %s11
  %s14 = scalar_select 0, %s13, %s11
  // Predicated region
  $region2: #{forward.5} parent=0 // pred_check
    _
  $region3: #{forward.5} parent=0 // pred_check_branch
    %16 = sbr.rel (0) target = $region5
  $region4: #{forward.5} parent=0 // pred_region
    _
  $region5: #{forward.5} parent=0 // pred_fallthru
    _
  // Predicated region
  $region6: #{forward.5} parent=0 // pred_check
    _
  $region7: #{forward.5} parent=0 // pred_check_branch
    %18 = sbr.rel (0) target = $region9
  $region8: #{forward.5} parent=0 // pred_region
    _
  $region9: #{forward.5} parent=0 // pred_fallthru
    _
  // Predicated region
  $region10: #{forward.5} parent=0 // pred_check
    _
  $region11: #{forward.5} parent=0 // pred_check_branch
    %20 = sbr.rel (0) target = $region13
  $region12: #{forward.5} parent=0 // pred_region
    _
  $region13: #{forward.5} parent=0 // pred_fallthru
    _
  // Predicated region
  $region14: #{forward.5} parent=0 // pred_check
    _
  $region15: #{forward.5} parent=0 // pred_check_branch
    %22 = sbr.rel (0) target = $region17
  $region16: #{forward.5} parent=0 // pred_region
    _
  $region17: #{forward.5} parent=0 // pred_fallthru
    _
  // Predicated region
  $region18: #{forward.5} parent=0 // pred_check
    _
  $region19: #{forward.5} parent=0 // pred_check_branch
    %24 = sbr.rel (0) target = $region21
  $region20: #{forward.5} parent=0 // pred_region
    _
  $region21: #{forward.5} parent=0 // pred_fallthru
    _
  // Predicated region
  $region22: #{forward.5} parent=0 // pred_check
    _
  $region23: #{forward.5} parent=0 // pred_check_branch
    %26 = sbr.rel (0) target = $region25
  $region24: #{forward.5} parent=0 // pred_region
    _
  $region25: #{forward.5} parent=0 // pred_fallthru
    _
  // Predicated region
  $region26: #{forward.5} parent=0 // pred_check
    _
  $region27: #{forward.5} parent=0 // pred_check_branch
    %28 = sbr.rel (0) target = $region29
  $region28: #{forward.5} parent=0 // pred_region
    _
  $region29: #{forward.5} parent=0 // pred_fallthru
    _
  // Predicated region
  $region30: #{forward.5} parent=0 // pred_check
    _
  $region31: #{forward.5} parent=0 // pred_check_branch
    %30 = sbr.rel (0) target = $region33
  $region32: #{forward.5} parent=0 // pred_region
    _
  $region33: #{forward.5} parent=0 // pred_fallthru
    _
  // Predicated region
  $region34: #{forward.5} parent=0 // pred_check
    _
  $region35: #{forward.5} parent=0 // pred_check_branch
    %32 = sbr.rel (0) target = $region37
  $region36: #{forward.5} parent=0 // pred_region
    _
  $region37: #{forward.5} parent=0 // pred_fallthru
    _
  // Predicated region
  $region38: #{forward.5} parent=0 // pred_check
    _
  $region39: #{forward.5} parent=0 // pred_check_branch
    %34 = sbr.rel (0) target = $region41
  $region40: #{forward.5} parent=0 // pred_region
    _
  $region41: #{forward.5} parent=0 // pred_fallthru
    _
  %v36 = vld [vmem:[%s0] sm:$0xff]
  %v37 = vld [vmem:[%s0 + $0x8] sm:$0xff]
  %v38 = vld [vmem:[%s0 + $0x10] sm:$0xff]
  %v39 = vld [vmem:[%s0 + $0x18] sm:$0xff]
  %v40 = vld [vmem:[%s0 + $0x20] sm:$0xff]
  %v41 = vld [vmem:[%s0 + $0x28] sm:$0xff]
  %v42 = vld [vmem:[%s0 + $0x30] sm:$0xff]
  %v43 = vld [vmem:[%s0 + $0x38] sm:$0xff]
  %v44 = vld [vmem:[%s0 + $0x40] sm:$0xff]
  %v45 = vld [vmem:[%s0 + $0x48] sm:$0xff]
  %v46 = vld [vmem:[%s0 + $0x50] sm:$0xff]
  %v47 = vld [vmem:[%s0 + $0x58] sm:$0xff]
  %v48 = vpack.c.bf16 %v38, %v36
  %v49 = vpack.c.bf16 %v39, %v37
  %v50 = vpack.c.bf16 %v42, %v40
  %v51 = vpack.c.bf16 %v43, %v41
  %v52 = vpack.c.bf16 %v46, %v44
  %v53 = vpack.c.bf16 %v47, %v45
  %v54 = vld [vmem:[%s1] sm:$0xf]
  %v55 = vld [vmem:[%s1 + $0x4] sm:$0xf]
  %v56 = vld [vmem:[%s1 + $0x8] sm:$0xf]
  %v57 = vld [vmem:[%s1 + $0xc] sm:$0xf]
  %v58 = vld [vmem:[%s1 + $0x10] sm:$0xf]
  %v59 = vld [vmem:[%s1 + $0x14] sm:$0xf]
  %v60 = vld [vmem:[%s1 + $0x18] sm:$0xf]
  %v61 = vld [vmem:[%s1 + $0x1c] sm:$0xf]
  %v62 = vld [vmem:[%s1 + $0x20] sm:$0xf]
  %v63 = vld [vmem:[%s1 + $0x24] sm:$0xf]
  %v64 = vld [vmem:[%s1 + $0x28] sm:$0xf]
  %v65 = vld [vmem:[%s1 + $0x2c] sm:$0xf]
  %v66 = vld [vmem:[%s1 + $0x30] sm:$0xf]
  %v67 = vld [vmem:[%s1 + $0x34] sm:$0xf]
  %v68 = vld [vmem:[%s1 + $0x38] sm:$0xf]
  %v69 = vld [vmem:[%s1 + $0x3c] sm:$0xf]
  %v70 = vld [vmem:[%s1 + $0x40] sm:$0xf]
  %v88 = vunpack.c.l.b16 %v54
  %v89 = vunpack.c.l.b16 %v55
  %v90 = vunpack.c.l.b16 %v56
  %v91 = vunpack.c.l.b16 %v57
  %v92 = vunpack.c.l.b16 %v58
  %v93 = vunpack.c.l.b16 %v59
  %v94 = vunpack.c.l.b16 %v60
  %v95 = vunpack.c.l.b16 %v61
  %v96 = vunpack.c.l.b16 %v62
  %v97 = vunpack.c.l.b16 %v63
  %v98 = vunpack.c.l.b16 %v64
  %v99 = vunpack.c.l.b16 %v65
  %v100 = vunpack.c.l.b16 %v66
  %v101 = vunpack.c.l.b16 %v67
  %v102 = vunpack.c.l.b16 %v68
  %v103 = vunpack.c.l.b16 %v69
  %v104 = vunpack.c.l.b16 %v70
  %v105 = vpack.c.b16 %v89, %v88
  %v106 = vpack.c.b16 %v91, %v90
  %v107 = vpack.c.b16 %v93, %v92
  %v108 = vpack.c.b16 %v95, %v94
  %v109 = vpack.c.b16 %v97, %v96
  %v110 = vpack.c.b16 %v99, %v98
  %v111 = vpack.c.b16 %v101, %v100
  %v112 = vpack.c.b16 %v103, %v102
  %v113 = vpack.c.b16 %v104, %v104
  %vm122 = vcmask 64512
  %v124 = vsel %vm122, %v49, 0
  %v127 = vsel %vm122, %v51, 0
  %v130 = vsel %vm122, %v53, 0
  %vm132 = vcmask 1043456
  %v134 = vsel %vm132, %v113, 0
  %136 = vmatprep.subr.bf16.mxu0 0
  %137 = vmatpush1.bf16.msra.mxu0 %v112
  %138 = vmatprep.subr.bf16.mxu0 0
  %139 = vmatpush1.bf16.msra.mxu0 %v111
  %140 = vmatprep.subr.bf16.mxu0 0
  %141 = vmatpush1.bf16.msra.mxu0 %v110
  %142 = vmatprep.subr.bf16.mxu0 0
  %143 = vmatpush1.bf16.msra.mxu0 %v109
  %144 = vmatprep.subr.bf16.mxu0 0
  %145 = vmatpush1.bf16.msra.mxu0 %v108
  %146 = vmatprep.subr.bf16.mxu0 0
  %147 = vmatpush1.bf16.msra.mxu0 %v107
  %148 = vmatprep.subr.bf16.mxu0 0
  %149 = vmatpush1.bf16.msra.mxu0 %v106
  %150 = vmatprep.subr.bf16.mxu0 0
  %151 = vmatpush1.bf16.msra.mxu0 %v105
  %152 = vmatprep.subr.bf16.mxu0 0
  %153 = vmatpush2.bf16.msra.mxu0 0
  %154 = vmatprep.subr.bf16.mxu0 0
  %155 = vmatpush2.bf16.msra.mxu0 0
  %156 = vmatprep.subr.bf16.mxu0 0
  %157 = vmatpush2.bf16.msra.mxu0 0
  %158 = vmatprep.subr.bf16.mxu0 0
  %159 = vmatpush2.bf16.msra.mxu0 0
  %160 = vmatprep.subr.bf16.mxu0 0
  %161 = vmatpush2.bf16.msra.mxu0 0
  %162 = vmatprep.subr.bf16.mxu0 0
  %163 = vmatpush2.bf16.msra.mxu0 0
  %164 = vmatprep.subr.bf16.mxu0 0
  %165 = vmatpush2.bf16.msra.mxu0 0
  %166 = vmatprep.subr.bf16.mxu0 0
  %167 = vmatpush2.bf16.msra.mxu0 %v134
  %168 = vmatprep.mubr.bf16.mxu0 %v124
  %169 = vmatmul.mubr.bf16.gmra.mxu0 %v48
  %v170 = vpop.f32.mrf.mxu0
  %v171 = vadd.f32 0.0, %v170
  %v172 = vpop.f32.mrf.mxu0
  %v173 = vpop.f32.mrf.mxu0
  %v174 = vadd.f32 0.0, %v173
  %v175 = vpop.f32.mrf.mxu0
  %176 = vmatprep.mubr.bf16.mxu0 %v127
  %177 = vmatmul.mubr.bf16.gmra.mxu0 %v50
  %v178 = vpop.f32.mrf.mxu0
  %v179 = vadd.f32 0.0, %v178
  %v180 = vpop.f32.mrf.mxu0
  %v181 = vpop.f32.mrf.mxu0
  %v182 = vadd.f32 0.0, %v181
  %v183 = vpop.f32.mrf.mxu0
  %184 = vmatprep.mubr.bf16.mxu0 %v130
  %185 = vmatmul.mubr.bf16.gmra.mxu0 %v52
  %v186 = vpop.f32.mrf.mxu0
  %v187 = vadd.f32 0.0, %v186
  %v188 = vpop.f32.mrf.mxu0
  %v189 = vpop.f32.mrf.mxu0
  %v190 = vadd.f32 0.0, %v189
  %v191 = vpop.f32.mrf.mxu0
  %192 = vdwg.mxu0
  %v193 = vld [vmem:[%s2] sm:$0x1]
  %v195 = vlaneseq
  %v196 = vshrl.u32 %v195, 7
  %v197 = vsub.s32 0, %v196
  %v198 = vrot.slane %v193, %v197
  %v200 = vmul.f32 %v171, %v198
  %v201 = vmul.f32 %v174, %v198
  %v202 = vmul.f32 %v179, %v198
  %v203 = vmul.f32 %v182, %v198
  %v204 = vmul.f32 %v187, %v198
  %v205 = vmul.f32 %v190, %v198
  %v206 = vld [vmem:[%s3] sm:$0x1]
  %v208 = vlaneseq
  %v209 = vshrl.u32 %v208, 7
  %v210 = vsub.s32 0, %v209
  %v211 = vrot.slane %v206, %v210
  %v213 = vadd.f32 %v200, %v211
  %v214 = vadd.f32 %v201, %v211
  %v215 = vadd.f32 %v202, %v211
  %v216 = vadd.f32 %v203, %v211
  %v217 = vadd.f32 %v204, %v211
  %v218 = vadd.f32 %v205, %v211
  %v219 = vmax.f32 %v213, 0.0
  %v220 = vmax.f32 %v214, 0.0
  %v221 = vmax.f32 %v215, 0.0
  %v222 = vmax.f32 %v216, 0.0
  %v223 = vmax.f32 %v217, 0.0
  %v224 = vmax.f32 %v218, 0.0
  %v225 = vpack.c.bf16 %v220, %v219
  %v226 = vpack.c.bf16 %v222, %v221
  %v227 = vpack.c.bf16 %v224, %v223
  %v228 = vld [vmem:[%s4] sm:$0xf]
  %v229 = vld [vmem:[%s4 + $0x4] sm:$0xf]
  %v230 = vld [vmem:[%s4 + $0x8] sm:$0xf]
  %v231 = vld [vmem:[%s4 + $0xc] sm:$0xf]
  %v232 = vld [vmem:[%s4 + $0x10] sm:$0xf]
  %v233 = vld [vmem:[%s4 + $0x14] sm:$0xf]
  %v234 = vld [vmem:[%s4 + $0x18] sm:$0xf]
  %v235 = vld [vmem:[%s4 + $0x1c] sm:$0xf]
  %v236 = vld [vmem:[%s4 + $0x20] sm:$0xf]
  %v237 = vld [vmem:[%s4 + $0x24] sm:$0xf]
  %v238 = vld [vmem:[%s4 + $0x28] sm:$0xf]
  %v239 = vld [vmem:[%s4 + $0x2c] sm:$0xf]
  %v240 = vld [vmem:[%s4 + $0x30] sm:$0xf]
  %v241 = vld [vmem:[%s4 + $0x34] sm:$0xf]
  %v242 = vld [vmem:[%s4 + $0x38] sm:$0xf]
  %v243 = vld [vmem:[%s4 + $0x3c] sm:$0xf]
  %v260 = vunpack.c.l.b16 %v228
  %v261 = vunpack.c.l.b16 %v229
  %v262 = vunpack.c.l.b16 %v230
  %v263 = vunpack.c.l.b16 %v231
  %v264 = vunpack.c.l.b16 %v232
  %v265 = vunpack.c.l.b16 %v233
  %v266 = vunpack.c.l.b16 %v234
  %v267 = vunpack.c.l.b16 %v235
  %v268 = vunpack.c.l.b16 %v236
  %v269 = vunpack.c.l.b16 %v237
  %v270 = vunpack.c.l.b16 %v238
  %v271 = vunpack.c.l.b16 %v239
  %v272 = vunpack.c.l.b16 %v240
  %v273 = vunpack.c.l.b16 %v241
  %v274 = vunpack.c.l.b16 %v242
  %v275 = vunpack.c.l.b16 %v243
  %v276 = vpack.c.b16 %v261, %v260
  %v277 = vpack.c.b16 %v263, %v262
  %v278 = vpack.c.b16 %v265, %v264
  %v279 = vpack.c.b16 %v267, %v266
  %v280 = vpack.c.b16 %v269, %v268
  %v281 = vpack.c.b16 %v271, %v270
  %v282 = vpack.c.b16 %v273, %v272
  %v283 = vpack.c.b16 %v275, %v274
  %292 = vmatprep.subr.bf16.mxu0 0
  %293 = vmatpush1.bf16.msra.mxu0 %v283
  %294 = vmatprep.subr.bf16.mxu0 0
  %295 = vmatpush1.bf16.msra.mxu0 %v282
  %296 = vmatprep.subr.bf16.mxu0 0
  %297 = vmatpush1.bf16.msra.mxu0 %v281
  %298 = vmatprep.subr.bf16.mxu0 0
  %299 = vmatpush1.bf16.msra.mxu0 %v280
  %300 = vmatprep.subr.bf16.mxu0 0
  %301 = vmatpush1.bf16.msra.mxu0 %v279
  %302 = vmatprep.subr.bf16.mxu0 0
  %303 = vmatpush1.bf16.msra.mxu0 %v278
  %304 = vmatprep.subr.bf16.mxu0 0
  %305 = vmatpush1.bf16.msra.mxu0 %v277
  %306 = vmatprep.subr.bf16.mxu0 0
  %307 = vmatpush1.bf16.msra.mxu0 %v276
  %308 = vmatprep.subr.bf16.mxu0 0
  %309 = vmatpush2.bf16.msra.mxu0 0
  %310 = vmatprep.subr.bf16.mxu0 0
  %311 = vmatpush2.bf16.msra.mxu0 0
  %312 = vmatprep.subr.bf16.mxu0 0
  %313 = vmatpush2.bf16.msra.mxu0 0
  %314 = vmatprep.subr.bf16.mxu0 0
  %315 = vmatpush2.bf16.msra.mxu0 0
  %316 = vmatprep.subr.bf16.mxu0 0
  %317 = vmatpush2.bf16.msra.mxu0 0
  %318 = vmatprep.subr.bf16.mxu0 0
  %319 = vmatpush2.bf16.msra.mxu0 0
  %320 = vmatprep.subr.bf16.mxu0 0
  %321 = vmatpush2.bf16.msra.mxu0 0
  %322 = vmatprep.subr.bf16.mxu0 0
  %323 = vmatpush2.bf16.msra.mxu0 0
  %324 = vmatprep.mubr.bf16.mxu0 0
  %325 = vmatmul.mubr.bf16.gmra.mxu0 %v225
  %v326 = vpop.f32.mrf.mxu0
  %v327 = vadd.f32 0.0, %v326
  %v328 = vpop.f32.mrf.mxu0
  %v329 = vpop.f32.mrf.mxu0
  %v330 = vadd.f32 0.0, %v329
  %v331 = vpop.f32.mrf.mxu0
  %332 = vmatprep.mubr.bf16.mxu0 0
  %333 = vmatmul.mubr.bf16.gmra.mxu0 %v226
  %v334 = vpop.f32.mrf.mxu0
  %v335 = vadd.f32 0.0, %v334
  %v336 = vpop.f32.mrf.mxu0
  %v337 = vpop.f32.mrf.mxu0
  %v338 = vadd.f32 0.0, %v337
  %v339 = vpop.f32.mrf.mxu0
  %340 = vmatprep.mubr.bf16.mxu0 0
  %341 = vmatmul.mubr.bf16.gmra.mxu0 %v227
  %v342 = vpop.f32.mrf.mxu0
  %v343 = vadd.f32 0.0, %v342
  %v344 = vpop.f32.mrf.mxu0
  %v345 = vpop.f32.mrf.mxu0
  %v346 = vadd.f32 0.0, %v345
  %v347 = vpop.f32.mrf.mxu0
  %348 = vdwg.mxu0
  %v349 = vld [vmem:[%s5] sm:$0x1]
  %v351 = vlaneseq
  %v352 = vshrl.u32 %v351, 7
  %v353 = vsub.s32 0, %v352
  %v354 = vrot.slane %v349, %v353
  %v356 = vmul.f32 %v327, %v354
  %v357 = vmul.f32 %v330, %v354
  %v358 = vmul.f32 %v335, %v354
  %v359 = vmul.f32 %v338, %v354
  %v360 = vmul.f32 %v343, %v354
  %v361 = vmul.f32 %v346, %v354
  %v362 = vld [vmem:[%s6] sm:$0x1]
  %v364 = vlaneseq
  %v365 = vshrl.u32 %v364, 7
  %v366 = vsub.s32 0, %v365
  %v367 = vrot.slane %v362, %v366
  %v369 = vadd.f32 %v356, %v367
  %v370 = vadd.f32 %v357, %v367
  %v371 = vadd.f32 %v358, %v367
  %v372 = vadd.f32 %v359, %v367
  %v373 = vadd.f32 %v360, %v367
  %v374 = vadd.f32 %v361, %v367
  %v375 = vmax.f32 %v369, 0.0
  %v376 = vmax.f32 %v370, 0.0
  %v377 = vmax.f32 %v371, 0.0
  %v378 = vmax.f32 %v372, 0.0
  %v379 = vmax.f32 %v373, 0.0
  %v380 = vmax.f32 %v374, 0.0
  %v381 = vpack.c.bf16 %v376, %v375
  %v382 = vpack.c.bf16 %v378, %v377
  %v383 = vpack.c.bf16 %v380, %v379
  %v384 = vld [vmem:[%s7] sm:$0xff]
  %v385 = vld [vmem:[%s7 + $0x8] sm:$0xff]
  %v386 = vld [vmem:[%s7 + $0x10] sm:$0xff]
  %v387 = vld [vmem:[%s7 + $0x18] sm:$0xff]
  %v388 = vld [vmem:[%s7 + $0x20] sm:$0xff]
  %v389 = vld [vmem:[%s7 + $0x28] sm:$0xff]
  %v390 = vld [vmem:[%s7 + $0x30] sm:$0xff]
  %v391 = vld [vmem:[%s7 + $0x38] sm:$0xff]
  %v392 = vld [vmem:[%s7 + $0x40] sm:$0xff]
  %v393 = vld [vmem:[%s7 + $0x48] sm:$0xff]
  %v394 = vld [vmem:[%s7 + $0x50] sm:$0xff]
  %v395 = vld [vmem:[%s7 + $0x58] sm:$0xff]
  %v396 = vld [vmem:[%s7 + $0x60] sm:$0xff]
  %v397 = vld [vmem:[%s7 + $0x68] sm:$0xff]
  %v398 = vld [vmem:[%s7 + $0x70] sm:$0xff]
  %v399 = vld [vmem:[%s7 + $0x78] sm:$0xff]
  %v416 = vunpack.c.l.b16 %v384
  %v417 = vunpack.c.h.b16 %v384
  %v418 = vunpack.c.l.b16 %v385
  %v419 = vunpack.c.h.b16 %v385
  %v420 = vunpack.c.l.b16 %v386
  %v421 = vunpack.c.h.b16 %v386
  %v422 = vunpack.c.l.b16 %v387
  %v423 = vunpack.c.h.b16 %v387
  %v424 = vunpack.c.l.b16 %v388
  %v425 = vunpack.c.h.b16 %v388
  %v426 = vunpack.c.l.b16 %v389
  %v427 = vunpack.c.h.b16 %v389
  %v428 = vunpack.c.l.b16 %v390
  %v429 = vunpack.c.h.b16 %v390
  %v430 = vunpack.c.l.b16 %v391
  %v431 = vunpack.c.h.b16 %v391
  %v432 = vunpack.c.l.b16 %v392
  %v433 = vunpack.c.h.b16 %v392
  %v434 = vunpack.c.l.b16 %v393
  %v435 = vunpack.c.h.b16 %v393
  %v436 = vunpack.c.l.b16 %v394
  %v437 = vunpack.c.h.b16 %v394
  %v438 = vunpack.c.l.b16 %v395
  %v439 = vunpack.c.h.b16 %v395
  %v440 = vunpack.c.l.b16 %v396
  %v441 = vunpack.c.h.b16 %v396
  %v442 = vunpack.c.l.b16 %v397
  %v443 = vunpack.c.h.b16 %v397
  %v444 = vunpack.c.l.b16 %v398
  %v445 = vunpack.c.h.b16 %v398
  %v446 = vunpack.c.l.b16 %v399
  %v447 = vunpack.c.h.b16 %v399
  %v448 = vpack.c.b16 %v418, %v416
  %v449 = vpack.c.b16 %v419, %v417
  %v450 = vpack.c.b16 %v422, %v420
  %v451 = vpack.c.b16 %v423, %v421
  %v452 = vpack.c.b16 %v426, %v424
  %v453 = vpack.c.b16 %v427, %v425
  %v454 = vpack.c.b16 %v430, %v428
  %v455 = vpack.c.b16 %v431, %v429
  %v456 = vpack.c.b16 %v434, %v432
  %v457 = vpack.c.b16 %v435, %v433
  %v458 = vpack.c.b16 %v438, %v436
  %v459 = vpack.c.b16 %v439, %v437
  %v460 = vpack.c.b16 %v442, %v440
  %v461 = vpack.c.b16 %v443, %v441
  %v462 = vpack.c.b16 %v446, %v444
  %v463 = vpack.c.b16 %v447, %v445
  %480 = vmatprep.subr.bf16.mxu0 %v463
  %481 = vmatpush1.bf16.msra.mxu0 %v462
  %482 = vmatprep.subr.bf16.mxu0 %v461
  %483 = vmatpush1.bf16.msra.mxu0 %v460
  %484 = vmatprep.subr.bf16.mxu0 %v459
  %485 = vmatpush1.bf16.msra.mxu0 %v458
  %486 = vmatprep.subr.bf16.mxu0 %v457
  %487 = vmatpush1.bf16.msra.mxu0 %v456
  %488 = vmatprep.subr.bf16.mxu0 %v455
  %489 = vmatpush1.bf16.msra.mxu0 %v454
  %490 = vmatprep.subr.bf16.mxu0 %v453
  %491 = vmatpush1.bf16.msra.mxu0 %v452
  %492 = vmatprep.subr.bf16.mxu0 %v451
  %493 = vmatpush1.bf16.msra.mxu0 %v450
  %494 = vmatprep.subr.bf16.mxu0 %v449
  %495 = vmatpush1.bf16.msra.mxu0 %v448
  %496 = vmatprep.subr.bf16.mxu0 0
  %497 = vmatpush2.bf16.msra.mxu0 0
  %498 = vmatprep.subr.bf16.mxu0 0
  %499 = vmatpush2.bf16.msra.mxu0 0
  %500 = vmatprep.subr.bf16.mxu0 0
  %501 = vmatpush2.bf16.msra.mxu0 0
  %502 = vmatprep.subr.bf16.mxu0 0
  %503 = vmatpush2.bf16.msra.mxu0 0
  %504 = vmatprep.subr.bf16.mxu0 0
  %505 = vmatpush2.bf16.msra.mxu0 0
  %506 = vmatprep.subr.bf16.mxu0 0
  %507 = vmatpush2.bf16.msra.mxu0 0
  %508 = vmatprep.subr.bf16.mxu0 0
  %509 = vmatpush2.bf16.msra.mxu0 0
  %510 = vmatprep.subr.bf16.mxu0 0
  %511 = vmatpush2.bf16.msra.mxu0 0
  %512 = vmatprep.mubr.bf16.mxu0 0
  %513 = vmatmul.mubr.bf16.gmra.mxu0 %v381
  %v514 = vpop.f32.mrf.mxu0
  %v515 = vadd.f32 0.0, %v514
  %v516 = vpop.f32.mrf.mxu0
  %v517 = vadd.f32 0.0, %v516
  %v518 = vpop.f32.mrf.mxu0
  %v519 = vadd.f32 0.0, %v518
  %v520 = vpop.f32.mrf.mxu0
  %v521 = vadd.f32 0.0, %v520
  %522 = vmatprep.mubr.bf16.mxu0 0
  %523 = vmatmul.mubr.bf16.gmra.mxu0 %v382
  %v524 = vpop.f32.mrf.mxu0
  %v525 = vadd.f32 0.0, %v524
  %v526 = vpop.f32.mrf.mxu0
  %v527 = vadd.f32 0.0, %v526
  %v528 = vpop.f32.mrf.mxu0
  %v529 = vadd.f32 0.0, %v528
  %v530 = vpop.f32.mrf.mxu0
  %v531 = vadd.f32 0.0, %v530
  %532 = vmatprep.mubr.bf16.mxu0 0
  %533 = vmatmul.mubr.bf16.gmra.mxu0 %v383
  %v534 = vpop.f32.mrf.mxu0
  %v535 = vadd.f32 0.0, %v534
  %v536 = vpop.f32.mrf.mxu0
  %v537 = vadd.f32 0.0, %v536
  %v538 = vpop.f32.mrf.mxu0
  %v539 = vadd.f32 0.0, %v538
  %v540 = vpop.f32.mrf.mxu0
  %v541 = vadd.f32 0.0, %v540
  %542 = vdwg.mxu0
  %v543 = vld [vmem:[%s8] sm:$0x3]
  %v545 = vlaneseq
  %v546 = vshrl.u32 %v545, 7
  %v547 = vsub.s32 0, %v546
  %v548 = vrot.slane %v543, %v547
  %v549 = vlaneseq
  %v550 = vshrl.u32 %v549, 7
  %v551 = vsub.s32 1, %v550
  %v552 = vrot.slane %v543, %v551
  %v555 = vmul.f32 %v515, %v548
  %v556 = vmul.f32 %v517, %v552
  %v557 = vmul.f32 %v519, %v548
  %v558 = vmul.f32 %v521, %v552
  %v559 = vmul.f32 %v525, %v548
  %v560 = vmul.f32 %v527, %v552
  %v561 = vmul.f32 %v529, %v548
  %v562 = vmul.f32 %v531, %v552
  %v563 = vmul.f32 %v535, %v548
  %v564 = vmul.f32 %v537, %v552
  %v565 = vmul.f32 %v539, %v548
  %v566 = vmul.f32 %v541, %v552
  %v567 = vld [vmem:[%s9] sm:$0x3]
  %v569 = vlaneseq
  %v570 = vshrl.u32 %v569, 7
  %v571 = vsub.s32 0, %v570
  %v572 = vrot.slane %v567, %v571
  %v573 = vlaneseq
  %v574 = vshrl.u32 %v573, 7
  %v575 = vsub.s32 1, %v574
  %v576 = vrot.slane %v567, %v575
  %v579 = vadd.f32 %v555, %v572
  %v580 = vadd.f32 %v556, %v576
  %v581 = vadd.f32 %v557, %v572
  %v582 = vadd.f32 %v558, %v576
  %v583 = vadd.f32 %v559, %v572
  %v584 = vadd.f32 %v560, %v576
  %v585 = vadd.f32 %v561, %v572
  %v586 = vadd.f32 %v562, %v576
  %v587 = vadd.f32 %v563, %v572
  %v588 = vadd.f32 %v564, %v576
  %v589 = vadd.f32 %v565, %v572
  %v590 = vadd.f32 %v566, %v576
  %v591 = vmax.f32 %v579, 0.0
  %v592 = vmax.f32 %v580, 0.0
  %v593 = vmax.f32 %v581, 0.0
  %v594 = vmax.f32 %v582, 0.0
  %v595 = vmax.f32 %v583, 0.0
  %v596 = vmax.f32 %v584, 0.0
  %v597 = vmax.f32 %v585, 0.0
  %v598 = vmax.f32 %v586, 0.0
  %v599 = vmax.f32 %v587, 0.0
  %v600 = vmax.f32 %v588, 0.0
  %v601 = vmax.f32 %v589, 0.0
  %v602 = vmax.f32 %v590, 0.0
  %v603 = vmax.f32 %v591, %v597
  %v604 = vmax.f32 %v592, %v598
  %v605 = vmax.f32 %v593, %v599
  %v606 = vmax.f32 %v594, %v600
  %v607 = vmax.f32 %v595, %v601
  %v608 = vmax.f32 %v596, %v602
  %609 = vst [vmem:[%s10] sm:$0xff] %v603
  %610 = vst [vmem:[%s10 + $0x8] sm:$0xff] %v604
  %611 = vst [vmem:[%s10 + $0x10] sm:$0xff] %v605
  %612 = vst [vmem:[%s10 + $0x18] sm:$0xff] %v606
  %613 = vst [vmem:[%s10 + $0x20] sm:$0xff] %v607
  %614 = vst [vmem:[%s10 + $0x28] sm:$0xff] %v608
  // Predicated region
  $region42: #{forward.5} parent=0 // pred_check
    _
  $region43: #{forward.5} parent=0 // pred_check_branch
    %616 = sbr.rel (0) target = $region45
  $region44: #{forward.5} parent=0 // pred_region
    _
  $region45: #{forward.5} parent=0 // pred_fallthru
    _
  // Predicated region
  $region46: #{forward.5} parent=0 // pred_check
    _
  $region47: #{forward.5} parent=0 // pred_check_branch
    %618 = sbr.rel (0) target = $region49
  $region48: #{forward.5} parent=0 // pred_region
    _
  $region49: #{forward.5} parent=0 // pred_fallthru
    _

// kernel: forward.7
$region0: #{forward.7}
  #allocation0 [shape = 'u32[]', space=smem, size = 0x4, offset = 0x4, fixed_abs, tag = 'smem constant byte address 0x4 - core index']
  #allocation1 [shape = 'u32[144,128]{1,0:T(1,128)}', space=vmem, size = 0x12000, scoped, tag = 'internal scratch']
  #allocation2 [shape = 'f32[24,64]{1,0:T(8,128)}', space=vmem, size = 0x3000, scoped, tag = 'scratch operand']
  #allocation3 [shape = 'f32[8,64]{1,0:T(8,128)}', space=vmem, size = 0x1000, scoped, tag = 'scratch operand']
  %s0 = inlined_call_operand.vmem [shape: f32[24,256], index: 0, kind: input, shape index: {}]
  %s1 = inlined_call_operand.vmem [shape: bf16[256,256], index: 1, kind: input, shape index: {}]
  %s2 = inlined_call_operand.vmem [shape: bf16[32,128], index: 2, kind: input, shape index: {}]
  %s3 = inlined_call_operand.vmem [shape: bf16[32,128], index: 3, kind: input, shape index: {}]
  %s4 = inlined_call_operand.vmem [shape: f32[1,128], index: 4, kind: input, shape index: {}]
  %s5 = inlined_call_operand.vmem [shape: f32[1,128], index: 5, kind: input, shape index: {}]
  %s6 = inlined_call_operand.vmem [shape: bf16[64,256], index: 6, kind: input, shape index: {}]
  %s7 = inlined_call_operand.vmem [shape: bf16[32,128], index: 7, kind: input, shape index: {}]
  %s8 = inlined_call_operand.vmem [shape: bf16[32,128], index: 8, kind: input, shape index: {}]
  %s9 = inlined_call_operand.vmem [shape: f32[1,128], index: 9, kind: input, shape index: {}]
  %s10 = inlined_call_operand.vmem [shape: f32[1,128], index: 10, kind: input, shape index: {}]
  %s11 = inlined_call_operand.vmem [shape: bf16[64,512], index: 11, kind: input, shape index: {}]
  %s12 = inlined_call_operand.vmem [shape: f32[1,512], index: 12, kind: input, shape index: {}]
  %s13 = inlined_call_operand.vmem [shape: f32[1,512], index: 13, kind: input, shape index: {}]
  %s14 = inlined_call_operand.vmem [shape: bf16[512,256], index: 14, kind: input, shape index: {}]
  %s15 = inlined_call_operand.vmem [shape: f32[1,256], index: 15, kind: input, shape index: {}]
  %s16 = inlined_call_operand.vmem [shape: f32[1,256], index: 16, kind: input, shape index: {}]
  %s17 = inlined_call_operand.vmem [shape: bf16[256,128], index: 17, kind: input, shape index: {}]
  %s18 = inlined_call_operand.vmem [shape: f32[1,128], index: 18, kind: input, shape index: {}]
  %s19 = inlined_call_operand.vmem [shape: f32[8,128], index: 19, kind: output, shape index: {}]
  %s20 = sld [smem:[#allocation0]]
  $region86: #{forward.7} parent=0
    _
  %s22 = ssub.s32 1, %s20
  %s23 = scalar_select 0, %s22, %s20
  // Predicated region
  $region2: #{forward.7} parent=0 // pred_check
    _
  $region3: #{forward.7} parent=0 // pred_check_branch
    %25 = sbr.rel (0) target = $region5
  $region4: #{forward.7} parent=0 // pred_region
    _
  $region5: #{forward.7} parent=0 // pred_fallthru
    _
  // Predicated region
  $region6: #{forward.7} parent=0 // pred_check
    _
  $region7: #{forward.7} parent=0 // pred_check_branch
    %27 = sbr.rel (0) target = $region9
  $region8: #{forward.7} parent=0 // pred_region
    _
  $region9: #{forward.7} parent=0 // pred_fallthru
    _
  // Predicated region
  $region10: #{forward.7} parent=0 // pred_check
    _
  $region11: #{forward.7} parent=0 // pred_check_branch
    %29 = sbr.rel (0) target = $region13
  $region12: #{forward.7} parent=0 // pred_region
    _
  $region13: #{forward.7} parent=0 // pred_fallthru
    _
  // Predicated region
  $region14: #{forward.7} parent=0 // pred_check
    _
  $region15: #{forward.7} parent=0 // pred_check_branch
    %31 = sbr.rel (0) target = $region17
  $region16: #{forward.7} parent=0 // pred_region
    _
  $region17: #{forward.7} parent=0 // pred_fallthru
    _
  // Predicated region
  $region18: #{forward.7} parent=0 // pred_check
    _
  $region19: #{forward.7} parent=0 // pred_check_branch
    %33 = sbr.rel (0) target = $region21
  $region20: #{forward.7} parent=0 // pred_region
    _
  $region21: #{forward.7} parent=0 // pred_fallthru
    _
  // Predicated region
  $region22: #{forward.7} parent=0 // pred_check
    _
  $region23: #{forward.7} parent=0 // pred_check_branch
    %35 = sbr.rel (0) target = $region25
  $region24: #{forward.7} parent=0 // pred_region
    _
  $region25: #{forward.7} parent=0 // pred_fallthru
    _
  // Predicated region
  $region26: #{forward.7} parent=0 // pred_check
    _
  $region27: #{forward.7} parent=0 // pred_check_branch
    %37 = sbr.rel (0) target = $region29
  $region28: #{forward.7} parent=0 // pred_region
    _
  $region29: #{forward.7} parent=0 // pred_fallthru
    _
  // Predicated region
  $region30: #{forward.7} parent=0 // pred_check
    _
  $region31: #{forward.7} parent=0 // pred_check_branch
    %39 = sbr.rel (0) target = $region33
  $region32: #{forward.7} parent=0 // pred_region
    _
  $region33: #{forward.7} parent=0 // pred_fallthru
    _
  // Predicated region
  $region34: #{forward.7} parent=0 // pred_check
    _
  $region35: #{forward.7} parent=0 // pred_check_branch
    %41 = sbr.rel (0) target = $region37
  $region36: #{forward.7} parent=0 // pred_region
    _
  $region37: #{forward.7} parent=0 // pred_fallthru
    _
  // Predicated region
  $region38: #{forward.7} parent=0 // pred_check
    _
  $region39: #{forward.7} parent=0 // pred_check_branch
    %43 = sbr.rel (0) target = $region41
  $region40: #{forward.7} parent=0 // pred_region
    _
  $region41: #{forward.7} parent=0 // pred_fallthru
    _
  // Predicated region
  $region42: #{forward.7} parent=0 // pred_check
    _
  $region43: #{forward.7} parent=0 // pred_check_branch
    %45 = sbr.rel (0) target = $region45
  $region44: #{forward.7} parent=0 // pred_region
    _
  $region45: #{forward.7} parent=0 // pred_fallthru
    _
  // Predicated region
  $region46: #{forward.7} parent=0 // pred_check
    _
  $region47: #{forward.7} parent=0 // pred_check_branch
    %47 = sbr.rel (0) target = $region49
  $region48: #{forward.7} parent=0 // pred_region
    _
  $region49: #{forward.7} parent=0 // pred_fallthru
    _
  // Predicated region
  $region50: #{forward.7} parent=0 // pred_check
    _
  $region51: #{forward.7} parent=0 // pred_check_branch
    %49 = sbr.rel (0) target = $region53
  $region52: #{forward.7} parent=0 // pred_region
    _
  $region53: #{forward.7} parent=0 // pred_fallthru
    _
  // Predicated region
  $region54: #{forward.7} parent=0 // pred_check
    _
  $region55: #{forward.7} parent=0 // pred_check_branch
    %51 = sbr.rel (0) target = $region57
  $region56: #{forward.7} parent=0 // pred_region
    _
  $region57: #{forward.7} parent=0 // pred_fallthru
    _
  // Predicated region
  $region58: #{forward.7} parent=0 // pred_check
    _
  $region59: #{forward.7} parent=0 // pred_check_branch
    %53 = sbr.rel (0) target = $region61
  $region60: #{forward.7} parent=0 // pred_region
    _
  $region61: #{forward.7} parent=0 // pred_fallthru
    _
  // Predicated region
  $region62: #{forward.7} parent=0 // pred_check
    _
  $region63: #{forward.7} parent=0 // pred_check_branch
    %55 = sbr.rel (0) target = $region65
  $region64: #{forward.7} parent=0 // pred_region
    _
  $region65: #{forward.7} parent=0 // pred_fallthru
    _
  // Predicated region
  $region66: #{forward.7} parent=0 // pred_check
    _
  $region67: #{forward.7} parent=0 // pred_check_branch
    %57 = sbr.rel (0) target = $region69
  $region68: #{forward.7} parent=0 // pred_region
    _
  $region69: #{forward.7} parent=0 // pred_fallthru
    _
  // Predicated region
  $region70: #{forward.7} parent=0 // pred_check
    _
  $region71: #{forward.7} parent=0 // pred_check_branch
    %59 = sbr.rel (0) target = $region73
  $region72: #{forward.7} parent=0 // pred_region
    _
  $region73: #{forward.7} parent=0 // pred_fallthru
    _
  // Predicated region
  $region74: #{forward.7} parent=0 // pred_check
    _
  $region75: #{forward.7} parent=0 // pred_check_branch
    %61 = sbr.rel (0) target = $region77
  $region76: #{forward.7} parent=0 // pred_region
    _
  $region77: #{forward.7} parent=0 // pred_fallthru
    _
  %v63 = vld [vmem:[%s0] sm:$0xff]
  %v64 = vld [vmem:[%s0 + $0x8] sm:$0xff]
  %v65 = vld [vmem:[%s0 + $0x10] sm:$0xff]
  %v66 = vld [vmem:[%s0 + $0x18] sm:$0xff]
  %v67 = vld [vmem:[%s0 + $0x20] sm:$0xff]
  %v68 = vld [vmem:[%s0 + $0x28] sm:$0xff]
  %v69 = vpack.c.bf16 %v65, %v63
  %v70 = vpack.c.bf16 %v66, %v64
  %v71 = vpack.c.bf16 %v67, %v67
  %v72 = vpack.c.bf16 %v68, %v68
  %v73 = vld [vmem:[%s1] sm:$0xff]
  %v74 = vld [vmem:[%s1 + $0x8] sm:$0xff]
  %v75 = vld [vmem:[%s1 + $0x10] sm:$0xff]
  %v76 = vld [vmem:[%s1 + $0x18] sm:$0xff]
  %v77 = vld [vmem:[%s1 + $0x20] sm:$0xff]
  %v78 = vld [vmem:[%s1 + $0x28] sm:$0xff]
  %v79 = vld [vmem:[%s1 + $0x30] sm:$0xff]
  %v80 = vld [vmem:[%s1 + $0x38] sm:$0xff]
  %v81 = vld [vmem:[%s1 + $0x40] sm:$0xff]
  %v82 = vld [vmem:[%s1 + $0x48] sm:$0xff]
  %v83 = vld [vmem:[%s1 + $0x50] sm:$0xff]
  %v84 = vld [vmem:[%s1 + $0x58] sm:$0xff]
  %v85 = vld [vmem:[%s1 + $0x60] sm:$0xff]
  %v86 = vld [vmem:[%s1 + $0x68] sm:$0xff]
  %v87 = vld [vmem:[%s1 + $0x70] sm:$0xff]
  %v88 = vld [vmem:[%s1 + $0x78] sm:$0xff]
  %v89 = vld [vmem:[%s1 + $0x80] sm:$0xff]
  %v90 = vld [vmem:[%s1 + $0x88] sm:$0xff]
  %v91 = vld [vmem:[%s1 + $0x90] sm:$0xff]
  %v92 = vld [vmem:[%s1 + $0x98] sm:$0xff]
  %v93 = vld [vmem:[%s1 + $0xa0] sm:$0xff]
  %v94 = vld [vmem:[%s1 + $0xa8] sm:$0xff]
  %v95 = vld [vmem:[%s1 + $0xb0] sm:$0xff]
  %v96 = vld [vmem:[%s1 + $0xb8] sm:$0xff]
  %v97 = vld [vmem:[%s1 + $0xc0] sm:$0xff]
  %v98 = vld [vmem:[%s1 + $0xc8] sm:$0xff]
  %v99 = vld [vmem:[%s1 + $0xd0] sm:$0xff]
  %v100 = vld [vmem:[%s1 + $0xd8] sm:$0xff]
  %v101 = vld [vmem:[%s1 + $0xe0] sm:$0xff]
  %v102 = vld [vmem:[%s1 + $0xe8] sm:$0xff]
  %v103 = vld [vmem:[%s1 + $0xf0] sm:$0xff]
  %v104 = vld [vmem:[%s1 + $0xf8] sm:$0xff]
  %v137 = vunpack.c.l.b16 %v73
  %v138 = vunpack.c.h.b16 %v73
  %v139 = vunpack.c.l.b16 %v74
  %v140 = vunpack.c.h.b16 %v74
  %v141 = vunpack.c.l.b16 %v75
  %v142 = vunpack.c.h.b16 %v75
  %v143 = vunpack.c.l.b16 %v76
  %v144 = vunpack.c.h.b16 %v76
  %v145 = vunpack.c.l.b16 %v77
  %v146 = vunpack.c.h.b16 %v77
  %v147 = vunpack.c.l.b16 %v78
  %v148 = vunpack.c.h.b16 %v78
  %v149 = vunpack.c.l.b16 %v79
  %v150 = vunpack.c.h.b16 %v79
  %v151 = vunpack.c.l.b16 %v80
  %v152 = vunpack.c.h.b16 %v80
  %v153 = vunpack.c.l.b16 %v81
  %v154 = vunpack.c.h.b16 %v81
  %v155 = vunpack.c.l.b16 %v82
  %v156 = vunpack.c.h.b16 %v82
  %v157 = vunpack.c.l.b16 %v83
  %v158 = vunpack.c.h.b16 %v83
  %v159 = vunpack.c.l.b16 %v84
  %v160 = vunpack.c.h.b16 %v84
  %v161 = vunpack.c.l.b16 %v85
  %v162 = vunpack.c.h.b16 %v85
  %v163 = vunpack.c.l.b16 %v86
  %v164 = vunpack.c.h.b16 %v86
  %v165 = vunpack.c.l.b16 %v87
  %v166 = vunpack.c.h.b16 %v87
  %v167 = vunpack.c.l.b16 %v88
  %v168 = vunpack.c.h.b16 %v88
  %v169 = vunpack.c.l.b16 %v89
  %v170 = vunpack.c.h.b16 %v89
  %v171 = vunpack.c.l.b16 %v90
  %v172 = vunpack.c.h.b16 %v90
  %v173 = vunpack.c.l.b16 %v91
  %v174 = vunpack.c.h.b16 %v91
  %v175 = vunpack.c.l.b16 %v92
  %v176 = vunpack.c.h.b16 %v92
  %v177 = vunpack.c.l.b16 %v93
  %v178 = vunpack.c.h.b16 %v93
  %v179 = vunpack.c.l.b16 %v94
  %v180 = vunpack.c.h.b16 %v94
  %v181 = vunpack.c.l.b16 %v95
  %v182 = vunpack.c.h.b16 %v95
  %v183 = vunpack.c.l.b16 %v96
  %v184 = vunpack.c.h.b16 %v96
  %v185 = vunpack.c.l.b16 %v97
  %v186 = vunpack.c.h.b16 %v97
  %v187 = vunpack.c.l.b16 %v98
  %v188 = vunpack.c.h.b16 %v98
  %v189 = vunpack.c.l.b16 %v99
  %v190 = vunpack.c.h.b16 %v99
  %v191 = vunpack.c.l.b16 %v100
  %v192 = vunpack.c.h.b16 %v100
  %v193 = vunpack.c.l.b16 %v101
  %v194 = vunpack.c.h.b16 %v101
  %v195 = vunpack.c.l.b16 %v102
  %v196 = vunpack.c.h.b16 %v102
  %v197 = vunpack.c.l.b16 %v103
  %v198 = vunpack.c.h.b16 %v103
  %v199 = vunpack.c.l.b16 %v104
  %v200 = vunpack.c.h.b16 %v104
  %v201 = vpack.c.b16 %v139, %v137
  %v202 = vpack.c.b16 %v140, %v138
  %v203 = vpack.c.b16 %v143, %v141
  %v204 = vpack.c.b16 %v144, %v142
  %v205 = vpack.c.b16 %v147, %v145
  %v206 = vpack.c.b16 %v148, %v146
  %v207 = vpack.c.b16 %v151, %v149
  %v208 = vpack.c.b16 %v152, %v150
  %v209 = vpack.c.b16 %v155, %v153
  %v210 = vpack.c.b16 %v156, %v154
  %v211 = vpack.c.b16 %v159, %v157
  %v212 = vpack.c.b16 %v160, %v158
  %v213 = vpack.c.b16 %v163, %v161
  %v214 = vpack.c.b16 %v164, %v162
  %v215 = vpack.c.b16 %v167, %v165
  %v216 = vpack.c.b16 %v168, %v166
  %v217 = vpack.c.b16 %v171, %v169
  %v218 = vpack.c.b16 %v172, %v170
  %v219 = vpack.c.b16 %v175, %v173
  %v220 = vpack.c.b16 %v176, %v174
  %v221 = vpack.c.b16 %v179, %v177
  %v222 = vpack.c.b16 %v180, %v178
  %v223 = vpack.c.b16 %v183, %v181
  %v224 = vpack.c.b16 %v184, %v182
  %v225 = vpack.c.b16 %v187, %v185
  %v226 = vpack.c.b16 %v188, %v186
  %v227 = vpack.c.b16 %v191, %v189
  %v228 = vpack.c.b16 %v192, %v190
  %v229 = vpack.c.b16 %v195, %v193
  %v230 = vpack.c.b16 %v196, %v194
  %v231 = vpack.c.b16 %v199, %v197
  %v232 = vpack.c.b16 %v200, %v198
  %265 = vmatprep.subr.bf16.mxu0 %v216
  %266 = vmatpush1.bf16.msra.mxu0 %v215
  %267 = vmatprep.subr.bf16.mxu0 %v214
  %268 = vmatpush1.bf16.msra.mxu0 %v213
  %269 = vmatprep.subr.bf16.mxu0 %v212
  %270 = vmatpush1.bf16.msra.mxu0 %v211
  %271 = vmatprep.subr.bf16.mxu0 %v210
  %272 = vmatpush1.bf16.msra.mxu0 %v209
  %273 = vmatprep.subr.bf16.mxu0 %v208
  %274 = vmatpush1.bf16.msra.mxu0 %v207
  %275 = vmatprep.subr.bf16.mxu0 %v206
  %276 = vmatpush1.bf16.msra.mxu0 %v205
  %277 = vmatprep.subr.bf16.mxu0 %v204
  %278 = vmatpush1.bf16.msra.mxu0 %v203
  %279 = vmatprep.subr.bf16.mxu0 %v202
  %280 = vmatpush1.bf16.msra.mxu0 %v201
  %281 = vmatprep.subr.bf16.mxu0 %v232
  %282 = vmatpush2.bf16.msra.mxu0 %v231
  %283 = vmatprep.subr.bf16.mxu0 %v230
  %284 = vmatpush2.bf16.msra.mxu0 %v229
  %285 = vmatprep.subr.bf16.mxu0 %v228
  %286 = vmatpush2.bf16.msra.mxu0 %v227
  %287 = vmatprep.subr.bf16.mxu0 %v226
  %288 = vmatpush2.bf16.msra.mxu0 %v225
  %289 = vmatprep.subr.bf16.mxu0 %v224
  %290 = vmatpush2.bf16.msra.mxu0 %v223
  %291 = vmatprep.subr.bf16.mxu0 %v222
  %292 = vmatpush2.bf16.msra.mxu0 %v221
  %293 = vmatprep.subr.bf16.mxu0 %v220
  %294 = vmatpush2.bf16.msra.mxu0 %v219
  %295 = vmatprep.subr.bf16.mxu0 %v218
  %296 = vmatpush2.bf16.msra.mxu0 %v217
  %297 = vmatprep.mubr.bf16.mxu0 %v70
  %298 = vmatmul.mubr.bf16.gmra.mxu0 %v69
  %v299 = vpop.f32.mrf.mxu0
  %v300 = vadd.f32 0.0, %v299
  %v301 = vpop.f32.mrf.mxu0
  %v302 = vadd.f32 0.0, %v301
  %v303 = vpop.f32.mrf.mxu0
  %v304 = vadd.f32 0.0, %v303
  %v305 = vpop.f32.mrf.mxu0
  %v306 = vadd.f32 0.0, %v305
  %307 = vmatprep.mubr.bf16.mxu0 %v72
  %308 = vmatmul.mubr.bf16.gmra.mxu0 %v71
  %v309 = vpop.f32.mrf.mxu0
  %v310 = vadd.f32 0.0, %v309
  %v311 = vpop.f32.mrf.mxu0
  %v312 = vadd.f32 0.0, %v311
  %v313 = vpop.f32.mrf.mxu0
  %v314 = vpop.f32.mrf.mxu0
  %315 = vdwg.mxu0
  %v316 = vld [vmem:[%s2] sm:$0xf]
  %v317 = vld [vmem:[%s2 + $0x4] sm:$0xf]
  %v318 = vld [vmem:[%s2 + $0x8] sm:$0xf]
  %v319 = vld [vmem:[%s2 + $0xc] sm:$0xf]
  %v324 = vunpack.c.l.b16 %v316
  %v325 = vunpack.c.l.b16 %v317
  %v326 = vunpack.c.l.b16 %v318
  %v327 = vunpack.c.l.b16 %v319
  %v328 = vpack.c.b16 %v325, %v324
  %v329 = vpack.c.b16 %v327, %v326
  %vm332 = vcmask 261120
  %v334 = vsel %vm332, 0, 0
  %336 = vmatprep.subr.bf16.mxu0 0
  %337 = vmatpush1.bf16.msra.mxu0 0
  %338 = vmatprep.subr.bf16.mxu0 0
  %339 = vmatpush1.bf16.msra.mxu0 0
  %340 = vmatprep.subr.bf16.mxu0 0
  %341 = vmatpush1.bf16.msra.mxu0 0
  %342 = vmatprep.subr.bf16.mxu0 0
  %343 = vmatpush1.bf16.msra.mxu0 0
  %344 = vmatprep.subr.bf16.mxu0 0
  %345 = vmatpush1.bf16.msra.mxu0 0
  %346 = vmatprep.subr.bf16.mxu0 0
  %347 = vmatpush1.bf16.msra.mxu0 0
  %348 = vmatprep.subr.bf16.mxu0 0
  %349 = vmatpush1.bf16.msra.mxu0 %v329
  %350 = vmatprep.subr.bf16.mxu0 0
  %351 = vmatpush1.bf16.msra.mxu0 %v328
  %352 = vmatprep.subr.bf16.mxu0 0
  %353 = vmatpush2.bf16.msra.mxu0 0
  %354 = vmatprep.subr.bf16.mxu0 0
  %355 = vmatpush2.bf16.msra.mxu0 0
  %356 = vmatprep.subr.bf16.mxu0 0
  %357 = vmatpush2.bf16.msra.mxu0 0
  %358 = vmatprep.subr.bf16.mxu0 0
  %359 = vmatpush2.bf16.msra.mxu0 0
  %360 = vmatprep.subr.bf16.mxu0 0
  %361 = vmatpush2.bf16.msra.mxu0 0
  %362 = vmatprep.subr.bf16.mxu0 0
  %363 = vmatpush2.bf16.msra.mxu0 0
  %364 = vmatprep.subr.bf16.mxu0 0
  %365 = vmatpush2.bf16.msra.mxu0 0
  %366 = vmatprep.subr.bf16.mxu0 0
  %367 = vmatpush2.bf16.msra.mxu0 0
  %368 = vmatprep.mubr.bf16.mxu0 0
  %369 = vmatmul.mubr.bf16.gmra.mxu0 %v334
  %v370 = vpop.f32.mrf.mxu0
  %v371 = vadd.f32 0.0, %v370
  %v372 = vpop.f32.mrf.mxu0
  %v373 = vpop.f32.mrf.mxu0
  %v374 = vpop.f32.mrf.mxu0
  %375 = vdwg.mxu0
  %v376 = vld [vmem:[%s3] sm:$0xf]
  %v377 = vld [vmem:[%s3 + $0x4] sm:$0xf]
  %v378 = vld [vmem:[%s3 + $0x8] sm:$0xf]
  %v379 = vld [vmem:[%s3 + $0xc] sm:$0xf]
  %v384 = vunpack.c.l.b16 %v376
  %v385 = vunpack.c.l.b16 %v377
  %v386 = vunpack.c.l.b16 %v378
  %v387 = vunpack.c.l.b16 %v379
  %v388 = vpack.c.b16 %v385, %v384
  %v389 = vpack.c.b16 %v387, %v386
  %392 = vmatprep.subr.bf16.mxu0 0
  %393 = vmatpush1.bf16.msra.mxu0 0
  %394 = vmatprep.subr.bf16.mxu0 0
  %395 = vmatpush1.bf16.msra.mxu0 0
  %396 = vmatprep.subr.bf16.mxu0 0
  %397 = vmatpush1.bf16.msra.mxu0 0
  %398 = vmatprep.subr.bf16.mxu0 0
  %399 = vmatpush1.bf16.msra.mxu0 0
  %400 = vmatprep.subr.bf16.mxu0 0
  %401 = vmatpush1.bf16.msra.mxu0 0
  %402 = vmatprep.subr.bf16.mxu0 0
  %403 = vmatpush1.bf16.msra.mxu0 0
  %404 = vmatprep.subr.bf16.mxu0 0
  %405 = vmatpush1.bf16.msra.mxu0 %v389
  %406 = vmatprep.subr.bf16.mxu0 0
  %407 = vmatpush1.bf16.msra.mxu0 %v388
  %408 = vmatprep.subr.bf16.mxu0 0
  %409 = vmatpush2.bf16.msra.mxu0 0
  %410 = vmatprep.subr.bf16.mxu0 0
  %411 = vmatpush2.bf16.msra.mxu0 0
  %412 = vmatprep.subr.bf16.mxu0 0
  %413 = vmatpush2.bf16.msra.mxu0 0
  %414 = vmatprep.subr.bf16.mxu0 0
  %415 = vmatpush2.bf16.msra.mxu0 0
  %416 = vmatprep.subr.bf16.mxu0 0
  %417 = vmatpush2.bf16.msra.mxu0 0
  %418 = vmatprep.subr.bf16.mxu0 0
  %419 = vmatpush2.bf16.msra.mxu0 0
  %420 = vmatprep.subr.bf16.mxu0 0
  %421 = vmatpush2.bf16.msra.mxu0 0
  %422 = vmatprep.subr.bf16.mxu0 0
  %423 = vmatpush2.bf16.msra.mxu0 0
  %424 = vmatprep.mubr.bf16.mxu0 0
  %425 = vmatmul.mubr.bf16.gmra.mxu0 %v334
  %v426 = vpop.f32.mrf.mxu0
  %v427 = vadd.f32 0.0, %v426
  %v428 = vpop.f32.mrf.mxu0
  %v429 = vpop.f32.mrf.mxu0
  %v430 = vpop.f32.mrf.mxu0
  %431 = vdwg.mxu0
  %v432 = vadd.f32 %v300, %v371
  %v433 = vld [vmem:[%s4] sm:$0x1]
  %v435 = vlaneseq
  %v436 = vshrl.u32 %v435, 7
  %v437 = vsub.s32 0, %v436
  %v438 = vrot.slane %v433, %v437
  %v440 = vadd.f32 %v432, %v438
  %v441 = vsub.f32 0.0, %v440
  %v442 = vmul.f32 %v441, 1.442695
  %v443 = vpow.pop %v442
  %v444 = vadd.f32 %v443, 1.0
  %v445 = vrcp.pop %v444
  %v446 = vmul.f32 1.0, %v445
  %v447 = vtanh.pop %v440
  %v448 = vmul.f32 %v446, 0.0
  %450 = vrot.lane.b32.xlu0 %v447, 64
  %v451 = vpop.permute.xlu0 %450
  %v453 = vmul.f32 %v446, %v451
  %455 = vrot.lane.b32.xlu0 %v453, 32
  %v456 = vpop.permute.xlu0 %455
  %v458 = vadd.f32 %v448, %v456
  %v459 = vtanh.pop %v458
  %461 = vrot.lane.b32.xlu0 %v459, 64
  %v462 = vpop.permute.xlu0 %461
  %v464 = vmul.f32 %v446, %v462
  %v465 = vadd.f32 %v312, %v427
  %v466 = vld [vmem:[%s5] sm:$0x1]
  %v468 = vlaneseq
  %v469 = vshrl.u32 %v468, 7
  %v470 = vsub.s32 0, %v469
  %v471 = vrot.slane %v466, %v470
  %v473 = vadd.f32 %v465, %v471
  %v474 = vsub.f32 0.0, %v473
  %v475 = vmul.f32 %v474, 1.442695
  %v476 = vpow.pop %v475
  %v477 = vadd.f32 %v476, 1.0
  %v478 = vrcp.pop %v477
  %v479 = vmul.f32 1.0, %v478
  %v480 = vtanh.pop %v473
  %v481 = vmul.f32 %v479, 0.0
  %483 = vrot.lane.b32.xlu0 %v480, 64
  %v484 = vpop.permute.xlu0 %483
  %v486 = vmul.f32 %v479, %v484
  %488 = vrot.lane.b32.xlu0 %v486, 32
  %v489 = vpop.permute.xlu0 %488
  %v491 = vadd.f32 %v481, %v489
  %v492 = vtanh.pop %v491
  %494 = vrot.lane.b32.xlu0 %v492, 64
  %v495 = vpop.permute.xlu0 %494
  %v497 = vmul.f32 %v479, %v495
  %499 = vrot.lane.b32.xlu0 %v464, 32
  %v500 = vpop.permute.xlu0 %499
  %502 = vst.msk [vmem:[#allocation2] sm:$0xff] %vm332, %v500
  %504 = vrot.lane.b32.xlu0 %v497, 64
  %v505 = vpop.permute.xlu0 %504
  %vm507 = vcmask 523520
  %508 = vst.msk [vmem:[#allocation2 + $0x10] sm:$0xff] %vm507, %v505
  %v509 = vpack.c.bf16 %v464, %v464
  %v510 = vld [vmem:[%s2] sm:$0xf]
  %v511 = vld [vmem:[%s2 + $0x4] sm:$0xf]
  %v512 = vld [vmem:[%s2 + $0x8] sm:$0xf]
  %v513 = vld [vmem:[%s2 + $0xc] sm:$0xf]
  %515 = vrot.lane.b32.xlu0 %v509, 32
  %v516 = vpop.permute.xlu0 %515
  %v521 = vunpack.c.l.b16 %v510
  %v522 = vunpack.c.l.b16 %v511
  %v523 = vunpack.c.l.b16 %v512
  %v524 = vunpack.c.l.b16 %v513
  %v525 = vpack.c.b16 %v522, %v521
  %v526 = vpack.c.b16 %v524, %v523
  %v530 = vsel %vm332, %v516, 0
  %532 = vmatprep.subr.bf16.mxu0 0
  %533 = vmatpush1.bf16.msra.mxu0 0
  %534 = vmatprep.subr.bf16.mxu0 0
  %535 = vmatpush1.bf16.msra.mxu0 0
  %536 = vmatprep.subr.bf16.mxu0 0
  %537 = vmatpush1.bf16.msra.mxu0 0
  %538 = vmatprep.subr.bf16.mxu0 0
  %539 = vmatpush1.bf16.msra.mxu0 0
  %540 = vmatprep.subr.bf16.mxu0 0
  %541 = vmatpush1.bf16.msra.mxu0 0
  %542 = vmatprep.subr.bf16.mxu0 0
  %543 = vmatpush1.bf16.msra.mxu0 0
  %544 = vmatprep.subr.bf16.mxu0 0
  %545 = vmatpush1.bf16.msra.mxu0 %v526
  %546 = vmatprep.subr.bf16.mxu0 0
  %547 = vmatpush1.bf16.msra.mxu0 %v525
  %548 = vmatprep.subr.bf16.mxu0 0
  %549 = vmatpush2.bf16.msra.mxu0 0
  %550 = vmatprep.subr.bf16.mxu0 0
  %551 = vmatpush2.bf16.msra.mxu0 0
  %552 = vmatprep.subr.bf16.mxu0 0
  %553 = vmatpush2.bf16.msra.mxu0 0
  %554 = vmatprep.subr.bf16.mxu0 0
  %555 = vmatpush2.bf16.msra.mxu0 0
  %556 = vmatprep.subr.bf16.mxu0 0
  %557 = vmatpush2.bf16.msra.mxu0 0
  %558 = vmatprep.subr.bf16.mxu0 0
  %559 = vmatpush2.bf16.msra.mxu0 0
  %560 = vmatprep.subr.bf16.mxu0 0
  %561 = vmatpush2.bf16.msra.mxu0 0
  %562 = vmatprep.subr.bf16.mxu0 0
  %563 = vmatpush2.bf16.msra.mxu0 0
  %564 = vmatprep.mubr.bf16.mxu0 0
  %565 = vmatmul.mubr.bf16.gmra.mxu0 %v530
  %v566 = vpop.f32.mrf.mxu0
  %v567 = vadd.f32 0.0, %v566
  %v568 = vpop.f32.mrf.mxu0
  %v569 = vpop.f32.mrf.mxu0
  %v570 = vpop.f32.mrf.mxu0
  %571 = vdwg.mxu0
  %v572 = vpack.c.bf16 %v497, %v497
  %v573 = vld [vmem:[%s3] sm:$0xf]
  %v574 = vld [vmem:[%s3 + $0x4] sm:$0xf]
  %v575 = vld [vmem:[%s3 + $0x8] sm:$0xf]
  %v576 = vld [vmem:[%s3 + $0xc] sm:$0xf]
  %578 = vrot.lane.b32.xlu0 %v572, 32
  %v579 = vpop.permute.xlu0 %578
  %v584 = vunpack.c.l.b16 %v573
  %v585 = vunpack.c.l.b16 %v574
  %v586 = vunpack.c.l.b16 %v575
  %v587 = vunpack.c.l.b16 %v576
  %v588 = vpack.c.b16 %v585, %v584
  %v589 = vpack.c.b16 %v587, %v586
  %v593 = vsel %vm332, %v579, 0
  %595 = vmatprep.subr.bf16.mxu0 0
  %596 = vmatpush1.bf16.msra.mxu0 0
  %597 = vmatprep.subr.bf16.mxu0 0
  %598 = vmatpush1.bf16.msra.mxu0 0
  %599 = vmatprep.subr.bf16.mxu0 0
  %600 = vmatpush1.bf16.msra.mxu0 0
  %601 = vmatprep.subr.bf16.mxu0 0
  %602 = vmatpush1.bf16.msra.mxu0 0
  %603 = vmatprep.subr.bf16.mxu0 0
  %604 = vmatpush1.bf16.msra.mxu0 0
  %605 = vmatprep.subr.bf16.mxu0 0
  %606 = vmatpush1.bf16.msra.mxu0 0
  %607 = vmatprep.subr.bf16.mxu0 0
  %608 = vmatpush1.bf16.msra.mxu0 %v589
  %609 = vmatprep.subr.bf16.mxu0 0
  %610 = vmatpush1.bf16.msra.mxu0 %v588
  %611 = vmatprep.subr.bf16.mxu0 0
  %612 = vmatpush2.bf16.msra.mxu0 0
  %613 = vmatprep.subr.bf16.mxu0 0
  %614 = vmatpush2.bf16.msra.mxu0 0
  %615 = vmatprep.subr.bf16.mxu0 0
  %616 = vmatpush2.bf16.msra.mxu0 0
  %617 = vmatprep.subr.bf16.mxu0 0
  %618 = vmatpush2.bf16.msra.mxu0 0
  %619 = vmatprep.subr.bf16.mxu0 0
  %620 = vmatpush2.bf16.msra.mxu0 0
  %621 = vmatprep.subr.bf16.mxu0 0
  %622 = vmatpush2.bf16.msra.mxu0 0
  %623 = vmatprep.subr.bf16.mxu0 0
  %624 = vmatpush2.bf16.msra.mxu0 0
  %625 = vmatprep.subr.bf16.mxu0 0
  %626 = vmatpush2.bf16.msra.mxu0 0
  %627 = vmatprep.mubr.bf16.mxu0 0
  %628 = vmatmul.mubr.bf16.gmra.mxu0 %v593
  %v629 = vpop.f32.mrf.mxu0
  %v630 = vadd.f32 0.0, %v629
  %v631 = vpop.f32.mrf.mxu0
  %v632 = vpop.f32.mrf.mxu0
  %v633 = vpop.f32.mrf.mxu0
  %634 = vdwg.mxu0
  %v635 = vadd.f32 %v304, %v567
  %v636 = vld [vmem:[%s4] sm:$0x1]
  %v638 = vlaneseq
  %v639 = vshrl.u32 %v638, 7
  %v640 = vsub.s32 0, %v639
  %v641 = vrot.slane %v636, %v640
  %v643 = vadd.f32 %v635, %v641
  %v644 = vsub.f32 0.0, %v643
  %v645 = vmul.f32 %v644, 1.442695
  %v646 = vpow.pop %v645
  %v647 = vadd.f32 %v646, 1.0
  %v648 = vrcp.pop %v647
  %v649 = vmul.f32 1.0, %v648
  %v650 = vtanh.pop %v643
  %v651 = vmul.f32 %v649, %v458
  %653 = vrot.lane.b32.xlu0 %v650, 64
  %v654 = vpop.permute.xlu0 %653
  %v656 = vmul.f32 %v649, %v654
  %658 = vrot.lane.b32.xlu0 %v656, 32
  %v659 = vpop.permute.xlu0 %658
  %v661 = vadd.f32 %v651, %v659
  %v662 = vtanh.pop %v661
  %664 = vrot.lane.b32.xlu0 %v662, 64
  %v665 = vpop.permute.xlu0 %664
  %v667 = vmul.f32 %v649, %v665
  %v668 = vadd.f32 %v306, %v630
  %v669 = vld [vmem:[%s5] sm:$0x1]
  %v671 = vlaneseq
  %v672 = vshrl.u32 %v671, 7
  %v673 = vsub.s32 0, %v672
  %v674 = vrot.slane %v669, %v673
  %v676 = vadd.f32 %v668, %v674
  %v677 = vsub.f32 0.0, %v676
  %v678 = vmul.f32 %v677, 1.442695
  %v679 = vpow.pop %v678
  %v680 = vadd.f32 %v679, 1.0
  %v681 = vrcp.pop %v680
  %v682 = vmul.f32 1.0, %v681
  %v683 = vtanh.pop %v676
  %v684 = vmul.f32 %v682, %v491
  %686 = vrot.lane.b32.xlu0 %v683, 64
  %v687 = vpop.permute.xlu0 %686
  %v689 = vmul.f32 %v682, %v687
  %691 = vrot.lane.b32.xlu0 %v689, 32
  %v692 = vpop.permute.xlu0 %691
  %v694 = vadd.f32 %v684, %v692
  %v695 = vtanh.pop %v694
  %697 = vrot.lane.b32.xlu0 %v695, 64
  %v698 = vpop.permute.xlu0 %697
  %v700 = vmul.f32 %v682, %v698
  %702 = vrot.lane.b32.xlu0 %v667, 32
  %v703 = vpop.permute.xlu0 %702
  %705 = vst.msk [vmem:[#allocation2 + $0x8] sm:$0xff] %vm332, %v703
  %707 = vrot.lane.b32.xlu0 %v700, 64
  %v708 = vpop.permute.xlu0 %707
  %710 = vst.msk [vmem:[#allocation2 + $0x8] sm:$0xff] %vm507, %v708
  %v711 = vpack.c.bf16 %v667, %v667
  %v712 = vld [vmem:[%s2] sm:$0xf]
  %v713 = vld [vmem:[%s2 + $0x4] sm:$0xf]
  %v714 = vld [vmem:[%s2 + $0x8] sm:$0xf]
  %v715 = vld [vmem:[%s2 + $0xc] sm:$0xf]
  %717 = vrot.lane.b32.xlu0 %v711, 32
  %v718 = vpop.permute.xlu0 %717
  %v723 = vunpack.c.l.b16 %v712
  %v724 = vunpack.c.l.b16 %v713
  %v725 = vunpack.c.l.b16 %v714
  %v726 = vunpack.c.l.b16 %v715
  %v727 = vpack.c.b16 %v724, %v723
  %v728 = vpack.c.b16 %v726, %v725
  %v732 = vsel %vm332, %v718, 0
  %734 = vmatprep.subr.bf16.mxu0 0
  %735 = vmatpush1.bf16.msra.mxu0 0
  %736 = vmatprep.subr.bf16.mxu0 0
  %737 = vmatpush1.bf16.msra.mxu0 0
  %738 = vmatprep.subr.bf16.mxu0 0
  %739 = vmatpush1.bf16.msra.mxu0 0
  %740 = vmatprep.subr.bf16.mxu0 0
  %741 = vmatpush1.bf16.msra.mxu0 0
  %742 = vmatprep.subr.bf16.mxu0 0
  %743 = vmatpush1.bf16.msra.mxu0 0
  %744 = vmatprep.subr.bf16.mxu0 0
  %745 = vmatpush1.bf16.msra.mxu0 0
  %746 = vmatprep.subr.bf16.mxu0 0
  %747 = vmatpush1.bf16.msra.mxu0 %v728
  %748 = vmatprep.subr.bf16.mxu0 0
  %749 = vmatpush1.bf16.msra.mxu0 %v727
  %750 = vmatprep.subr.bf16.mxu0 0
  %751 = vmatpush2.bf16.msra.mxu0 0
  %752 = vmatprep.subr.bf16.mxu0 0
  %753 = vmatpush2.bf16.msra.mxu0 0
  %754 = vmatprep.subr.bf16.mxu0 0
  %755 = vmatpush2.bf16.msra.mxu0 0
  %756 = vmatprep.subr.bf16.mxu0 0
  %757 = vmatpush2.bf16.msra.mxu0 0
  %758 = vmatprep.subr.bf16.mxu0 0
  %759 = vmatpush2.bf16.msra.mxu0 0
  %760 = vmatprep.subr.bf16.mxu0 0
  %761 = vmatpush2.bf16.msra.mxu0 0
  %762 = vmatprep.subr.bf16.mxu0 0
  %763 = vmatpush2.bf16.msra.mxu0 0
  %764 = vmatprep.subr.bf16.mxu0 0
  %765 = vmatpush2.bf16.msra.mxu0 0
  %766 = vmatprep.mubr.bf16.mxu0 0
  %767 = vmatmul.mubr.bf16.gmra.mxu0 %v732
  %v768 = vpop.f32.mrf.mxu0
  %v769 = vadd.f32 0.0, %v768
  %v770 = vpop.f32.mrf.mxu0
  %v771 = vpop.f32.mrf.mxu0
  %v772 = vpop.f32.mrf.mxu0
  %773 = vdwg.mxu0
  %v774 = vpack.c.bf16 %v700, %v700
  %v775 = vld [vmem:[%s3] sm:$0xf]
  %v776 = vld [vmem:[%s3 + $0x4] sm:$0xf]
  %v777 = vld [vmem:[%s3 + $0x8] sm:$0xf]
  %v778 = vld [vmem:[%s3 + $0xc] sm:$0xf]
  %780 = vrot.lane.b32.xlu0 %v774, 32
  %v781 = vpop.permute.xlu0 %780
  %v786 = vunpack.c.l.b16 %v775
  %v787 = vunpack.c.l.b16 %v776
  %v788 = vunpack.c.l.b16 %v777
  %v789 = vunpack.c.l.b16 %v778
  %v790 = vpack.c.b16 %v787, %v786
  %v791 = vpack.c.b16 %v789, %v788
  %v795 = vsel %vm332, %v781, 0
  %797 = vmatprep.subr.bf16.mxu0 0
  %798 = vmatpush1.bf16.msra.mxu0 0
  %799 = vmatprep.subr.bf16.mxu0 0
  %800 = vmatpush1.bf16.msra.mxu0 0
  %801 = vmatprep.subr.bf16.mxu0 0
  %802 = vmatpush1.bf16.msra.mxu0 0
  %803 = vmatprep.subr.bf16.mxu0 0
  %804 = vmatpush1.bf16.msra.mxu0 0
  %805 = vmatprep.subr.bf16.mxu0 0
  %806 = vmatpush1.bf16.msra.mxu0 0
  %807 = vmatprep.subr.bf16.mxu0 0
  %808 = vmatpush1.bf16.msra.mxu0 0
  %809 = vmatprep.subr.bf16.mxu0 0
  %810 = vmatpush1.bf16.msra.mxu0 %v791
  %811 = vmatprep.subr.bf16.mxu0 0
  %812 = vmatpush1.bf16.msra.mxu0 %v790
  %813 = vmatprep.subr.bf16.mxu0 0
  %814 = vmatpush2.bf16.msra.mxu0 0
  %815 = vmatprep.subr.bf16.mxu0 0
  %816 = vmatpush2.bf16.msra.mxu0 0
  %817 = vmatprep.subr.bf16.mxu0 0
  %818 = vmatpush2.bf16.msra.mxu0 0
  %819 = vmatprep.subr.bf16.mxu0 0
  %820 = vmatpush2.bf16.msra.mxu0 0
  %821 = vmatprep.subr.bf16.mxu0 0
  %822 = vmatpush2.bf16.msra.mxu0 0
  %823 = vmatprep.subr.bf16.mxu0 0
  %824 = vmatpush2.bf16.msra.mxu0 0
  %825 = vmatprep.subr.bf16.mxu0 0
  %826 = vmatpush2.bf16.msra.mxu0 0
  %827 = vmatprep.subr.bf16.mxu0 0
  %828 = vmatpush2.bf16.msra.mxu0 0
  %829 = vmatprep.mubr.bf16.mxu0 0
  %830 = vmatmul.mubr.bf16.gmra.mxu0 %v795
  %v831 = vpop.f32.mrf.mxu0
  %v832 = vadd.f32 0.0, %v831
  %v833 = vpop.f32.mrf.mxu0
  %v834 = vpop.f32.mrf.mxu0
  %v835 = vpop.f32.mrf.mxu0
  %836 = vdwg.mxu0
  %v837 = vadd.f32 %v310, %v769
  %v838 = vld [vmem:[%s4] sm:$0x1]
  %v840 = vlaneseq
  %v841 = vshrl.u32 %v840, 7
  %v842 = vsub.s32 0, %v841
  %v843 = vrot.slane %v838, %v842
  %v845 = vadd.f32 %v837, %v843
  %v846 = vsub.f32 0.0, %v845
  %v847 = vmul.f32 %v846, 1.442695
  %v848 = vpow.pop %v847
  %v849 = vadd.f32 %v848, 1.0
  %v850 = vrcp.pop %v849
  %v851 = vmul.f32 1.0, %v850
  %v852 = vtanh.pop %v845
  %v853 = vmul.f32 %v851, %v661
  %855 = vrot.lane.b32.xlu0 %v852, 64
  %v856 = vpop.permute.xlu0 %855
  %v858 = vmul.f32 %v851, %v856
  %860 = vrot.lane.b32.xlu0 %v858, 32
  %v861 = vpop.permute.xlu0 %860
  %v863 = vadd.f32 %v853, %v861
  %v864 = vtanh.pop %v863
  %866 = vrot.lane.b32.xlu0 %v864, 64
  %v867 = vpop.permute.xlu0 %866
  %v869 = vmul.f32 %v851, %v867
  %v870 = vadd.f32 %v302, %v832
  %v871 = vld [vmem:[%s5] sm:$0x1]
  %v873 = vlaneseq
  %v874 = vshrl.u32 %v873, 7
  %v875 = vsub.s32 0, %v874
  %v876 = vrot.slane %v871, %v875
  %v878 = vadd.f32 %v870, %v876
  %v879 = vsub.f32 0.0, %v878
  %v880 = vmul.f32 %v879, 1.442695
  %v881 = vpow.pop %v880
  %v882 = vadd.f32 %v881, 1.0
  %v883 = vrcp.pop %v882
  %v884 = vmul.f32 1.0, %v883
  %v885 = vtanh.pop %v878
  %v886 = vmul.f32 %v884, %v694
  %888 = vrot.lane.b32.xlu0 %v885, 64
  %v889 = vpop.permute.xlu0 %888
  %v891 = vmul.f32 %v884, %v889
  %893 = vrot.lane.b32.xlu0 %v891, 32
  %v894 = vpop.permute.xlu0 %893
  %v896 = vadd.f32 %v886, %v894
  %v897 = vtanh.pop %v896
  %899 = vrot.lane.b32.xlu0 %v897, 64
  %v900 = vpop.permute.xlu0 %899
  %v902 = vmul.f32 %v884, %v900
  %904 = vrot.lane.b32.xlu0 %v869, 32
  %v905 = vpop.permute.xlu0 %904
  %907 = vst.msk [vmem:[#allocation2 + $0x10] sm:$0xff] %vm332, %v905
  %909 = vrot.lane.b32.xlu0 %v902, 64
  %v910 = vpop.permute.xlu0 %909
  %912 = vst.msk [vmem:[#allocation2] sm:$0xff] %vm507, %v910
  %v913 = vld [vmem:[#allocation2] sm:$0xff]
  %v914 = vld [vmem:[#allocation2 + $0x8] sm:$0xff]
  %v915 = vld [vmem:[#allocation2 + $0x10] sm:$0xff]
  %v916 = vpack.c.bf16 %v914, %v913
  %v917 = vpack.c.bf16 %v915, %v915
  %v918 = vld [vmem:[%s6] sm:$0xff]
  %v919 = vld [vmem:[%s6 + $0x8] sm:$0xff]
  %v920 = vld [vmem:[%s6 + $0x10] sm:$0xff]
  %v921 = vld [vmem:[%s6 + $0x18] sm:$0xff]
  %v922 = vld [vmem:[%s6 + $0x20] sm:$0xff]
  %v923 = vld [vmem:[%s6 + $0x28] sm:$0xff]
  %v924 = vld [vmem:[%s6 + $0x30] sm:$0xff]
  %v925 = vld [vmem:[%s6 + $0x38] sm:$0xff]
  %v934 = vunpack.c.l.b16 %v918
  %v935 = vunpack.c.h.b16 %v918
  %v936 = vunpack.c.l.b16 %v919
  %v937 = vunpack.c.h.b16 %v919
  %v938 = vunpack.c.l.b16 %v920
  %v939 = vunpack.c.h.b16 %v920
  %v940 = vunpack.c.l.b16 %v921
  %v941 = vunpack.c.h.b16 %v921
  %v942 = vunpack.c.l.b16 %v922
  %v943 = vunpack.c.h.b16 %v922
  %v944 = vunpack.c.l.b16 %v923
  %v945 = vunpack.c.h.b16 %v923
  %v946 = vunpack.c.l.b16 %v924
  %v947 = vunpack.c.h.b16 %v924
  %v948 = vunpack.c.l.b16 %v925
  %v949 = vunpack.c.h.b16 %v925
  %v950 = vpack.c.b16 %v936, %v934
  %v951 = vpack.c.b16 %v937, %v935
  %v952 = vpack.c.b16 %v940, %v938
  %v953 = vpack.c.b16 %v941, %v939
  %v954 = vpack.c.b16 %v944, %v942
  %v955 = vpack.c.b16 %v945, %v943
  %v956 = vpack.c.b16 %v948, %v946
  %v957 = vpack.c.b16 %v949, %v947
  %vm966 = vcmask 523264
  %v968 = vsel %vm966, %v916, 0
  %v971 = vsel %vm966, %v917, 0
  %973 = vmatprep.subr.bf16.mxu0 0
  %974 = vmatpush1.bf16.msra.mxu0 0
  %975 = vmatprep.subr.bf16.mxu0 0
  %976 = vmatpush1.bf16.msra.mxu0 0
  %977 = vmatprep.subr.bf16.mxu0 0
  %978 = vmatpush1.bf16.msra.mxu0 0
  %979 = vmatprep.subr.bf16.mxu0 0
  %980 = vmatpush1.bf16.msra.mxu0 0
  %981 = vmatprep.subr.bf16.mxu0 %v957
  %982 = vmatpush1.bf16.msra.mxu0 %v956
  %983 = vmatprep.subr.bf16.mxu0 %v955
  %984 = vmatpush1.bf16.msra.mxu0 %v954
  %985 = vmatprep.subr.bf16.mxu0 %v953
  %986 = vmatpush1.bf16.msra.mxu0 %v952
  %987 = vmatprep.subr.bf16.mxu0 %v951
  %988 = vmatpush1.bf16.msra.mxu0 %v950
  %989 = vmatprep.subr.bf16.mxu0 0
  %990 = vmatpush2.bf16.msra.mxu0 0
  %991 = vmatprep.subr.bf16.mxu0 0
  %992 = vmatpush2.bf16.msra.mxu0 0
  %993 = vmatprep.subr.bf16.mxu0 0
  %994 = vmatpush2.bf16.msra.mxu0 0
  %995 = vmatprep.subr.bf16.mxu0 0
  %996 = vmatpush2.bf16.msra.mxu0 0
  %997 = vmatprep.subr.bf16.mxu0 0
  %998 = vmatpush2.bf16.msra.mxu0 0
  %999 = vmatprep.subr.bf16.mxu0 0
  %1000 = vmatpush2.bf16.msra.mxu0 0
  %1001 = vmatprep.subr.bf16.mxu0 0
  %1002 = vmatpush2.bf16.msra.mxu0 0
  %1003 = vmatprep.subr.bf16.mxu0 0
  %1004 = vmatpush2.bf16.msra.mxu0 0
  %1005 = vmatprep.mubr.bf16.mxu0 0
  %1006 = vmatmul.mubr.bf16.gmra.mxu0 %v968
  %v1007 = vpop.f32.mrf.mxu0
  %v1008 = vadd.f32 0.0, %v1007
  %v1009 = vpop.f32.mrf.mxu0
  %v1010 = vpop.f32.mrf.mxu0
  %v1011 = vadd.f32 0.0, %v1010
  %v1012 = vpop.f32.mrf.mxu0
  %1013 = vmatprep.mubr.bf16.mxu0 0
  %1014 = vmatmul.mubr.bf16.gmra.mxu0 %v971
  %v1015 = vpop.f32.mrf.mxu0
  %v1016 = vadd.f32 0.0, %v1015
  %v1017 = vpop.f32.mrf.mxu0
  %v1018 = vadd.f32 0.0, %v1017
  %v1019 = vpop.f32.mrf.mxu0
  %v1020 = vpop.f32.mrf.mxu0
  %1021 = vdwg.mxu0
  %v1022 = vld [vmem:[%s7] sm:$0xf]
  %v1023 = vld [vmem:[%s7 + $0x4] sm:$0xf]
  %v1024 = vld [vmem:[%s7 + $0x8] sm:$0xf]
  %v1025 = vld [vmem:[%s7 + $0xc] sm:$0xf]
  %v1030 = vunpack.c.l.b16 %v1022
  %v1031 = vunpack.c.l.b16 %v1023
  %v1032 = vunpack.c.l.b16 %v1024
  %v1033 = vunpack.c.l.b16 %v1025
  %v1034 = vpack.c.b16 %v1031, %v1030
  %v1035 = vpack.c.b16 %v1033, %v1032
  %1038 = vmatprep.subr.bf16.mxu0 0
  %1039 = vmatpush1.bf16.msra.mxu0 0
  %1040 = vmatprep.subr.bf16.mxu0 0
  %1041 = vmatpush1.bf16.msra.mxu0 0
  %1042 = vmatprep.subr.bf16.mxu0 0
  %1043 = vmatpush1.bf16.msra.mxu0 0
  %1044 = vmatprep.subr.bf16.mxu0 0
  %1045 = vmatpush1.bf16.msra.mxu0 0
  %1046 = vmatprep.subr.bf16.mxu0 0
  %1047 = vmatpush1.bf16.msra.mxu0 0
  %1048 = vmatprep.subr.bf16.mxu0 0
  %1049 = vmatpush1.bf16.msra.mxu0 0
  %1050 = vmatprep.subr.bf16.mxu0 0
  %1051 = vmatpush1.bf16.msra.mxu0 %v1035
  %1052 = vmatprep.subr.bf16.mxu0 0
  %1053 = vmatpush1.bf16.msra.mxu0 %v1034
  %1054 = vmatprep.subr.bf16.mxu0 0
  %1055 = vmatpush2.bf16.msra.mxu0 0
  %1056 = vmatprep.subr.bf16.mxu0 0
  %1057 = vmatpush2.bf16.msra.mxu0 0
  %1058 = vmatprep.subr.bf16.mxu0 0
  %1059 = vmatpush2.bf16.msra.mxu0 0
  %1060 = vmatprep.subr.bf16.mxu0 0
  %1061 = vmatpush2.bf16.msra.mxu0 0
  %1062 = vmatprep.subr.bf16.mxu0 0
  %1063 = vmatpush2.bf16.msra.mxu0 0
  %1064 = vmatprep.subr.bf16.mxu0 0
  %1065 = vmatpush2.bf16.msra.mxu0 0
  %1066 = vmatprep.subr.bf16.mxu0 0
  %1067 = vmatpush2.bf16.msra.mxu0 0
  %1068 = vmatprep.subr.bf16.mxu0 0
  %1069 = vmatpush2.bf16.msra.mxu0 0
  %1070 = vmatprep.mubr.bf16.mxu0 0
  %1071 = vmatmul.mubr.bf16.gmra.mxu0 %v334
  %v1072 = vpop.f32.mrf.mxu0
  %v1073 = vadd.f32 0.0, %v1072
  %v1074 = vpop.f32.mrf.mxu0
  %v1075 = vpop.f32.mrf.mxu0
  %v1076 = vpop.f32.mrf.mxu0
  %1077 = vdwg.mxu0
  %v1078 = vld [vmem:[%s8] sm:$0xf]
  %v1079 = vld [vmem:[%s8 + $0x4] sm:$0xf]
  %v1080 = vld [vmem:[%s8 + $0x8] sm:$0xf]
  %v1081 = vld [vmem:[%s8 + $0xc] sm:$0xf]
  %v1086 = vunpack.c.l.b16 %v1078
  %v1087 = vunpack.c.l.b16 %v1079
  %v1088 = vunpack.c.l.b16 %v1080
  %v1089 = vunpack.c.l.b16 %v1081
  %v1090 = vpack.c.b16 %v1087, %v1086
  %v1091 = vpack.c.b16 %v1089, %v1088
  %1094 = vmatprep.subr.bf16.mxu0 0
  %1095 = vmatpush1.bf16.msra.mxu0 0
  %1096 = vmatprep.subr.bf16.mxu0 0
  %1097 = vmatpush1.bf16.msra.mxu0 0
  %1098 = vmatprep.subr.bf16.mxu0 0
  %1099 = vmatpush1.bf16.msra.mxu0 0
  %1100 = vmatprep.subr.bf16.mxu0 0
  %1101 = vmatpush1.bf16.msra.mxu0 0
  %1102 = vmatprep.subr.bf16.mxu0 0
  %1103 = vmatpush1.bf16.msra.mxu0 0
  %1104 = vmatprep.subr.bf16.mxu0 0
  %1105 = vmatpush1.bf16.msra.mxu0 0
  %1106 = vmatprep.subr.bf16.mxu0 0
  %1107 = vmatpush1.bf16.msra.mxu0 %v1091
  %1108 = vmatprep.subr.bf16.mxu0 0
  %1109 = vmatpush1.bf16.msra.mxu0 %v1090
  %1110 = vmatprep.subr.bf16.mxu0 0
  %1111 = vmatpush2.bf16.msra.mxu0 0
  %1112 = vmatprep.subr.bf16.mxu0 0
  %1113 = vmatpush2.bf16.msra.mxu0 0
  %1114 = vmatprep.subr.bf16.mxu0 0
  %1115 = vmatpush2.bf16.msra.mxu0 0
  %1116 = vmatprep.subr.bf16.mxu0 0
  %1117 = vmatpush2.bf16.msra.mxu0 0
  %1118 = vmatprep.subr.bf16.mxu0 0
  %1119 = vmatpush2.bf16.msra.mxu0 0
  %1120 = vmatprep.subr.bf16.mxu0 0
  %1121 = vmatpush2.bf16.msra.mxu0 0
  %1122 = vmatprep.subr.bf16.mxu0 0
  %1123 = vmatpush2.bf16.msra.mxu0 0
  %1124 = vmatprep.subr.bf16.mxu0 0
  %1125 = vmatpush2.bf16.msra.mxu0 0
  %1126 = vmatprep.mubr.bf16.mxu0 0
  %1127 = vmatmul.mubr.bf16.gmra.mxu0 %v334
  %v1128 = vpop.f32.mrf.mxu0
  %v1129 = vadd.f32 0.0, %v1128
  %v1130 = vpop.f32.mrf.mxu0
  %v1131 = vpop.f32.mrf.mxu0
  %v1132 = vpop.f32.mrf.mxu0
  %1133 = vdwg.mxu0
  %v1134 = vadd.f32 %v1008, %v1073
  %v1135 = vld [vmem:[%s9] sm:$0x1]
  %v1137 = vlaneseq
  %v1138 = vshrl.u32 %v1137, 7
  %v1139 = vsub.s32 0, %v1138
  %v1140 = vrot.slane %v1135, %v1139
  %v1142 = vadd.f32 %v1134, %v1140
  %v1143 = vsub.f32 0.0, %v1142
  %v1144 = vmul.f32 %v1143, 1.442695
  %v1145 = vpow.pop %v1144
  %v1146 = vadd.f32 %v1145, 1.0
  %v1147 = vrcp.pop %v1146
  %v1148 = vmul.f32 1.0, %v1147
  %v1149 = vtanh.pop %v1142
  %v1150 = vmul.f32 %v1148, 0.0
  %1152 = vrot.lane.b32.xlu0 %v1149, 64
  %v1153 = vpop.permute.xlu0 %1152
  %v1155 = vmul.f32 %v1148, %v1153
  %1157 = vrot.lane.b32.xlu0 %v1155, 32
  %v1158 = vpop.permute.xlu0 %1157
  %v1160 = vadd.f32 %v1150, %v1158
  %v1161 = vtanh.pop %v1160
  %1163 = vrot.lane.b32.xlu0 %v1161, 64
  %v1164 = vpop.permute.xlu0 %1163
  %v1166 = vmul.f32 %v1148, %v1164
  %v1167 = vadd.f32 %v1018, %v1129
  %v1168 = vld [vmem:[%s10] sm:$0x1]
  %v1170 = vlaneseq
  %v1171 = vshrl.u32 %v1170, 7
  %v1172 = vsub.s32 0, %v1171
  %v1173 = vrot.slane %v1168, %v1172
  %v1175 = vadd.f32 %v1167, %v1173
  %v1176 = vsub.f32 0.0, %v1175
  %v1177 = vmul.f32 %v1176, 1.442695
  %v1178 = vpow.pop %v1177
  %v1179 = vadd.f32 %v1178, 1.0
  %v1180 = vrcp.pop %v1179
  %v1181 = vmul.f32 1.0, %v1180
  %v1182 = vtanh.pop %v1175
  %v1183 = vmul.f32 %v1181, 0.0
  %1185 = vrot.lane.b32.xlu0 %v1182, 64
  %v1186 = vpop.permute.xlu0 %1185
  %v1188 = vmul.f32 %v1181, %v1186
  %1190 = vrot.lane.b32.xlu0 %v1188, 32
  %v1191 = vpop.permute.xlu0 %1190
  %v1193 = vadd.f32 %v1183, %v1191
  %v1194 = vtanh.pop %v1193
  %1196 = vrot.lane.b32.xlu0 %v1194, 64
  %v1197 = vpop.permute.xlu0 %1196
  %v1199 = vmul.f32 %v1181, %v1197
  %1201 = vrot.lane.b32.xlu0 %v1199, 64
  %v1202 = vpop.permute.xlu0 %1201
  %1204 = vst.msk [vmem:[#allocation3] sm:$0xff] %vm507, %v1202
  %v1205 = vpack.c.bf16 %v1166, %v1166
  %v1206 = vld [vmem:[%s7] sm:$0xf]
  %v1207 = vld [vmem:[%s7 + $0x4] sm:$0xf]
  %v1208 = vld [vmem:[%s7 + $0x8] sm:$0xf]
  %v1209 = vld [vmem:[%s7 + $0xc] sm:$0xf]
  %1211 = vrot.lane.b32.xlu0 %v1205, 32
  %v1212 = vpop.permute.xlu0 %1211
  %v1217 = vunpack.c.l.b16 %v1206
  %v1218 = vunpack.c.l.b16 %v1207
  %v1219 = vunpack.c.l.b16 %v1208
  %v1220 = vunpack.c.l.b16 %v1209
  %v1221 = vpack.c.b16 %v1218, %v1217
  %v1222 = vpack.c.b16 %v1220, %v1219
  %v1226 = vsel %vm332, %v1212, 0
  %1228 = vmatprep.subr.bf16.mxu0 0
  %1229 = vmatpush1.bf16.msra.mxu0 0
  %1230 = vmatprep.subr.bf16.mxu0 0
  %1231 = vmatpush1.bf16.msra.mxu0 0
  %1232 = vmatprep.subr.bf16.mxu0 0
  %1233 = vmatpush1.bf16.msra.mxu0 0
  %1234 = vmatprep.subr.bf16.mxu0 0
  %1235 = vmatpush1.bf16.msra.mxu0 0
  %1236 = vmatprep.subr.bf16.mxu0 0
  %1237 = vmatpush1.bf16.msra.mxu0 0
  %1238 = vmatprep.subr.bf16.mxu0 0
  %1239 = vmatpush1.bf16.msra.mxu0 0
  %1240 = vmatprep.subr.bf16.mxu0 0
  %1241 = vmatpush1.bf16.msra.mxu0 %v1222
  %1242 = vmatprep.subr.bf16.mxu0 0
  %1243 = vmatpush1.bf16.msra.mxu0 %v1221
  %1244 = vmatprep.subr.bf16.mxu0 0
  %1245 = vmatpush2.bf16.msra.mxu0 0
  %1246 = vmatprep.subr.bf16.mxu0 0
  %1247 = vmatpush2.bf16.msra.mxu0 0
  %1248 = vmatprep.subr.bf16.mxu0 0
  %1249 = vmatpush2.bf16.msra.mxu0 0
  %1250 = vmatprep.subr.bf16.mxu0 0
  %1251 = vmatpush2.bf16.msra.mxu0 0
  %1252 = vmatprep.subr.bf16.mxu0 0
  %1253 = vmatpush2.bf16.msra.mxu0 0
  %1254 = vmatprep.subr.bf16.mxu0 0
  %1255 = vmatpush2.bf16.msra.mxu0 0
  %1256 = vmatprep.subr.bf16.mxu0 0
  %1257 = vmatpush2.bf16.msra.mxu0 0
  %1258 = vmatprep.subr.bf16.mxu0 0
  %1259 = vmatpush2.bf16.msra.mxu0 0
  %1260 = vmatprep.mubr.bf16.mxu0 0
  %1261 = vmatmul.mubr.bf16.gmra.mxu0 %v1226
  %v1262 = vpop.f32.mrf.mxu0
  %v1263 = vadd.f32 0.0, %v1262
  %v1264 = vpop.f32.mrf.mxu0
  %v1265 = vpop.f32.mrf.mxu0
  %v1266 = vpop.f32.mrf.mxu0
  %1267 = vdwg.mxu0
  %v1268 = vadd.f32 %v1011, %v1263
  %v1269 = vld [vmem:[%s9] sm:$0x1]
  %v1271 = vlaneseq
  %v1272 = vshrl.u32 %v1271, 7
  %v1273 = vsub.s32 0, %v1272
  %v1274 = vrot.slane %v1269, %v1273
  %v1276 = vadd.f32 %v1268, %v1274
  %v1277 = vsub.f32 0.0, %v1276
  %v1278 = vmul.f32 %v1277, 1.442695
  %v1279 = vpow.pop %v1278
  %v1280 = vadd.f32 %v1279, 1.0
  %v1281 = vrcp.pop %v1280
  %v1282 = vmul.f32 1.0, %v1281
  %v1283 = vtanh.pop %v1276
  %v1284 = vmul.f32 %v1282, %v1160
  %1286 = vrot.lane.b32.xlu0 %v1283, 64
  %v1287 = vpop.permute.xlu0 %1286
  %v1289 = vmul.f32 %v1282, %v1287
  %1291 = vrot.lane.b32.xlu0 %v1289, 32
  %v1292 = vpop.permute.xlu0 %1291
  %v1294 = vadd.f32 %v1284, %v1292
  %v1295 = vtanh.pop %v1294
  %1297 = vrot.lane.b32.xlu0 %v1295, 64
  %v1298 = vpop.permute.xlu0 %1297
  %v1300 = vmul.f32 %v1282, %v1298
  %v1301 = vpack.c.bf16 %v1300, %v1300
  %1303 = vrot.lane.b32.xlu0 %v1301, 32
  %v1304 = vpop.permute.xlu0 %1303
  %v1306 = vsel %vm332, %v1304, 0
  %1308 = vmatprep.subr.bf16.mxu0 0
  %1309 = vmatpush1.bf16.msra.mxu0 0
  %1310 = vmatprep.subr.bf16.mxu0 0
  %1311 = vmatpush1.bf16.msra.mxu0 0
  %1312 = vmatprep.subr.bf16.mxu0 0
  %1313 = vmatpush1.bf16.msra.mxu0 0
  %1314 = vmatprep.subr.bf16.mxu0 0
  %1315 = vmatpush1.bf16.msra.mxu0 0
  %1316 = vmatprep.subr.bf16.mxu0 0
  %1317 = vmatpush1.bf16.msra.mxu0 0
  %1318 = vmatprep.subr.bf16.mxu0 0
  %1319 = vmatpush1.bf16.msra.mxu0 0
  %1320 = vmatprep.subr.bf16.mxu0 0
  %1321 = vmatpush1.bf16.msra.mxu0 %v1222
  %1322 = vmatprep.subr.bf16.mxu0 0
  %1323 = vmatpush1.bf16.msra.mxu0 %v1221
  %1324 = vmatprep.subr.bf16.mxu0 0
  %1325 = vmatpush2.bf16.msra.mxu0 0
  %1326 = vmatprep.subr.bf16.mxu0 0
  %1327 = vmatpush2.bf16.msra.mxu0 0
  %1328 = vmatprep.subr.bf16.mxu0 0
  %1329 = vmatpush2.bf16.msra.mxu0 0
  %1330 = vmatprep.subr.bf16.mxu0 0
  %1331 = vmatpush2.bf16.msra.mxu0 0
  %1332 = vmatprep.subr.bf16.mxu0 0
  %1333 = vmatpush2.bf16.msra.mxu0 0
  %1334 = vmatprep.subr.bf16.mxu0 0
  %1335 = vmatpush2.bf16.msra.mxu0 0
  %1336 = vmatprep.subr.bf16.mxu0 0
  %1337 = vmatpush2.bf16.msra.mxu0 0
  %1338 = vmatprep.subr.bf16.mxu0 0
  %1339 = vmatpush2.bf16.msra.mxu0 0
  %1340 = vmatprep.mubr.bf16.mxu0 0
  %1341 = vmatmul.mubr.bf16.gmra.mxu0 %v1306
  %v1342 = vpop.f32.mrf.mxu0
  %v1343 = vadd.f32 0.0, %v1342
  %v1344 = vpop.f32.mrf.mxu0
  %v1345 = vpop.f32.mrf.mxu0
  %v1346 = vpop.f32.mrf.mxu0
  %1347 = vdwg.mxu0
  %v1348 = vadd.f32 %v1016, %v1343
  %v1349 = vadd.f32 %v1348, %v1274
  %v1350 = vsub.f32 0.0, %v1349
  %v1351 = vmul.f32 %v1350, 1.442695
  %v1352 = vpow.pop %v1351
  %v1353 = vadd.f32 %v1352, 1.0
  %v1354 = vrcp.pop %v1353
  %v1355 = vmul.f32 1.0, %v1354
  %v1356 = vtanh.pop %v1349
  %v1357 = vmul.f32 %v1355, %v1294
  %1359 = vrot.lane.b32.xlu0 %v1356, 64
  %v1360 = vpop.permute.xlu0 %1359
  %v1362 = vmul.f32 %v1355, %v1360
  %1364 = vrot.lane.b32.xlu0 %v1362, 32
  %v1365 = vpop.permute.xlu0 %1364
  %v1367 = vadd.f32 %v1357, %v1365
  %v1368 = vtanh.pop %v1367
  %1370 = vrot.lane.b32.xlu0 %v1368, 64
  %v1371 = vpop.permute.xlu0 %1370
  %v1373 = vmul.f32 %v1355, %v1371
  %1375 = vrot.lane.b32.xlu0 %v1373, 32
  %v1376 = vpop.permute.xlu0 %1375
  %1378 = vst.msk [vmem:[#allocation3] sm:$0xff] %vm332, %v1376
  %v1379 = vld [vmem:[#allocation3] sm:$0xff]
  %v1380 = vpack.c.bf16 %v1379, %v1379
  %v1381 = vld [vmem:[%s11] sm:$0xff]
  %v1382 = vld [vmem:[%s11 + $0x8] sm:$0xff]
  %v1383 = vld [vmem:[%s11 + $0x10] sm:$0xff]
  %v1384 = vld [vmem:[%s11 + $0x18] sm:$0xff]
  %v1385 = vld [vmem:[%s11 + $0x20] sm:$0xff]
  %v1386 = vld [vmem:[%s11 + $0x28] sm:$0xff]
  %v1387 = vld [vmem:[%s11 + $0x30] sm:$0xff]
  %v1388 = vld [vmem:[%s11 + $0x38] sm:$0xff]
  %v1389 = vld [vmem:[%s11 + $0x40] sm:$0xff]
  %v1390 = vld [vmem:[%s11 + $0x48] sm:$0xff]
  %v1391 = vld [vmem:[%s11 + $0x50] sm:$0xff]
  %v1392 = vld [vmem:[%s11 + $0x58] sm:$0xff]
  %v1393 = vld [vmem:[%s11 + $0x60] sm:$0xff]
  %v1394 = vld [vmem:[%s11 + $0x68] sm:$0xff]
  %v1395 = vld [vmem:[%s11 + $0x70] sm:$0xff]
  %v1396 = vld [vmem:[%s11 + $0x78] sm:$0xff]
  %v1413 = vunpack.c.l.b16 %v1381
  %v1414 = vunpack.c.h.b16 %v1381
  %v1415 = vunpack.c.l.b16 %v1382
  %v1416 = vunpack.c.h.b16 %v1382
  %v1417 = vunpack.c.l.b16 %v1383
  %v1418 = vunpack.c.h.b16 %v1383
  %v1419 = vunpack.c.l.b16 %v1384
  %v1420 = vunpack.c.h.b16 %v1384
  %v1421 = vunpack.c.l.b16 %v1385
  %v1422 = vunpack.c.h.b16 %v1385
  %v1423 = vunpack.c.l.b16 %v1386
  %v1424 = vunpack.c.h.b16 %v1386
  %v1425 = vunpack.c.l.b16 %v1387
  %v1426 = vunpack.c.h.b16 %v1387
  %v1427 = vunpack.c.l.b16 %v1388
  %v1428 = vunpack.c.h.b16 %v1388
  %v1429 = vunpack.c.l.b16 %v1389
  %v1430 = vunpack.c.h.b16 %v1389
  %v1431 = vunpack.c.l.b16 %v1390
  %v1432 = vunpack.c.h.b16 %v1390
  %v1433 = vunpack.c.l.b16 %v1391
  %v1434 = vunpack.c.h.b16 %v1391
  %v1435 = vunpack.c.l.b16 %v1392
  %v1436 = vunpack.c.h.b16 %v1392
  %v1437 = vunpack.c.l.b16 %v1393
  %v1438 = vunpack.c.h.b16 %v1393
  %v1439 = vunpack.c.l.b16 %v1394
  %v1440 = vunpack.c.h.b16 %v1394
  %v1441 = vunpack.c.l.b16 %v1395
  %v1442 = vunpack.c.h.b16 %v1395
  %v1443 = vunpack.c.l.b16 %v1396
  %v1444 = vunpack.c.h.b16 %v1396
  %v1445 = vpack.c.b16 %v1417, %v1413
  %v1446 = vpack.c.b16 %v1418, %v1414
  %v1447 = vpack.c.b16 %v1419, %v1415
  %v1448 = vpack.c.b16 %v1420, %v1416
  %v1449 = vpack.c.b16 %v1425, %v1421
  %v1450 = vpack.c.b16 %v1426, %v1422
  %v1451 = vpack.c.b16 %v1427, %v1423
  %v1452 = vpack.c.b16 %v1428, %v1424
  %v1453 = vpack.c.b16 %v1433, %v1429
  %v1454 = vpack.c.b16 %v1434, %v1430
  %v1455 = vpack.c.b16 %v1435, %v1431
  %v1456 = vpack.c.b16 %v1436, %v1432
  %v1457 = vpack.c.b16 %v1441, %v1437
  %v1458 = vpack.c.b16 %v1442, %v1438
  %v1459 = vpack.c.b16 %v1443, %v1439
  %v1460 = vpack.c.b16 %v1444, %v1440
  %v1478 = vsel %vm966, %v1380, 0
  %1480 = vmatprep.subr.bf16.mxu0 0
  %1481 = vmatpush1.bf16.msra.mxu0 0
  %1482 = vmatprep.subr.bf16.mxu0 0
  %1483 = vmatpush1.bf16.msra.mxu0 0
  %1484 = vmatprep.subr.bf16.mxu0 0
  %1485 = vmatpush1.bf16.msra.mxu0 0
  %1486 = vmatprep.subr.bf16.mxu0 0
  %1487 = vmatpush1.bf16.msra.mxu0 0
  %1488 = vmatprep.subr.bf16.mxu0 %v1458
  %1489 = vmatpush1.bf16.msra.mxu0 %v1457
  %1490 = vmatprep.subr.bf16.mxu0 %v1454
  %1491 = vmatpush1.bf16.msra.mxu0 %v1453
  %1492 = vmatprep.subr.bf16.mxu0 %v1450
  %1493 = vmatpush1.bf16.msra.mxu0 %v1449
  %1494 = vmatprep.subr.bf16.mxu0 %v1446
  %1495 = vmatpush1.bf16.msra.mxu0 %v1445
  %1496 = vmatprep.subr.bf16.mxu0 0
  %1497 = vmatpush2.bf16.msra.mxu0 0
  %1498 = vmatprep.subr.bf16.mxu0 0
  %1499 = vmatpush2.bf16.msra.mxu0 0
  %1500 = vmatprep.subr.bf16.mxu0 0
  %1501 = vmatpush2.bf16.msra.mxu0 0
  %1502 = vmatprep.subr.bf16.mxu0 0
  %1503 = vmatpush2.bf16.msra.mxu0 0
  %1504 = vmatprep.subr.bf16.mxu0 0
  %1505 = vmatpush2.bf16.msra.mxu0 0
  %1506 = vmatprep.subr.bf16.mxu0 0
  %1507 = vmatpush2.bf16.msra.mxu0 0
  %1508 = vmatprep.subr.bf16.mxu0 0
  %1509 = vmatpush2.bf16.msra.mxu0 0
  %1510 = vmatprep.subr.bf16.mxu0 0
  %1511 = vmatpush2.bf16.msra.mxu0 0
  %1512 = vmatprep.mubr.bf16.mxu0 0
  %1513 = vmatmul.mubr.bf16.gmra.mxu0 %v1478
  %v1514 = vpop.f32.mrf.mxu0
  %v1515 = vadd.f32 0.0, %v1514
  %v1516 = vpop.f32.mrf.mxu0
  %v1517 = vadd.f32 0.0, %v1516
  %v1518 = vpop.f32.mrf.mxu0
  %v1519 = vpop.f32.mrf.mxu0
  %1520 = vdwg.mxu0
  %1521 = vmatprep.subr.bf16.mxu0 0
  %1522 = vmatpush1.bf16.msra.mxu0 0
  %1523 = vmatprep.subr.bf16.mxu0 0
  %1524 = vmatpush1.bf16.msra.mxu0 0
  %1525 = vmatprep.subr.bf16.mxu0 0
  %1526 = vmatpush1.bf16.msra.mxu0 0
  %1527 = vmatprep.subr.bf16.mxu0 0
  %1528 = vmatpush1.bf16.msra.mxu0 0
  %1529 = vmatprep.subr.bf16.mxu0 %v1460
  %1530 = vmatpush1.bf16.msra.mxu0 %v1459
  %1531 = vmatprep.subr.bf16.mxu0 %v1456
  %1532 = vmatpush1.bf16.msra.mxu0 %v1455
  %1533 = vmatprep.subr.bf16.mxu0 %v1452
  %1534 = vmatpush1.bf16.msra.mxu0 %v1451
  %1535 = vmatprep.subr.bf16.mxu0 %v1448
  %1536 = vmatpush1.bf16.msra.mxu0 %v1447
  %1537 = vmatprep.subr.bf16.mxu0 0
  %1538 = vmatpush2.bf16.msra.mxu0 0
  %1539 = vmatprep.subr.bf16.mxu0 0
  %1540 = vmatpush2.bf16.msra.mxu0 0
  %1541 = vmatprep.subr.bf16.mxu0 0
  %1542 = vmatpush2.bf16.msra.mxu0 0
  %1543 = vmatprep.subr.bf16.mxu0 0
  %1544 = vmatpush2.bf16.msra.mxu0 0
  %1545 = vmatprep.subr.bf16.mxu0 0
  %1546 = vmatpush2.bf16.msra.mxu0 0
  %1547 = vmatprep.subr.bf16.mxu0 0
  %1548 = vmatpush2.bf16.msra.mxu0 0
  %1549 = vmatprep.subr.bf16.mxu0 0
  %1550 = vmatpush2.bf16.msra.mxu0 0
  %1551 = vmatprep.subr.bf16.mxu0 0
  %1552 = vmatpush2.bf16.msra.mxu0 0
  %1553 = vmatprep.mubr.bf16.mxu0 0
  %1554 = vmatmul.mubr.bf16.gmra.mxu0 %v1478
  %v1555 = vpop.f32.mrf.mxu0
  %v1556 = vadd.f32 0.0, %v1555
  %v1557 = vpop.f32.mrf.mxu0
  %v1558 = vadd.f32 0.0, %v1557
  %v1559 = vpop.f32.mrf.mxu0
  %v1560 = vpop.f32.mrf.mxu0
  %1561 = vdwg.mxu0
  %v1562 = vld [vmem:[%s12] sm:$0xf]
  %v1564 = vlaneseq
  %v1565 = vshrl.u32 %v1564, 7
  %v1566 = vsub.s32 0, %v1565
  %v1567 = vrot.slane %v1562, %v1566
  %v1568 = vlaneseq
  %v1569 = vshrl.u32 %v1568, 7
  %v1570 = vsub.s32 1, %v1569
  %v1571 = vrot.slane %v1562, %v1570
  %v1572 = vlaneseq
  %v1573 = vshrl.u32 %v1572, 7
  %v1574 = vsub.s32 2, %v1573
  %v1575 = vrot.slane %v1562, %v1574
  %v1576 = vlaneseq
  %v1577 = vshrl.u32 %v1576, 7
  %v1578 = vsub.s32 3, %v1577
  %v1579 = vrot.slane %v1562, %v1578
  %v1584 = vmul.f32 %v1515, %v1567
  %v1585 = vmul.f32 %v1517, %v1571
  %v1586 = vmul.f32 %v1556, %v1575
  %v1587 = vmul.f32 %v1558, %v1579
  %v1588 = vld [vmem:[%s13] sm:$0xf]
  %v1590 = vlaneseq
  %v1591 = vshrl.u32 %v1590, 7
  %v1592 = vsub.s32 0, %v1591
  %v1593 = vrot.slane %v1588, %v1592
  %v1594 = vlaneseq
  %v1595 = vshrl.u32 %v1594, 7
  %v1596 = vsub.s32 1, %v1595
  %v1597 = vrot.slane %v1588, %v1596
  %v1598 = vlaneseq
  %v1599 = vshrl.u32 %v1598, 7
  %v1600 = vsub.s32 2, %v1599
  %v1601 = vrot.slane %v1588, %v1600
  %v1602 = vlaneseq
  %v1603 = vshrl.u32 %v1602, 7
  %v1604 = vsub.s32 3, %v1603
  %v1605 = vrot.slane %v1588, %v1604
  %v1610 = vadd.f32 %v1584, %v1593
  %v1611 = vadd.f32 %v1585, %v1597
  %v1612 = vadd.f32 %v1586, %v1601
  %v1613 = vadd.f32 %v1587, %v1605
  %v1614 = vmax.f32 %v1610, 0.0
  %v1615 = vmax.f32 %v1611, 0.0
  %v1616 = vmax.f32 %v1612, 0.0
  %v1617 = vmax.f32 %v1613, 0.0
  %v1618 = vpack.c.bf16 %v1614, %v1614
  %v1619 = vpack.c.bf16 %v1615, %v1615
  %v1620 = vpack.c.bf16 %v1616, %v1616
  %v1621 = vpack.c.bf16 %v1617, %v1617
  %v1622 = vld [vmem:[%s14] sm:$0xff]
  %v1623 = vld [vmem:[%s14 + $0x8] sm:$0xff]
  %v1624 = vld [vmem:[%s14 + $0x10] sm:$0xff]
  %v1625 = vld [vmem:[%s14 + $0x18] sm:$0xff]
  %v1626 = vld [vmem:[%s14 + $0x20] sm:$0xff]
  %v1627 = vld [vmem:[%s14 + $0x28] sm:$0xff]
  %v1628 = vld [vmem:[%s14 + $0x30] sm:$0xff]
  %v1629 = vld [vmem:[%s14 + $0x38] sm:$0xff]
  %v1630 = vld [vmem:[%s14 + $0x40] sm:$0xff]
  %v1631 = vld [vmem:[%s14 + $0x48] sm:$0xff]
  %v1632 = vld [vmem:[%s14 + $0x50] sm:$0xff]
  %v1633 = vld [vmem:[%s14 + $0x58] sm:$0xff]
  %v1634 = vld [vmem:[%s14 + $0x60] sm:$0xff]
  %v1635 = vld [vmem:[%s14 + $0x68] sm:$0xff]
  %v1636 = vld [vmem:[%s14 + $0x70] sm:$0xff]
  %v1637 = vld [vmem:[%s14 + $0x78] sm:$0xff]
  %v1638 = vld [vmem:[%s14 + $0x80] sm:$0xff]
  %v1639 = vld [vmem:[%s14 + $0x88] sm:$0xff]
  %v1640 = vld [vmem:[%s14 + $0x90] sm:$0xff]
  %v1641 = vld [vmem:[%s14 + $0x98] sm:$0xff]
  %v1642 = vld [vmem:[%s14 + $0xa0] sm:$0xff]
  %v1643 = vld [vmem:[%s14 + $0xa8] sm:$0xff]
  %v1644 = vld [vmem:[%s14 + $0xb0] sm:$0xff]
  %v1645 = vld [vmem:[%s14 + $0xb8] sm:$0xff]
  %v1646 = vld [vmem:[%s14 + $0xc0] sm:$0xff]
  %v1647 = vld [vmem:[%s14 + $0xc8] sm:$0xff]
  %v1648 = vld [vmem:[%s14 + $0xd0] sm:$0xff]
  %v1649 = vld [vmem:[%s14 + $0xd8] sm:$0xff]
  %v1650 = vld [vmem:[%s14 + $0xe0] sm:$0xff]
  %v1651 = vld [vmem:[%s14 + $0xe8] sm:$0xff]
  %v1652 = vld [vmem:[%s14 + $0xf0] sm:$0xff]
  %v1653 = vld [vmem:[%s14 + $0xf8] sm:$0xff]
  %v1654 = vld [vmem:[%s14 + $0x100] sm:$0xff]
  %v1655 = vld [vmem:[%s14 + $0x108] sm:$0xff]
  %v1656 = vld [vmem:[%s14 + $0x110] sm:$0xff]
  %v1657 = vld [vmem:[%s14 + $0x118] sm:$0xff]
  %v1658 = vld [vmem:[%s14 + $0x120] sm:$0xff]
  %v1659 = vld [vmem:[%s14 + $0x128] sm:$0xff]
  %v1660 = vld [vmem:[%s14 + $0x130] sm:$0xff]
  %v1661 = vld [vmem:[%s14 + $0x138] sm:$0xff]
  %v1662 = vld [vmem:[%s14 + $0x140] sm:$0xff]
  %v1663 = vld [vmem:[%s14 + $0x148] sm:$0xff]
  %v1664 = vld [vmem:[%s14 + $0x150] sm:$0xff]
  %v1665 = vld [vmem:[%s14 + $0x158] sm:$0xff]
  %v1666 = vld [vmem:[%s14 + $0x160] sm:$0xff]
  %v1667 = vld [vmem:[%s14 + $0x168] sm:$0xff]
  %v1668 = vld [vmem:[%s14 + $0x170] sm:$0xff]
  %v1669 = vld [vmem:[%s14 + $0x178] sm:$0xff]
  %v1670 = vld [vmem:[%s14 + $0x180] sm:$0xff]
  %v1671 = vld [vmem:[%s14 + $0x188] sm:$0xff]
  %v1672 = vld [vmem:[%s14 + $0x190] sm:$0xff]
  %v1673 = vld [vmem:[%s14 + $0x198] sm:$0xff]
  %v1674 = vld [vmem:[%s14 + $0x1a0] sm:$0xff]
  %v1675 = vld [vmem:[%s14 + $0x1a8] sm:$0xff]
  %v1676 = vld [vmem:[%s14 + $0x1b0] sm:$0xff]
  %v1677 = vld [vmem:[%s14 + $0x1b8] sm:$0xff]
  %v1678 = vld [vmem:[%s14 + $0x1c0] sm:$0xff]
  %v1679 = vld [vmem:[%s14 + $0x1c8] sm:$0xff]
  %v1680 = vld [vmem:[%s14 + $0x1d0] sm:$0xff]
  %v1681 = vld [vmem:[%s14 + $0x1d8] sm:$0xff]
  %v1682 = vld [vmem:[%s14 + $0x1e0] sm:$0xff]
  %v1683 = vld [vmem:[%s14 + $0x1e8] sm:$0xff]
  %v1684 = vld [vmem:[%s14 + $0x1f0] sm:$0xff]
  %v1685 = vld [vmem:[%s14 + $0x1f8] sm:$0xff]
  %v1750 = vunpack.c.l.b16 %v1622
  %v1751 = vunpack.c.h.b16 %v1622
  %v1752 = vunpack.c.l.b16 %v1623
  %v1753 = vunpack.c.h.b16 %v1623
  %v1754 = vunpack.c.l.b16 %v1624
  %v1755 = vunpack.c.h.b16 %v1624
  %v1756 = vunpack.c.l.b16 %v1625
  %v1757 = vunpack.c.h.b16 %v1625
  %v1758 = vunpack.c.l.b16 %v1626
  %v1759 = vunpack.c.h.b16 %v1626
  %v1760 = vunpack.c.l.b16 %v1627
  %v1761 = vunpack.c.h.b16 %v1627
  %v1762 = vunpack.c.l.b16 %v1628
  %v1763 = vunpack.c.h.b16 %v1628
  %v1764 = vunpack.c.l.b16 %v1629
  %v1765 = vunpack.c.h.b16 %v1629
  %v1766 = vunpack.c.l.b16 %v1630
  %v1767 = vunpack.c.h.b16 %v1630
  %v1768 = vunpack.c.l.b16 %v1631
  %v1769 = vunpack.c.h.b16 %v1631
  %v1770 = vunpack.c.l.b16 %v1632
  %v1771 = vunpack.c.h.b16 %v1632
  %v1772 = vunpack.c.l.b16 %v1633
  %v1773 = vunpack.c.h.b16 %v1633
  %v1774 = vunpack.c.l.b16 %v1634
  %v1775 = vunpack.c.h.b16 %v1634
  %v1776 = vunpack.c.l.b16 %v1635
  %v1777 = vunpack.c.h.b16 %v1635
  %v1778 = vunpack.c.l.b16 %v1636
  %v1779 = vunpack.c.h.b16 %v1636
  %v1780 = vunpack.c.l.b16 %v1637
  %v1781 = vunpack.c.h.b16 %v1637
  %v1782 = vunpack.c.l.b16 %v1638
  %v1783 = vunpack.c.h.b16 %v1638
  %v1784 = vunpack.c.l.b16 %v1639
  %v1785 = vunpack.c.h.b16 %v1639
  %v1786 = vunpack.c.l.b16 %v1640
  %v1787 = vunpack.c.h.b16 %v1640
  %v1788 = vunpack.c.l.b16 %v1641
  %v1789 = vunpack.c.h.b16 %v1641
  %v1790 = vunpack.c.l.b16 %v1642
  %v1791 = vunpack.c.h.b16 %v1642
  %v1792 = vunpack.c.l.b16 %v1643
  %v1793 = vunpack.c.h.b16 %v1643
  %v1794 = vunpack.c.l.b16 %v1644
  %v1795 = vunpack.c.h.b16 %v1644
  %v1796 = vunpack.c.l.b16 %v1645
  %v1797 = vunpack.c.h.b16 %v1645
  %v1798 = vunpack.c.l.b16 %v1646
  %v1799 = vunpack.c.h.b16 %v1646
  %v1800 = vunpack.c.l.b16 %v1647
  %v1801 = vunpack.c.h.b16 %v1647
  %v1802 = vunpack.c.l.b16 %v1648
  %v1803 = vunpack.c.h.b16 %v1648
  %v1804 = vunpack.c.l.b16 %v1649
  %v1805 = vunpack.c.h.b16 %v1649
  %v1806 = vunpack.c.l.b16 %v1650
  %v1807 = vunpack.c.h.b16 %v1650
  %v1808 = vunpack.c.l.b16 %v1651
  %v1809 = vunpack.c.h.b16 %v1651
  %v1810 = vunpack.c.l.b16 %v1652
  %v1811 = vunpack.c.h.b16 %v1652
  %v1812 = vunpack.c.l.b16 %v1653
  %v1813 = vunpack.c.h.b16 %v1653
  %v1814 = vunpack.c.l.b16 %v1654
  %v1815 = vunpack.c.h.b16 %v1654
  %v1816 = vunpack.c.l.b16 %v1655
  %v1817 = vunpack.c.h.b16 %v1655
  %v1818 = vunpack.c.l.b16 %v1656
  %v1819 = vunpack.c.h.b16 %v1656
  %v1820 = vunpack.c.l.b16 %v1657
  %v1821 = vunpack.c.h.b16 %v1657
  %v1822 = vunpack.c.l.b16 %v1658
  %v1823 = vunpack.c.h.b16 %v1658
  %v1824 = vunpack.c.l.b16 %v1659
  %v1825 = vunpack.c.h.b16 %v1659
  %v1826 = vunpack.c.l.b16 %v1660
  %v1827 = vunpack.c.h.b16 %v1660
  %v1828 = vunpack.c.l.b16 %v1661
  %v1829 = vunpack.c.h.b16 %v1661
  %v1830 = vunpack.c.l.b16 %v1662
  %v1831 = vunpack.c.h.b16 %v1662
  %v1832 = vunpack.c.l.b16 %v1663
  %v1833 = vunpack.c.h.b16 %v1663
  %v1834 = vunpack.c.l.b16 %v1664
  %v1835 = vunpack.c.h.b16 %v1664
  %v1836 = vunpack.c.l.b16 %v1665
  %v1837 = vunpack.c.h.b16 %v1665
  %v1838 = vunpack.c.l.b16 %v1666
  %v1839 = vunpack.c.h.b16 %v1666
  %v1840 = vunpack.c.l.b16 %v1667
  %v1841 = vunpack.c.h.b16 %v1667
  %v1842 = vunpack.c.l.b16 %v1668
  %v1843 = vunpack.c.h.b16 %v1668
  %v1844 = vunpack.c.l.b16 %v1669
  %v1845 = vunpack.c.h.b16 %v1669
  %v1846 = vunpack.c.l.b16 %v1670
  %v1847 = vunpack.c.h.b16 %v1670
  %v1848 = vunpack.c.l.b16 %v1671
  %v1849 = vunpack.c.h.b16 %v1671
  %v1850 = vunpack.c.l.b16 %v1672
  %v1851 = vunpack.c.h.b16 %v1672
  %v1852 = vunpack.c.l.b16 %v1673
  %v1853 = vunpack.c.h.b16 %v1673
  %v1854 = vunpack.c.l.b16 %v1674
  %v1855 = vunpack.c.h.b16 %v1674
  %v1856 = vunpack.c.l.b16 %v1675
  %v1857 = vunpack.c.h.b16 %v1675
  %v1858 = vunpack.c.l.b16 %v1676
  %v1859 = vunpack.c.h.b16 %v1676
  %v1860 = vunpack.c.l.b16 %v1677
  %v1861 = vunpack.c.h.b16 %v1677
  %v1862 = vunpack.c.l.b16 %v1678
  %v1863 = vunpack.c.h.b16 %v1678
  %v1864 = vunpack.c.l.b16 %v1679
  %v1865 = vunpack.c.h.b16 %v1679
  %v1866 = vunpack.c.l.b16 %v1680
  %v1867 = vunpack.c.h.b16 %v1680
  %v1868 = vunpack.c.l.b16 %v1681
  %v1869 = vunpack.c.h.b16 %v1681
  %v1870 = vunpack.c.l.b16 %v1682
  %v1871 = vunpack.c.h.b16 %v1682
  %v1872 = vunpack.c.l.b16 %v1683
  %v1873 = vunpack.c.h.b16 %v1683
  %v1874 = vunpack.c.l.b16 %v1684
  %v1875 = vunpack.c.h.b16 %v1684
  %v1876 = vunpack.c.l.b16 %v1685
  %v1877 = vunpack.c.h.b16 %v1685
  %v1878 = vpack.c.b16 %v1752, %v1750
  %v1879 = vpack.c.b16 %v1753, %v1751
  %v1880 = vpack.c.b16 %v1756, %v1754
  %v1881 = vpack.c.b16 %v1757, %v1755
  %v1882 = vpack.c.b16 %v1760, %v1758
  %v1883 = vpack.c.b16 %v1761, %v1759
  %v1884 = vpack.c.b16 %v1764, %v1762
  %v1885 = vpack.c.b16 %v1765, %v1763
  %v1886 = vpack.c.b16 %v1768, %v1766
  %v1887 = vpack.c.b16 %v1769, %v1767
  %v1888 = vpack.c.b16 %v1772, %v1770
  %v1889 = vpack.c.b16 %v1773, %v1771
  %v1890 = vpack.c.b16 %v1776, %v1774
  %v1891 = vpack.c.b16 %v1777, %v1775
  %v1892 = vpack.c.b16 %v1780, %v1778
  %v1893 = vpack.c.b16 %v1781, %v1779
  %v1894 = vpack.c.b16 %v1784, %v1782
  %v1895 = vpack.c.b16 %v1785, %v1783
  %v1896 = vpack.c.b16 %v1788, %v1786
  %v1897 = vpack.c.b16 %v1789, %v1787
  %v1898 = vpack.c.b16 %v1792, %v1790
  %v1899 = vpack.c.b16 %v1793, %v1791
  %v1900 = vpack.c.b16 %v1796, %v1794
  %v1901 = vpack.c.b16 %v1797, %v1795
  %v1902 = vpack.c.b16 %v1800, %v1798
  %v1903 = vpack.c.b16 %v1801, %v1799
  %v1904 = vpack.c.b16 %v1804, %v1802
  %v1905 = vpack.c.b16 %v1805, %v1803
  %v1906 = vpack.c.b16 %v1808, %v1806
  %v1907 = vpack.c.b16 %v1809, %v1807
  %v1908 = vpack.c.b16 %v1812, %v1810
  %v1909 = vpack.c.b16 %v1813, %v1811
  %v1910 = vpack.c.b16 %v1816, %v1814
  %v1911 = vpack.c.b16 %v1817, %v1815
  %v1912 = vpack.c.b16 %v1820, %v1818
  %v1913 = vpack.c.b16 %v1821, %v1819
  %v1914 = vpack.c.b16 %v1824, %v1822
  %v1915 = vpack.c.b16 %v1825, %v1823
  %v1916 = vpack.c.b16 %v1828, %v1826
  %v1917 = vpack.c.b16 %v1829, %v1827
  %v1918 = vpack.c.b16 %v1832, %v1830
  %v1919 = vpack.c.b16 %v1833, %v1831
  %v1920 = vpack.c.b16 %v1836, %v1834
  %v1921 = vpack.c.b16 %v1837, %v1835
  %v1922 = vpack.c.b16 %v1840, %v1838
  %v1923 = vpack.c.b16 %v1841, %v1839
  %v1924 = vpack.c.b16 %v1844, %v1842
  %v1925 = vpack.c.b16 %v1845, %v1843
  %v1926 = vpack.c.b16 %v1848, %v1846
  %v1927 = vpack.c.b16 %v1849, %v1847
  %v1928 = vpack.c.b16 %v1852, %v1850
  %v1929 = vpack.c.b16 %v1853, %v1851
  %v1930 = vpack.c.b16 %v1856, %v1854
  %v1931 = vpack.c.b16 %v1857, %v1855
  %v1932 = vpack.c.b16 %v1860, %v1858
  %v1933 = vpack.c.b16 %v1861, %v1859
  %v1934 = vpack.c.b16 %v1864, %v1862
  %v1935 = vpack.c.b16 %v1865, %v1863
  %v1936 = vpack.c.b16 %v1868, %v1866
  %v1937 = vpack.c.b16 %v1869, %v1867
  %v1938 = vpack.c.b16 %v1872, %v1870
  %v1939 = vpack.c.b16 %v1873, %v1871
  %v1940 = vpack.c.b16 %v1876, %v1874
  %v1941 = vpack.c.b16 %v1877, %v1875
  %2006 = vmatprep.subr.bf16.mxu0 %v1893
  %2007 = vmatpush1.bf16.msra.mxu0 %v1892
  %2008 = vmatprep.subr.bf16.mxu0 %v1891
  %2009 = vmatpush1.bf16.msra.mxu0 %v1890
  %2010 = vmatprep.subr.bf16.mxu0 %v1889
  %2011 = vmatpush1.bf16.msra.mxu0 %v1888
  %2012 = vmatprep.subr.bf16.mxu0 %v1887
  %2013 = vmatpush1.bf16.msra.mxu0 %v1886
  %2014 = vmatprep.subr.bf16.mxu0 %v1885
  %2015 = vmatpush1.bf16.msra.mxu0 %v1884
  %2016 = vmatprep.subr.bf16.mxu0 %v1883
  %2017 = vmatpush1.bf16.msra.mxu0 %v1882
  %2018 = vmatprep.subr.bf16.mxu0 %v1881
  %2019 = vmatpush1.bf16.msra.mxu0 %v1880
  %2020 = vmatprep.subr.bf16.mxu0 %v1879
  %2021 = vmatpush1.bf16.msra.mxu0 %v1878
  %2022 = vmatprep.subr.bf16.mxu0 %v1909
  %2023 = vmatpush2.bf16.msra.mxu0 %v1908
  %2024 = vmatprep.subr.bf16.mxu0 %v1907
  %2025 = vmatpush2.bf16.msra.mxu0 %v1906
  %2026 = vmatprep.subr.bf16.mxu0 %v1905
  %2027 = vmatpush2.bf16.msra.mxu0 %v1904
  %2028 = vmatprep.subr.bf16.mxu0 %v1903
  %2029 = vmatpush2.bf16.msra.mxu0 %v1902
  %2030 = vmatprep.subr.bf16.mxu0 %v1901
  %2031 = vmatpush2.bf16.msra.mxu0 %v1900
  %2032 = vmatprep.subr.bf16.mxu0 %v1899
  %2033 = vmatpush2.bf16.msra.mxu0 %v1898
  %2034 = vmatprep.subr.bf16.mxu0 %v1897
  %2035 = vmatpush2.bf16.msra.mxu0 %v1896
  %2036 = vmatprep.subr.bf16.mxu0 %v1895
  %2037 = vmatpush2.bf16.msra.mxu0 %v1894
  %2038 = vmatprep.mubr.bf16.mxu0 %v1619
  %2039 = vmatmul.mubr.bf16.gmra.mxu0 %v1618
  %v2040 = vpop.f32.mrf.mxu0
  %v2041 = vadd.f32 0.0, %v2040
  %v2042 = vpop.f32.mrf.mxu0
  %v2043 = vadd.f32 0.0, %v2042
  %v2044 = vpop.f32.mrf.mxu0
  %v2045 = vpop.f32.mrf.mxu0
  %2046 = vdwg.mxu0
  %2047 = vmatprep.subr.bf16.mxu0 %v1925
  %2048 = vmatpush1.bf16.msra.mxu0 %v1924
  %2049 = vmatprep.subr.bf16.mxu0 %v1923
  %2050 = vmatpush1.bf16.msra.mxu0 %v1922
  %2051 = vmatprep.subr.bf16.mxu0 %v1921
  %2052 = vmatpush1.bf16.msra.mxu0 %v1920
  %2053 = vmatprep.subr.bf16.mxu0 %v1919
  %2054 = vmatpush1.bf16.msra.mxu0 %v1918
  %2055 = vmatprep.subr.bf16.mxu0 %v1917
  %2056 = vmatpush1.bf16.msra.mxu0 %v1916
  %2057 = vmatprep.subr.bf16.mxu0 %v1915
  %2058 = vmatpush1.bf16.msra.mxu0 %v1914
  %2059 = vmatprep.subr.bf16.mxu0 %v1913
  %2060 = vmatpush1.bf16.msra.mxu0 %v1912
  %2061 = vmatprep.subr.bf16.mxu0 %v1911
  %2062 = vmatpush1.bf16.msra.mxu0 %v1910
  %2063 = vmatprep.subr.bf16.mxu0 %v1941
  %2064 = vmatpush2.bf16.msra.mxu0 %v1940
  %2065 = vmatprep.subr.bf16.mxu0 %v1939
  %2066 = vmatpush2.bf16.msra.mxu0 %v1938
  %2067 = vmatprep.subr.bf16.mxu0 %v1937
  %2068 = vmatpush2.bf16.msra.mxu0 %v1936
  %2069 = vmatprep.subr.bf16.mxu0 %v1935
  %2070 = vmatpush2.bf16.msra.mxu0 %v1934
  %2071 = vmatprep.subr.bf16.mxu0 %v1933
  %2072 = vmatpush2.bf16.msra.mxu0 %v1932
  %2073 = vmatprep.subr.bf16.mxu0 %v1931
  %2074 = vmatpush2.bf16.msra.mxu0 %v1930
  %2075 = vmatprep.subr.bf16.mxu0 %v1929
  %2076 = vmatpush2.bf16.msra.mxu0 %v1928
  %2077 = vmatprep.subr.bf16.mxu0 %v1927
  %2078 = vmatpush2.bf16.msra.mxu0 %v1926
  %2079 = vmatprep.mubr.bf16.mxu0 %v1621
  %2080 = vmatmul.mubr.bf16.gmra.mxu0 %v1620
  %v2081 = vpop.f32.mrf.mxu0
  %v2082 = vadd.f32 %v2041, %v2081
  %v2083 = vpop.f32.mrf.mxu0
  %v2084 = vadd.f32 %v2043, %v2083
  %v2085 = vpop.f32.mrf.mxu0
  %v2086 = vpop.f32.mrf.mxu0
  %2087 = vdwg.mxu0
  %v2088 = vld [vmem:[%s15] sm:$0x3]
  %v2090 = vlaneseq
  %v2091 = vshrl.u32 %v2090, 7
  %v2092 = vsub.s32 0, %v2091
  %v2093 = vrot.slane %v2088, %v2092
  %v2094 = vlaneseq
  %v2095 = vshrl.u32 %v2094, 7
  %v2096 = vsub.s32 1, %v2095
  %v2097 = vrot.slane %v2088, %v2096
  %v2100 = vmul.f32 %v2082, %v2093
  %v2101 = vmul.f32 %v2084, %v2097
  %v2102 = vld [vmem:[%s16] sm:$0x3]
  %v2104 = vlaneseq
  %v2105 = vshrl.u32 %v2104, 7
  %v2106 = vsub.s32 0, %v2105
  %v2107 = vrot.slane %v2102, %v2106
  %v2108 = vlaneseq
  %v2109 = vshrl.u32 %v2108, 7
  %v2110 = vsub.s32 1, %v2109
  %v2111 = vrot.slane %v2102, %v2110
  %v2114 = vadd.f32 %v2100, %v2107
  %v2115 = vadd.f32 %v2101, %v2111
  %v2116 = vmax.f32 %v2114, 0.0
  %v2117 = vmax.f32 %v2115, 0.0
  %v2118 = vpack.c.bf16 %v2116, %v2116
  %v2119 = vpack.c.bf16 %v2117, %v2117
  %v2120 = vld [vmem:[%s17] sm:$0xf]
  %v2121 = vld [vmem:[%s17 + $0x4] sm:$0xf]
  %v2122 = vld [vmem:[%s17 + $0x8] sm:$0xf]
  %v2123 = vld [vmem:[%s17 + $0xc] sm:$0xf]
  %v2124 = vld [vmem:[%s17 + $0x10] sm:$0xf]
  %v2125 = vld [vmem:[%s17 + $0x14] sm:$0xf]
  %v2126 = vld [vmem:[%s17 + $0x18] sm:$0xf]
  %v2127 = vld [vmem:[%s17 + $0x1c] sm:$0xf]
  %v2128 = vld [vmem:[%s17 + $0x20] sm:$0xf]
  %v2129 = vld [vmem:[%s17 + $0x24] sm:$0xf]
  %v2130 = vld [vmem:[%s17 + $0x28] sm:$0xf]
  %v2131 = vld [vmem:[%s17 + $0x2c] sm:$0xf]
  %v2132 = vld [vmem:[%s17 + $0x30] sm:$0xf]
  %v2133 = vld [vmem:[%s17 + $0x34] sm:$0xf]
  %v2134 = vld [vmem:[%s17 + $0x38] sm:$0xf]
  %v2135 = vld [vmem:[%s17 + $0x3c] sm:$0xf]
  %v2136 = vld [vmem:[%s17 + $0x40] sm:$0xf]
  %v2137 = vld [vmem:[%s17 + $0x44] sm:$0xf]
  %v2138 = vld [vmem:[%s17 + $0x48] sm:$0xf]
  %v2139 = vld [vmem:[%s17 + $0x4c] sm:$0xf]
  %v2140 = vld [vmem:[%s17 + $0x50] sm:$0xf]
  %v2141 = vld [vmem:[%s17 + $0x54] sm:$0xf]
  %v2142 = vld [vmem:[%s17 + $0x58] sm:$0xf]
  %v2143 = vld [vmem:[%s17 + $0x5c] sm:$0xf]
  %v2144 = vld [vmem:[%s17 + $0x60] sm:$0xf]
  %v2145 = vld [vmem:[%s17 + $0x64] sm:$0xf]
  %v2146 = vld [vmem:[%s17 + $0x68] sm:$0xf]
  %v2147 = vld [vmem:[%s17 + $0x6c] sm:$0xf]
  %v2148 = vld [vmem:[%s17 + $0x70] sm:$0xf]
  %v2149 = vld [vmem:[%s17 + $0x74] sm:$0xf]
  %v2150 = vld [vmem:[%s17 + $0x78] sm:$0xf]
  %v2151 = vld [vmem:[%s17 + $0x7c] sm:$0xf]
  %v2152 = vld [vmem:[%s18] sm:$0x1]
  %v2154 = vlaneseq
  %v2155 = vshrl.u32 %v2154, 7
  %v2156 = vsub.s32 0, %v2155
  %v2157 = vrot.slane %v2152, %v2156
  %v2191 = vunpack.c.l.b16 %v2120
  %v2192 = vunpack.c.l.b16 %v2121
  %v2193 = vunpack.c.l.b16 %v2122
  %v2194 = vunpack.c.l.b16 %v2123
  %v2195 = vunpack.c.l.b16 %v2124
  %v2196 = vunpack.c.l.b16 %v2125
  %v2197 = vunpack.c.l.b16 %v2126
  %v2198 = vunpack.c.l.b16 %v2127
  %v2199 = vunpack.c.l.b16 %v2128
  %v2200 = vunpack.c.l.b16 %v2129
  %v2201 = vunpack.c.l.b16 %v2130
  %v2202 = vunpack.c.l.b16 %v2131
  %v2203 = vunpack.c.l.b16 %v2132
  %v2204 = vunpack.c.l.b16 %v2133
  %v2205 = vunpack.c.l.b16 %v2134
  %v2206 = vunpack.c.l.b16 %v2135
  %v2207 = vunpack.c.l.b16 %v2136
  %v2208 = vunpack.c.l.b16 %v2137
  %v2209 = vunpack.c.l.b16 %v2138
  %v2210 = vunpack.c.l.b16 %v2139
  %v2211 = vunpack.c.l.b16 %v2140
  %v2212 = vunpack.c.l.b16 %v2141
  %v2213 = vunpack.c.l.b16 %v2142
  %v2214 = vunpack.c.l.b16 %v2143
  %v2215 = vunpack.c.l.b16 %v2144
  %v2216 = vunpack.c.l.b16 %v2145
  %v2217 = vunpack.c.l.b16 %v2146
  %v2218 = vunpack.c.l.b16 %v2147
  %v2219 = vunpack.c.l.b16 %v2148
  %v2220 = vunpack.c.l.b16 %v2149
  %v2221 = vunpack.c.l.b16 %v2150
  %v2222 = vunpack.c.l.b16 %v2151
  %v2223 = vpack.c.b16 %v2192, %v2191
  %v2224 = vpack.c.b16 %v2194, %v2193
  %v2225 = vpack.c.b16 %v2196, %v2195
  %v2226 = vpack.c.b16 %v2198, %v2197
  %v2227 = vpack.c.b16 %v2200, %v2199
  %v2228 = vpack.c.b16 %v2202, %v2201
  %v2229 = vpack.c.b16 %v2204, %v2203
  %v2230 = vpack.c.b16 %v2206, %v2205
  %v2231 = vpack.c.b16 %v2208, %v2207
  %v2232 = vpack.c.b16 %v2210, %v2209
  %v2233 = vpack.c.b16 %v2212, %v2211
  %v2234 = vpack.c.b16 %v2214, %v2213
  %v2235 = vpack.c.b16 %v2216, %v2215
  %v2236 = vpack.c.b16 %v2218, %v2217
  %v2237 = vpack.c.b16 %v2220, %v2219
  %v2238 = vpack.c.b16 %v2222, %v2221
  %2255 = vmatprep.subr.bf16.mxu0 0
  %2256 = vmatpush1.bf16.msra.mxu0 %v2230
  %2257 = vmatprep.subr.bf16.mxu0 0
  %2258 = vmatpush1.bf16.msra.mxu0 %v2229
  %2259 = vmatprep.subr.bf16.mxu0 0
  %2260 = vmatpush1.bf16.msra.mxu0 %v2228
  %2261 = vmatprep.subr.bf16.mxu0 0
  %2262 = vmatpush1.bf16.msra.mxu0 %v2227
  %2263 = vmatprep.subr.bf16.mxu0 0
  %2264 = vmatpush1.bf16.msra.mxu0 %v2226
  %2265 = vmatprep.subr.bf16.mxu0 0
  %2266 = vmatpush1.bf16.msra.mxu0 %v2225
  %2267 = vmatprep.subr.bf16.mxu0 0
  %2268 = vmatpush1.bf16.msra.mxu0 %v2224
  %2269 = vmatprep.subr.bf16.mxu0 0
  %2270 = vmatpush1.bf16.msra.mxu0 %v2223
  %2271 = vmatprep.subr.bf16.mxu0 0
  %2272 = vmatpush2.bf16.msra.mxu0 %v2238
  %2273 = vmatprep.subr.bf16.mxu0 0
  %2274 = vmatpush2.bf16.msra.mxu0 %v2237
  %2275 = vmatprep.subr.bf16.mxu0 0
  %2276 = vmatpush2.bf16.msra.mxu0 %v2236
  %2277 = vmatprep.subr.bf16.mxu0 0
  %2278 = vmatpush2.bf16.msra.mxu0 %v2235
  %2279 = vmatprep.subr.bf16.mxu0 0
  %2280 = vmatpush2.bf16.msra.mxu0 %v2234
  %2281 = vmatprep.subr.bf16.mxu0 0
  %2282 = vmatpush2.bf16.msra.mxu0 %v2233
  %2283 = vmatprep.subr.bf16.mxu0 0
  %2284 = vmatpush2.bf16.msra.mxu0 %v2232
  %2285 = vmatprep.subr.bf16.mxu0 0
  %2286 = vmatpush2.bf16.msra.mxu0 %v2231
  %2287 = vmatprep.mubr.bf16.mxu0 %v2119
  %2288 = vmatmul.mubr.bf16.gmra.mxu0 %v2118
  %v2289 = vpop.f32.mrf.mxu0
  %v2290 = vadd.f32 %v2157, %v2289
  %v2291 = vpop.f32.mrf.mxu0
  %v2292 = vpop.f32.mrf.mxu0
  %v2293 = vpop.f32.mrf.mxu0
  %2294 = vdwg.mxu0
  %2295 = vmax.xlane.f32.xlu0 %v2290
  %v2296 = vpop.xlane.xlu0 %2295
  %v2297 = vsub.f32 %v2290, %v2296
  %v2298 = vmul.f32 %v2297, 1.442695
  %v2299 = vpow.pop %v2298
  %2300 = vadd.xlane.f32.xlu0 %v2299
  %v2301 = vpop.xlane.xlu0 %2300
  %v2302 = vlog2.pop %v2301
  %v2303 = vmul.f32 %v2302, 0.6931472
  %v2304 = vsub.f32 %v2297, %v2303
  %2305 = vst [vmem:[%s19] sm:$0xff] %v2304
  // Predicated region
  $region78: #{forward.7} parent=0 // pred_check
    _
  $region79: #{forward.7} parent=0 // pred_check_branch
    %2307 = sbr.rel (0) target = $region81
  $region80: #{forward.7} parent=0 // pred_region
    _
  $region81: #{forward.7} parent=0 // pred_fallthru
    _
  // Predicated region
  $region82: #{forward.7} parent=0 // pred_check
    _
  $region83: #{forward.7} parent=0 // pred_check_branch
    %2309 = sbr.rel (0) target = $region85
  $region84: #{forward.7} parent=0 // pred_region
    _
  $region85: #{forward.7} parent=0 // pred_fallthru
    _

// kernel: forward.6
$region0: #{forward.6}
  #allocation0 [shape = 'u32[]', space=smem, size = 0x4, offset = 0x4, fixed_abs, tag = 'smem constant byte address 0x4 - core index']
  #allocation1 [shape = 'u32[144,128]{1,0:T(1,128)}', space=vmem, size = 0x12000, scoped, tag = 'internal scratch']
  %s0 = inlined_call_operand.vmem [shape: f32[32,264], index: 0, kind: input, shape index: {}]
  %s1 = inlined_call_operand.vmem [shape: bf16[264,256], index: 1, kind: input, shape index: {}]
  %s2 = inlined_call_operand.vmem [shape: f32[1,256], index: 2, kind: input, shape index: {}]
  %s3 = inlined_call_operand.vmem [shape: f32[1,256], index: 3, kind: input, shape index: {}]
  %s4 = inlined_call_operand.vmem [shape: bf16[256,512], index: 4, kind: input, shape index: {}]
  %s5 = inlined_call_operand.vmem [shape: f32[1,512], index: 5, kind: input, shape index: {}]
  %s6 = inlined_call_operand.vmem [shape: f32[1,512], index: 6, kind: input, shape index: {}]
  %s7 = inlined_call_operand.vmem [shape: bf16[512,1024], index: 7, kind: input, shape index: {}]
  %s8 = inlined_call_operand.vmem [shape: f32[1,1024], index: 8, kind: input, shape index: {}]
  %s9 = inlined_call_operand.vmem [shape: f32[1,1024], index: 9, kind: input, shape index: {}]
  %s10 = inlined_call_operand.vmem [shape: bf16[1024,512], index: 10, kind: input, shape index: {}]
  %s11 = inlined_call_operand.vmem [shape: f32[1,512], index: 11, kind: input, shape index: {}]
  %s12 = inlined_call_operand.vmem [shape: f32[1,512], index: 12, kind: input, shape index: {}]
  %s13 = inlined_call_operand.vmem [shape: bf16[512,256], index: 13, kind: input, shape index: {}]
  %s14 = inlined_call_operand.vmem [shape: f32[1,256], index: 14, kind: input, shape index: {}]
  %s15 = inlined_call_operand.vmem [shape: f32[1,256], index: 15, kind: input, shape index: {}]
  %s16 = inlined_call_operand.vmem [shape: f32[8,256], index: 16, kind: output, shape index: {}]
  %s17 = sld [smem:[#allocation0]]
  $region74: #{forward.6} parent=0
    _
  %s19 = ssub.s32 1, %s17
  %s20 = scalar_select 0, %s19, %s17
  // Predicated region
  $region2: #{forward.6} parent=0 // pred_check
    _
  $region3: #{forward.6} parent=0 // pred_check_branch
    %22 = sbr.rel (0) target = $region5
  $region4: #{forward.6} parent=0 // pred_region
    _
  $region5: #{forward.6} parent=0 // pred_fallthru
    _
  // Predicated region
  $region6: #{forward.6} parent=0 // pred_check
    _
  $region7: #{forward.6} parent=0 // pred_check_branch
    %24 = sbr.rel (0) target = $region9
  $region8: #{forward.6} parent=0 // pred_region
    _
  $region9: #{forward.6} parent=0 // pred_fallthru
    _
  // Predicated region
  $region10: #{forward.6} parent=0 // pred_check
    _
  $region11: #{forward.6} parent=0 // pred_check_branch
    %26 = sbr.rel (0) target = $region13
  $region12: #{forward.6} parent=0 // pred_region
    _
  $region13: #{forward.6} parent=0 // pred_fallthru
    _
  // Predicated region
  $region14: #{forward.6} parent=0 // pred_check
    _
  $region15: #{forward.6} parent=0 // pred_check_branch
    %28 = sbr.rel (0) target = $region17
  $region16: #{forward.6} parent=0 // pred_region
    _
  $region17: #{forward.6} parent=0 // pred_fallthru
    _
  // Predicated region
  $region18: #{forward.6} parent=0 // pred_check
    _
  $region19: #{forward.6} parent=0 // pred_check_branch
    %30 = sbr.rel (0) target = $region21
  $region20: #{forward.6} parent=0 // pred_region
    _
  $region21: #{forward.6} parent=0 // pred_fallthru
    _
  // Predicated region
  $region22: #{forward.6} parent=0 // pred_check
    _
  $region23: #{forward.6} parent=0 // pred_check_branch
    %32 = sbr.rel (0) target = $region25
  $region24: #{forward.6} parent=0 // pred_region
    _
  $region25: #{forward.6} parent=0 // pred_fallthru
    _
  // Predicated region
  $region26: #{forward.6} parent=0 // pred_check
    _
  $region27: #{forward.6} parent=0 // pred_check_branch
    %34 = sbr.rel (0) target = $region29
  $region28: #{forward.6} parent=0 // pred_region
    _
  $region29: #{forward.6} parent=0 // pred_fallthru
    _
  // Predicated region
  $region30: #{forward.6} parent=0 // pred_check
    _
  $region31: #{forward.6} parent=0 // pred_check_branch
    %36 = sbr.rel (0) target = $region33
  $region32: #{forward.6} parent=0 // pred_region
    _
  $region33: #{forward.6} parent=0 // pred_fallthru
    _
  // Predicated region
  $region34: #{forward.6} parent=0 // pred_check
    _
  $region35: #{forward.6} parent=0 // pred_check_branch
    %38 = sbr.rel (0) target = $region37
  $region36: #{forward.6} parent=0 // pred_region
    _
  $region37: #{forward.6} parent=0 // pred_fallthru
    _
  // Predicated region
  $region38: #{forward.6} parent=0 // pred_check
    _
  $region39: #{forward.6} parent=0 // pred_check_branch
    %40 = sbr.rel (0) target = $region41
  $region40: #{forward.6} parent=0 // pred_region
    _
  $region41: #{forward.6} parent=0 // pred_fallthru
    _
  // Predicated region
  $region42: #{forward.6} parent=0 // pred_check
    _
  $region43: #{forward.6} parent=0 // pred_check_branch
    %42 = sbr.rel (0) target = $region45
  $region44: #{forward.6} parent=0 // pred_region
    _
  $region45: #{forward.6} parent=0 // pred_fallthru
    _
  // Predicated region
  $region46: #{forward.6} parent=0 // pred_check
    _
  $region47: #{forward.6} parent=0 // pred_check_branch
    %44 = sbr.rel (0) target = $region49
  $region48: #{forward.6} parent=0 // pred_region
    _
  $region49: #{forward.6} parent=0 // pred_fallthru
    _
  // Predicated region
  $region50: #{forward.6} parent=0 // pred_check
    _
  $region51: #{forward.6} parent=0 // pred_check_branch
    %46 = sbr.rel (0) target = $region53
  $region52: #{forward.6} parent=0 // pred_region
    _
  $region53: #{forward.6} parent=0 // pred_fallthru
    _
  // Predicated region
  $region54: #{forward.6} parent=0 // pred_check
    _
  $region55: #{forward.6} parent=0 // pred_check_branch
    %48 = sbr.rel (0) target = $region57
  $region56: #{forward.6} parent=0 // pred_region
    _
  $region57: #{forward.6} parent=0 // pred_fallthru
    _
  // Predicated region
  $region58: #{forward.6} parent=0 // pred_check
    _
  $region59: #{forward.6} parent=0 // pred_check_branch
    %50 = sbr.rel (0) target = $region61
  $region60: #{forward.6} parent=0 // pred_region
    _
  $region61: #{forward.6} parent=0 // pred_fallthru
    _
  // Predicated region
  $region62: #{forward.6} parent=0 // pred_check
    _
  $region63: #{forward.6} parent=0 // pred_check_branch
    %52 = sbr.rel (0) target = $region65
  $region64: #{forward.6} parent=0 // pred_region
    _
  $region65: #{forward.6} parent=0 // pred_fallthru
    _
  %v54 = vld [vmem:[%s0] sm:$0xff]
  %v55 = vld [vmem:[%s0 + $0x8] sm:$0xff]
  %v56 = vld [vmem:[%s0 + $0x10] sm:$0xff]
  %v57 = vld [vmem:[%s0 + $0x18] sm:$0xff]
  %v58 = vld [vmem:[%s0 + $0x20] sm:$0xff]
  %v59 = vld [vmem:[%s0 + $0x28] sm:$0xff]
  %v60 = vld [vmem:[%s0 + $0x30] sm:$0xff]
  %v61 = vld [vmem:[%s0 + $0x38] sm:$0xff]
  %v62 = vld [vmem:[%s0 + $0x40] sm:$0xff]
  %v63 = vld [vmem:[%s0 + $0x48] sm:$0xff]
  %v64 = vld [vmem:[%s0 + $0x50] sm:$0xff]
  %v65 = vld [vmem:[%s0 + $0x58] sm:$0xff]
  %v66 = vpack.c.bf16 %v57, %v54
  %v67 = vpack.c.bf16 %v58, %v55
  %v68 = vpack.c.bf16 %v59, %v56
  %v69 = vpack.c.bf16 %v63, %v60
  %v70 = vpack.c.bf16 %v64, %v61
  %v71 = vpack.c.bf16 %v65, %v62
  %v72 = vld [vmem:[%s1] sm:$0xff]
  %v73 = vld [vmem:[%s1 + $0x8] sm:$0xff]
  %v74 = vld [vmem:[%s1 + $0x10] sm:$0xff]
  %v75 = vld [vmem:[%s1 + $0x18] sm:$0xff]
  %v76 = vld [vmem:[%s1 + $0x20] sm:$0xff]
  %v77 = vld [vmem:[%s1 + $0x28] sm:$0xff]
  %v78 = vld [vmem:[%s1 + $0x30] sm:$0xff]
  %v79 = vld [vmem:[%s1 + $0x38] sm:$0xff]
  %v80 = vld [vmem:[%s1 + $0x40] sm:$0xff]
  %v81 = vld [vmem:[%s1 + $0x48] sm:$0xff]
  %v82 = vld [vmem:[%s1 + $0x50] sm:$0xff]
  %v83 = vld [vmem:[%s1 + $0x58] sm:$0xff]
  %v84 = vld [vmem:[%s1 + $0x60] sm:$0xff]
  %v85 = vld [vmem:[%s1 + $0x68] sm:$0xff]
  %v86 = vld [vmem:[%s1 + $0x70] sm:$0xff]
  %v87 = vld [vmem:[%s1 + $0x78] sm:$0xff]
  %v88 = vld [vmem:[%s1 + $0x80] sm:$0xff]
  %v89 = vld [vmem:[%s1 + $0x88] sm:$0xff]
  %v90 = vld [vmem:[%s1 + $0x90] sm:$0xff]
  %v91 = vld [vmem:[%s1 + $0x98] sm:$0xff]
  %v92 = vld [vmem:[%s1 + $0xa0] sm:$0xff]
  %v93 = vld [vmem:[%s1 + $0xa8] sm:$0xff]
  %v94 = vld [vmem:[%s1 + $0xb0] sm:$0xff]
  %v95 = vld [vmem:[%s1 + $0xb8] sm:$0xff]
  %v96 = vld [vmem:[%s1 + $0xc0] sm:$0xff]
  %v97 = vld [vmem:[%s1 + $0xc8] sm:$0xff]
  %v98 = vld [vmem:[%s1 + $0xd0] sm:$0xff]
  %v99 = vld [vmem:[%s1 + $0xd8] sm:$0xff]
  %v100 = vld [vmem:[%s1 + $0xe0] sm:$0xff]
  %v101 = vld [vmem:[%s1 + $0xe8] sm:$0xff]
  %v102 = vld [vmem:[%s1 + $0xf0] sm:$0xff]
  %v103 = vld [vmem:[%s1 + $0xf8] sm:$0xff]
  %v104 = vld [vmem:[%s1 + $0x100] sm:$0xff]
  %v138 = vunpack.c.l.b16 %v72
  %v139 = vunpack.c.h.b16 %v72
  %v140 = vunpack.c.l.b16 %v73
  %v141 = vunpack.c.h.b16 %v73
  %v142 = vunpack.c.l.b16 %v74
  %v143 = vunpack.c.h.b16 %v74
  %v144 = vunpack.c.l.b16 %v75
  %v145 = vunpack.c.h.b16 %v75
  %v146 = vunpack.c.l.b16 %v76
  %v147 = vunpack.c.h.b16 %v76
  %v148 = vunpack.c.l.b16 %v77
  %v149 = vunpack.c.h.b16 %v77
  %v150 = vunpack.c.l.b16 %v78
  %v151 = vunpack.c.h.b16 %v78
  %v152 = vunpack.c.l.b16 %v79
  %v153 = vunpack.c.h.b16 %v79
  %v154 = vunpack.c.l.b16 %v80
  %v155 = vunpack.c.h.b16 %v80
  %v156 = vunpack.c.l.b16 %v81
  %v157 = vunpack.c.h.b16 %v81
  %v158 = vunpack.c.l.b16 %v82
  %v159 = vunpack.c.h.b16 %v82
  %v160 = vunpack.c.l.b16 %v83
  %v161 = vunpack.c.h.b16 %v83
  %v162 = vunpack.c.l.b16 %v84
  %v163 = vunpack.c.h.b16 %v84
  %v164 = vunpack.c.l.b16 %v85
  %v165 = vunpack.c.h.b16 %v85
  %v166 = vunpack.c.l.b16 %v86
  %v167 = vunpack.c.h.b16 %v86
  %v168 = vunpack.c.l.b16 %v87
  %v169 = vunpack.c.h.b16 %v87
  %v170 = vunpack.c.l.b16 %v88
  %v171 = vunpack.c.h.b16 %v88
  %v172 = vunpack.c.l.b16 %v89
  %v173 = vunpack.c.h.b16 %v89
  %v174 = vunpack.c.l.b16 %v90
  %v175 = vunpack.c.h.b16 %v90
  %v176 = vunpack.c.l.b16 %v91
  %v177 = vunpack.c.h.b16 %v91
  %v178 = vunpack.c.l.b16 %v92
  %v179 = vunpack.c.h.b16 %v92
  %v180 = vunpack.c.l.b16 %v93
  %v181 = vunpack.c.h.b16 %v93
  %v182 = vunpack.c.l.b16 %v94
  %v183 = vunpack.c.h.b16 %v94
  %v184 = vunpack.c.l.b16 %v95
  %v185 = vunpack.c.h.b16 %v95
  %v186 = vunpack.c.l.b16 %v96
  %v187 = vunpack.c.h.b16 %v96
  %v188 = vunpack.c.l.b16 %v97
  %v189 = vunpack.c.h.b16 %v97
  %v190 = vunpack.c.l.b16 %v98
  %v191 = vunpack.c.h.b16 %v98
  %v192 = vunpack.c.l.b16 %v99
  %v193 = vunpack.c.h.b16 %v99
  %v194 = vunpack.c.l.b16 %v100
  %v195 = vunpack.c.h.b16 %v100
  %v196 = vunpack.c.l.b16 %v101
  %v197 = vunpack.c.h.b16 %v101
  %v198 = vunpack.c.l.b16 %v102
  %v199 = vunpack.c.h.b16 %v102
  %v200 = vunpack.c.l.b16 %v103
  %v201 = vunpack.c.h.b16 %v103
  %v202 = vunpack.c.l.b16 %v104
  %v203 = vunpack.c.h.b16 %v104
  %v204 = vpack.c.b16 %v140, %v138
  %v205 = vpack.c.b16 %v141, %v139
  %v206 = vpack.c.b16 %v144, %v142
  %v207 = vpack.c.b16 %v145, %v143
  %v208 = vpack.c.b16 %v148, %v146
  %v209 = vpack.c.b16 %v149, %v147
  %v210 = vpack.c.b16 %v152, %v150
  %v211 = vpack.c.b16 %v153, %v151
  %v212 = vpack.c.b16 %v156, %v154
  %v213 = vpack.c.b16 %v157, %v155
  %v214 = vpack.c.b16 %v160, %v158
  %v215 = vpack.c.b16 %v161, %v159
  %v216 = vpack.c.b16 %v164, %v162
  %v217 = vpack.c.b16 %v165, %v163
  %v218 = vpack.c.b16 %v168, %v166
  %v219 = vpack.c.b16 %v169, %v167
  %v220 = vpack.c.b16 %v172, %v170
  %v221 = vpack.c.b16 %v173, %v171
  %v222 = vpack.c.b16 %v176, %v174
  %v223 = vpack.c.b16 %v177, %v175
  %v224 = vpack.c.b16 %v180, %v178
  %v225 = vpack.c.b16 %v181, %v179
  %v226 = vpack.c.b16 %v184, %v182
  %v227 = vpack.c.b16 %v185, %v183
  %v228 = vpack.c.b16 %v188, %v186
  %v229 = vpack.c.b16 %v189, %v187
  %v230 = vpack.c.b16 %v192, %v190
  %v231 = vpack.c.b16 %v193, %v191
  %v232 = vpack.c.b16 %v196, %v194
  %v233 = vpack.c.b16 %v197, %v195
  %v234 = vpack.c.b16 %v200, %v198
  %v235 = vpack.c.b16 %v201, %v199
  %v236 = vpack.c.b16 %v202, %v202
  %v237 = vpack.c.b16 %v203, %v203
  %vm270 = vcmask 64512
  %v272 = vsel %vm270, %v68, 0
  %v275 = vsel %vm270, %v71, 0
  %vm277 = vcmask 1043456
  %v279 = vsel %vm277, %v236, 0
  %v282 = vsel %vm277, %v237, 0
  %284 = vmatprep.subr.bf16.mxu0 %v219
  %285 = vmatpush1.bf16.msra.mxu0 %v218
  %286 = vmatprep.subr.bf16.mxu0 %v217
  %287 = vmatpush1.bf16.msra.mxu0 %v216
  %288 = vmatprep.subr.bf16.mxu0 %v215
  %289 = vmatpush1.bf16.msra.mxu0 %v214
  %290 = vmatprep.subr.bf16.mxu0 %v213
  %291 = vmatpush1.bf16.msra.mxu0 %v212
  %292 = vmatprep.subr.bf16.mxu0 %v211
  %293 = vmatpush1.bf16.msra.mxu0 %v210
  %294 = vmatprep.subr.bf16.mxu0 %v209
  %295 = vmatpush1.bf16.msra.mxu0 %v208
  %296 = vmatprep.subr.bf16.mxu0 %v207
  %297 = vmatpush1.bf16.msra.mxu0 %v206
  %298 = vmatprep.subr.bf16.mxu0 %v205
  %299 = vmatpush1.bf16.msra.mxu0 %v204
  %300 = vmatprep.subr.bf16.mxu0 %v235
  %301 = vmatpush2.bf16.msra.mxu0 %v234
  %302 = vmatprep.subr.bf16.mxu0 %v233
  %303 = vmatpush2.bf16.msra.mxu0 %v232
  %304 = vmatprep.subr.bf16.mxu0 %v231
  %305 = vmatpush2.bf16.msra.mxu0 %v230
  %306 = vmatprep.subr.bf16.mxu0 %v229
  %307 = vmatpush2.bf16.msra.mxu0 %v228
  %308 = vmatprep.subr.bf16.mxu0 %v227
  %309 = vmatpush2.bf16.msra.mxu0 %v226
  %310 = vmatprep.subr.bf16.mxu0 %v225
  %311 = vmatpush2.bf16.msra.mxu0 %v224
  %312 = vmatprep.subr.bf16.mxu0 %v223
  %313 = vmatpush2.bf16.msra.mxu0 %v222
  %314 = vmatprep.subr.bf16.mxu0 %v221
  %315 = vmatpush2.bf16.msra.mxu0 %v220
  %316 = vmatprep.mubr.bf16.mxu0 %v67
  %317 = vmatmul.mubr.bf16.gmra.mxu0 %v66
  %v318 = vpop.f32.mrf.mxu0
  %v319 = vadd.f32 0.0, %v318
  %v320 = vpop.f32.mrf.mxu0
  %v321 = vadd.f32 0.0, %v320
  %v322 = vpop.f32.mrf.mxu0
  %v323 = vadd.f32 0.0, %v322
  %v324 = vpop.f32.mrf.mxu0
  %v325 = vadd.f32 0.0, %v324
  %326 = vmatprep.mubr.bf16.mxu0 %v70
  %327 = vmatmul.mubr.bf16.gmra.mxu0 %v69
  %v328 = vpop.f32.mrf.mxu0
  %v329 = vadd.f32 0.0, %v328
  %v330 = vpop.f32.mrf.mxu0
  %v331 = vadd.f32 0.0, %v330
  %v332 = vpop.f32.mrf.mxu0
  %v333 = vadd.f32 0.0, %v332
  %v334 = vpop.f32.mrf.mxu0
  %v335 = vadd.f32 0.0, %v334
  %336 = vdwg.mxu0
  %337 = vmatprep.subr.bf16.mxu0 0
  %338 = vmatpush1.bf16.msra.mxu0 0
  %339 = vmatprep.subr.bf16.mxu0 0
  %340 = vmatpush1.bf16.msra.mxu0 0
  %341 = vmatprep.subr.bf16.mxu0 0
  %342 = vmatpush1.bf16.msra.mxu0 0
  %343 = vmatprep.subr.bf16.mxu0 0
  %344 = vmatpush1.bf16.msra.mxu0 0
  %345 = vmatprep.subr.bf16.mxu0 0
  %346 = vmatpush1.bf16.msra.mxu0 0
  %347 = vmatprep.subr.bf16.mxu0 0
  %348 = vmatpush1.bf16.msra.mxu0 0
  %349 = vmatprep.subr.bf16.mxu0 0
  %350 = vmatpush1.bf16.msra.mxu0 0
  %351 = vmatprep.subr.bf16.mxu0 %v282
  %352 = vmatpush1.bf16.msra.mxu0 %v279
  %353 = vmatprep.subr.bf16.mxu0 0
  %354 = vmatpush2.bf16.msra.mxu0 0
  %355 = vmatprep.subr.bf16.mxu0 0
  %356 = vmatpush2.bf16.msra.mxu0 0
  %357 = vmatprep.subr.bf16.mxu0 0
  %358 = vmatpush2.bf16.msra.mxu0 0
  %359 = vmatprep.subr.bf16.mxu0 0
  %360 = vmatpush2.bf16.msra.mxu0 0
  %361 = vmatprep.subr.bf16.mxu0 0
  %362 = vmatpush2.bf16.msra.mxu0 0
  %363 = vmatprep.subr.bf16.mxu0 0
  %364 = vmatpush2.bf16.msra.mxu0 0
  %365 = vmatprep.subr.bf16.mxu0 0
  %366 = vmatpush2.bf16.msra.mxu0 0
  %367 = vmatprep.subr.bf16.mxu0 0
  %368 = vmatpush2.bf16.msra.mxu0 0
  %369 = vmatprep.mubr.bf16.mxu0 0
  %370 = vmatmul.mubr.bf16.gmra.mxu0 %v272
  %v371 = vpop.f32.mrf.mxu0
  %v372 = vadd.f32 %v319, %v371
  %v373 = vpop.f32.mrf.mxu0
  %v374 = vadd.f32 %v321, %v373
  %v375 = vpop.f32.mrf.mxu0
  %v376 = vadd.f32 %v323, %v375
  %v377 = vpop.f32.mrf.mxu0
  %v378 = vadd.f32 %v325, %v377
  %379 = vmatprep.mubr.bf16.mxu0 0
  %380 = vmatmul.mubr.bf16.gmra.mxu0 %v275
  %v381 = vpop.f32.mrf.mxu0
  %v382 = vadd.f32 %v329, %v381
  %v383 = vpop.f32.mrf.mxu0
  %v384 = vadd.f32 %v331, %v383
  %v385 = vpop.f32.mrf.mxu0
  %v386 = vadd.f32 %v333, %v385
  %v387 = vpop.f32.mrf.mxu0
  %v388 = vadd.f32 %v335, %v387
  %389 = vdwg.mxu0
  %v390 = vld [vmem:[%s2] sm:$0x3]
  %v392 = vlaneseq
  %v393 = vshrl.u32 %v392, 7
  %v394 = vsub.s32 0, %v393
  %v395 = vrot.slane %v390, %v394
  %v396 = vlaneseq
  %v397 = vshrl.u32 %v396, 7
  %v398 = vsub.s32 1, %v397
  %v399 = vrot.slane %v390, %v398
  %v402 = vmul.f32 %v372, %v395
  %v403 = vmul.f32 %v374, %v399
  %v404 = vmul.f32 %v376, %v395
  %v405 = vmul.f32 %v378, %v399
  %v406 = vmul.f32 %v382, %v395
  %v407 = vmul.f32 %v384, %v399
  %v408 = vmul.f32 %v386, %v395
  %v409 = vmul.f32 %v388, %v399
  %v410 = vld [vmem:[%s3] sm:$0x3]
  %v412 = vlaneseq
  %v413 = vshrl.u32 %v412, 7
  %v414 = vsub.s32 0, %v413
  %v415 = vrot.slane %v410, %v414
  %v416 = vlaneseq
  %v417 = vshrl.u32 %v416, 7
  %v418 = vsub.s32 1, %v417
  %v419 = vrot.slane %v410, %v418
  %v422 = vadd.f32 %v402, %v415
  %v423 = vadd.f32 %v403, %v419
  %v424 = vadd.f32 %v404, %v415
  %v425 = vadd.f32 %v405, %v419
  %v426 = vadd.f32 %v406, %v415
  %v427 = vadd.f32 %v407, %v419
  %v428 = vadd.f32 %v408, %v415
  %v429 = vadd.f32 %v409, %v419
  %v430 = vmax.f32 %v422, 0.0
  %v431 = vmax.f32 %v423, 0.0
  %v432 = vmax.f32 %v424, 0.0
  %v433 = vmax.f32 %v425, 0.0
  %v434 = vmax.f32 %v426, 0.0
  %v435 = vmax.f32 %v427, 0.0
  %v436 = vmax.f32 %v428, 0.0
  %v437 = vmax.f32 %v429, 0.0
  %v438 = vpack.c.bf16 %v432, %v430
  %v439 = vpack.c.bf16 %v433, %v431
  %v440 = vpack.c.bf16 %v436, %v434
  %v441 = vpack.c.bf16 %v437, %v435
  %v442 = vld [vmem:[%s4] sm:$0xff]
  %v443 = vld [vmem:[%s4 + $0x8] sm:$0xff]
  %v444 = vld [vmem:[%s4 + $0x10] sm:$0xff]
  %v445 = vld [vmem:[%s4 + $0x18] sm:$0xff]
  %v446 = vld [vmem:[%s4 + $0x20] sm:$0xff]
  %v447 = vld [vmem:[%s4 + $0x28] sm:$0xff]
  %v448 = vld [vmem:[%s4 + $0x30] sm:$0xff]
  %v449 = vld [vmem:[%s4 + $0x38] sm:$0xff]
  %v450 = vld [vmem:[%s4 + $0x40] sm:$0xff]
  %v451 = vld [vmem:[%s4 + $0x48] sm:$0xff]
  %v452 = vld [vmem:[%s4 + $0x50] sm:$0xff]
  %v453 = vld [vmem:[%s4 + $0x58] sm:$0xff]
  %v454 = vld [vmem:[%s4 + $0x60] sm:$0xff]
  %v455 = vld [vmem:[%s4 + $0x68] sm:$0xff]
  %v456 = vld [vmem:[%s4 + $0x70] sm:$0xff]
  %v457 = vld [vmem:[%s4 + $0x78] sm:$0xff]
  %v458 = vld [vmem:[%s4 + $0x80] sm:$0xff]
  %v459 = vld [vmem:[%s4 + $0x88] sm:$0xff]
  %v460 = vld [vmem:[%s4 + $0x90] sm:$0xff]
  %v461 = vld [vmem:[%s4 + $0x98] sm:$0xff]
  %v462 = vld [vmem:[%s4 + $0xa0] sm:$0xff]
  %v463 = vld [vmem:[%s4 + $0xa8] sm:$0xff]
  %v464 = vld [vmem:[%s4 + $0xb0] sm:$0xff]
  %v465 = vld [vmem:[%s4 + $0xb8] sm:$0xff]
  %v466 = vld [vmem:[%s4 + $0xc0] sm:$0xff]
  %v467 = vld [vmem:[%s4 + $0xc8] sm:$0xff]
  %v468 = vld [vmem:[%s4 + $0xd0] sm:$0xff]
  %v469 = vld [vmem:[%s4 + $0xd8] sm:$0xff]
  %v470 = vld [vmem:[%s4 + $0xe0] sm:$0xff]
  %v471 = vld [vmem:[%s4 + $0xe8] sm:$0xff]
  %v472 = vld [vmem:[%s4 + $0xf0] sm:$0xff]
  %v473 = vld [vmem:[%s4 + $0xf8] sm:$0xff]
  %v474 = vld [vmem:[%s4 + $0x100] sm:$0xff]
  %v475 = vld [vmem:[%s4 + $0x108] sm:$0xff]
  %v476 = vld [vmem:[%s4 + $0x110] sm:$0xff]
  %v477 = vld [vmem:[%s4 + $0x118] sm:$0xff]
  %v478 = vld [vmem:[%s4 + $0x120] sm:$0xff]
  %v479 = vld [vmem:[%s4 + $0x128] sm:$0xff]
  %v480 = vld [vmem:[%s4 + $0x130] sm:$0xff]
  %v481 = vld [vmem:[%s4 + $0x138] sm:$0xff]
  %v482 = vld [vmem:[%s4 + $0x140] sm:$0xff]
  %v483 = vld [vmem:[%s4 + $0x148] sm:$0xff]
  %v484 = vld [vmem:[%s4 + $0x150] sm:$0xff]
  %v485 = vld [vmem:[%s4 + $0x158] sm:$0xff]
  %v486 = vld [vmem:[%s4 + $0x160] sm:$0xff]
  %v487 = vld [vmem:[%s4 + $0x168] sm:$0xff]
  %v488 = vld [vmem:[%s4 + $0x170] sm:$0xff]
  %v489 = vld [vmem:[%s4 + $0x178] sm:$0xff]
  %v490 = vld [vmem:[%s4 + $0x180] sm:$0xff]
  %v491 = vld [vmem:[%s4 + $0x188] sm:$0xff]
  %v492 = vld [vmem:[%s4 + $0x190] sm:$0xff]
  %v493 = vld [vmem:[%s4 + $0x198] sm:$0xff]
  %v494 = vld [vmem:[%s4 + $0x1a0] sm:$0xff]
  %v495 = vld [vmem:[%s4 + $0x1a8] sm:$0xff]
  %v496 = vld [vmem:[%s4 + $0x1b0] sm:$0xff]
  %v497 = vld [vmem:[%s4 + $0x1b8] sm:$0xff]
  %v498 = vld [vmem:[%s4 + $0x1c0] sm:$0xff]
  %v499 = vld [vmem:[%s4 + $0x1c8] sm:$0xff]
  %v500 = vld [vmem:[%s4 + $0x1d0] sm:$0xff]
  %v501 = vld [vmem:[%s4 + $0x1d8] sm:$0xff]
  %v502 = vld [vmem:[%s4 + $0x1e0] sm:$0xff]
  %v503 = vld [vmem:[%s4 + $0x1e8] sm:$0xff]
  %v504 = vld [vmem:[%s4 + $0x1f0] sm:$0xff]
  %v505 = vld [vmem:[%s4 + $0x1f8] sm:$0xff]
  %v570 = vunpack.c.l.b16 %v442
  %v571 = vunpack.c.h.b16 %v442
  %v572 = vunpack.c.l.b16 %v443
  %v573 = vunpack.c.h.b16 %v443
  %v574 = vunpack.c.l.b16 %v444
  %v575 = vunpack.c.h.b16 %v444
  %v576 = vunpack.c.l.b16 %v445
  %v577 = vunpack.c.h.b16 %v445
  %v578 = vunpack.c.l.b16 %v446
  %v579 = vunpack.c.h.b16 %v446
  %v580 = vunpack.c.l.b16 %v447
  %v581 = vunpack.c.h.b16 %v447
  %v582 = vunpack.c.l.b16 %v448
  %v583 = vunpack.c.h.b16 %v448
  %v584 = vunpack.c.l.b16 %v449
  %v585 = vunpack.c.h.b16 %v449
  %v586 = vunpack.c.l.b16 %v450
  %v587 = vunpack.c.h.b16 %v450
  %v588 = vunpack.c.l.b16 %v451
  %v589 = vunpack.c.h.b16 %v451
  %v590 = vunpack.c.l.b16 %v452
  %v591 = vunpack.c.h.b16 %v452
  %v592 = vunpack.c.l.b16 %v453
  %v593 = vunpack.c.h.b16 %v453
  %v594 = vunpack.c.l.b16 %v454
  %v595 = vunpack.c.h.b16 %v454
  %v596 = vunpack.c.l.b16 %v455
  %v597 = vunpack.c.h.b16 %v455
  %v598 = vunpack.c.l.b16 %v456
  %v599 = vunpack.c.h.b16 %v456
  %v600 = vunpack.c.l.b16 %v457
  %v601 = vunpack.c.h.b16 %v457
  %v602 = vunpack.c.l.b16 %v458
  %v603 = vunpack.c.h.b16 %v458
  %v604 = vunpack.c.l.b16 %v459
  %v605 = vunpack.c.h.b16 %v459
  %v606 = vunpack.c.l.b16 %v460
  %v607 = vunpack.c.h.b16 %v460
  %v608 = vunpack.c.l.b16 %v461
  %v609 = vunpack.c.h.b16 %v461
  %v610 = vunpack.c.l.b16 %v462
  %v611 = vunpack.c.h.b16 %v462
  %v612 = vunpack.c.l.b16 %v463
  %v613 = vunpack.c.h.b16 %v463
  %v614 = vunpack.c.l.b16 %v464
  %v615 = vunpack.c.h.b16 %v464
  %v616 = vunpack.c.l.b16 %v465
  %v617 = vunpack.c.h.b16 %v465
  %v618 = vunpack.c.l.b16 %v466
  %v619 = vunpack.c.h.b16 %v466
  %v620 = vunpack.c.l.b16 %v467
  %v621 = vunpack.c.h.b16 %v467
  %v622 = vunpack.c.l.b16 %v468
  %v623 = vunpack.c.h.b16 %v468
  %v624 = vunpack.c.l.b16 %v469
  %v625 = vunpack.c.h.b16 %v469
  %v626 = vunpack.c.l.b16 %v470
  %v627 = vunpack.c.h.b16 %v470
  %v628 = vunpack.c.l.b16 %v471
  %v629 = vunpack.c.h.b16 %v471
  %v630 = vunpack.c.l.b16 %v472
  %v631 = vunpack.c.h.b16 %v472
  %v632 = vunpack.c.l.b16 %v473
  %v633 = vunpack.c.h.b16 %v473
  %v634 = vunpack.c.l.b16 %v474
  %v635 = vunpack.c.h.b16 %v474
  %v636 = vunpack.c.l.b16 %v475
  %v637 = vunpack.c.h.b16 %v475
  %v638 = vunpack.c.l.b16 %v476
  %v639 = vunpack.c.h.b16 %v476
  %v640 = vunpack.c.l.b16 %v477
  %v641 = vunpack.c.h.b16 %v477
  %v642 = vunpack.c.l.b16 %v478
  %v643 = vunpack.c.h.b16 %v478
  %v644 = vunpack.c.l.b16 %v479
  %v645 = vunpack.c.h.b16 %v479
  %v646 = vunpack.c.l.b16 %v480
  %v647 = vunpack.c.h.b16 %v480
  %v648 = vunpack.c.l.b16 %v481
  %v649 = vunpack.c.h.b16 %v481
  %v650 = vunpack.c.l.b16 %v482
  %v651 = vunpack.c.h.b16 %v482
  %v652 = vunpack.c.l.b16 %v483
  %v653 = vunpack.c.h.b16 %v483
  %v654 = vunpack.c.l.b16 %v484
  %v655 = vunpack.c.h.b16 %v484
  %v656 = vunpack.c.l.b16 %v485
  %v657 = vunpack.c.h.b16 %v485
  %v658 = vunpack.c.l.b16 %v486
  %v659 = vunpack.c.h.b16 %v486
  %v660 = vunpack.c.l.b16 %v487
  %v661 = vunpack.c.h.b16 %v487
  %v662 = vunpack.c.l.b16 %v488
  %v663 = vunpack.c.h.b16 %v488
  %v664 = vunpack.c.l.b16 %v489
  %v665 = vunpack.c.h.b16 %v489
  %v666 = vunpack.c.l.b16 %v490
  %v667 = vunpack.c.h.b16 %v490
  %v668 = vunpack.c.l.b16 %v491
  %v669 = vunpack.c.h.b16 %v491
  %v670 = vunpack.c.l.b16 %v492
  %v671 = vunpack.c.h.b16 %v492
  %v672 = vunpack.c.l.b16 %v493
  %v673 = vunpack.c.h.b16 %v493
  %v674 = vunpack.c.l.b16 %v494
  %v675 = vunpack.c.h.b16 %v494
  %v676 = vunpack.c.l.b16 %v495
  %v677 = vunpack.c.h.b16 %v495
  %v678 = vunpack.c.l.b16 %v496
  %v679 = vunpack.c.h.b16 %v496
  %v680 = vunpack.c.l.b16 %v497
  %v681 = vunpack.c.h.b16 %v497
  %v682 = vunpack.c.l.b16 %v498
  %v683 = vunpack.c.h.b16 %v498
  %v684 = vunpack.c.l.b16 %v499
  %v685 = vunpack.c.h.b16 %v499
  %v686 = vunpack.c.l.b16 %v500
  %v687 = vunpack.c.h.b16 %v500
  %v688 = vunpack.c.l.b16 %v501
  %v689 = vunpack.c.h.b16 %v501
  %v690 = vunpack.c.l.b16 %v502
  %v691 = vunpack.c.h.b16 %v502
  %v692 = vunpack.c.l.b16 %v503
  %v693 = vunpack.c.h.b16 %v503
  %v694 = vunpack.c.l.b16 %v504
  %v695 = vunpack.c.h.b16 %v504
  %v696 = vunpack.c.l.b16 %v505
  %v697 = vunpack.c.h.b16 %v505
  %v698 = vpack.c.b16 %v574, %v570
  %v699 = vpack.c.b16 %v575, %v571
  %v700 = vpack.c.b16 %v576, %v572
  %v701 = vpack.c.b16 %v577, %v573
  %v702 = vpack.c.b16 %v582, %v578
  %v703 = vpack.c.b16 %v583, %v579
  %v704 = vpack.c.b16 %v584, %v580
  %v705 = vpack.c.b16 %v585, %v581
  %v706 = vpack.c.b16 %v590, %v586
  %v707 = vpack.c.b16 %v591, %v587
  %v708 = vpack.c.b16 %v592, %v588
  %v709 = vpack.c.b16 %v593, %v589
  %v710 = vpack.c.b16 %v598, %v594
  %v711 = vpack.c.b16 %v599, %v595
  %v712 = vpack.c.b16 %v600, %v596
  %v713 = vpack.c.b16 %v601, %v597
  %v714 = vpack.c.b16 %v606, %v602
  %v715 = vpack.c.b16 %v607, %v603
  %v716 = vpack.c.b16 %v608, %v604
  %v717 = vpack.c.b16 %v609, %v605
  %v718 = vpack.c.b16 %v614, %v610
  %v719 = vpack.c.b16 %v615, %v611
  %v720 = vpack.c.b16 %v616, %v612
  %v721 = vpack.c.b16 %v617, %v613
  %v722 = vpack.c.b16 %v622, %v618
  %v723 = vpack.c.b16 %v623, %v619
  %v724 = vpack.c.b16 %v624, %v620
  %v725 = vpack.c.b16 %v625, %v621
  %v726 = vpack.c.b16 %v630, %v626
  %v727 = vpack.c.b16 %v631, %v627
  %v728 = vpack.c.b16 %v632, %v628
  %v729 = vpack.c.b16 %v633, %v629
  %v730 = vpack.c.b16 %v638, %v634
  %v731 = vpack.c.b16 %v639, %v635
  %v732 = vpack.c.b16 %v640, %v636
  %v733 = vpack.c.b16 %v641, %v637
  %v734 = vpack.c.b16 %v646, %v642
  %v735 = vpack.c.b16 %v647, %v643
  %v736 = vpack.c.b16 %v648, %v644
  %v737 = vpack.c.b16 %v649, %v645
  %v738 = vpack.c.b16 %v654, %v650
  %v739 = vpack.c.b16 %v655, %v651
  %v740 = vpack.c.b16 %v656, %v652
  %v741 = vpack.c.b16 %v657, %v653
  %v742 = vpack.c.b16 %v662, %v658
  %v743 = vpack.c.b16 %v663, %v659
  %v744 = vpack.c.b16 %v664, %v660
  %v745 = vpack.c.b16 %v665, %v661
  %v746 = vpack.c.b16 %v670, %v666
  %v747 = vpack.c.b16 %v671, %v667
  %v748 = vpack.c.b16 %v672, %v668
  %v749 = vpack.c.b16 %v673, %v669
  %v750 = vpack.c.b16 %v678, %v674
  %v751 = vpack.c.b16 %v679, %v675
  %v752 = vpack.c.b16 %v680, %v676
  %v753 = vpack.c.b16 %v681, %v677
  %v754 = vpack.c.b16 %v686, %v682
  %v755 = vpack.c.b16 %v687, %v683
  %v756 = vpack.c.b16 %v688, %v684
  %v757 = vpack.c.b16 %v689, %v685
  %v758 = vpack.c.b16 %v694, %v690
  %v759 = vpack.c.b16 %v695, %v691
  %v760 = vpack.c.b16 %v696, %v692
  %v761 = vpack.c.b16 %v697, %v693
  %826 = vmatprep.subr.bf16.mxu0 %v727
  %827 = vmatpush1.bf16.msra.mxu0 %v726
  %828 = vmatprep.subr.bf16.mxu0 %v723
  %829 = vmatpush1.bf16.msra.mxu0 %v722
  %830 = vmatprep.subr.bf16.mxu0 %v719
  %831 = vmatpush1.bf16.msra.mxu0 %v718
  %832 = vmatprep.subr.bf16.mxu0 %v715
  %833 = vmatpush1.bf16.msra.mxu0 %v714
  %834 = vmatprep.subr.bf16.mxu0 %v711
  %835 = vmatpush1.bf16.msra.mxu0 %v710
  %836 = vmatprep.subr.bf16.mxu0 %v707
  %837 = vmatpush1.bf16.msra.mxu0 %v706
  %838 = vmatprep.subr.bf16.mxu0 %v703
  %839 = vmatpush1.bf16.msra.mxu0 %v702
  %840 = vmatprep.subr.bf16.mxu0 %v699
  %841 = vmatpush1.bf16.msra.mxu0 %v698
  %842 = vmatprep.subr.bf16.mxu0 %v759
  %843 = vmatpush2.bf16.msra.mxu0 %v758
  %844 = vmatprep.subr.bf16.mxu0 %v755
  %845 = vmatpush2.bf16.msra.mxu0 %v754
  %846 = vmatprep.subr.bf16.mxu0 %v751
  %847 = vmatpush2.bf16.msra.mxu0 %v750
  %848 = vmatprep.subr.bf16.mxu0 %v747
  %849 = vmatpush2.bf16.msra.mxu0 %v746
  %850 = vmatprep.subr.bf16.mxu0 %v743
  %851 = vmatpush2.bf16.msra.mxu0 %v742
  %852 = vmatprep.subr.bf16.mxu0 %v739
  %853 = vmatpush2.bf16.msra.mxu0 %v738
  %854 = vmatprep.subr.bf16.mxu0 %v735
  %855 = vmatpush2.bf16.msra.mxu0 %v734
  %856 = vmatprep.subr.bf16.mxu0 %v731
  %857 = vmatpush2.bf16.msra.mxu0 %v730
  %858 = vmatprep.mubr.bf16.mxu0 %v439
  %859 = vmatmul.mubr.bf16.gmra.mxu0 %v438
  %v860 = vpop.f32.mrf.mxu0
  %v861 = vadd.f32 0.0, %v860
  %v862 = vpop.f32.mrf.mxu0
  %v863 = vadd.f32 0.0, %v862
  %v864 = vpop.f32.mrf.mxu0
  %v865 = vadd.f32 0.0, %v864
  %v866 = vpop.f32.mrf.mxu0
  %v867 = vadd.f32 0.0, %v866
  %868 = vmatprep.mubr.bf16.mxu0 %v441
  %869 = vmatmul.mubr.bf16.gmra.mxu0 %v440
  %v870 = vpop.f32.mrf.mxu0
  %v871 = vadd.f32 0.0, %v870
  %v872 = vpop.f32.mrf.mxu0
  %v873 = vadd.f32 0.0, %v872
  %v874 = vpop.f32.mrf.mxu0
  %v875 = vadd.f32 0.0, %v874
  %v876 = vpop.f32.mrf.mxu0
  %v877 = vadd.f32 0.0, %v876
  %878 = vdwg.mxu0
  %879 = vmatprep.subr.bf16.mxu0 %v729
  %880 = vmatpush1.bf16.msra.mxu0 %v728
  %881 = vmatprep.subr.bf16.mxu0 %v725
  %882 = vmatpush1.bf16.msra.mxu0 %v724
  %883 = vmatprep.subr.bf16.mxu0 %v721
  %884 = vmatpush1.bf16.msra.mxu0 %v720
  %885 = vmatprep.subr.bf16.mxu0 %v717
  %886 = vmatpush1.bf16.msra.mxu0 %v716
  %887 = vmatprep.subr.bf16.mxu0 %v713
  %888 = vmatpush1.bf16.msra.mxu0 %v712
  %889 = vmatprep.subr.bf16.mxu0 %v709
  %890 = vmatpush1.bf16.msra.mxu0 %v708
  %891 = vmatprep.subr.bf16.mxu0 %v705
  %892 = vmatpush1.bf16.msra.mxu0 %v704
  %893 = vmatprep.subr.bf16.mxu0 %v701
  %894 = vmatpush1.bf16.msra.mxu0 %v700
  %895 = vmatprep.subr.bf16.mxu0 %v761
  %896 = vmatpush2.bf16.msra.mxu0 %v760
  %897 = vmatprep.subr.bf16.mxu0 %v757
  %898 = vmatpush2.bf16.msra.mxu0 %v756
  %899 = vmatprep.subr.bf16.mxu0 %v753
  %900 = vmatpush2.bf16.msra.mxu0 %v752
  %901 = vmatprep.subr.bf16.mxu0 %v749
  %902 = vmatpush2.bf16.msra.mxu0 %v748
  %903 = vmatprep.subr.bf16.mxu0 %v745
  %904 = vmatpush2.bf16.msra.mxu0 %v744
  %905 = vmatprep.subr.bf16.mxu0 %v741
  %906 = vmatpush2.bf16.msra.mxu0 %v740
  %907 = vmatprep.subr.bf16.mxu0 %v737
  %908 = vmatpush2.bf16.msra.mxu0 %v736
  %909 = vmatprep.subr.bf16.mxu0 %v733
  %910 = vmatpush2.bf16.msra.mxu0 %v732
  %911 = vmatprep.mubr.bf16.mxu0 %v439
  %912 = vmatmul.mubr.bf16.gmra.mxu0 %v438
  %v913 = vpop.f32.mrf.mxu0
  %v914 = vadd.f32 0.0, %v913
  %v915 = vpop.f32.mrf.mxu0
  %v916 = vadd.f32 0.0, %v915
  %v917 = vpop.f32.mrf.mxu0
  %v918 = vadd.f32 0.0, %v917
  %v919 = vpop.f32.mrf.mxu0
  %v920 = vadd.f32 0.0, %v919
  %921 = vmatprep.mubr.bf16.mxu0 %v441
  %922 = vmatmul.mubr.bf16.gmra.mxu0 %v440
  %v923 = vpop.f32.mrf.mxu0
  %v924 = vadd.f32 0.0, %v923
  %v925 = vpop.f32.mrf.mxu0
  %v926 = vadd.f32 0.0, %v925
  %v927 = vpop.f32.mrf.mxu0
  %v928 = vadd.f32 0.0, %v927
  %v929 = vpop.f32.mrf.mxu0
  %v930 = vadd.f32 0.0, %v929
  %931 = vdwg.mxu0
  %v932 = vld [vmem:[%s5] sm:$0xf]
  %v934 = vlaneseq
  %v935 = vshrl.u32 %v934, 7
  %v936 = vsub.s32 0, %v935
  %v937 = vrot.slane %v932, %v936
  %v938 = vlaneseq
  %v939 = vshrl.u32 %v938, 7
  %v940 = vsub.s32 1, %v939
  %v941 = vrot.slane %v932, %v940
  %v942 = vlaneseq
  %v943 = vshrl.u32 %v942, 7
  %v944 = vsub.s32 2, %v943
  %v945 = vrot.slane %v932, %v944
  %v946 = vlaneseq
  %v947 = vshrl.u32 %v946, 7
  %v948 = vsub.s32 3, %v947
  %v949 = vrot.slane %v932, %v948
  %v954 = vmul.f32 %v861, %v937
  %v955 = vmul.f32 %v863, %v941
  %v956 = vmul.f32 %v914, %v945
  %v957 = vmul.f32 %v916, %v949
  %v958 = vmul.f32 %v865, %v937
  %v959 = vmul.f32 %v867, %v941
  %v960 = vmul.f32 %v918, %v945
  %v961 = vmul.f32 %v920, %v949
  %v962 = vmul.f32 %v871, %v937
  %v963 = vmul.f32 %v873, %v941
  %v964 = vmul.f32 %v924, %v945
  %v965 = vmul.f32 %v926, %v949
  %v966 = vmul.f32 %v875, %v937
  %v967 = vmul.f32 %v877, %v941
  %v968 = vmul.f32 %v928, %v945
  %v969 = vmul.f32 %v930, %v949
  %v970 = vld [vmem:[%s6] sm:$0xf]
  %v972 = vlaneseq
  %v973 = vshrl.u32 %v972, 7
  %v974 = vsub.s32 0, %v973
  %v975 = vrot.slane %v970, %v974
  %v976 = vlaneseq
  %v977 = vshrl.u32 %v976, 7
  %v978 = vsub.s32 1, %v977
  %v979 = vrot.slane %v970, %v978
  %v980 = vlaneseq
  %v981 = vshrl.u32 %v980, 7
  %v982 = vsub.s32 2, %v981
  %v983 = vrot.slane %v970, %v982
  %v984 = vlaneseq
  %v985 = vshrl.u32 %v984, 7
  %v986 = vsub.s32 3, %v985
  %v987 = vrot.slane %v970, %v986
  %v992 = vadd.f32 %v954, %v975
  %v993 = vadd.f32 %v955, %v979
  %v994 = vadd.f32 %v956, %v983
  %v995 = vadd.f32 %v957, %v987
  %v996 = vadd.f32 %v958, %v975
  %v997 = vadd.f32 %v959, %v979
  %v998 = vadd.f32 %v960, %v983
  %v999 = vadd.f32 %v961, %v987
  %v1000 = vadd.f32 %v962, %v975
  %v1001 = vadd.f32 %v963, %v979
  %v1002 = vadd.f32 %v964, %v983
  %v1003 = vadd.f32 %v965, %v987
  %v1004 = vadd.f32 %v966, %v975
  %v1005 = vadd.f32 %v967, %v979
  %v1006 = vadd.f32 %v968, %v983
  %v1007 = vadd.f32 %v969, %v987
  %v1008 = vmax.f32 %v992, 0.0
  %v1009 = vmax.f32 %v993, 0.0
  %v1010 = vmax.f32 %v994, 0.0
  %v1011 = vmax.f32 %v995, 0.0
  %v1012 = vmax.f32 %v996, 0.0
  %v1013 = vmax.f32 %v997, 0.0
  %v1014 = vmax.f32 %v998, 0.0
  %v1015 = vmax.f32 %v999, 0.0
  %v1016 = vmax.f32 %v1000, 0.0
  %v1017 = vmax.f32 %v1001, 0.0
  %v1018 = vmax.f32 %v1002, 0.0
  %v1019 = vmax.f32 %v1003, 0.0
  %v1020 = vmax.f32 %v1004, 0.0
  %v1021 = vmax.f32 %v1005, 0.0
  %v1022 = vmax.f32 %v1006, 0.0
  %v1023 = vmax.f32 %v1007, 0.0
  %v1024 = vpack.c.bf16 %v1012, %v1008
  %v1025 = vpack.c.bf16 %v1013, %v1009
  %v1026 = vpack.c.bf16 %v1014, %v1010
  %v1027 = vpack.c.bf16 %v1015, %v1011
  %v1028 = vpack.c.bf16 %v1020, %v1016
  %v1029 = vpack.c.bf16 %v1021, %v1017
  %v1030 = vpack.c.bf16 %v1022, %v1018
  %v1031 = vpack.c.bf16 %v1023, %v1019
  %v1032 = vld [vmem:[%s7] sm:$0xff]
  %v1033 = vld [vmem:[%s7 + $0x8] sm:$0xff]
  %v1034 = vld [vmem:[%s7 + $0x10] sm:$0xff]
  %v1035 = vld [vmem:[%s7 + $0x18] sm:$0xff]
  %v1036 = vld [vmem:[%s7 + $0x20] sm:$0xff]
  %v1037 = vld [vmem:[%s7 + $0x28] sm:$0xff]
  %v1038 = vld [vmem:[%s7 + $0x30] sm:$0xff]
  %v1039 = vld [vmem:[%s7 + $0x38] sm:$0xff]
  %v1040 = vld [vmem:[%s7 + $0x40] sm:$0xff]
  %v1041 = vld [vmem:[%s7 + $0x48] sm:$0xff]
  %v1042 = vld [vmem:[%s7 + $0x50] sm:$0xff]
  %v1043 = vld [vmem:[%s7 + $0x58] sm:$0xff]
  %v1044 = vld [vmem:[%s7 + $0x60] sm:$0xff]
  %v1045 = vld [vmem:[%s7 + $0x68] sm:$0xff]
  %v1046 = vld [vmem:[%s7 + $0x70] sm:$0xff]
  %v1047 = vld [vmem:[%s7 + $0x78] sm:$0xff]
  %v1048 = vld [vmem:[%s7 + $0x80] sm:$0xff]
  %v1049 = vld [vmem:[%s7 + $0x88] sm:$0xff]
  %v1050 = vld [vmem:[%s7 + $0x90] sm:$0xff]
  %v1051 = vld [vmem:[%s7 + $0x98] sm:$0xff]
  %v1052 = vld [vmem:[%s7 + $0xa0] sm:$0xff]
  %v1053 = vld [vmem:[%s7 + $0xa8] sm:$0xff]
  %v1054 = vld [vmem:[%s7 + $0xb0] sm:$0xff]
  %v1055 = vld [vmem:[%s7 + $0xb8] sm:$0xff]
  %v1056 = vld [vmem:[%s7 + $0xc0] sm:$0xff]
  %v1057 = vld [vmem:[%s7 + $0xc8] sm:$0xff]
  %v1058 = vld [vmem:[%s7 + $0xd0] sm:$0xff]
  %v1059 = vld [vmem:[%s7 + $0xd8] sm:$0xff]
  %v1060 = vld [vmem:[%s7 + $0xe0] sm:$0xff]
  %v1061 = vld [vmem:[%s7 + $0xe8] sm:$0xff]
  %v1062 = vld [vmem:[%s7 + $0xf0] sm:$0xff]
  %v1063 = vld [vmem:[%s7 + $0xf8] sm:$0xff]
  %v1064 = vld [vmem:[%s7 + $0x100] sm:$0xff]
  %v1065 = vld [vmem:[%s7 + $0x108] sm:$0xff]
  %v1066 = vld [vmem:[%s7 + $0x110] sm:$0xff]
  %v1067 = vld [vmem:[%s7 + $0x118] sm:$0xff]
  %v1068 = vld [vmem:[%s7 + $0x120] sm:$0xff]
  %v1069 = vld [vmem:[%s7 + $0x128] sm:$0xff]
  %v1070 = vld [vmem:[%s7 + $0x130] sm:$0xff]
  %v1071 = vld [vmem:[%s7 + $0x138] sm:$0xff]
  %v1072 = vld [vmem:[%s7 + $0x140] sm:$0xff]
  %v1073 = vld [vmem:[%s7 + $0x148] sm:$0xff]
  %v1074 = vld [vmem:[%s7 + $0x150] sm:$0xff]
  %v1075 = vld [vmem:[%s7 + $0x158] sm:$0xff]
  %v1076 = vld [vmem:[%s7 + $0x160] sm:$0xff]
  %v1077 = vld [vmem:[%s7 + $0x168] sm:$0xff]
  %v1078 = vld [vmem:[%s7 + $0x170] sm:$0xff]
  %v1079 = vld [vmem:[%s7 + $0x178] sm:$0xff]
  %v1080 = vld [vmem:[%s7 + $0x180] sm:$0xff]
  %v1081 = vld [vmem:[%s7 + $0x188] sm:$0xff]
  %v1082 = vld [vmem:[%s7 + $0x190] sm:$0xff]
  %v1083 = vld [vmem:[%s7 + $0x198] sm:$0xff]
  %v1084 = vld [vmem:[%s7 + $0x1a0] sm:$0xff]
  %v1085 = vld [vmem:[%s7 + $0x1a8] sm:$0xff]
  %v1086 = vld [vmem:[%s7 + $0x1b0] sm:$0xff]
  %v1087 = vld [vmem:[%s7 + $0x1b8] sm:$0xff]
  %v1088 = vld [vmem:[%s7 + $0x1c0] sm:$0xff]
  %v1089 = vld [vmem:[%s7 + $0x1c8] sm:$0xff]
  %v1090 = vld [vmem:[%s7 + $0x1d0] sm:$0xff]
  %v1091 = vld [vmem:[%s7 + $0x1d8] sm:$0xff]
  %v1092 = vld [vmem:[%s7 + $0x1e0] sm:$0xff]
  %v1093 = vld [vmem:[%s7 + $0x1e8] sm:$0xff]
  %v1094 = vld [vmem:[%s7 + $0x1f0] sm:$0xff]
  %v1095 = vld [vmem:[%s7 + $0x1f8] sm:$0xff]
  %v1096 = vld [vmem:[%s7 + $0x200] sm:$0xff]
  %v1097 = vld [vmem:[%s7 + $0x208] sm:$0xff]
  %v1098 = vld [vmem:[%s7 + $0x210] sm:$0xff]
  %v1099 = vld [vmem:[%s7 + $0x218] sm:$0xff]
  %v1100 = vld [vmem:[%s7 + $0x220] sm:$0xff]
  %v1101 = vld [vmem:[%s7 + $0x228] sm:$0xff]
  %v1102 = vld [vmem:[%s7 + $0x230] sm:$0xff]
  %v1103 = vld [vmem:[%s7 + $0x238] sm:$0xff]
  %v1104 = vld [vmem:[%s7 + $0x240] sm:$0xff]
  %v1105 = vld [vmem:[%s7 + $0x248] sm:$0xff]
  %v1106 = vld [vmem:[%s7 + $0x250] sm:$0xff]
  %v1107 = vld [vmem:[%s7 + $0x258] sm:$0xff]
  %v1108 = vld [vmem:[%s7 + $0x260] sm:$0xff]
  %v1109 = vld [vmem:[%s7 + $0x268] sm:$0xff]
  %v1110 = vld [vmem:[%s7 + $0x270] sm:$0xff]
  %v1111 = vld [vmem:[%s7 + $0x278] sm:$0xff]
  %v1112 = vld [vmem:[%s7 + $0x280] sm:$0xff]
  %v1113 = vld [vmem:[%s7 + $0x288] sm:$0xff]
  %v1114 = vld [vmem:[%s7 + $0x290] sm:$0xff]
  %v1115 = vld [vmem:[%s7 + $0x298] sm:$0xff]
  %v1116 = vld [vmem:[%s7 + $0x2a0] sm:$0xff]
  %v1117 = vld [vmem:[%s7 + $0x2a8] sm:$0xff]
  %v1118 = vld [vmem:[%s7 + $0x2b0] sm:$0xff]
  %v1119 = vld [vmem:[%s7 + $0x2b8] sm:$0xff]
  %v1120 = vld [vmem:[%s7 + $0x2c0] sm:$0xff]
  %v1121 = vld [vmem:[%s7 + $0x2c8] sm:$0xff]
  %v1122 = vld [vmem:[%s7 + $0x2d0] sm:$0xff]
  %v1123 = vld [vmem:[%s7 + $0x2d8] sm:$0xff]
  %v1124 = vld [vmem:[%s7 + $0x2e0] sm:$0xff]
  %v1125 = vld [vmem:[%s7 + $0x2e8] sm:$0xff]
  %v1126 = vld [vmem:[%s7 + $0x2f0] sm:$0xff]
  %v1127 = vld [vmem:[%s7 + $0x2f8] sm:$0xff]
  %v1128 = vld [vmem:[%s7 + $0x300] sm:$0xff]
  %v1129 = vld [vmem:[%s7 + $0x308] sm:$0xff]
  %v1130 = vld [vmem:[%s7 + $0x310] sm:$0xff]
  %v1131 = vld [vmem:[%s7 + $0x318] sm:$0xff]
  %v1132 = vld [vmem:[%s7 + $0x320] sm:$0xff]
  %v1133 = vld [vmem:[%s7 + $0x328] sm:$0xff]
  %v1134 = vld [vmem:[%s7 + $0x330] sm:$0xff]
  %v1135 = vld [vmem:[%s7 + $0x338] sm:$0xff]
  %v1136 = vld [vmem:[%s7 + $0x340] sm:$0xff]
  %v1137 = vld [vmem:[%s7 + $0x348] sm:$0xff]
  %v1138 = vld [vmem:[%s7 + $0x350] sm:$0xff]
  %v1139 = vld [vmem:[%s7 + $0x358] sm:$0xff]
  %v1140 = vld [vmem:[%s7 + $0x360] sm:$0xff]
  %v1141 = vld [vmem:[%s7 + $0x368] sm:$0xff]
  %v1142 = vld [vmem:[%s7 + $0x370] sm:$0xff]
  %v1143 = vld [vmem:[%s7 + $0x378] sm:$0xff]
  %v1144 = vld [vmem:[%s7 + $0x380] sm:$0xff]
  %v1145 = vld [vmem:[%s7 + $0x388] sm:$0xff]
  %v1146 = vld [vmem:[%s7 + $0x390] sm:$0xff]
  %v1147 = vld [vmem:[%s7 + $0x398] sm:$0xff]
  %v1148 = vld [vmem:[%s7 + $0x3a0] sm:$0xff]
  %v1149 = vld [vmem:[%s7 + $0x3a8] sm:$0xff]
  %v1150 = vld [vmem:[%s7 + $0x3b0] sm:$0xff]
  %v1151 = vld [vmem:[%s7 + $0x3b8] sm:$0xff]
  %v1152 = vld [vmem:[%s7 + $0x3c0] sm:$0xff]
  %v1153 = vld [vmem:[%s7 + $0x3c8] sm:$0xff]
  %v1154 = vld [vmem:[%s7 + $0x3d0] sm:$0xff]
  %v1155 = vld [vmem:[%s7 + $0x3d8] sm:$0xff]
  %v1156 = vld [vmem:[%s7 + $0x3e0] sm:$0xff]
  %v1157 = vld [vmem:[%s7 + $0x3e8] sm:$0xff]
  %v1158 = vld [vmem:[%s7 + $0x3f0] sm:$0xff]
  %v1159 = vld [vmem:[%s7 + $0x3f8] sm:$0xff]
  %v1160 = vld [vmem:[%s7 + $0x400] sm:$0xff]
  %v1161 = vld [vmem:[%s7 + $0x408] sm:$0xff]
  %v1162 = vld [vmem:[%s7 + $0x410] sm:$0xff]
  %v1163 = vld [vmem:[%s7 + $0x418] sm:$0xff]
  %v1164 = vld [vmem:[%s7 + $0x420] sm:$0xff]
  %v1165 = vld [vmem:[%s7 + $0x428] sm:$0xff]
  %v1166 = vld [vmem:[%s7 + $0x430] sm:$0xff]
  %v1167 = vld [vmem:[%s7 + $0x438] sm:$0xff]
  %v1168 = vld [vmem:[%s7 + $0x440] sm:$0xff]
  %v1169 = vld [vmem:[%s7 + $0x448] sm:$0xff]
  %v1170 = vld [vmem:[%s7 + $0x450] sm:$0xff]
  %v1171 = vld [vmem:[%s7 + $0x458] sm:$0xff]
  %v1172 = vld [vmem:[%s7 + $0x460] sm:$0xff]
  %v1173 = vld [vmem:[%s7 + $0x468] sm:$0xff]
  %v1174 = vld [vmem:[%s7 + $0x470] sm:$0xff]
  %v1175 = vld [vmem:[%s7 + $0x478] sm:$0xff]
  %v1176 = vld [vmem:[%s7 + $0x480] sm:$0xff]
  %v1177 = vld [vmem:[%s7 + $0x488] sm:$0xff]
  %v1178 = vld [vmem:[%s7 + $0x490] sm:$0xff]
  %v1179 = vld [vmem:[%s7 + $0x498] sm:$0xff]
  %v1180 = vld [vmem:[%s7 + $0x4a0] sm:$0xff]
  %v1181 = vld [vmem:[%s7 + $0x4a8] sm:$0xff]
  %v1182 = vld [vmem:[%s7 + $0x4b0] sm:$0xff]
  %v1183 = vld [vmem:[%s7 + $0x4b8] sm:$0xff]
  %v1184 = vld [vmem:[%s7 + $0x4c0] sm:$0xff]
  %v1185 = vld [vmem:[%s7 + $0x4c8] sm:$0xff]
  %v1186 = vld [vmem:[%s7 + $0x4d0] sm:$0xff]
  %v1187 = vld [vmem:[%s7 + $0x4d8] sm:$0xff]
  %v1188 = vld [vmem:[%s7 + $0x4e0] sm:$0xff]
  %v1189 = vld [vmem:[%s7 + $0x4e8] sm:$0xff]
  %v1190 = vld [vmem:[%s7 + $0x4f0] sm:$0xff]
  %v1191 = vld [vmem:[%s7 + $0x4f8] sm:$0xff]
  %v1192 = vld [vmem:[%s7 + $0x500] sm:$0xff]
  %v1193 = vld [vmem:[%s7 + $0x508] sm:$0xff]
  %v1194 = vld [vmem:[%s7 + $0x510] sm:$0xff]
  %v1195 = vld [vmem:[%s7 + $0x518] sm:$0xff]
  %v1196 = vld [vmem:[%s7 + $0x520] sm:$0xff]
  %v1197 = vld [vmem:[%s7 + $0x528] sm:$0xff]
  %v1198 = vld [vmem:[%s7 + $0x530] sm:$0xff]
  %v1199 = vld [vmem:[%s7 + $0x538] sm:$0xff]
  %v1200 = vld [vmem:[%s7 + $0x540] sm:$0xff]
  %v1201 = vld [vmem:[%s7 + $0x548] sm:$0xff]
  %v1202 = vld [vmem:[%s7 + $0x550] sm:$0xff]
  %v1203 = vld [vmem:[%s7 + $0x558] sm:$0xff]
  %v1204 = vld [vmem:[%s7 + $0x560] sm:$0xff]
  %v1205 = vld [vmem:[%s7 + $0x568] sm:$0xff]
  %v1206 = vld [vmem:[%s7 + $0x570] sm:$0xff]
  %v1207 = vld [vmem:[%s7 + $0x578] sm:$0xff]
  %v1208 = vld [vmem:[%s7 + $0x580] sm:$0xff]
  %v1209 = vld [vmem:[%s7 + $0x588] sm:$0xff]
  %v1210 = vld [vmem:[%s7 + $0x590] sm:$0xff]
  %v1211 = vld [vmem:[%s7 + $0x598] sm:$0xff]
  %v1212 = vld [vmem:[%s7 + $0x5a0] sm:$0xff]
  %v1213 = vld [vmem:[%s7 + $0x5a8] sm:$0xff]
  %v1214 = vld [vmem:[%s7 + $0x5b0] sm:$0xff]
  %v1215 = vld [vmem:[%s7 + $0x5b8] sm:$0xff]
  %v1216 = vld [vmem:[%s7 + $0x5c0] sm:$0xff]
  %v1217 = vld [vmem:[%s7 + $0x5c8] sm:$0xff]
  %v1218 = vld [vmem:[%s7 + $0x5d0] sm:$0xff]
  %v1219 = vld [vmem:[%s7 + $0x5d8] sm:$0xff]
  %v1220 = vld [vmem:[%s7 + $0x5e0] sm:$0xff]
  %v1221 = vld [vmem:[%s7 + $0x5e8] sm:$0xff]
  %v1222 = vld [vmem:[%s7 + $0x5f0] sm:$0xff]
  %v1223 = vld [vmem:[%s7 + $0x5f8] sm:$0xff]
  %v1224 = vld [vmem:[%s7 + $0x600] sm:$0xff]
  %v1225 = vld [vmem:[%s7 + $0x608] sm:$0xff]
  %v1226 = vld [vmem:[%s7 + $0x610] sm:$0xff]
  %v1227 = vld [vmem:[%s7 + $0x618] sm:$0xff]
  %v1228 = vld [vmem:[%s7 + $0x620] sm:$0xff]
  %v1229 = vld [vmem:[%s7 + $0x628] sm:$0xff]
  %v1230 = vld [vmem:[%s7 + $0x630] sm:$0xff]
  %v1231 = vld [vmem:[%s7 + $0x638] sm:$0xff]
  %v1232 = vld [vmem:[%s7 + $0x640] sm:$0xff]
  %v1233 = vld [vmem:[%s7 + $0x648] sm:$0xff]
  %v1234 = vld [vmem:[%s7 + $0x650] sm:$0xff]
  %v1235 = vld [vmem:[%s7 + $0x658] sm:$0xff]
  %v1236 = vld [vmem:[%s7 + $0x660] sm:$0xff]
  %v1237 = vld [vmem:[%s7 + $0x668] sm:$0xff]
  %v1238 = vld [vmem:[%s7 + $0x670] sm:$0xff]
  %v1239 = vld [vmem:[%s7 + $0x678] sm:$0xff]
  %v1240 = vld [vmem:[%s7 + $0x680] sm:$0xff]
  %v1241 = vld [vmem:[%s7 + $0x688] sm:$0xff]
  %v1242 = vld [vmem:[%s7 + $0x690] sm:$0xff]
  %v1243 = vld [vmem:[%s7 + $0x698] sm:$0xff]
  %v1244 = vld [vmem:[%s7 + $0x6a0] sm:$0xff]
  %v1245 = vld [vmem:[%s7 + $0x6a8] sm:$0xff]
  %v1246 = vld [vmem:[%s7 + $0x6b0] sm:$0xff]
  %v1247 = vld [vmem:[%s7 + $0x6b8] sm:$0xff]
  %v1248 = vld [vmem:[%s7 + $0x6c0] sm:$0xff]
  %v1249 = vld [vmem:[%s7 + $0x6c8] sm:$0xff]
  %v1250 = vld [vmem:[%s7 + $0x6d0] sm:$0xff]
  %v1251 = vld [vmem:[%s7 + $0x6d8] sm:$0xff]
  %v1252 = vld [vmem:[%s7 + $0x6e0] sm:$0xff]
  %v1253 = vld [vmem:[%s7 + $0x6e8] sm:$0xff]
  %v1254 = vld [vmem:[%s7 + $0x6f0] sm:$0xff]
  %v1255 = vld [vmem:[%s7 + $0x6f8] sm:$0xff]
  %v1256 = vld [vmem:[%s7 + $0x700] sm:$0xff]
  %v1257 = vld [vmem:[%s7 + $0x708] sm:$0xff]
  %v1258 = vld [vmem:[%s7 + $0x710] sm:$0xff]
  %v1259 = vld [vmem:[%s7 + $0x718] sm:$0xff]
  %v1260 = vld [vmem:[%s7 + $0x720] sm:$0xff]
  %v1261 = vld [vmem:[%s7 + $0x728] sm:$0xff]
  %v1262 = vld [vmem:[%s7 + $0x730] sm:$0xff]
  %v1263 = vld [vmem:[%s7 + $0x738] sm:$0xff]
  %v1264 = vld [vmem:[%s7 + $0x740] sm:$0xff]
  %v1265 = vld [vmem:[%s7 + $0x748] sm:$0xff]
  %v1266 = vld [vmem:[%s7 + $0x750] sm:$0xff]
  %v1267 = vld [vmem:[%s7 + $0x758] sm:$0xff]
  %v1268 = vld [vmem:[%s7 + $0x760] sm:$0xff]
  %v1269 = vld [vmem:[%s7 + $0x768] sm:$0xff]
  %v1270 = vld [vmem:[%s7 + $0x770] sm:$0xff]
  %v1271 = vld [vmem:[%s7 + $0x778] sm:$0xff]
  %v1272 = vld [vmem:[%s7 + $0x780] sm:$0xff]
  %v1273 = vld [vmem:[%s7 + $0x788] sm:$0xff]
  %v1274 = vld [vmem:[%s7 + $0x790] sm:$0xff]
  %v1275 = vld [vmem:[%s7 + $0x798] sm:$0xff]
  %v1276 = vld [vmem:[%s7 + $0x7a0] sm:$0xff]
  %v1277 = vld [vmem:[%s7 + $0x7a8] sm:$0xff]
  %v1278 = vld [vmem:[%s7 + $0x7b0] sm:$0xff]
  %v1279 = vld [vmem:[%s7 + $0x7b8] sm:$0xff]
  %v1280 = vld [vmem:[%s7 + $0x7c0] sm:$0xff]
  %v1281 = vld [vmem:[%s7 + $0x7c8] sm:$0xff]
  %v1282 = vld [vmem:[%s7 + $0x7d0] sm:$0xff]
  %v1283 = vld [vmem:[%s7 + $0x7d8] sm:$0xff]
  %v1284 = vld [vmem:[%s7 + $0x7e0] sm:$0xff]
  %v1285 = vld [vmem:[%s7 + $0x7e8] sm:$0xff]
  %v1286 = vld [vmem:[%s7 + $0x7f0] sm:$0xff]
  %v1287 = vld [vmem:[%s7 + $0x7f8] sm:$0xff]
  %v1544 = vunpack.c.l.b16 %v1032
  %v1545 = vunpack.c.h.b16 %v1032
  %v1546 = vunpack.c.l.b16 %v1033
  %v1547 = vunpack.c.h.b16 %v1033
  %v1548 = vunpack.c.l.b16 %v1034
  %v1549 = vunpack.c.h.b16 %v1034
  %v1550 = vunpack.c.l.b16 %v1035
  %v1551 = vunpack.c.h.b16 %v1035
  %v1552 = vunpack.c.l.b16 %v1036
  %v1553 = vunpack.c.h.b16 %v1036
  %v1554 = vunpack.c.l.b16 %v1037
  %v1555 = vunpack.c.h.b16 %v1037
  %v1556 = vunpack.c.l.b16 %v1038
  %v1557 = vunpack.c.h.b16 %v1038
  %v1558 = vunpack.c.l.b16 %v1039
  %v1559 = vunpack.c.h.b16 %v1039
  %v1560 = vunpack.c.l.b16 %v1040
  %v1561 = vunpack.c.h.b16 %v1040
  %v1562 = vunpack.c.l.b16 %v1041
  %v1563 = vunpack.c.h.b16 %v1041
  %v1564 = vunpack.c.l.b16 %v1042
  %v1565 = vunpack.c.h.b16 %v1042
  %v1566 = vunpack.c.l.b16 %v1043
  %v1567 = vunpack.c.h.b16 %v1043
  %v1568 = vunpack.c.l.b16 %v1044
  %v1569 = vunpack.c.h.b16 %v1044
  %v1570 = vunpack.c.l.b16 %v1045
  %v1571 = vunpack.c.h.b16 %v1045
  %v1572 = vunpack.c.l.b16 %v1046
  %v1573 = vunpack.c.h.b16 %v1046
  %v1574 = vunpack.c.l.b16 %v1047
  %v1575 = vunpack.c.h.b16 %v1047
  %v1576 = vunpack.c.l.b16 %v1048
  %v1577 = vunpack.c.h.b16 %v1048
  %v1578 = vunpack.c.l.b16 %v1049
  %v1579 = vunpack.c.h.b16 %v1049
  %v1580 = vunpack.c.l.b16 %v1050
  %v1581 = vunpack.c.h.b16 %v1050
  %v1582 = vunpack.c.l.b16 %v1051
  %v1583 = vunpack.c.h.b16 %v1051
  %v1584 = vunpack.c.l.b16 %v1052
  %v1585 = vunpack.c.h.b16 %v1052
  %v1586 = vunpack.c.l.b16 %v1053
  %v1587 = vunpack.c.h.b16 %v1053
  %v1588 = vunpack.c.l.b16 %v1054
  %v1589 = vunpack.c.h.b16 %v1054
  %v1590 = vunpack.c.l.b16 %v1055
  %v1591 = vunpack.c.h.b16 %v1055
  %v1592 = vunpack.c.l.b16 %v1056
  %v1593 = vunpack.c.h.b16 %v1056
  %v1594 = vunpack.c.l.b16 %v1057
  %v1595 = vunpack.c.h.b16 %v1057
  %v1596 = vunpack.c.l.b16 %v1058
  %v1597 = vunpack.c.h.b16 %v1058
  %v1598 = vunpack.c.l.b16 %v1059
  %v1599 = vunpack.c.h.b16 %v1059
  %v1600 = vunpack.c.l.b16 %v1060
  %v1601 = vunpack.c.h.b16 %v1060
  %v1602 = vunpack.c.l.b16 %v1061
  %v1603 = vunpack.c.h.b16 %v1061
  %v1604 = vunpack.c.l.b16 %v1062
  %v1605 = vunpack.c.h.b16 %v1062
  %v1606 = vunpack.c.l.b16 %v1063
  %v1607 = vunpack.c.h.b16 %v1063
  %v1608 = vunpack.c.l.b16 %v1064
  %v1609 = vunpack.c.h.b16 %v1064
  %v1610 = vunpack.c.l.b16 %v1065
  %v1611 = vunpack.c.h.b16 %v1065
  %v1612 = vunpack.c.l.b16 %v1066
  %v1613 = vunpack.c.h.b16 %v1066
  %v1614 = vunpack.c.l.b16 %v1067
  %v1615 = vunpack.c.h.b16 %v1067
  %v1616 = vunpack.c.l.b16 %v1068
  %v1617 = vunpack.c.h.b16 %v1068
  %v1618 = vunpack.c.l.b16 %v1069
  %v1619 = vunpack.c.h.b16 %v1069
  %v1620 = vunpack.c.l.b16 %v1070
  %v1621 = vunpack.c.h.b16 %v1070
  %v1622 = vunpack.c.l.b16 %v1071
  %v1623 = vunpack.c.h.b16 %v1071
  %v1624 = vunpack.c.l.b16 %v1072
  %v1625 = vunpack.c.h.b16 %v1072
  %v1626 = vunpack.c.l.b16 %v1073
  %v1627 = vunpack.c.h.b16 %v1073
  %v1628 = vunpack.c.l.b16 %v1074
  %v1629 = vunpack.c.h.b16 %v1074
  %v1630 = vunpack.c.l.b16 %v1075
  %v1631 = vunpack.c.h.b16 %v1075
  %v1632 = vunpack.c.l.b16 %v1076
  %v1633 = vunpack.c.h.b16 %v1076
  %v1634 = vunpack.c.l.b16 %v1077
  %v1635 = vunpack.c.h.b16 %v1077
  %v1636 = vunpack.c.l.b16 %v1078
  %v1637 = vunpack.c.h.b16 %v1078
  %v1638 = vunpack.c.l.b16 %v1079
  %v1639 = vunpack.c.h.b16 %v1079
  %v1640 = vunpack.c.l.b16 %v1080
  %v1641 = vunpack.c.h.b16 %v1080
  %v1642 = vunpack.c.l.b16 %v1081
  %v1643 = vunpack.c.h.b16 %v1081
  %v1644 = vunpack.c.l.b16 %v1082
  %v1645 = vunpack.c.h.b16 %v1082
  %v1646 = vunpack.c.l.b16 %v1083
  %v1647 = vunpack.c.h.b16 %v1083
  %v1648 = vunpack.c.l.b16 %v1084
  %v1649 = vunpack.c.h.b16 %v1084
  %v1650 = vunpack.c.l.b16 %v1085
  %v1651 = vunpack.c.h.b16 %v1085
  %v1652 = vunpack.c.l.b16 %v1086
  %v1653 = vunpack.c.h.b16 %v1086
  %v1654 = vunpack.c.l.b16 %v1087
  %v1655 = vunpack.c.h.b16 %v1087
  %v1656 = vunpack.c.l.b16 %v1088
  %v1657 = vunpack.c.h.b16 %v1088
  %v1658 = vunpack.c.l.b16 %v1089
  %v1659 = vunpack.c.h.b16 %v1089
  %v1660 = vunpack.c.l.b16 %v1090
  %v1661 = vunpack.c.h.b16 %v1090
  %v1662 = vunpack.c.l.b16 %v1091
  %v1663 = vunpack.c.h.b16 %v1091
  %v1664 = vunpack.c.l.b16 %v1092
  %v1665 = vunpack.c.h.b16 %v1092
  %v1666 = vunpack.c.l.b16 %v1093
  %v1667 = vunpack.c.h.b16 %v1093
  %v1668 = vunpack.c.l.b16 %v1094
  %v1669 = vunpack.c.h.b16 %v1094
  %v1670 = vunpack.c.l.b16 %v1095
  %v1671 = vunpack.c.h.b16 %v1095
  %v1672 = vunpack.c.l.b16 %v1096
  %v1673 = vunpack.c.h.b16 %v1096
  %v1674 = vunpack.c.l.b16 %v1097
  %v1675 = vunpack.c.h.b16 %v1097
  %v1676 = vunpack.c.l.b16 %v1098
  %v1677 = vunpack.c.h.b16 %v1098
  %v1678 = vunpack.c.l.b16 %v1099
  %v1679 = vunpack.c.h.b16 %v1099
  %v1680 = vunpack.c.l.b16 %v1100
  %v1681 = vunpack.c.h.b16 %v1100
  %v1682 = vunpack.c.l.b16 %v1101
  %v1683 = vunpack.c.h.b16 %v1101
  %v1684 = vunpack.c.l.b16 %v1102
  %v1685 = vunpack.c.h.b16 %v1102
  %v1686 = vunpack.c.l.b16 %v1103
  %v1687 = vunpack.c.h.b16 %v1103
  %v1688 = vunpack.c.l.b16 %v1104
  %v1689 = vunpack.c.h.b16 %v1104
  %v1690 = vunpack.c.l.b16 %v1105
  %v1691 = vunpack.c.h.b16 %v1105
  %v1692 = vunpack.c.l.b16 %v1106
  %v1693 = vunpack.c.h.b16 %v1106
  %v1694 = vunpack.c.l.b16 %v1107
  %v1695 = vunpack.c.h.b16 %v1107
  %v1696 = vunpack.c.l.b16 %v1108
  %v1697 = vunpack.c.h.b16 %v1108
  %v1698 = vunpack.c.l.b16 %v1109
  %v1699 = vunpack.c.h.b16 %v1109
  %v1700 = vunpack.c.l.b16 %v1110
  %v1701 = vunpack.c.h.b16 %v1110
  %v1702 = vunpack.c.l.b16 %v1111
  %v1703 = vunpack.c.h.b16 %v1111
  %v1704 = vunpack.c.l.b16 %v1112
  %v1705 = vunpack.c.h.b16 %v1112
  %v1706 = vunpack.c.l.b16 %v1113
  %v1707 = vunpack.c.h.b16 %v1113
  %v1708 = vunpack.c.l.b16 %v1114
  %v1709 = vunpack.c.h.b16 %v1114
  %v1710 = vunpack.c.l.b16 %v1115
  %v1711 = vunpack.c.h.b16 %v1115
  %v1712 = vunpack.c.l.b16 %v1116
  %v1713 = vunpack.c.h.b16 %v1116
  %v1714 = vunpack.c.l.b16 %v1117
  %v1715 = vunpack.c.h.b16 %v1117
  %v1716 = vunpack.c.l.b16 %v1118
  %v1717 = vunpack.c.h.b16 %v1118
  %v1718 = vunpack.c.l.b16 %v1119
  %v1719 = vunpack.c.h.b16 %v1119
  %v1720 = vunpack.c.l.b16 %v1120
  %v1721 = vunpack.c.h.b16 %v1120
  %v1722 = vunpack.c.l.b16 %v1121
  %v1723 = vunpack.c.h.b16 %v1121
  %v1724 = vunpack.c.l.b16 %v1122
  %v1725 = vunpack.c.h.b16 %v1122
  %v1726 = vunpack.c.l.b16 %v1123
  %v1727 = vunpack.c.h.b16 %v1123
  %v1728 = vunpack.c.l.b16 %v1124
  %v1729 = vunpack.c.h.b16 %v1124
  %v1730 = vunpack.c.l.b16 %v1125
  %v1731 = vunpack.c.h.b16 %v1125
  %v1732 = vunpack.c.l.b16 %v1126
  %v1733 = vunpack.c.h.b16 %v1126
  %v1734 = vunpack.c.l.b16 %v1127
  %v1735 = vunpack.c.h.b16 %v1127
  %v1736 = vunpack.c.l.b16 %v1128
  %v1737 = vunpack.c.h.b16 %v1128
  %v1738 = vunpack.c.l.b16 %v1129
  %v1739 = vunpack.c.h.b16 %v1129
  %v1740 = vunpack.c.l.b16 %v1130
  %v1741 = vunpack.c.h.b16 %v1130
  %v1742 = vunpack.c.l.b16 %v1131
  %v1743 = vunpack.c.h.b16 %v1131
  %v1744 = vunpack.c.l.b16 %v1132
  %v1745 = vunpack.c.h.b16 %v1132
  %v1746 = vunpack.c.l.b16 %v1133
  %v1747 = vunpack.c.h.b16 %v1133
  %v1748 = vunpack.c.l.b16 %v1134
  %v1749 = vunpack.c.h.b16 %v1134
  %v1750 = vunpack.c.l.b16 %v1135
  %v1751 = vunpack.c.h.b16 %v1135
  %v1752 = vunpack.c.l.b16 %v1136
  %v1753 = vunpack.c.h.b16 %v1136
  %v1754 = vunpack.c.l.b16 %v1137
  %v1755 = vunpack.c.h.b16 %v1137
  %v1756 = vunpack.c.l.b16 %v1138
  %v1757 = vunpack.c.h.b16 %v1138
  %v1758 = vunpack.c.l.b16 %v1139
  %v1759 = vunpack.c.h.b16 %v1139
  %v1760 = vunpack.c.l.b16 %v1140
  %v1761 = vunpack.c.h.b16 %v1140
  %v1762 = vunpack.c.l.b16 %v1141
  %v1763 = vunpack.c.h.b16 %v1141
  %v1764 = vunpack.c.l.b16 %v1142
  %v1765 = vunpack.c.h.b16 %v1142
  %v1766 = vunpack.c.l.b16 %v1143
  %v1767 = vunpack.c.h.b16 %v1143
  %v1768 = vunpack.c.l.b16 %v1144
  %v1769 = vunpack.c.h.b16 %v1144
  %v1770 = vunpack.c.l.b16 %v1145
  %v1771 = vunpack.c.h.b16 %v1145
  %v1772 = vunpack.c.l.b16 %v1146
  %v1773 = vunpack.c.h.b16 %v1146
  %v1774 = vunpack.c.l.b16 %v1147
  %v1775 = vunpack.c.h.b16 %v1147
  %v1776 = vunpack.c.l.b16 %v1148
  %v1777 = vunpack.c.h.b16 %v1148
  %v1778 = vunpack.c.l.b16 %v1149
  %v1779 = vunpack.c.h.b16 %v1149
  %v1780 = vunpack.c.l.b16 %v1150
  %v1781 = vunpack.c.h.b16 %v1150
  %v1782 = vunpack.c.l.b16 %v1151
  %v1783 = vunpack.c.h.b16 %v1151
  %v1784 = vunpack.c.l.b16 %v1152
  %v1785 = vunpack.c.h.b16 %v1152
  %v1786 = vunpack.c.l.b16 %v1153
  %v1787 = vunpack.c.h.b16 %v1153
  %v1788 = vunpack.c.l.b16 %v1154
  %v1789 = vunpack.c.h.b16 %v1154
  %v1790 = vunpack.c.l.b16 %v1155
  %v1791 = vunpack.c.h.b16 %v1155
  %v1792 = vunpack.c.l.b16 %v1156
  %v1793 = vunpack.c.h.b16 %v1156
  %v1794 = vunpack.c.l.b16 %v1157
  %v1795 = vunpack.c.h.b16 %v1157
  %v1796 = vunpack.c.l.b16 %v1158
  %v1797 = vunpack.c.h.b16 %v1158
  %v1798 = vunpack.c.l.b16 %v1159
  %v1799 = vunpack.c.h.b16 %v1159
  %v1800 = vunpack.c.l.b16 %v1160
  %v1801 = vunpack.c.h.b16 %v1160
  %v1802 = vunpack.c.l.b16 %v1161
  %v1803 = vunpack.c.h.b16 %v1161
  %v1804 = vunpack.c.l.b16 %v1162
  %v1805 = vunpack.c.h.b16 %v1162
  %v1806 = vunpack.c.l.b16 %v1163
  %v1807 = vunpack.c.h.b16 %v1163
  %v1808 = vunpack.c.l.b16 %v1164
  %v1809 = vunpack.c.h.b16 %v1164
  %v1810 = vunpack.c.l.b16 %v1165
  %v1811 = vunpack.c.h.b16 %v1165
  %v1812 = vunpack.c.l.b16 %v1166
  %v1813 = vunpack.c.h.b16 %v1166
  %v1814 = vunpack.c.l.b16 %v1167
  %v1815 = vunpack.c.h.b16 %v1167
  %v1816 = vunpack.c.l.b16 %v1168
  %v1817 = vunpack.c.h.b16 %v1168
  %v1818 = vunpack.c.l.b16 %v1169
  %v1819 = vunpack.c.h.b16 %v1169
  %v1820 = vunpack.c.l.b16 %v1170
  %v1821 = vunpack.c.h.b16 %v1170
  %v1822 = vunpack.c.l.b16 %v1171
  %v1823 = vunpack.c.h.b16 %v1171
  %v1824 = vunpack.c.l.b16 %v1172
  %v1825 = vunpack.c.h.b16 %v1172
  %v1826 = vunpack.c.l.b16 %v1173
  %v1827 = vunpack.c.h.b16 %v1173
  %v1828 = vunpack.c.l.b16 %v1174
  %v1829 = vunpack.c.h.b16 %v1174
  %v1830 = vunpack.c.l.b16 %v1175
  %v1831 = vunpack.c.h.b16 %v1175
  %v1832 = vunpack.c.l.b16 %v1176
  %v1833 = vunpack.c.h.b16 %v1176
  %v1834 = vunpack.c.l.b16 %v1177
  %v1835 = vunpack.c.h.b16 %v1177
  %v1836 = vunpack.c.l.b16 %v1178
  %v1837 = vunpack.c.h.b16 %v1178
  %v1838 = vunpack.c.l.b16 %v1179
  %v1839 = vunpack.c.h.b16 %v1179
  %v1840 = vunpack.c.l.b16 %v1180
  %v1841 = vunpack.c.h.b16 %v1180
  %v1842 = vunpack.c.l.b16 %v1181
  %v1843 = vunpack.c.h.b16 %v1181
  %v1844 = vunpack.c.l.b16 %v1182
  %v1845 = vunpack.c.h.b16 %v1182
  %v1846 = vunpack.c.l.b16 %v1183
  %v1847 = vunpack.c.h.b16 %v1183
  %v1848 = vunpack.c.l.b16 %v1184
  %v1849 = vunpack.c.h.b16 %v1184
  %v1850 = vunpack.c.l.b16 %v1185
  %v1851 = vunpack.c.h.b16 %v1185
  %v1852 = vunpack.c.l.b16 %v1186
  %v1853 = vunpack.c.h.b16 %v1186
  %v1854 = vunpack.c.l.b16 %v1187
  %v1855 = vunpack.c.h.b16 %v1187
  %v1856 = vunpack.c.l.b16 %v1188
  %v1857 = vunpack.c.h.b16 %v1188
  %v1858 = vunpack.c.l.b16 %v1189
  %v1859 = vunpack.c.h.b16 %v1189
  %v1860 = vunpack.c.l.b16 %v1190
  %v1861 = vunpack.c.h.b16 %v1190
  %v1862 = vunpack.c.l.b16 %v1191
  %v1863 = vunpack.c.h.b16 %v1191
  %v1864 = vunpack.c.l.b16 %v1192
  %v1865 = vunpack.c.h.b16 %v1192
  %v1866 = vunpack.c.l.b16 %v1193
  %v1867 = vunpack.c.h.b16 %v1193
  %v1868 = vunpack.c.l.b16 %v1194
  %v1869 = vunpack.c.h.b16 %v1194
  %v1870 = vunpack.c.l.b16 %v1195
  %v1871 = vunpack.c.h.b16 %v1195
  %v1872 = vunpack.c.l.b16 %v1196
  %v1873 = vunpack.c.h.b16 %v1196
  %v1874 = vunpack.c.l.b16 %v1197
  %v1875 = vunpack.c.h.b16 %v1197
  %v1876 = vunpack.c.l.b16 %v1198
  %v1877 = vunpack.c.h.b16 %v1198
  %v1878 = vunpack.c.l.b16 %v1199
  %v1879 = vunpack.c.h.b16 %v1199
  %v1880 = vunpack.c.l.b16 %v1200
  %v1881 = vunpack.c.h.b16 %v1200
  %v1882 = vunpack.c.l.b16 %v1201
  %v1883 = vunpack.c.h.b16 %v1201
  %v1884 = vunpack.c.l.b16 %v1202
  %v1885 = vunpack.c.h.b16 %v1202
  %v1886 = vunpack.c.l.b16 %v1203
  %v1887 = vunpack.c.h.b16 %v1203
  %v1888 = vunpack.c.l.b16 %v1204
  %v1889 = vunpack.c.h.b16 %v1204
  %v1890 = vunpack.c.l.b16 %v1205
  %v1891 = vunpack.c.h.b16 %v1205
  %v1892 = vunpack.c.l.b16 %v1206
  %v1893 = vunpack.c.h.b16 %v1206
  %v1894 = vunpack.c.l.b16 %v1207
  %v1895 = vunpack.c.h.b16 %v1207
  %v1896 = vunpack.c.l.b16 %v1208
  %v1897 = vunpack.c.h.b16 %v1208
  %v1898 = vunpack.c.l.b16 %v1209
  %v1899 = vunpack.c.h.b16 %v1209
  %v1900 = vunpack.c.l.b16 %v1210
  %v1901 = vunpack.c.h.b16 %v1210
  %v1902 = vunpack.c.l.b16 %v1211
  %v1903 = vunpack.c.h.b16 %v1211
  %v1904 = vunpack.c.l.b16 %v1212
  %v1905 = vunpack.c.h.b16 %v1212
  %v1906 = vunpack.c.l.b16 %v1213
  %v1907 = vunpack.c.h.b16 %v1213
  %v1908 = vunpack.c.l.b16 %v1214
  %v1909 = vunpack.c.h.b16 %v1214
  %v1910 = vunpack.c.l.b16 %v1215
  %v1911 = vunpack.c.h.b16 %v1215
  %v1912 = vunpack.c.l.b16 %v1216
  %v1913 = vunpack.c.h.b16 %v1216
  %v1914 = vunpack.c.l.b16 %v1217
  %v1915 = vunpack.c.h.b16 %v1217
  %v1916 = vunpack.c.l.b16 %v1218
  %v1917 = vunpack.c.h.b16 %v1218
  %v1918 = vunpack.c.l.b16 %v1219
  %v1919 = vunpack.c.h.b16 %v1219
  %v1920 = vunpack.c.l.b16 %v1220
  %v1921 = vunpack.c.h.b16 %v1220
  %v1922 = vunpack.c.l.b16 %v1221
  %v1923 = vunpack.c.h.b16 %v1221
  %v1924 = vunpack.c.l.b16 %v1222
  %v1925 = vunpack.c.h.b16 %v1222
  %v1926 = vunpack.c.l.b16 %v1223
  %v1927 = vunpack.c.h.b16 %v1223
  %v1928 = vunpack.c.l.b16 %v1224
  %v1929 = vunpack.c.h.b16 %v1224
  %v1930 = vunpack.c.l.b16 %v1225
  %v1931 = vunpack.c.h.b16 %v1225
  %v1932 = vunpack.c.l.b16 %v1226
  %v1933 = vunpack.c.h.b16 %v1226
  %v1934 = vunpack.c.l.b16 %v1227
  %v1935 = vunpack.c.h.b16 %v1227
  %v1936 = vunpack.c.l.b16 %v1228
  %v1937 = vunpack.c.h.b16 %v1228
  %v1938 = vunpack.c.l.b16 %v1229
  %v1939 = vunpack.c.h.b16 %v1229
  %v1940 = vunpack.c.l.b16 %v1230
  %v1941 = vunpack.c.h.b16 %v1230
  %v1942 = vunpack.c.l.b16 %v1231
  %v1943 = vunpack.c.h.b16 %v1231
  %v1944 = vunpack.c.l.b16 %v1232
  %v1945 = vunpack.c.h.b16 %v1232
  %v1946 = vunpack.c.l.b16 %v1233
  %v1947 = vunpack.c.h.b16 %v1233
  %v1948 = vunpack.c.l.b16 %v1234
  %v1949 = vunpack.c.h.b16 %v1234
  %v1950 = vunpack.c.l.b16 %v1235
  %v1951 = vunpack.c.h.b16 %v1235
  %v1952 = vunpack.c.l.b16 %v1236
  %v1953 = vunpack.c.h.b16 %v1236
  %v1954 = vunpack.c.l.b16 %v1237
  %v1955 = vunpack.c.h.b16 %v1237
  %v1956 = vunpack.c.l.b16 %v1238
  %v1957 = vunpack.c.h.b16 %v1238
  %v1958 = vunpack.c.l.b16 %v1239
  %v1959 = vunpack.c.h.b16 %v1239
  %v1960 = vunpack.c.l.b16 %v1240
  %v1961 = vunpack.c.h.b16 %v1240
  %v1962 = vunpack.c.l.b16 %v1241
  %v1963 = vunpack.c.h.b16 %v1241
  %v1964 = vunpack.c.l.b16 %v1242
  %v1965 = vunpack.c.h.b16 %v1242
  %v1966 = vunpack.c.l.b16 %v1243
  %v1967 = vunpack.c.h.b16 %v1243
  %v1968 = vunpack.c.l.b16 %v1244
  %v1969 = vunpack.c.h.b16 %v1244
  %v1970 = vunpack.c.l.b16 %v1245
  %v1971 = vunpack.c.h.b16 %v1245
  %v1972 = vunpack.c.l.b16 %v1246
  %v1973 = vunpack.c.h.b16 %v1246
  %v1974 = vunpack.c.l.b16 %v1247
  %v1975 = vunpack.c.h.b16 %v1247
  %v1976 = vunpack.c.l.b16 %v1248
  %v1977 = vunpack.c.h.b16 %v1248
  %v1978 = vunpack.c.l.b16 %v1249
  %v1979 = vunpack.c.h.b16 %v1249
  %v1980 = vunpack.c.l.b16 %v1250
  %v1981 = vunpack.c.h.b16 %v1250
  %v1982 = vunpack.c.l.b16 %v1251
  %v1983 = vunpack.c.h.b16 %v1251
  %v1984 = vunpack.c.l.b16 %v1252
  %v1985 = vunpack.c.h.b16 %v1252
  %v1986 = vunpack.c.l.b16 %v1253
  %v1987 = vunpack.c.h.b16 %v1253
  %v1988 = vunpack.c.l.b16 %v1254
  %v1989 = vunpack.c.h.b16 %v1254
  %v1990 = vunpack.c.l.b16 %v1255
  %v1991 = vunpack.c.h.b16 %v1255
  %v1992 = vunpack.c.l.b16 %v1256
  %v1993 = vunpack.c.h.b16 %v1256
  %v1994 = vunpack.c.l.b16 %v1257
  %v1995 = vunpack.c.h.b16 %v1257
  %v1996 = vunpack.c.l.b16 %v1258
  %v1997 = vunpack.c.h.b16 %v1258
  %v1998 = vunpack.c.l.b16 %v1259
  %v1999 = vunpack.c.h.b16 %v1259
  %v2000 = vunpack.c.l.b16 %v1260
  %v2001 = vunpack.c.h.b16 %v1260
  %v2002 = vunpack.c.l.b16 %v1261
  %v2003 = vunpack.c.h.b16 %v1261
  %v2004 = vunpack.c.l.b16 %v1262
  %v2005 = vunpack.c.h.b16 %v1262
  %v2006 = vunpack.c.l.b16 %v1263
  %v2007 = vunpack.c.h.b16 %v1263
  %v2008 = vunpack.c.l.b16 %v1264
  %v2009 = vunpack.c.h.b16 %v1264
  %v2010 = vunpack.c.l.b16 %v1265
  %v2011 = vunpack.c.h.b16 %v1265
  %v2012 = vunpack.c.l.b16 %v1266
  %v2013 = vunpack.c.h.b16 %v1266
  %v2014 = vunpack.c.l.b16 %v1267
  %v2015 = vunpack.c.h.b16 %v1267
  %v2016 = vunpack.c.l.b16 %v1268
  %v2017 = vunpack.c.h.b16 %v1268
  %v2018 = vunpack.c.l.b16 %v1269
  %v2019 = vunpack.c.h.b16 %v1269
  %v2020 = vunpack.c.l.b16 %v1270
  %v2021 = vunpack.c.h.b16 %v1270
  %v2022 = vunpack.c.l.b16 %v1271
  %v2023 = vunpack.c.h.b16 %v1271
  %v2024 = vunpack.c.l.b16 %v1272
  %v2025 = vunpack.c.h.b16 %v1272
  %v2026 = vunpack.c.l.b16 %v1273
  %v2027 = vunpack.c.h.b16 %v1273
  %v2028 = vunpack.c.l.b16 %v1274
  %v2029 = vunpack.c.h.b16 %v1274
  %v2030 = vunpack.c.l.b16 %v1275
  %v2031 = vunpack.c.h.b16 %v1275
  %v2032 = vunpack.c.l.b16 %v1276
  %v2033 = vunpack.c.h.b16 %v1276
  %v2034 = vunpack.c.l.b16 %v1277
  %v2035 = vunpack.c.h.b16 %v1277
  %v2036 = vunpack.c.l.b16 %v1278
  %v2037 = vunpack.c.h.b16 %v1278
  %v2038 = vunpack.c.l.b16 %v1279
  %v2039 = vunpack.c.h.b16 %v1279
  %v2040 = vunpack.c.l.b16 %v1280
  %v2041 = vunpack.c.h.b16 %v1280
  %v2042 = vunpack.c.l.b16 %v1281
  %v2043 = vunpack.c.h.b16 %v1281
  %v2044 = vunpack.c.l.b16 %v1282
  %v2045 = vunpack.c.h.b16 %v1282
  %v2046 = vunpack.c.l.b16 %v1283
  %v2047 = vunpack.c.h.b16 %v1283
  %v2048 = vunpack.c.l.b16 %v1284
  %v2049 = vunpack.c.h.b16 %v1284
  %v2050 = vunpack.c.l.b16 %v1285
  %v2051 = vunpack.c.h.b16 %v1285
  %v2052 = vunpack.c.l.b16 %v1286
  %v2053 = vunpack.c.h.b16 %v1286
  %v2054 = vunpack.c.l.b16 %v1287
  %v2055 = vunpack.c.h.b16 %v1287
  %v2056 = vpack.c.b16 %v1552, %v1544
  %v2057 = vpack.c.b16 %v1553, %v1545
  %v2058 = vpack.c.b16 %v1554, %v1546
  %v2059 = vpack.c.b16 %v1555, %v1547
  %v2060 = vpack.c.b16 %v1556, %v1548
  %v2061 = vpack.c.b16 %v1557, %v1549
  %v2062 = vpack.c.b16 %v1558, %v1550
  %v2063 = vpack.c.b16 %v1559, %v1551
  %v2064 = vpack.c.b16 %v1568, %v1560
  %v2065 = vpack.c.b16 %v1569, %v1561
  %v2066 = vpack.c.b16 %v1570, %v1562
  %v2067 = vpack.c.b16 %v1571, %v1563
  %v2068 = vpack.c.b16 %v1572, %v1564
  %v2069 = vpack.c.b16 %v1573, %v1565
  %v2070 = vpack.c.b16 %v1574, %v1566
  %v2071 = vpack.c.b16 %v1575, %v1567
  %v2072 = vpack.c.b16 %v1584, %v1576
  %v2073 = vpack.c.b16 %v1585, %v1577
  %v2074 = vpack.c.b16 %v1586, %v1578
  %v2075 = vpack.c.b16 %v1587, %v1579
  %v2076 = vpack.c.b16 %v1588, %v1580
  %v2077 = vpack.c.b16 %v1589, %v1581
  %v2078 = vpack.c.b16 %v1590, %v1582
  %v2079 = vpack.c.b16 %v1591, %v1583
  %v2080 = vpack.c.b16 %v1600, %v1592
  %v2081 = vpack.c.b16 %v1601, %v1593
  %v2082 = vpack.c.b16 %v1602, %v1594
  %v2083 = vpack.c.b16 %v1603, %v1595
  %v2084 = vpack.c.b16 %v1604, %v1596
  %v2085 = vpack.c.b16 %v1605, %v1597
  %v2086 = vpack.c.b16 %v1606, %v1598
  %v2087 = vpack.c.b16 %v1607, %v1599
  %v2088 = vpack.c.b16 %v1616, %v1608
  %v2089 = vpack.c.b16 %v1617, %v1609
  %v2090 = vpack.c.b16 %v1618, %v1610
  %v2091 = vpack.c.b16 %v1619, %v1611
  %v2092 = vpack.c.b16 %v1620, %v1612
  %v2093 = vpack.c.b16 %v1621, %v1613
  %v2094 = vpack.c.b16 %v1622, %v1614
  %v2095 = vpack.c.b16 %v1623, %v1615
  %v2096 = vpack.c.b16 %v1632, %v1624
  %v2097 = vpack.c.b16 %v1633, %v1625
  %v2098 = vpack.c.b16 %v1634, %v1626
  %v2099 = vpack.c.b16 %v1635, %v1627
  %v2100 = vpack.c.b16 %v1636, %v1628
  %v2101 = vpack.c.b16 %v1637, %v1629
  %v2102 = vpack.c.b16 %v1638, %v1630
  %v2103 = vpack.c.b16 %v1639, %v1631
  %v2104 = vpack.c.b16 %v1648, %v1640
  %v2105 = vpack.c.b16 %v1649, %v1641
  %v2106 = vpack.c.b16 %v1650, %v1642
  %v2107 = vpack.c.b16 %v1651, %v1643
  %v2108 = vpack.c.b16 %v1652, %v1644
  %v2109 = vpack.c.b16 %v1653, %v1645
  %v2110 = vpack.c.b16 %v1654, %v1646
  %v2111 = vpack.c.b16 %v1655, %v1647
  %v2112 = vpack.c.b16 %v1664, %v1656
  %v2113 = vpack.c.b16 %v1665, %v1657
  %v2114 = vpack.c.b16 %v1666, %v1658
  %v2115 = vpack.c.b16 %v1667, %v1659
  %v2116 = vpack.c.b16 %v1668, %v1660
  %v2117 = vpack.c.b16 %v1669, %v1661
  %v2118 = vpack.c.b16 %v1670, %v1662
  %v2119 = vpack.c.b16 %v1671, %v1663
  %v2120 = vpack.c.b16 %v1680, %v1672
  %v2121 = vpack.c.b16 %v1681, %v1673
  %v2122 = vpack.c.b16 %v1682, %v1674
  %v2123 = vpack.c.b16 %v1683, %v1675
  %v2124 = vpack.c.b16 %v1684, %v1676
  %v2125 = vpack.c.b16 %v1685, %v1677
  %v2126 = vpack.c.b16 %v1686, %v1678
  %v2127 = vpack.c.b16 %v1687, %v1679
  %v2128 = vpack.c.b16 %v1696, %v1688
  %v2129 = vpack.c.b16 %v1697, %v1689
  %v2130 = vpack.c.b16 %v1698, %v1690
  %v2131 = vpack.c.b16 %v1699, %v1691
  %v2132 = vpack.c.b16 %v1700, %v1692
  %v2133 = vpack.c.b16 %v1701, %v1693
  %v2134 = vpack.c.b16 %v1702, %v1694
  %v2135 = vpack.c.b16 %v1703, %v1695
  %v2136 = vpack.c.b16 %v1712, %v1704
  %v2137 = vpack.c.b16 %v1713, %v1705
  %v2138 = vpack.c.b16 %v1714, %v1706
  %v2139 = vpack.c.b16 %v1715, %v1707
  %v2140 = vpack.c.b16 %v1716, %v1708
  %v2141 = vpack.c.b16 %v1717, %v1709
  %v2142 = vpack.c.b16 %v1718, %v1710
  %v2143 = vpack.c.b16 %v1719, %v1711
  %v2144 = vpack.c.b16 %v1728, %v1720
  %v2145 = vpack.c.b16 %v1729, %v1721
  %v2146 = vpack.c.b16 %v1730, %v1722
  %v2147 = vpack.c.b16 %v1731, %v1723
  %v2148 = vpack.c.b16 %v1732, %v1724
  %v2149 = vpack.c.b16 %v1733, %v1725
  %v2150 = vpack.c.b16 %v1734, %v1726
  %v2151 = vpack.c.b16 %v1735, %v1727
  %v2152 = vpack.c.b16 %v1744, %v1736
  %v2153 = vpack.c.b16 %v1745, %v1737
  %v2154 = vpack.c.b16 %v1746, %v1738
  %v2155 = vpack.c.b16 %v1747, %v1739
  %v2156 = vpack.c.b16 %v1748, %v1740
  %v2157 = vpack.c.b16 %v1749, %v1741
  %v2158 = vpack.c.b16 %v1750, %v1742
  %v2159 = vpack.c.b16 %v1751, %v1743
  %v2160 = vpack.c.b16 %v1760, %v1752
  %v2161 = vpack.c.b16 %v1761, %v1753
  %v2162 = vpack.c.b16 %v1762, %v1754
  %v2163 = vpack.c.b16 %v1763, %v1755
  %v2164 = vpack.c.b16 %v1764, %v1756
  %v2165 = vpack.c.b16 %v1765, %v1757
  %v2166 = vpack.c.b16 %v1766, %v1758
  %v2167 = vpack.c.b16 %v1767, %v1759
  %v2168 = vpack.c.b16 %v1776, %v1768
  %v2169 = vpack.c.b16 %v1777, %v1769
  %v2170 = vpack.c.b16 %v1778, %v1770
  %v2171 = vpack.c.b16 %v1779, %v1771
  %v2172 = vpack.c.b16 %v1780, %v1772
  %v2173 = vpack.c.b16 %v1781, %v1773
  %v2174 = vpack.c.b16 %v1782, %v1774
  %v2175 = vpack.c.b16 %v1783, %v1775
  %v2176 = vpack.c.b16 %v1792, %v1784
  %v2177 = vpack.c.b16 %v1793, %v1785
  %v2178 = vpack.c.b16 %v1794, %v1786
  %v2179 = vpack.c.b16 %v1795, %v1787
  %v2180 = vpack.c.b16 %v1796, %v1788
  %v2181 = vpack.c.b16 %v1797, %v1789
  %v2182 = vpack.c.b16 %v1798, %v1790
  %v2183 = vpack.c.b16 %v1799, %v1791
  %v2184 = vpack.c.b16 %v1808, %v1800
  %v2185 = vpack.c.b16 %v1809, %v1801
  %v2186 = vpack.c.b16 %v1810, %v1802
  %v2187 = vpack.c.b16 %v1811, %v1803
  %v2188 = vpack.c.b16 %v1812, %v1804
  %v2189 = vpack.c.b16 %v1813, %v1805
  %v2190 = vpack.c.b16 %v1814, %v1806
  %v2191 = vpack.c.b16 %v1815, %v1807
  %v2192 = vpack.c.b16 %v1824, %v1816
  %v2193 = vpack.c.b16 %v1825, %v1817
  %v2194 = vpack.c.b16 %v1826, %v1818
  %v2195 = vpack.c.b16 %v1827, %v1819
  %v2196 = vpack.c.b16 %v1828, %v1820
  %v2197 = vpack.c.b16 %v1829, %v1821
  %v2198 = vpack.c.b16 %v1830, %v1822
  %v2199 = vpack.c.b16 %v1831, %v1823
  %v2200 = vpack.c.b16 %v1840, %v1832
  %v2201 = vpack.c.b16 %v1841, %v1833
  %v2202 = vpack.c.b16 %v1842, %v1834
  %v2203 = vpack.c.b16 %v1843, %v1835
  %v2204 = vpack.c.b16 %v1844, %v1836
  %v2205 = vpack.c.b16 %v1845, %v1837
  %v2206 = vpack.c.b16 %v1846, %v1838
  %v2207 = vpack.c.b16 %v1847, %v1839
  %v2208 = vpack.c.b16 %v1856, %v1848
  %v2209 = vpack.c.b16 %v1857, %v1849
  %v2210 = vpack.c.b16 %v1858, %v1850
  %v2211 = vpack.c.b16 %v1859, %v1851
  %v2212 = vpack.c.b16 %v1860, %v1852
  %v2213 = vpack.c.b16 %v1861, %v1853
  %v2214 = vpack.c.b16 %v1862, %v1854
  %v2215 = vpack.c.b16 %v1863, %v1855
  %v2216 = vpack.c.b16 %v1872, %v1864
  %v2217 = vpack.c.b16 %v1873, %v1865
  %v2218 = vpack.c.b16 %v1874, %v1866
  %v2219 = vpack.c.b16 %v1875, %v1867
  %v2220 = vpack.c.b16 %v1876, %v1868
  %v2221 = vpack.c.b16 %v1877, %v1869
  %v2222 = vpack.c.b16 %v1878, %v1870
  %v2223 = vpack.c.b16 %v1879, %v1871
  %v2224 = vpack.c.b16 %v1888, %v1880
  %v2225 = vpack.c.b16 %v1889, %v1881
  %v2226 = vpack.c.b16 %v1890, %v1882
  %v2227 = vpack.c.b16 %v1891, %v1883
  %v2228 = vpack.c.b16 %v1892, %v1884
  %v2229 = vpack.c.b16 %v1893, %v1885
  %v2230 = vpack.c.b16 %v1894, %v1886
  %v2231 = vpack.c.b16 %v1895, %v1887
  %v2232 = vpack.c.b16 %v1904, %v1896
  %v2233 = vpack.c.b16 %v1905, %v1897
  %v2234 = vpack.c.b16 %v1906, %v1898
  %v2235 = vpack.c.b16 %v1907, %v1899
  %v2236 = vpack.c.b16 %v1908, %v1900
  %v2237 = vpack.c.b16 %v1909, %v1901
  %v2238 = vpack.c.b16 %v1910, %v1902
  %v2239 = vpack.c.b16 %v1911, %v1903
  %v2240 = vpack.c.b16 %v1920, %v1912
  %v2241 = vpack.c.b16 %v1921, %v1913
  %v2242 = vpack.c.b16 %v1922, %v1914
  %v2243 = vpack.c.b16 %v1923, %v1915
  %v2244 = vpack.c.b16 %v1924, %v1916
  %v2245 = vpack.c.b16 %v1925, %v1917
  %v2246 = vpack.c.b16 %v1926, %v1918
  %v2247 = vpack.c.b16 %v1927, %v1919
  %v2248 = vpack.c.b16 %v1936, %v1928
  %v2249 = vpack.c.b16 %v1937, %v1929
  %v2250 = vpack.c.b16 %v1938, %v1930
  %v2251 = vpack.c.b16 %v1939, %v1931
  %v2252 = vpack.c.b16 %v1940, %v1932
  %v2253 = vpack.c.b16 %v1941, %v1933
  %v2254 = vpack.c.b16 %v1942, %v1934
  %v2255 = vpack.c.b16 %v1943, %v1935
  %v2256 = vpack.c.b16 %v1952, %v1944
  %v2257 = vpack.c.b16 %v1953, %v1945
  %v2258 = vpack.c.b16 %v1954, %v1946
  %v2259 = vpack.c.b16 %v1955, %v1947
  %v2260 = vpack.c.b16 %v1956, %v1948
  %v2261 = vpack.c.b16 %v1957, %v1949
  %v2262 = vpack.c.b16 %v1958, %v1950
  %v2263 = vpack.c.b16 %v1959, %v1951
  %v2264 = vpack.c.b16 %v1968, %v1960
  %v2265 = vpack.c.b16 %v1969, %v1961
  %v2266 = vpack.c.b16 %v1970, %v1962
  %v2267 = vpack.c.b16 %v1971, %v1963
  %v2268 = vpack.c.b16 %v1972, %v1964
  %v2269 = vpack.c.b16 %v1973, %v1965
  %v2270 = vpack.c.b16 %v1974, %v1966
  %v2271 = vpack.c.b16 %v1975, %v1967
  %v2272 = vpack.c.b16 %v1984, %v1976
  %v2273 = vpack.c.b16 %v1985, %v1977
  %v2274 = vpack.c.b16 %v1986, %v1978
  %v2275 = vpack.c.b16 %v1987, %v1979
  %v2276 = vpack.c.b16 %v1988, %v1980
  %v2277 = vpack.c.b16 %v1989, %v1981
  %v2278 = vpack.c.b16 %v1990, %v1982
  %v2279 = vpack.c.b16 %v1991, %v1983
  %v2280 = vpack.c.b16 %v2000, %v1992
  %v2281 = vpack.c.b16 %v2001, %v1993
  %v2282 = vpack.c.b16 %v2002, %v1994
  %v2283 = vpack.c.b16 %v2003, %v1995
  %v2284 = vpack.c.b16 %v2004, %v1996
  %v2285 = vpack.c.b16 %v2005, %v1997
  %v2286 = vpack.c.b16 %v2006, %v1998
  %v2287 = vpack.c.b16 %v2007, %v1999
  %v2288 = vpack.c.b16 %v2016, %v2008
  %v2289 = vpack.c.b16 %v2017, %v2009
  %v2290 = vpack.c.b16 %v2018, %v2010
  %v2291 = vpack.c.b16 %v2019, %v2011
  %v2292 = vpack.c.b16 %v2020, %v2012
  %v2293 = vpack.c.b16 %v2021, %v2013
  %v2294 = vpack.c.b16 %v2022, %v2014
  %v2295 = vpack.c.b16 %v2023, %v2015
  %v2296 = vpack.c.b16 %v2032, %v2024
  %v2297 = vpack.c.b16 %v2033, %v2025
  %v2298 = vpack.c.b16 %v2034, %v2026
  %v2299 = vpack.c.b16 %v2035, %v2027
  %v2300 = vpack.c.b16 %v2036, %v2028
  %v2301 = vpack.c.b16 %v2037, %v2029
  %v2302 = vpack.c.b16 %v2038, %v2030
  %v2303 = vpack.c.b16 %v2039, %v2031
  %v2304 = vpack.c.b16 %v2048, %v2040
  %v2305 = vpack.c.b16 %v2049, %v2041
  %v2306 = vpack.c.b16 %v2050, %v2042
  %v2307 = vpack.c.b16 %v2051, %v2043
  %v2308 = vpack.c.b16 %v2052, %v2044
  %v2309 = vpack.c.b16 %v2053, %v2045
  %v2310 = vpack.c.b16 %v2054, %v2046
  %v2311 = vpack.c.b16 %v2055, %v2047
  %2568 = vmatprep.subr.bf16.mxu0 %v2113
  %2569 = vmatpush1.bf16.msra.mxu0 %v2112
  %2570 = vmatprep.subr.bf16.mxu0 %v2105
  %2571 = vmatpush1.bf16.msra.mxu0 %v2104
  %2572 = vmatprep.subr.bf16.mxu0 %v2097
  %2573 = vmatpush1.bf16.msra.mxu0 %v2096
  %2574 = vmatprep.subr.bf16.mxu0 %v2089
  %2575 = vmatpush1.bf16.msra.mxu0 %v2088
  %2576 = vmatprep.subr.bf16.mxu0 %v2081
  %2577 = vmatpush1.bf16.msra.mxu0 %v2080
  %2578 = vmatprep.subr.bf16.mxu0 %v2073
  %2579 = vmatpush1.bf16.msra.mxu0 %v2072
  %2580 = vmatprep.subr.bf16.mxu0 %v2065
  %2581 = vmatpush1.bf16.msra.mxu0 %v2064
  %2582 = vmatprep.subr.bf16.mxu0 %v2057
  %2583 = vmatpush1.bf16.msra.mxu0 %v2056
  %2584 = vmatprep.subr.bf16.mxu0 %v2177
  %2585 = vmatpush2.bf16.msra.mxu0 %v2176
  %2586 = vmatprep.subr.bf16.mxu0 %v2169
  %2587 = vmatpush2.bf16.msra.mxu0 %v2168
  %2588 = vmatprep.subr.bf16.mxu0 %v2161
  %2589 = vmatpush2.bf16.msra.mxu0 %v2160
  %2590 = vmatprep.subr.bf16.mxu0 %v2153
  %2591 = vmatpush2.bf16.msra.mxu0 %v2152
  %2592 = vmatprep.subr.bf16.mxu0 %v2145
  %2593 = vmatpush2.bf16.msra.mxu0 %v2144
  %2594 = vmatprep.subr.bf16.mxu0 %v2137
  %2595 = vmatpush2.bf16.msra.mxu0 %v2136
  %2596 = vmatprep.subr.bf16.mxu0 %v2129
  %2597 = vmatpush2.bf16.msra.mxu0 %v2128
  %2598 = vmatprep.subr.bf16.mxu0 %v2121
  %2599 = vmatpush2.bf16.msra.mxu0 %v2120
  %2600 = vmatprep.mubr.bf16.mxu0 %v1025
  %2601 = vmatmul.mubr.bf16.gmra.mxu0 %v1024
  %v2602 = vpop.f32.mrf.mxu0
  %v2603 = vadd.f32 0.0, %v2602
  %v2604 = vpop.f32.mrf.mxu0
  %v2605 = vadd.f32 0.0, %v2604
  %v2606 = vpop.f32.mrf.mxu0
  %v2607 = vadd.f32 0.0, %v2606
  %v2608 = vpop.f32.mrf.mxu0
  %v2609 = vadd.f32 0.0, %v2608
  %2610 = vmatprep.mubr.bf16.mxu0 %v1029
  %2611 = vmatmul.mubr.bf16.gmra.mxu0 %v1028
  %v2612 = vpop.f32.mrf.mxu0
  %v2613 = vadd.f32 0.0, %v2612
  %v2614 = vpop.f32.mrf.mxu0
  %v2615 = vadd.f32 0.0, %v2614
  %v2616 = vpop.f32.mrf.mxu0
  %v2617 = vadd.f32 0.0, %v2616
  %v2618 = vpop.f32.mrf.mxu0
  %v2619 = vadd.f32 0.0, %v2618
  %2620 = vdwg.mxu0
  %2621 = vmatprep.subr.bf16.mxu0 %v2241
  %2622 = vmatpush1.bf16.msra.mxu0 %v2240
  %2623 = vmatprep.subr.bf16.mxu0 %v2233
  %2624 = vmatpush1.bf16.msra.mxu0 %v2232
  %2625 = vmatprep.subr.bf16.mxu0 %v2225
  %2626 = vmatpush1.bf16.msra.mxu0 %v2224
  %2627 = vmatprep.subr.bf16.mxu0 %v2217
  %2628 = vmatpush1.bf16.msra.mxu0 %v2216
  %2629 = vmatprep.subr.bf16.mxu0 %v2209
  %2630 = vmatpush1.bf16.msra.mxu0 %v2208
  %2631 = vmatprep.subr.bf16.mxu0 %v2201
  %2632 = vmatpush1.bf16.msra.mxu0 %v2200
  %2633 = vmatprep.subr.bf16.mxu0 %v2193
  %2634 = vmatpush1.bf16.msra.mxu0 %v2192
  %2635 = vmatprep.subr.bf16.mxu0 %v2185
  %2636 = vmatpush1.bf16.msra.mxu0 %v2184
  %2637 = vmatprep.subr.bf16.mxu0 %v2305
  %2638 = vmatpush2.bf16.msra.mxu0 %v2304
  %2639 = vmatprep.subr.bf16.mxu0 %v2297
  %2640 = vmatpush2.bf16.msra.mxu0 %v2296
  %2641 = vmatprep.subr.bf16.mxu0 %v2289
  %2642 = vmatpush2.bf16.msra.mxu0 %v2288
  %2643 = vmatprep.subr.bf16.mxu0 %v2281
  %2644 = vmatpush2.bf16.msra.mxu0 %v2280
  %2645 = vmatprep.subr.bf16.mxu0 %v2273
  %2646 = vmatpush2.bf16.msra.mxu0 %v2272
  %2647 = vmatprep.subr.bf16.mxu0 %v2265
  %2648 = vmatpush2.bf16.msra.mxu0 %v2264
  %2649 = vmatprep.subr.bf16.mxu0 %v2257
  %2650 = vmatpush2.bf16.msra.mxu0 %v2256
  %2651 = vmatprep.subr.bf16.mxu0 %v2249
  %2652 = vmatpush2.bf16.msra.mxu0 %v2248
  %2653 = vmatprep.mubr.bf16.mxu0 %v1027
  %2654 = vmatmul.mubr.bf16.gmra.mxu0 %v1026
  %v2655 = vpop.f32.mrf.mxu0
  %v2656 = vadd.f32 %v2603, %v2655
  %v2657 = vpop.f32.mrf.mxu0
  %v2658 = vadd.f32 %v2605, %v2657
  %v2659 = vpop.f32.mrf.mxu0
  %v2660 = vadd.f32 %v2607, %v2659
  %v2661 = vpop.f32.mrf.mxu0
  %v2662 = vadd.f32 %v2609, %v2661
  %2663 = vmatprep.mubr.bf16.mxu0 %v1031
  %2664 = vmatmul.mubr.bf16.gmra.mxu0 %v1030
  %v2665 = vpop.f32.mrf.mxu0
  %v2666 = vadd.f32 %v2613, %v2665
  %v2667 = vpop.f32.mrf.mxu0
  %v2668 = vadd.f32 %v2615, %v2667
  %v2669 = vpop.f32.mrf.mxu0
  %v2670 = vadd.f32 %v2617, %v2669
  %v2671 = vpop.f32.mrf.mxu0
  %v2672 = vadd.f32 %v2619, %v2671
  %2673 = vdwg.mxu0
  %2674 = vmatprep.subr.bf16.mxu0 %v2115
  %2675 = vmatpush1.bf16.msra.mxu0 %v2114
  %2676 = vmatprep.subr.bf16.mxu0 %v2107
  %2677 = vmatpush1.bf16.msra.mxu0 %v2106
  %2678 = vmatprep.subr.bf16.mxu0 %v2099
  %2679 = vmatpush1.bf16.msra.mxu0 %v2098
  %2680 = vmatprep.subr.bf16.mxu0 %v2091
  %2681 = vmatpush1.bf16.msra.mxu0 %v2090
  %2682 = vmatprep.subr.bf16.mxu0 %v2083
  %2683 = vmatpush1.bf16.msra.mxu0 %v2082
  %2684 = vmatprep.subr.bf16.mxu0 %v2075
  %2685 = vmatpush1.bf16.msra.mxu0 %v2074
  %2686 = vmatprep.subr.bf16.mxu0 %v2067
  %2687 = vmatpush1.bf16.msra.mxu0 %v2066
  %2688 = vmatprep.subr.bf16.mxu0 %v2059
  %2689 = vmatpush1.bf16.msra.mxu0 %v2058
  %2690 = vmatprep.subr.bf16.mxu0 %v2179
  %2691 = vmatpush2.bf16.msra.mxu0 %v2178
  %2692 = vmatprep.subr.bf16.mxu0 %v2171
  %2693 = vmatpush2.bf16.msra.mxu0 %v2170
  %2694 = vmatprep.subr.bf16.mxu0 %v2163
  %2695 = vmatpush2.bf16.msra.mxu0 %v2162
  %2696 = vmatprep.subr.bf16.mxu0 %v2155
  %2697 = vmatpush2.bf16.msra.mxu0 %v2154
  %2698 = vmatprep.subr.bf16.mxu0 %v2147
  %2699 = vmatpush2.bf16.msra.mxu0 %v2146
  %2700 = vmatprep.subr.bf16.mxu0 %v2139
  %2701 = vmatpush2.bf16.msra.mxu0 %v2138
  %2702 = vmatprep.subr.bf16.mxu0 %v2131
  %2703 = vmatpush2.bf16.msra.mxu0 %v2130
  %2704 = vmatprep.subr.bf16.mxu0 %v2123
  %2705 = vmatpush2.bf16.msra.mxu0 %v2122
  %2706 = vmatprep.mubr.bf16.mxu0 %v1025
  %2707 = vmatmul.mubr.bf16.gmra.mxu0 %v1024
  %v2708 = vpop.f32.mrf.mxu0
  %v2709 = vadd.f32 0.0, %v2708
  %v2710 = vpop.f32.mrf.mxu0
  %v2711 = vadd.f32 0.0, %v2710
  %v2712 = vpop.f32.mrf.mxu0
  %v2713 = vadd.f32 0.0, %v2712
  %v2714 = vpop.f32.mrf.mxu0
  %v2715 = vadd.f32 0.0, %v2714
  %2716 = vmatprep.mubr.bf16.mxu0 %v1029
  %2717 = vmatmul.mubr.bf16.gmra.mxu0 %v1028
  %v2718 = vpop.f32.mrf.mxu0
  %v2719 = vadd.f32 0.0, %v2718
  %v2720 = vpop.f32.mrf.mxu0
  %v2721 = vadd.f32 0.0, %v2720
  %v2722 = vpop.f32.mrf.mxu0
  %v2723 = vadd.f32 0.0, %v2722
  %v2724 = vpop.f32.mrf.mxu0
  %v2725 = vadd.f32 0.0, %v2724
  %2726 = vdwg.mxu0
  %2727 = vmatprep.subr.bf16.mxu0 %v2243
  %2728 = vmatpush1.bf16.msra.mxu0 %v2242
  %2729 = vmatprep.subr.bf16.mxu0 %v2235
  %2730 = vmatpush1.bf16.msra.mxu0 %v2234
  %2731 = vmatprep.subr.bf16.mxu0 %v2227
  %2732 = vmatpush1.bf16.msra.mxu0 %v2226
  %2733 = vmatprep.subr.bf16.mxu0 %v2219
  %2734 = vmatpush1.bf16.msra.mxu0 %v2218
  %2735 = vmatprep.subr.bf16.mxu0 %v2211
  %2736 = vmatpush1.bf16.msra.mxu0 %v2210
  %2737 = vmatprep.subr.bf16.mxu0 %v2203
  %2738 = vmatpush1.bf16.msra.mxu0 %v2202
  %2739 = vmatprep.subr.bf16.mxu0 %v2195
  %2740 = vmatpush1.bf16.msra.mxu0 %v2194
  %2741 = vmatprep.subr.bf16.mxu0 %v2187
  %2742 = vmatpush1.bf16.msra.mxu0 %v2186
  %2743 = vmatprep.subr.bf16.mxu0 %v2307
  %2744 = vmatpush2.bf16.msra.mxu0 %v2306
  %2745 = vmatprep.subr.bf16.mxu0 %v2299
  %2746 = vmatpush2.bf16.msra.mxu0 %v2298
  %2747 = vmatprep.subr.bf16.mxu0 %v2291
  %2748 = vmatpush2.bf16.msra.mxu0 %v2290
  %2749 = vmatprep.subr.bf16.mxu0 %v2283
  %2750 = vmatpush2.bf16.msra.mxu0 %v2282
  %2751 = vmatprep.subr.bf16.mxu0 %v2275
  %2752 = vmatpush2.bf16.msra.mxu0 %v2274
  %2753 = vmatprep.subr.bf16.mxu0 %v2267
  %2754 = vmatpush2.bf16.msra.mxu0 %v2266
  %2755 = vmatprep.subr.bf16.mxu0 %v2259
  %2756 = vmatpush2.bf16.msra.mxu0 %v2258
  %2757 = vmatprep.subr.bf16.mxu0 %v2251
  %2758 = vmatpush2.bf16.msra.mxu0 %v2250
  %2759 = vmatprep.mubr.bf16.mxu0 %v1027
  %2760 = vmatmul.mubr.bf16.gmra.mxu0 %v1026
  %v2761 = vpop.f32.mrf.mxu0
  %v2762 = vadd.f32 %v2709, %v2761
  %v2763 = vpop.f32.mrf.mxu0
  %v2764 = vadd.f32 %v2711, %v2763
  %v2765 = vpop.f32.mrf.mxu0
  %v2766 = vadd.f32 %v2713, %v2765
  %v2767 = vpop.f32.mrf.mxu0
  %v2768 = vadd.f32 %v2715, %v2767
  %2769 = vmatprep.mubr.bf16.mxu0 %v1031
  %2770 = vmatmul.mubr.bf16.gmra.mxu0 %v1030
  %v2771 = vpop.f32.mrf.mxu0
  %v2772 = vadd.f32 %v2719, %v2771
  %v2773 = vpop.f32.mrf.mxu0
  %v2774 = vadd.f32 %v2721, %v2773
  %v2775 = vpop.f32.mrf.mxu0
  %v2776 = vadd.f32 %v2723, %v2775
  %v2777 = vpop.f32.mrf.mxu0
  %v2778 = vadd.f32 %v2725, %v2777
  %2779 = vdwg.mxu0
  %2780 = vmatprep.subr.bf16.mxu0 %v2117
  %2781 = vmatpush1.bf16.msra.mxu0 %v2116
  %2782 = vmatprep.subr.bf16.mxu0 %v2109
  %2783 = vmatpush1.bf16.msra.mxu0 %v2108
  %2784 = vmatprep.subr.bf16.mxu0 %v2101
  %2785 = vmatpush1.bf16.msra.mxu0 %v2100
  %2786 = vmatprep.subr.bf16.mxu0 %v2093
  %2787 = vmatpush1.bf16.msra.mxu0 %v2092
  %2788 = vmatprep.subr.bf16.mxu0 %v2085
  %2789 = vmatpush1.bf16.msra.mxu0 %v2084
  %2790 = vmatprep.subr.bf16.mxu0 %v2077
  %2791 = vmatpush1.bf16.msra.mxu0 %v2076
  %2792 = vmatprep.subr.bf16.mxu0 %v2069
  %2793 = vmatpush1.bf16.msra.mxu0 %v2068
  %2794 = vmatprep.subr.bf16.mxu0 %v2061
  %2795 = vmatpush1.bf16.msra.mxu0 %v2060
  %2796 = vmatprep.subr.bf16.mxu0 %v2181
  %2797 = vmatpush2.bf16.msra.mxu0 %v2180
  %2798 = vmatprep.subr.bf16.mxu0 %v2173
  %2799 = vmatpush2.bf16.msra.mxu0 %v2172
  %2800 = vmatprep.subr.bf16.mxu0 %v2165
  %2801 = vmatpush2.bf16.msra.mxu0 %v2164
  %2802 = vmatprep.subr.bf16.mxu0 %v2157
  %2803 = vmatpush2.bf16.msra.mxu0 %v2156
  %2804 = vmatprep.subr.bf16.mxu0 %v2149
  %2805 = vmatpush2.bf16.msra.mxu0 %v2148
  %2806 = vmatprep.subr.bf16.mxu0 %v2141
  %2807 = vmatpush2.bf16.msra.mxu0 %v2140
  %2808 = vmatprep.subr.bf16.mxu0 %v2133
  %2809 = vmatpush2.bf16.msra.mxu0 %v2132
  %2810 = vmatprep.subr.bf16.mxu0 %v2125
  %2811 = vmatpush2.bf16.msra.mxu0 %v2124
  %2812 = vmatprep.mubr.bf16.mxu0 %v1025
  %2813 = vmatmul.mubr.bf16.gmra.mxu0 %v1024
  %v2814 = vpop.f32.mrf.mxu0
  %v2815 = vadd.f32 0.0, %v2814
  %v2816 = vpop.f32.mrf.mxu0
  %v2817 = vadd.f32 0.0, %v2816
  %v2818 = vpop.f32.mrf.mxu0
  %v2819 = vadd.f32 0.0, %v2818
  %v2820 = vpop.f32.mrf.mxu0
  %v2821 = vadd.f32 0.0, %v2820
  %2822 = vmatprep.mubr.bf16.mxu0 %v1029
  %2823 = vmatmul.mubr.bf16.gmra.mxu0 %v1028
  %v2824 = vpop.f32.mrf.mxu0
  %v2825 = vadd.f32 0.0, %v2824
  %v2826 = vpop.f32.mrf.mxu0
  %v2827 = vadd.f32 0.0, %v2826
  %v2828 = vpop.f32.mrf.mxu0
  %v2829 = vadd.f32 0.0, %v2828
  %v2830 = vpop.f32.mrf.mxu0
  %v2831 = vadd.f32 0.0, %v2830
  %2832 = vdwg.mxu0
  %2833 = vmatprep.subr.bf16.mxu0 %v2245
  %2834 = vmatpush1.bf16.msra.mxu0 %v2244
  %2835 = vmatprep.subr.bf16.mxu0 %v2237
  %2836 = vmatpush1.bf16.msra.mxu0 %v2236
  %2837 = vmatprep.subr.bf16.mxu0 %v2229
  %2838 = vmatpush1.bf16.msra.mxu0 %v2228
  %2839 = vmatprep.subr.bf16.mxu0 %v2221
  %2840 = vmatpush1.bf16.msra.mxu0 %v2220
  %2841 = vmatprep.subr.bf16.mxu0 %v2213
  %2842 = vmatpush1.bf16.msra.mxu0 %v2212
  %2843 = vmatprep.subr.bf16.mxu0 %v2205
  %2844 = vmatpush1.bf16.msra.mxu0 %v2204
  %2845 = vmatprep.subr.bf16.mxu0 %v2197
  %2846 = vmatpush1.bf16.msra.mxu0 %v2196
  %2847 = vmatprep.subr.bf16.mxu0 %v2189
  %2848 = vmatpush1.bf16.msra.mxu0 %v2188
  %2849 = vmatprep.subr.bf16.mxu0 %v2309
  %2850 = vmatpush2.bf16.msra.mxu0 %v2308
  %2851 = vmatprep.subr.bf16.mxu0 %v2301
  %2852 = vmatpush2.bf16.msra.mxu0 %v2300
  %2853 = vmatprep.subr.bf16.mxu0 %v2293
  %2854 = vmatpush2.bf16.msra.mxu0 %v2292
  %2855 = vmatprep.subr.bf16.mxu0 %v2285
  %2856 = vmatpush2.bf16.msra.mxu0 %v2284
  %2857 = vmatprep.subr.bf16.mxu0 %v2277
  %2858 = vmatpush2.bf16.msra.mxu0 %v2276
  %2859 = vmatprep.subr.bf16.mxu0 %v2269
  %2860 = vmatpush2.bf16.msra.mxu0 %v2268
  %2861 = vmatprep.subr.bf16.mxu0 %v2261
  %2862 = vmatpush2.bf16.msra.mxu0 %v2260
  %2863 = vmatprep.subr.bf16.mxu0 %v2253
  %2864 = vmatpush2.bf16.msra.mxu0 %v2252
  %2865 = vmatprep.mubr.bf16.mxu0 %v1027
  %2866 = vmatmul.mubr.bf16.gmra.mxu0 %v1026
  %v2867 = vpop.f32.mrf.mxu0
  %v2868 = vadd.f32 %v2815, %v2867
  %v2869 = vpop.f32.mrf.mxu0
  %v2870 = vadd.f32 %v2817, %v2869
  %v2871 = vpop.f32.mrf.mxu0
  %v2872 = vadd.f32 %v2819, %v2871
  %v2873 = vpop.f32.mrf.mxu0
  %v2874 = vadd.f32 %v2821, %v2873
  %2875 = vmatprep.mubr.bf16.mxu0 %v1031
  %2876 = vmatmul.mubr.bf16.gmra.mxu0 %v1030
  %v2877 = vpop.f32.mrf.mxu0
  %v2878 = vadd.f32 %v2825, %v2877
  %v2879 = vpop.f32.mrf.mxu0
  %v2880 = vadd.f32 %v2827, %v2879
  %v2881 = vpop.f32.mrf.mxu0
  %v2882 = vadd.f32 %v2829, %v2881
  %v2883 = vpop.f32.mrf.mxu0
  %v2884 = vadd.f32 %v2831, %v2883
  %2885 = vdwg.mxu0
  %2886 = vmatprep.subr.bf16.mxu0 %v2119
  %2887 = vmatpush1.bf16.msra.mxu0 %v2118
  %2888 = vmatprep.subr.bf16.mxu0 %v2111
  %2889 = vmatpush1.bf16.msra.mxu0 %v2110
  %2890 = vmatprep.subr.bf16.mxu0 %v2103
  %2891 = vmatpush1.bf16.msra.mxu0 %v2102
  %2892 = vmatprep.subr.bf16.mxu0 %v2095
  %2893 = vmatpush1.bf16.msra.mxu0 %v2094
  %2894 = vmatprep.subr.bf16.mxu0 %v2087
  %2895 = vmatpush1.bf16.msra.mxu0 %v2086
  %2896 = vmatprep.subr.bf16.mxu0 %v2079
  %2897 = vmatpush1.bf16.msra.mxu0 %v2078
  %2898 = vmatprep.subr.bf16.mxu0 %v2071
  %2899 = vmatpush1.bf16.msra.mxu0 %v2070
  %2900 = vmatprep.subr.bf16.mxu0 %v2063
  %2901 = vmatpush1.bf16.msra.mxu0 %v2062
  %2902 = vmatprep.subr.bf16.mxu0 %v2183
  %2903 = vmatpush2.bf16.msra.mxu0 %v2182
  %2904 = vmatprep.subr.bf16.mxu0 %v2175
  %2905 = vmatpush2.bf16.msra.mxu0 %v2174
  %2906 = vmatprep.subr.bf16.mxu0 %v2167
  %2907 = vmatpush2.bf16.msra.mxu0 %v2166
  %2908 = vmatprep.subr.bf16.mxu0 %v2159
  %2909 = vmatpush2.bf16.msra.mxu0 %v2158
  %2910 = vmatprep.subr.bf16.mxu0 %v2151
  %2911 = vmatpush2.bf16.msra.mxu0 %v2150
  %2912 = vmatprep.subr.bf16.mxu0 %v2143
  %2913 = vmatpush2.bf16.msra.mxu0 %v2142
  %2914 = vmatprep.subr.bf16.mxu0 %v2135
  %2915 = vmatpush2.bf16.msra.mxu0 %v2134
  %2916 = vmatprep.subr.bf16.mxu0 %v2127
  %2917 = vmatpush2.bf16.msra.mxu0 %v2126
  %2918 = vmatprep.mubr.bf16.mxu0 %v1025
  %2919 = vmatmul.mubr.bf16.gmra.mxu0 %v1024
  %v2920 = vpop.f32.mrf.mxu0
  %v2921 = vadd.f32 0.0, %v2920
  %v2922 = vpop.f32.mrf.mxu0
  %v2923 = vadd.f32 0.0, %v2922
  %v2924 = vpop.f32.mrf.mxu0
  %v2925 = vadd.f32 0.0, %v2924
  %v2926 = vpop.f32.mrf.mxu0
  %v2927 = vadd.f32 0.0, %v2926
  %2928 = vmatprep.mubr.bf16.mxu0 %v1029
  %2929 = vmatmul.mubr.bf16.gmra.mxu0 %v1028
  %v2930 = vpop.f32.mrf.mxu0
  %v2931 = vadd.f32 0.0, %v2930
  %v2932 = vpop.f32.mrf.mxu0
  %v2933 = vadd.f32 0.0, %v2932
  %v2934 = vpop.f32.mrf.mxu0
  %v2935 = vadd.f32 0.0, %v2934
  %v2936 = vpop.f32.mrf.mxu0
  %v2937 = vadd.f32 0.0, %v2936
  %2938 = vdwg.mxu0
  %2939 = vmatprep.subr.bf16.mxu0 %v2247
  %2940 = vmatpush1.bf16.msra.mxu0 %v2246
  %2941 = vmatprep.subr.bf16.mxu0 %v2239
  %2942 = vmatpush1.bf16.msra.mxu0 %v2238
  %2943 = vmatprep.subr.bf16.mxu0 %v2231
  %2944 = vmatpush1.bf16.msra.mxu0 %v2230
  %2945 = vmatprep.subr.bf16.mxu0 %v2223
  %2946 = vmatpush1.bf16.msra.mxu0 %v2222
  %2947 = vmatprep.subr.bf16.mxu0 %v2215
  %2948 = vmatpush1.bf16.msra.mxu0 %v2214
  %2949 = vmatprep.subr.bf16.mxu0 %v2207
  %2950 = vmatpush1.bf16.msra.mxu0 %v2206
  %2951 = vmatprep.subr.bf16.mxu0 %v2199
  %2952 = vmatpush1.bf16.msra.mxu0 %v2198
  %2953 = vmatprep.subr.bf16.mxu0 %v2191
  %2954 = vmatpush1.bf16.msra.mxu0 %v2190
  %2955 = vmatprep.subr.bf16.mxu0 %v2311
  %2956 = vmatpush2.bf16.msra.mxu0 %v2310
  %2957 = vmatprep.subr.bf16.mxu0 %v2303
  %2958 = vmatpush2.bf16.msra.mxu0 %v2302
  %2959 = vmatprep.subr.bf16.mxu0 %v2295
  %2960 = vmatpush2.bf16.msra.mxu0 %v2294
  %2961 = vmatprep.subr.bf16.mxu0 %v2287
  %2962 = vmatpush2.bf16.msra.mxu0 %v2286
  %2963 = vmatprep.subr.bf16.mxu0 %v2279
  %2964 = vmatpush2.bf16.msra.mxu0 %v2278
  %2965 = vmatprep.subr.bf16.mxu0 %v2271
  %2966 = vmatpush2.bf16.msra.mxu0 %v2270
  %2967 = vmatprep.subr.bf16.mxu0 %v2263
  %2968 = vmatpush2.bf16.msra.mxu0 %v2262
  %2969 = vmatprep.subr.bf16.mxu0 %v2255
  %2970 = vmatpush2.bf16.msra.mxu0 %v2254
  %2971 = vmatprep.mubr.bf16.mxu0 %v1027
  %2972 = vmatmul.mubr.bf16.gmra.mxu0 %v1026
  %v2973 = vpop.f32.mrf.mxu0
  %v2974 = vadd.f32 %v2921, %v2973
  %v2975 = vpop.f32.mrf.mxu0
  %v2976 = vadd.f32 %v2923, %v2975
  %v2977 = vpop.f32.mrf.mxu0
  %v2978 = vadd.f32 %v2925, %v2977
  %v2979 = vpop.f32.mrf.mxu0
  %v2980 = vadd.f32 %v2927, %v2979
  %2981 = vmatprep.mubr.bf16.mxu0 %v1031
  %2982 = vmatmul.mubr.bf16.gmra.mxu0 %v1030
  %v2983 = vpop.f32.mrf.mxu0
  %v2984 = vadd.f32 %v2931, %v2983
  %v2985 = vpop.f32.mrf.mxu0
  %v2986 = vadd.f32 %v2933, %v2985
  %v2987 = vpop.f32.mrf.mxu0
  %v2988 = vadd.f32 %v2935, %v2987
  %v2989 = vpop.f32.mrf.mxu0
  %v2990 = vadd.f32 %v2937, %v2989
  %2991 = vdwg.mxu0
  %v2992 = vld [vmem:[%s8] sm:$0xff]
  %v2994 = vlaneseq
  %v2995 = vshrl.u32 %v2994, 7
  %v2996 = vsub.s32 0, %v2995
  %v2997 = vrot.slane %v2992, %v2996
  %v2998 = vlaneseq
  %v2999 = vshrl.u32 %v2998, 7
  %v3000 = vsub.s32 1, %v2999
  %v3001 = vrot.slane %v2992, %v3000
  %v3002 = vlaneseq
  %v3003 = vshrl.u32 %v3002, 7
  %v3004 = vsub.s32 2, %v3003
  %v3005 = vrot.slane %v2992, %v3004
  %v3006 = vlaneseq
  %v3007 = vshrl.u32 %v3006, 7
  %v3008 = vsub.s32 3, %v3007
  %v3009 = vrot.slane %v2992, %v3008
  %v3010 = vlaneseq
  %v3011 = vshrl.u32 %v3010, 7
  %v3012 = vsub.s32 4, %v3011
  %v3013 = vrot.slane %v2992, %v3012
  %v3014 = vlaneseq
  %v3015 = vshrl.u32 %v3014, 7
  %v3016 = vsub.s32 5, %v3015
  %v3017 = vrot.slane %v2992, %v3016
  %v3018 = vlaneseq
  %v3019 = vshrl.u32 %v3018, 7
  %v3020 = vsub.s32 6, %v3019
  %v3021 = vrot.slane %v2992, %v3020
  %v3022 = vlaneseq
  %v3023 = vshrl.u32 %v3022, 7
  %v3024 = vsub.s32 7, %v3023
  %v3025 = vrot.slane %v2992, %v3024
  %v3034 = vmul.f32 %v2656, %v2997
  %v3035 = vmul.f32 %v2658, %v3001
  %v3036 = vmul.f32 %v2762, %v3005
  %v3037 = vmul.f32 %v2764, %v3009
  %v3038 = vmul.f32 %v2868, %v3013
  %v3039 = vmul.f32 %v2870, %v3017
  %v3040 = vmul.f32 %v2974, %v3021
  %v3041 = vmul.f32 %v2976, %v3025
  %v3042 = vmul.f32 %v2660, %v2997
  %v3043 = vmul.f32 %v2662, %v3001
  %v3044 = vmul.f32 %v2766, %v3005
  %v3045 = vmul.f32 %v2768, %v3009
  %v3046 = vmul.f32 %v2872, %v3013
  %v3047 = vmul.f32 %v2874, %v3017
  %v3048 = vmul.f32 %v2978, %v3021
  %v3049 = vmul.f32 %v2980, %v3025
  %v3050 = vmul.f32 %v2666, %v2997
  %v3051 = vmul.f32 %v2668, %v3001
  %v3052 = vmul.f32 %v2772, %v3005
  %v3053 = vmul.f32 %v2774, %v3009
  %v3054 = vmul.f32 %v2878, %v3013
  %v3055 = vmul.f32 %v2880, %v3017
  %v3056 = vmul.f32 %v2984, %v3021
  %v3057 = vmul.f32 %v2986, %v3025
  %v3058 = vmul.f32 %v2670, %v2997
  %v3059 = vmul.f32 %v2672, %v3001
  %v3060 = vmul.f32 %v2776, %v3005
  %v3061 = vmul.f32 %v2778, %v3009
  %v3062 = vmul.f32 %v2882, %v3013
  %v3063 = vmul.f32 %v2884, %v3017
  %v3064 = vmul.f32 %v2988, %v3021
  %v3065 = vmul.f32 %v2990, %v3025
  %v3066 = vld [vmem:[%s9] sm:$0xff]
  %v3068 = vlaneseq
  %v3069 = vshrl.u32 %v3068, 7
  %v3070 = vsub.s32 0, %v3069
  %v3071 = vrot.slane %v3066, %v3070
  %v3072 = vlaneseq
  %v3073 = vshrl.u32 %v3072, 7
  %v3074 = vsub.s32 1, %v3073
  %v3075 = vrot.slane %v3066, %v3074
  %v3076 = vlaneseq
  %v3077 = vshrl.u32 %v3076, 7
  %v3078 = vsub.s32 2, %v3077
  %v3079 = vrot.slane %v3066, %v3078
  %v3080 = vlaneseq
  %v3081 = vshrl.u32 %v3080, 7
  %v3082 = vsub.s32 3, %v3081
  %v3083 = vrot.slane %v3066, %v3082
  %v3084 = vlaneseq
  %v3085 = vshrl.u32 %v3084, 7
  %v3086 = vsub.s32 4, %v3085
  %v3087 = vrot.slane %v3066, %v3086
  %v3088 = vlaneseq
  %v3089 = vshrl.u32 %v3088, 7
  %v3090 = vsub.s32 5, %v3089
  %v3091 = vrot.slane %v3066, %v3090
  %v3092 = vlaneseq
  %v3093 = vshrl.u32 %v3092, 7
  %v3094 = vsub.s32 6, %v3093
  %v3095 = vrot.slane %v3066, %v3094
  %v3096 = vlaneseq
  %v3097 = vshrl.u32 %v3096, 7
  %v3098 = vsub.s32 7, %v3097
  %v3099 = vrot.slane %v3066, %v3098
  %v3108 = vadd.f32 %v3034, %v3071
  %v3109 = vadd.f32 %v3035, %v3075
  %v3110 = vadd.f32 %v3036, %v3079
  %v3111 = vadd.f32 %v3037, %v3083
  %v3112 = vadd.f32 %v3038, %v3087
  %v3113 = vadd.f32 %v3039, %v3091
  %v3114 = vadd.f32 %v3040, %v3095
  %v3115 = vadd.f32 %v3041, %v3099
  %v3116 = vadd.f32 %v3042, %v3071
  %v3117 = vadd.f32 %v3043, %v3075
  %v3118 = vadd.f32 %v3044, %v3079
  %v3119 = vadd.f32 %v3045, %v3083
  %v3120 = vadd.f32 %v3046, %v3087
  %v3121 = vadd.f32 %v3047, %v3091
  %v3122 = vadd.f32 %v3048, %v3095
  %v3123 = vadd.f32 %v3049, %v3099
  %v3124 = vadd.f32 %v3050, %v3071
  %v3125 = vadd.f32 %v3051, %v3075
  %v3126 = vadd.f32 %v3052, %v3079
  %v3127 = vadd.f32 %v3053, %v3083
  %v3128 = vadd.f32 %v3054, %v3087
  %v3129 = vadd.f32 %v3055, %v3091
  %v3130 = vadd.f32 %v3056, %v3095
  %v3131 = vadd.f32 %v3057, %v3099
  %v3132 = vadd.f32 %v3058, %v3071
  %v3133 = vadd.f32 %v3059, %v3075
  %v3134 = vadd.f32 %v3060, %v3079
  %v3135 = vadd.f32 %v3061, %v3083
  %v3136 = vadd.f32 %v3062, %v3087
  %v3137 = vadd.f32 %v3063, %v3091
  %v3138 = vadd.f32 %v3064, %v3095
  %v3139 = vadd.f32 %v3065, %v3099
  %v3140 = vmax.f32 %v3108, 0.0
  %v3141 = vmax.f32 %v3109, 0.0
  %v3142 = vmax.f32 %v3110, 0.0
  %v3143 = vmax.f32 %v3111, 0.0
  %v3144 = vmax.f32 %v3112, 0.0
  %v3145 = vmax.f32 %v3113, 0.0
  %v3146 = vmax.f32 %v3114, 0.0
  %v3147 = vmax.f32 %v3115, 0.0
  %v3148 = vmax.f32 %v3116, 0.0
  %v3149 = vmax.f32 %v3117, 0.0
  %v3150 = vmax.f32 %v3118, 0.0
  %v3151 = vmax.f32 %v3119, 0.0
  %v3152 = vmax.f32 %v3120, 0.0
  %v3153 = vmax.f32 %v3121, 0.0
  %v3154 = vmax.f32 %v3122, 0.0
  %v3155 = vmax.f32 %v3123, 0.0
  %v3156 = vmax.f32 %v3124, 0.0
  %v3157 = vmax.f32 %v3125, 0.0
  %v3158 = vmax.f32 %v3126, 0.0
  %v3159 = vmax.f32 %v3127, 0.0
  %v3160 = vmax.f32 %v3128, 0.0
  %v3161 = vmax.f32 %v3129, 0.0
  %v3162 = vmax.f32 %v3130, 0.0
  %v3163 = vmax.f32 %v3131, 0.0
  %v3164 = vmax.f32 %v3132, 0.0
  %v3165 = vmax.f32 %v3133, 0.0
  %v3166 = vmax.f32 %v3134, 0.0
  %v3167 = vmax.f32 %v3135, 0.0
  %v3168 = vmax.f32 %v3136, 0.0
  %v3169 = vmax.f32 %v3137, 0.0
  %v3170 = vmax.f32 %v3138, 0.0
  %v3171 = vmax.f32 %v3139, 0.0
  %v3172 = vmax.f32 %v3140, %v3148
  %v3173 = vmax.f32 %v3141, %v3149
  %v3174 = vmax.f32 %v3142, %v3150
  %v3175 = vmax.f32 %v3143, %v3151
  %v3176 = vmax.f32 %v3144, %v3152
  %v3177 = vmax.f32 %v3145, %v3153
  %v3178 = vmax.f32 %v3146, %v3154
  %v3179 = vmax.f32 %v3147, %v3155
  %v3180 = vmax.f32 %v3172, %v3156
  %v3181 = vmax.f32 %v3173, %v3157
  %v3182 = vmax.f32 %v3174, %v3158
  %v3183 = vmax.f32 %v3175, %v3159
  %v3184 = vmax.f32 %v3176, %v3160
  %v3185 = vmax.f32 %v3177, %v3161
  %v3186 = vmax.f32 %v3178, %v3162
  %v3187 = vmax.f32 %v3179, %v3163
  %v3188 = vmax.f32 %v3180, %v3164
  %v3189 = vmax.f32 %v3181, %v3165
  %v3190 = vmax.f32 %v3182, %v3166
  %v3191 = vmax.f32 %v3183, %v3167
  %v3192 = vmax.f32 %v3184, %v3168
  %v3193 = vmax.f32 %v3185, %v3169
  %v3194 = vmax.f32 %v3186, %v3170
  %v3195 = vmax.f32 %v3187, %v3171
  %v3196 = vpack.c.bf16 %v3188, %v3188
  %v3197 = vpack.c.bf16 %v3189, %v3189
  %v3198 = vpack.c.bf16 %v3190, %v3190
  %v3199 = vpack.c.bf16 %v3191, %v3191
  %v3200 = vpack.c.bf16 %v3192, %v3192
  %v3201 = vpack.c.bf16 %v3193, %v3193
  %v3202 = vpack.c.bf16 %v3194, %v3194
  %v3203 = vpack.c.bf16 %v3195, %v3195
  %v3204 = vld [vmem:[%s10] sm:$0xff]
  %v3205 = vld [vmem:[%s10 + $0x8] sm:$0xff]
  %v3206 = vld [vmem:[%s10 + $0x10] sm:$0xff]
  %v3207 = vld [vmem:[%s10 + $0x18] sm:$0xff]
  %v3208 = vld [vmem:[%s10 + $0x20] sm:$0xff]
  %v3209 = vld [vmem:[%s10 + $0x28] sm:$0xff]
  %v3210 = vld [vmem:[%s10 + $0x30] sm:$0xff]
  %v3211 = vld [vmem:[%s10 + $0x38] sm:$0xff]
  %v3212 = vld [vmem:[%s10 + $0x40] sm:$0xff]
  %v3213 = vld [vmem:[%s10 + $0x48] sm:$0xff]
  %v3214 = vld [vmem:[%s10 + $0x50] sm:$0xff]
  %v3215 = vld [vmem:[%s10 + $0x58] sm:$0xff]
  %v3216 = vld [vmem:[%s10 + $0x60] sm:$0xff]
  %v3217 = vld [vmem:[%s10 + $0x68] sm:$0xff]
  %v3218 = vld [vmem:[%s10 + $0x70] sm:$0xff]
  %v3219 = vld [vmem:[%s10 + $0x78] sm:$0xff]
  %v3220 = vld [vmem:[%s10 + $0x80] sm:$0xff]
  %v3221 = vld [vmem:[%s10 + $0x88] sm:$0xff]
  %v3222 = vld [vmem:[%s10 + $0x90] sm:$0xff]
  %v3223 = vld [vmem:[%s10 + $0x98] sm:$0xff]
  %v3224 = vld [vmem:[%s10 + $0xa0] sm:$0xff]
  %v3225 = vld [vmem:[%s10 + $0xa8] sm:$0xff]
  %v3226 = vld [vmem:[%s10 + $0xb0] sm:$0xff]
  %v3227 = vld [vmem:[%s10 + $0xb8] sm:$0xff]
  %v3228 = vld [vmem:[%s10 + $0xc0] sm:$0xff]
  %v3229 = vld [vmem:[%s10 + $0xc8] sm:$0xff]
  %v3230 = vld [vmem:[%s10 + $0xd0] sm:$0xff]
  %v3231 = vld [vmem:[%s10 + $0xd8] sm:$0xff]
  %v3232 = vld [vmem:[%s10 + $0xe0] sm:$0xff]
  %v3233 = vld [vmem:[%s10 + $0xe8] sm:$0xff]
  %v3234 = vld [vmem:[%s10 + $0xf0] sm:$0xff]
  %v3235 = vld [vmem:[%s10 + $0xf8] sm:$0xff]
  %v3236 = vld [vmem:[%s10 + $0x100] sm:$0xff]
  %v3237 = vld [vmem:[%s10 + $0x108] sm:$0xff]
  %v3238 = vld [vmem:[%s10 + $0x110] sm:$0xff]
  %v3239 = vld [vmem:[%s10 + $0x118] sm:$0xff]
  %v3240 = vld [vmem:[%s10 + $0x120] sm:$0xff]
  %v3241 = vld [vmem:[%s10 + $0x128] sm:$0xff]
  %v3242 = vld [vmem:[%s10 + $0x130] sm:$0xff]
  %v3243 = vld [vmem:[%s10 + $0x138] sm:$0xff]
  %v3244 = vld [vmem:[%s10 + $0x140] sm:$0xff]
  %v3245 = vld [vmem:[%s10 + $0x148] sm:$0xff]
  %v3246 = vld [vmem:[%s10 + $0x150] sm:$0xff]
  %v3247 = vld [vmem:[%s10 + $0x158] sm:$0xff]
  %v3248 = vld [vmem:[%s10 + $0x160] sm:$0xff]
  %v3249 = vld [vmem:[%s10 + $0x168] sm:$0xff]
  %v3250 = vld [vmem:[%s10 + $0x170] sm:$0xff]
  %v3251 = vld [vmem:[%s10 + $0x178] sm:$0xff]
  %v3252 = vld [vmem:[%s10 + $0x180] sm:$0xff]
  %v3253 = vld [vmem:[%s10 + $0x188] sm:$0xff]
  %v3254 = vld [vmem:[%s10 + $0x190] sm:$0xff]
  %v3255 = vld [vmem:[%s10 + $0x198] sm:$0xff]
  %v3256 = vld [vmem:[%s10 + $0x1a0] sm:$0xff]
  %v3257 = vld [vmem:[%s10 + $0x1a8] sm:$0xff]
  %v3258 = vld [vmem:[%s10 + $0x1b0] sm:$0xff]
  %v3259 = vld [vmem:[%s10 + $0x1b8] sm:$0xff]
  %v3260 = vld [vmem:[%s10 + $0x1c0] sm:$0xff]
  %v3261 = vld [vmem:[%s10 + $0x1c8] sm:$0xff]
  %v3262 = vld [vmem:[%s10 + $0x1d0] sm:$0xff]
  %v3263 = vld [vmem:[%s10 + $0x1d8] sm:$0xff]
  %v3264 = vld [vmem:[%s10 + $0x1e0] sm:$0xff]
  %v3265 = vld [vmem:[%s10 + $0x1e8] sm:$0xff]
  %v3266 = vld [vmem:[%s10 + $0x1f0] sm:$0xff]
  %v3267 = vld [vmem:[%s10 + $0x1f8] sm:$0xff]
  %v3268 = vld [vmem:[%s10 + $0x200] sm:$0xff]
  %v3269 = vld [vmem:[%s10 + $0x208] sm:$0xff]
  %v3270 = vld [vmem:[%s10 + $0x210] sm:$0xff]
  %v3271 = vld [vmem:[%s10 + $0x218] sm:$0xff]
  %v3272 = vld [vmem:[%s10 + $0x220] sm:$0xff]
  %v3273 = vld [vmem:[%s10 + $0x228] sm:$0xff]
  %v3274 = vld [vmem:[%s10 + $0x230] sm:$0xff]
  %v3275 = vld [vmem:[%s10 + $0x238] sm:$0xff]
  %v3276 = vld [vmem:[%s10 + $0x240] sm:$0xff]
  %v3277 = vld [vmem:[%s10 + $0x248] sm:$0xff]
  %v3278 = vld [vmem:[%s10 + $0x250] sm:$0xff]
  %v3279 = vld [vmem:[%s10 + $0x258] sm:$0xff]
  %v3280 = vld [vmem:[%s10 + $0x260] sm:$0xff]
  %v3281 = vld [vmem:[%s10 + $0x268] sm:$0xff]
  %v3282 = vld [vmem:[%s10 + $0x270] sm:$0xff]
  %v3283 = vld [vmem:[%s10 + $0x278] sm:$0xff]
  %v3284 = vld [vmem:[%s10 + $0x280] sm:$0xff]
  %v3285 = vld [vmem:[%s10 + $0x288] sm:$0xff]
  %v3286 = vld [vmem:[%s10 + $0x290] sm:$0xff]
  %v3287 = vld [vmem:[%s10 + $0x298] sm:$0xff]
  %v3288 = vld [vmem:[%s10 + $0x2a0] sm:$0xff]
  %v3289 = vld [vmem:[%s10 + $0x2a8] sm:$0xff]
  %v3290 = vld [vmem:[%s10 + $0x2b0] sm:$0xff]
  %v3291 = vld [vmem:[%s10 + $0x2b8] sm:$0xff]
  %v3292 = vld [vmem:[%s10 + $0x2c0] sm:$0xff]
  %v3293 = vld [vmem:[%s10 + $0x2c8] sm:$0xff]
  %v3294 = vld [vmem:[%s10 + $0x2d0] sm:$0xff]
  %v3295 = vld [vmem:[%s10 + $0x2d8] sm:$0xff]
  %v3296 = vld [vmem:[%s10 + $0x2e0] sm:$0xff]
  %v3297 = vld [vmem:[%s10 + $0x2e8] sm:$0xff]
  %v3298 = vld [vmem:[%s10 + $0x2f0] sm:$0xff]
  %v3299 = vld [vmem:[%s10 + $0x2f8] sm:$0xff]
  %v3300 = vld [vmem:[%s10 + $0x300] sm:$0xff]
  %v3301 = vld [vmem:[%s10 + $0x308] sm:$0xff]
  %v3302 = vld [vmem:[%s10 + $0x310] sm:$0xff]
  %v3303 = vld [vmem:[%s10 + $0x318] sm:$0xff]
  %v3304 = vld [vmem:[%s10 + $0x320] sm:$0xff]
  %v3305 = vld [vmem:[%s10 + $0x328] sm:$0xff]
  %v3306 = vld [vmem:[%s10 + $0x330] sm:$0xff]
  %v3307 = vld [vmem:[%s10 + $0x338] sm:$0xff]
  %v3308 = vld [vmem:[%s10 + $0x340] sm:$0xff]
  %v3309 = vld [vmem:[%s10 + $0x348] sm:$0xff]
  %v3310 = vld [vmem:[%s10 + $0x350] sm:$0xff]
  %v3311 = vld [vmem:[%s10 + $0x358] sm:$0xff]
  %v3312 = vld [vmem:[%s10 + $0x360] sm:$0xff]
  %v3313 = vld [vmem:[%s10 + $0x368] sm:$0xff]
  %v3314 = vld [vmem:[%s10 + $0x370] sm:$0xff]
  %v3315 = vld [vmem:[%s10 + $0x378] sm:$0xff]
  %v3316 = vld [vmem:[%s10 + $0x380] sm:$0xff]
  %v3317 = vld [vmem:[%s10 + $0x388] sm:$0xff]
  %v3318 = vld [vmem:[%s10 + $0x390] sm:$0xff]
  %v3319 = vld [vmem:[%s10 + $0x398] sm:$0xff]
  %v3320 = vld [vmem:[%s10 + $0x3a0] sm:$0xff]
  %v3321 = vld [vmem:[%s10 + $0x3a8] sm:$0xff]
  %v3322 = vld [vmem:[%s10 + $0x3b0] sm:$0xff]
  %v3323 = vld [vmem:[%s10 + $0x3b8] sm:$0xff]
  %v3324 = vld [vmem:[%s10 + $0x3c0] sm:$0xff]
  %v3325 = vld [vmem:[%s10 + $0x3c8] sm:$0xff]
  %v3326 = vld [vmem:[%s10 + $0x3d0] sm:$0xff]
  %v3327 = vld [vmem:[%s10 + $0x3d8] sm:$0xff]
  %v3328 = vld [vmem:[%s10 + $0x3e0] sm:$0xff]
  %v3329 = vld [vmem:[%s10 + $0x3e8] sm:$0xff]
  %v3330 = vld [vmem:[%s10 + $0x3f0] sm:$0xff]
  %v3331 = vld [vmem:[%s10 + $0x3f8] sm:$0xff]
  %v3332 = vld [vmem:[%s10 + $0x400] sm:$0xff]
  %v3333 = vld [vmem:[%s10 + $0x408] sm:$0xff]
  %v3334 = vld [vmem:[%s10 + $0x410] sm:$0xff]
  %v3335 = vld [vmem:[%s10 + $0x418] sm:$0xff]
  %v3336 = vld [vmem:[%s10 + $0x420] sm:$0xff]
  %v3337 = vld [vmem:[%s10 + $0x428] sm:$0xff]
  %v3338 = vld [vmem:[%s10 + $0x430] sm:$0xff]
  %v3339 = vld [vmem:[%s10 + $0x438] sm:$0xff]
  %v3340 = vld [vmem:[%s10 + $0x440] sm:$0xff]
  %v3341 = vld [vmem:[%s10 + $0x448] sm:$0xff]
  %v3342 = vld [vmem:[%s10 + $0x450] sm:$0xff]
  %v3343 = vld [vmem:[%s10 + $0x458] sm:$0xff]
  %v3344 = vld [vmem:[%s10 + $0x460] sm:$0xff]
  %v3345 = vld [vmem:[%s10 + $0x468] sm:$0xff]
  %v3346 = vld [vmem:[%s10 + $0x470] sm:$0xff]
  %v3347 = vld [vmem:[%s10 + $0x478] sm:$0xff]
  %v3348 = vld [vmem:[%s10 + $0x480] sm:$0xff]
  %v3349 = vld [vmem:[%s10 + $0x488] sm:$0xff]
  %v3350 = vld [vmem:[%s10 + $0x490] sm:$0xff]
  %v3351 = vld [vmem:[%s10 + $0x498] sm:$0xff]
  %v3352 = vld [vmem:[%s10 + $0x4a0] sm:$0xff]
  %v3353 = vld [vmem:[%s10 + $0x4a8] sm:$0xff]
  %v3354 = vld [vmem:[%s10 + $0x4b0] sm:$0xff]
  %v3355 = vld [vmem:[%s10 + $0x4b8] sm:$0xff]
  %v3356 = vld [vmem:[%s10 + $0x4c0] sm:$0xff]
  %v3357 = vld [vmem:[%s10 + $0x4c8] sm:$0xff]
  %v3358 = vld [vmem:[%s10 + $0x4d0] sm:$0xff]
  %v3359 = vld [vmem:[%s10 + $0x4d8] sm:$0xff]
  %v3360 = vld [vmem:[%s10 + $0x4e0] sm:$0xff]
  %v3361 = vld [vmem:[%s10 + $0x4e8] sm:$0xff]
  %v3362 = vld [vmem:[%s10 + $0x4f0] sm:$0xff]
  %v3363 = vld [vmem:[%s10 + $0x4f8] sm:$0xff]
  %v3364 = vld [vmem:[%s10 + $0x500] sm:$0xff]
  %v3365 = vld [vmem:[%s10 + $0x508] sm:$0xff]
  %v3366 = vld [vmem:[%s10 + $0x510] sm:$0xff]
  %v3367 = vld [vmem:[%s10 + $0x518] sm:$0xff]
  %v3368 = vld [vmem:[%s10 + $0x520] sm:$0xff]
  %v3369 = vld [vmem:[%s10 + $0x528] sm:$0xff]
  %v3370 = vld [vmem:[%s10 + $0x530] sm:$0xff]
  %v3371 = vld [vmem:[%s10 + $0x538] sm:$0xff]
  %v3372 = vld [vmem:[%s10 + $0x540] sm:$0xff]
  %v3373 = vld [vmem:[%s10 + $0x548] sm:$0xff]
  %v3374 = vld [vmem:[%s10 + $0x550] sm:$0xff]
  %v3375 = vld [vmem:[%s10 + $0x558] sm:$0xff]
  %v3376 = vld [vmem:[%s10 + $0x560] sm:$0xff]
  %v3377 = vld [vmem:[%s10 + $0x568] sm:$0xff]
  %v3378 = vld [vmem:[%s10 + $0x570] sm:$0xff]
  %v3379 = vld [vmem:[%s10 + $0x578] sm:$0xff]
  %v3380 = vld [vmem:[%s10 + $0x580] sm:$0xff]
  %v3381 = vld [vmem:[%s10 + $0x588] sm:$0xff]
  %v3382 = vld [vmem:[%s10 + $0x590] sm:$0xff]
  %v3383 = vld [vmem:[%s10 + $0x598] sm:$0xff]
  %v3384 = vld [vmem:[%s10 + $0x5a0] sm:$0xff]
  %v3385 = vld [vmem:[%s10 + $0x5a8] sm:$0xff]
  %v3386 = vld [vmem:[%s10 + $0x5b0] sm:$0xff]
  %v3387 = vld [vmem:[%s10 + $0x5b8] sm:$0xff]
  %v3388 = vld [vmem:[%s10 + $0x5c0] sm:$0xff]
  %v3389 = vld [vmem:[%s10 + $0x5c8] sm:$0xff]
  %v3390 = vld [vmem:[%s10 + $0x5d0] sm:$0xff]
  %v3391 = vld [vmem:[%s10 + $0x5d8] sm:$0xff]
  %v3392 = vld [vmem:[%s10 + $0x5e0] sm:$0xff]
  %v3393 = vld [vmem:[%s10 + $0x5e8] sm:$0xff]
  %v3394 = vld [vmem:[%s10 + $0x5f0] sm:$0xff]
  %v3395 = vld [vmem:[%s10 + $0x5f8] sm:$0xff]
  %v3396 = vld [vmem:[%s10 + $0x600] sm:$0xff]
  %v3397 = vld [vmem:[%s10 + $0x608] sm:$0xff]
  %v3398 = vld [vmem:[%s10 + $0x610] sm:$0xff]
  %v3399 = vld [vmem:[%s10 + $0x618] sm:$0xff]
  %v3400 = vld [vmem:[%s10 + $0x620] sm:$0xff]
  %v3401 = vld [vmem:[%s10 + $0x628] sm:$0xff]
  %v3402 = vld [vmem:[%s10 + $0x630] sm:$0xff]
  %v3403 = vld [vmem:[%s10 + $0x638] sm:$0xff]
  %v3404 = vld [vmem:[%s10 + $0x640] sm:$0xff]
  %v3405 = vld [vmem:[%s10 + $0x648] sm:$0xff]
  %v3406 = vld [vmem:[%s10 + $0x650] sm:$0xff]
  %v3407 = vld [vmem:[%s10 + $0x658] sm:$0xff]
  %v3408 = vld [vmem:[%s10 + $0x660] sm:$0xff]
  %v3409 = vld [vmem:[%s10 + $0x668] sm:$0xff]
  %v3410 = vld [vmem:[%s10 + $0x670] sm:$0xff]
  %v3411 = vld [vmem:[%s10 + $0x678] sm:$0xff]
  %v3412 = vld [vmem:[%s10 + $0x680] sm:$0xff]
  %v3413 = vld [vmem:[%s10 + $0x688] sm:$0xff]
  %v3414 = vld [vmem:[%s10 + $0x690] sm:$0xff]
  %v3415 = vld [vmem:[%s10 + $0x698] sm:$0xff]
  %v3416 = vld [vmem:[%s10 + $0x6a0] sm:$0xff]
  %v3417 = vld [vmem:[%s10 + $0x6a8] sm:$0xff]
  %v3418 = vld [vmem:[%s10 + $0x6b0] sm:$0xff]
  %v3419 = vld [vmem:[%s10 + $0x6b8] sm:$0xff]
  %v3420 = vld [vmem:[%s10 + $0x6c0] sm:$0xff]
  %v3421 = vld [vmem:[%s10 + $0x6c8] sm:$0xff]
  %v3422 = vld [vmem:[%s10 + $0x6d0] sm:$0xff]
  %v3423 = vld [vmem:[%s10 + $0x6d8] sm:$0xff]
  %v3424 = vld [vmem:[%s10 + $0x6e0] sm:$0xff]
  %v3425 = vld [vmem:[%s10 + $0x6e8] sm:$0xff]
  %v3426 = vld [vmem:[%s10 + $0x6f0] sm:$0xff]
  %v3427 = vld [vmem:[%s10 + $0x6f8] sm:$0xff]
  %v3428 = vld [vmem:[%s10 + $0x700] sm:$0xff]
  %v3429 = vld [vmem:[%s10 + $0x708] sm:$0xff]
  %v3430 = vld [vmem:[%s10 + $0x710] sm:$0xff]
  %v3431 = vld [vmem:[%s10 + $0x718] sm:$0xff]
  %v3432 = vld [vmem:[%s10 + $0x720] sm:$0xff]
  %v3433 = vld [vmem:[%s10 + $0x728] sm:$0xff]
  %v3434 = vld [vmem:[%s10 + $0x730] sm:$0xff]
  %v3435 = vld [vmem:[%s10 + $0x738] sm:$0xff]
  %v3436 = vld [vmem:[%s10 + $0x740] sm:$0xff]
  %v3437 = vld [vmem:[%s10 + $0x748] sm:$0xff]
  %v3438 = vld [vmem:[%s10 + $0x750] sm:$0xff]
  %v3439 = vld [vmem:[%s10 + $0x758] sm:$0xff]
  %v3440 = vld [vmem:[%s10 + $0x760] sm:$0xff]
  %v3441 = vld [vmem:[%s10 + $0x768] sm:$0xff]
  %v3442 = vld [vmem:[%s10 + $0x770] sm:$0xff]
  %v3443 = vld [vmem:[%s10 + $0x778] sm:$0xff]
  %v3444 = vld [vmem:[%s10 + $0x780] sm:$0xff]
  %v3445 = vld [vmem:[%s10 + $0x788] sm:$0xff]
  %v3446 = vld [vmem:[%s10 + $0x790] sm:$0xff]
  %v3447 = vld [vmem:[%s10 + $0x798] sm:$0xff]
  %v3448 = vld [vmem:[%s10 + $0x7a0] sm:$0xff]
  %v3449 = vld [vmem:[%s10 + $0x7a8] sm:$0xff]
  %v3450 = vld [vmem:[%s10 + $0x7b0] sm:$0xff]
  %v3451 = vld [vmem:[%s10 + $0x7b8] sm:$0xff]
  %v3452 = vld [vmem:[%s10 + $0x7c0] sm:$0xff]
  %v3453 = vld [vmem:[%s10 + $0x7c8] sm:$0xff]
  %v3454 = vld [vmem:[%s10 + $0x7d0] sm:$0xff]
  %v3455 = vld [vmem:[%s10 + $0x7d8] sm:$0xff]
  %v3456 = vld [vmem:[%s10 + $0x7e0] sm:$0xff]
  %v3457 = vld [vmem:[%s10 + $0x7e8] sm:$0xff]
  %v3458 = vld [vmem:[%s10 + $0x7f0] sm:$0xff]
  %v3459 = vld [vmem:[%s10 + $0x7f8] sm:$0xff]
  %v3716 = vunpack.c.l.b16 %v3204
  %v3717 = vunpack.c.h.b16 %v3204
  %v3718 = vunpack.c.l.b16 %v3205
  %v3719 = vunpack.c.h.b16 %v3205
  %v3720 = vunpack.c.l.b16 %v3206
  %v3721 = vunpack.c.h.b16 %v3206
  %v3722 = vunpack.c.l.b16 %v3207
  %v3723 = vunpack.c.h.b16 %v3207
  %v3724 = vunpack.c.l.b16 %v3208
  %v3725 = vunpack.c.h.b16 %v3208
  %v3726 = vunpack.c.l.b16 %v3209
  %v3727 = vunpack.c.h.b16 %v3209
  %v3728 = vunpack.c.l.b16 %v3210
  %v3729 = vunpack.c.h.b16 %v3210
  %v3730 = vunpack.c.l.b16 %v3211
  %v3731 = vunpack.c.h.b16 %v3211
  %v3732 = vunpack.c.l.b16 %v3212
  %v3733 = vunpack.c.h.b16 %v3212
  %v3734 = vunpack.c.l.b16 %v3213
  %v3735 = vunpack.c.h.b16 %v3213
  %v3736 = vunpack.c.l.b16 %v3214
  %v3737 = vunpack.c.h.b16 %v3214
  %v3738 = vunpack.c.l.b16 %v3215
  %v3739 = vunpack.c.h.b16 %v3215
  %v3740 = vunpack.c.l.b16 %v3216
  %v3741 = vunpack.c.h.b16 %v3216
  %v3742 = vunpack.c.l.b16 %v3217
  %v3743 = vunpack.c.h.b16 %v3217
  %v3744 = vunpack.c.l.b16 %v3218
  %v3745 = vunpack.c.h.b16 %v3218
  %v3746 = vunpack.c.l.b16 %v3219
  %v3747 = vunpack.c.h.b16 %v3219
  %v3748 = vunpack.c.l.b16 %v3220
  %v3749 = vunpack.c.h.b16 %v3220
  %v3750 = vunpack.c.l.b16 %v3221
  %v3751 = vunpack.c.h.b16 %v3221
  %v3752 = vunpack.c.l.b16 %v3222
  %v3753 = vunpack.c.h.b16 %v3222
  %v3754 = vunpack.c.l.b16 %v3223
  %v3755 = vunpack.c.h.b16 %v3223
  %v3756 = vunpack.c.l.b16 %v3224
  %v3757 = vunpack.c.h.b16 %v3224
  %v3758 = vunpack.c.l.b16 %v3225
  %v3759 = vunpack.c.h.b16 %v3225
  %v3760 = vunpack.c.l.b16 %v3226
  %v3761 = vunpack.c.h.b16 %v3226
  %v3762 = vunpack.c.l.b16 %v3227
  %v3763 = vunpack.c.h.b16 %v3227
  %v3764 = vunpack.c.l.b16 %v3228
  %v3765 = vunpack.c.h.b16 %v3228
  %v3766 = vunpack.c.l.b16 %v3229
  %v3767 = vunpack.c.h.b16 %v3229
  %v3768 = vunpack.c.l.b16 %v3230
  %v3769 = vunpack.c.h.b16 %v3230
  %v3770 = vunpack.c.l.b16 %v3231
  %v3771 = vunpack.c.h.b16 %v3231
  %v3772 = vunpack.c.l.b16 %v3232
  %v3773 = vunpack.c.h.b16 %v3232
  %v3774 = vunpack.c.l.b16 %v3233
  %v3775 = vunpack.c.h.b16 %v3233
  %v3776 = vunpack.c.l.b16 %v3234
  %v3777 = vunpack.c.h.b16 %v3234
  %v3778 = vunpack.c.l.b16 %v3235
  %v3779 = vunpack.c.h.b16 %v3235
  %v3780 = vunpack.c.l.b16 %v3236
  %v3781 = vunpack.c.h.b16 %v3236
  %v3782 = vunpack.c.l.b16 %v3237
  %v3783 = vunpack.c.h.b16 %v3237
  %v3784 = vunpack.c.l.b16 %v3238
  %v3785 = vunpack.c.h.b16 %v3238
  %v3786 = vunpack.c.l.b16 %v3239
  %v3787 = vunpack.c.h.b16 %v3239
  %v3788 = vunpack.c.l.b16 %v3240
  %v3789 = vunpack.c.h.b16 %v3240
  %v3790 = vunpack.c.l.b16 %v3241
  %v3791 = vunpack.c.h.b16 %v3241
  %v3792 = vunpack.c.l.b16 %v3242
  %v3793 = vunpack.c.h.b16 %v3242
  %v3794 = vunpack.c.l.b16 %v3243
  %v3795 = vunpack.c.h.b16 %v3243
  %v3796 = vunpack.c.l.b16 %v3244
  %v3797 = vunpack.c.h.b16 %v3244
  %v3798 = vunpack.c.l.b16 %v3245
  %v3799 = vunpack.c.h.b16 %v3245
  %v3800 = vunpack.c.l.b16 %v3246
  %v3801 = vunpack.c.h.b16 %v3246
  %v3802 = vunpack.c.l.b16 %v3247
  %v3803 = vunpack.c.h.b16 %v3247
  %v3804 = vunpack.c.l.b16 %v3248
  %v3805 = vunpack.c.h.b16 %v3248
  %v3806 = vunpack.c.l.b16 %v3249
  %v3807 = vunpack.c.h.b16 %v3249
  %v3808 = vunpack.c.l.b16 %v3250
  %v3809 = vunpack.c.h.b16 %v3250
  %v3810 = vunpack.c.l.b16 %v3251
  %v3811 = vunpack.c.h.b16 %v3251
  %v3812 = vunpack.c.l.b16 %v3252
  %v3813 = vunpack.c.h.b16 %v3252
  %v3814 = vunpack.c.l.b16 %v3253
  %v3815 = vunpack.c.h.b16 %v3253
  %v3816 = vunpack.c.l.b16 %v3254
  %v3817 = vunpack.c.h.b16 %v3254
  %v3818 = vunpack.c.l.b16 %v3255
  %v3819 = vunpack.c.h.b16 %v3255
  %v3820 = vunpack.c.l.b16 %v3256
  %v3821 = vunpack.c.h.b16 %v3256
  %v3822 = vunpack.c.l.b16 %v3257
  %v3823 = vunpack.c.h.b16 %v3257
  %v3824 = vunpack.c.l.b16 %v3258
  %v3825 = vunpack.c.h.b16 %v3258
  %v3826 = vunpack.c.l.b16 %v3259
  %v3827 = vunpack.c.h.b16 %v3259
  %v3828 = vunpack.c.l.b16 %v3260
  %v3829 = vunpack.c.h.b16 %v3260
  %v3830 = vunpack.c.l.b16 %v3261
  %v3831 = vunpack.c.h.b16 %v3261
  %v3832 = vunpack.c.l.b16 %v3262
  %v3833 = vunpack.c.h.b16 %v3262
  %v3834 = vunpack.c.l.b16 %v3263
  %v3835 = vunpack.c.h.b16 %v3263
  %v3836 = vunpack.c.l.b16 %v3264
  %v3837 = vunpack.c.h.b16 %v3264
  %v3838 = vunpack.c.l.b16 %v3265
  %v3839 = vunpack.c.h.b16 %v3265
  %v3840 = vunpack.c.l.b16 %v3266
  %v3841 = vunpack.c.h.b16 %v3266
  %v3842 = vunpack.c.l.b16 %v3267
  %v3843 = vunpack.c.h.b16 %v3267
  %v3844 = vunpack.c.l.b16 %v3268
  %v3845 = vunpack.c.h.b16 %v3268
  %v3846 = vunpack.c.l.b16 %v3269
  %v3847 = vunpack.c.h.b16 %v3269
  %v3848 = vunpack.c.l.b16 %v3270
  %v3849 = vunpack.c.h.b16 %v3270
  %v3850 = vunpack.c.l.b16 %v3271
  %v3851 = vunpack.c.h.b16 %v3271
  %v3852 = vunpack.c.l.b16 %v3272
  %v3853 = vunpack.c.h.b16 %v3272
  %v3854 = vunpack.c.l.b16 %v3273
  %v3855 = vunpack.c.h.b16 %v3273
  %v3856 = vunpack.c.l.b16 %v3274
  %v3857 = vunpack.c.h.b16 %v3274
  %v3858 = vunpack.c.l.b16 %v3275
  %v3859 = vunpack.c.h.b16 %v3275
  %v3860 = vunpack.c.l.b16 %v3276
  %v3861 = vunpack.c.h.b16 %v3276
  %v3862 = vunpack.c.l.b16 %v3277
  %v3863 = vunpack.c.h.b16 %v3277
  %v3864 = vunpack.c.l.b16 %v3278
  %v3865 = vunpack.c.h.b16 %v3278
  %v3866 = vunpack.c.l.b16 %v3279
  %v3867 = vunpack.c.h.b16 %v3279
  %v3868 = vunpack.c.l.b16 %v3280
  %v3869 = vunpack.c.h.b16 %v3280
  %v3870 = vunpack.c.l.b16 %v3281
  %v3871 = vunpack.c.h.b16 %v3281
  %v3872 = vunpack.c.l.b16 %v3282
  %v3873 = vunpack.c.h.b16 %v3282
  %v3874 = vunpack.c.l.b16 %v3283
  %v3875 = vunpack.c.h.b16 %v3283
  %v3876 = vunpack.c.l.b16 %v3284
  %v3877 = vunpack.c.h.b16 %v3284
  %v3878 = vunpack.c.l.b16 %v3285
  %v3879 = vunpack.c.h.b16 %v3285
  %v3880 = vunpack.c.l.b16 %v3286
  %v3881 = vunpack.c.h.b16 %v3286
  %v3882 = vunpack.c.l.b16 %v3287
  %v3883 = vunpack.c.h.b16 %v3287
  %v3884 = vunpack.c.l.b16 %v3288
  %v3885 = vunpack.c.h.b16 %v3288
  %v3886 = vunpack.c.l.b16 %v3289
  %v3887 = vunpack.c.h.b16 %v3289
  %v3888 = vunpack.c.l.b16 %v3290
  %v3889 = vunpack.c.h.b16 %v3290
  %v3890 = vunpack.c.l.b16 %v3291
  %v3891 = vunpack.c.h.b16 %v3291
  %v3892 = vunpack.c.l.b16 %v3292
  %v3893 = vunpack.c.h.b16 %v3292
  %v3894 = vunpack.c.l.b16 %v3293
  %v3895 = vunpack.c.h.b16 %v3293
  %v3896 = vunpack.c.l.b16 %v3294
  %v3897 = vunpack.c.h.b16 %v3294
  %v3898 = vunpack.c.l.b16 %v3295
  %v3899 = vunpack.c.h.b16 %v3295
  %v3900 = vunpack.c.l.b16 %v3296
  %v3901 = vunpack.c.h.b16 %v3296
  %v3902 = vunpack.c.l.b16 %v3297
  %v3903 = vunpack.c.h.b16 %v3297
  %v3904 = vunpack.c.l.b16 %v3298
  %v3905 = vunpack.c.h.b16 %v3298
  %v3906 = vunpack.c.l.b16 %v3299
  %v3907 = vunpack.c.h.b16 %v3299
  %v3908 = vunpack.c.l.b16 %v3300
  %v3909 = vunpack.c.h.b16 %v3300
  %v3910 = vunpack.c.l.b16 %v3301
  %v3911 = vunpack.c.h.b16 %v3301
  %v3912 = vunpack.c.l.b16 %v3302
  %v3913 = vunpack.c.h.b16 %v3302
  %v3914 = vunpack.c.l.b16 %v3303
  %v3915 = vunpack.c.h.b16 %v3303
  %v3916 = vunpack.c.l.b16 %v3304
  %v3917 = vunpack.c.h.b16 %v3304
  %v3918 = vunpack.c.l.b16 %v3305
  %v3919 = vunpack.c.h.b16 %v3305
  %v3920 = vunpack.c.l.b16 %v3306
  %v3921 = vunpack.c.h.b16 %v3306
  %v3922 = vunpack.c.l.b16 %v3307
  %v3923 = vunpack.c.h.b16 %v3307
  %v3924 = vunpack.c.l.b16 %v3308
  %v3925 = vunpack.c.h.b16 %v3308
  %v3926 = vunpack.c.l.b16 %v3309
  %v3927 = vunpack.c.h.b16 %v3309
  %v3928 = vunpack.c.l.b16 %v3310
  %v3929 = vunpack.c.h.b16 %v3310
  %v3930 = vunpack.c.l.b16 %v3311
  %v3931 = vunpack.c.h.b16 %v3311
  %v3932 = vunpack.c.l.b16 %v3312
  %v3933 = vunpack.c.h.b16 %v3312
  %v3934 = vunpack.c.l.b16 %v3313
  %v3935 = vunpack.c.h.b16 %v3313
  %v3936 = vunpack.c.l.b16 %v3314
  %v3937 = vunpack.c.h.b16 %v3314
  %v3938 = vunpack.c.l.b16 %v3315
  %v3939 = vunpack.c.h.b16 %v3315
  %v3940 = vunpack.c.l.b16 %v3316
  %v3941 = vunpack.c.h.b16 %v3316
  %v3942 = vunpack.c.l.b16 %v3317
  %v3943 = vunpack.c.h.b16 %v3317
  %v3944 = vunpack.c.l.b16 %v3318
  %v3945 = vunpack.c.h.b16 %v3318
  %v3946 = vunpack.c.l.b16 %v3319
  %v3947 = vunpack.c.h.b16 %v3319
  %v3948 = vunpack.c.l.b16 %v3320
  %v3949 = vunpack.c.h.b16 %v3320
  %v3950 = vunpack.c.l.b16 %v3321
  %v3951 = vunpack.c.h.b16 %v3321
  %v3952 = vunpack.c.l.b16 %v3322
  %v3953 = vunpack.c.h.b16 %v3322
  %v3954 = vunpack.c.l.b16 %v3323
  %v3955 = vunpack.c.h.b16 %v3323
  %v3956 = vunpack.c.l.b16 %v3324
  %v3957 = vunpack.c.h.b16 %v3324
  %v3958 = vunpack.c.l.b16 %v3325
  %v3959 = vunpack.c.h.b16 %v3325
  %v3960 = vunpack.c.l.b16 %v3326
  %v3961 = vunpack.c.h.b16 %v3326
  %v3962 = vunpack.c.l.b16 %v3327
  %v3963 = vunpack.c.h.b16 %v3327
  %v3964 = vunpack.c.l.b16 %v3328
  %v3965 = vunpack.c.h.b16 %v3328
  %v3966 = vunpack.c.l.b16 %v3329
  %v3967 = vunpack.c.h.b16 %v3329
  %v3968 = vunpack.c.l.b16 %v3330
  %v3969 = vunpack.c.h.b16 %v3330
  %v3970 = vunpack.c.l.b16 %v3331
  %v3971 = vunpack.c.h.b16 %v3331
  %v3972 = vunpack.c.l.b16 %v3332
  %v3973 = vunpack.c.h.b16 %v3332
  %v3974 = vunpack.c.l.b16 %v3333
  %v3975 = vunpack.c.h.b16 %v3333
  %v3976 = vunpack.c.l.b16 %v3334
  %v3977 = vunpack.c.h.b16 %v3334
  %v3978 = vunpack.c.l.b16 %v3335
  %v3979 = vunpack.c.h.b16 %v3335
  %v3980 = vunpack.c.l.b16 %v3336
  %v3981 = vunpack.c.h.b16 %v3336
  %v3982 = vunpack.c.l.b16 %v3337
  %v3983 = vunpack.c.h.b16 %v3337
  %v3984 = vunpack.c.l.b16 %v3338
  %v3985 = vunpack.c.h.b16 %v3338
  %v3986 = vunpack.c.l.b16 %v3339
  %v3987 = vunpack.c.h.b16 %v3339
  %v3988 = vunpack.c.l.b16 %v3340
  %v3989 = vunpack.c.h.b16 %v3340
  %v3990 = vunpack.c.l.b16 %v3341
  %v3991 = vunpack.c.h.b16 %v3341
  %v3992 = vunpack.c.l.b16 %v3342
  %v3993 = vunpack.c.h.b16 %v3342
  %v3994 = vunpack.c.l.b16 %v3343
  %v3995 = vunpack.c.h.b16 %v3343
  %v3996 = vunpack.c.l.b16 %v3344
  %v3997 = vunpack.c.h.b16 %v3344
  %v3998 = vunpack.c.l.b16 %v3345
  %v3999 = vunpack.c.h.b16 %v3345
  %v4000 = vunpack.c.l.b16 %v3346
  %v4001 = vunpack.c.h.b16 %v3346
  %v4002 = vunpack.c.l.b16 %v3347
  %v4003 = vunpack.c.h.b16 %v3347
  %v4004 = vunpack.c.l.b16 %v3348
  %v4005 = vunpack.c.h.b16 %v3348
  %v4006 = vunpack.c.l.b16 %v3349
  %v4007 = vunpack.c.h.b16 %v3349
  %v4008 = vunpack.c.l.b16 %v3350
  %v4009 = vunpack.c.h.b16 %v3350
  %v4010 = vunpack.c.l.b16 %v3351
  %v4011 = vunpack.c.h.b16 %v3351
  %v4012 = vunpack.c.l.b16 %v3352
  %v4013 = vunpack.c.h.b16 %v3352
  %v4014 = vunpack.c.l.b16 %v3353
  %v4015 = vunpack.c.h.b16 %v3353
  %v4016 = vunpack.c.l.b16 %v3354
  %v4017 = vunpack.c.h.b16 %v3354
  %v4018 = vunpack.c.l.b16 %v3355
  %v4019 = vunpack.c.h.b16 %v3355
  %v4020 = vunpack.c.l.b16 %v3356
  %v4021 = vunpack.c.h.b16 %v3356
  %v4022 = vunpack.c.l.b16 %v3357
  %v4023 = vunpack.c.h.b16 %v3357
  %v4024 = vunpack.c.l.b16 %v3358
  %v4025 = vunpack.c.h.b16 %v3358
  %v4026 = vunpack.c.l.b16 %v3359
  %v4027 = vunpack.c.h.b16 %v3359
  %v4028 = vunpack.c.l.b16 %v3360
  %v4029 = vunpack.c.h.b16 %v3360
  %v4030 = vunpack.c.l.b16 %v3361
  %v4031 = vunpack.c.h.b16 %v3361
  %v4032 = vunpack.c.l.b16 %v3362
  %v4033 = vunpack.c.h.b16 %v3362
  %v4034 = vunpack.c.l.b16 %v3363
  %v4035 = vunpack.c.h.b16 %v3363
  %v4036 = vunpack.c.l.b16 %v3364
  %v4037 = vunpack.c.h.b16 %v3364
  %v4038 = vunpack.c.l.b16 %v3365
  %v4039 = vunpack.c.h.b16 %v3365
  %v4040 = vunpack.c.l.b16 %v3366
  %v4041 = vunpack.c.h.b16 %v3366
  %v4042 = vunpack.c.l.b16 %v3367
  %v4043 = vunpack.c.h.b16 %v3367
  %v4044 = vunpack.c.l.b16 %v3368
  %v4045 = vunpack.c.h.b16 %v3368
  %v4046 = vunpack.c.l.b16 %v3369
  %v4047 = vunpack.c.h.b16 %v3369
  %v4048 = vunpack.c.l.b16 %v3370
  %v4049 = vunpack.c.h.b16 %v3370
  %v4050 = vunpack.c.l.b16 %v3371
  %v4051 = vunpack.c.h.b16 %v3371
  %v4052 = vunpack.c.l.b16 %v3372
  %v4053 = vunpack.c.h.b16 %v3372
  %v4054 = vunpack.c.l.b16 %v3373
  %v4055 = vunpack.c.h.b16 %v3373
  %v4056 = vunpack.c.l.b16 %v3374
  %v4057 = vunpack.c.h.b16 %v3374
  %v4058 = vunpack.c.l.b16 %v3375
  %v4059 = vunpack.c.h.b16 %v3375
  %v4060 = vunpack.c.l.b16 %v3376
  %v4061 = vunpack.c.h.b16 %v3376
  %v4062 = vunpack.c.l.b16 %v3377
  %v4063 = vunpack.c.h.b16 %v3377
  %v4064 = vunpack.c.l.b16 %v3378
  %v4065 = vunpack.c.h.b16 %v3378
  %v4066 = vunpack.c.l.b16 %v3379
  %v4067 = vunpack.c.h.b16 %v3379
  %v4068 = vunpack.c.l.b16 %v3380
  %v4069 = vunpack.c.h.b16 %v3380
  %v4070 = vunpack.c.l.b16 %v3381
  %v4071 = vunpack.c.h.b16 %v3381
  %v4072 = vunpack.c.l.b16 %v3382
  %v4073 = vunpack.c.h.b16 %v3382
  %v4074 = vunpack.c.l.b16 %v3383
  %v4075 = vunpack.c.h.b16 %v3383
  %v4076 = vunpack.c.l.b16 %v3384
  %v4077 = vunpack.c.h.b16 %v3384
  %v4078 = vunpack.c.l.b16 %v3385
  %v4079 = vunpack.c.h.b16 %v3385
  %v4080 = vunpack.c.l.b16 %v3386
  %v4081 = vunpack.c.h.b16 %v3386
  %v4082 = vunpack.c.l.b16 %v3387
  %v4083 = vunpack.c.h.b16 %v3387
  %v4084 = vunpack.c.l.b16 %v3388
  %v4085 = vunpack.c.h.b16 %v3388
  %v4086 = vunpack.c.l.b16 %v3389
  %v4087 = vunpack.c.h.b16 %v3389
  %v4088 = vunpack.c.l.b16 %v3390
  %v4089 = vunpack.c.h.b16 %v3390
  %v4090 = vunpack.c.l.b16 %v3391
  %v4091 = vunpack.c.h.b16 %v3391
  %v4092 = vunpack.c.l.b16 %v3392
  %v4093 = vunpack.c.h.b16 %v3392
  %v4094 = vunpack.c.l.b16 %v3393
  %v4095 = vunpack.c.h.b16 %v3393
  %v4096 = vunpack.c.l.b16 %v3394
  %v4097 = vunpack.c.h.b16 %v3394
  %v4098 = vunpack.c.l.b16 %v3395
  %v4099 = vunpack.c.h.b16 %v3395
  %v4100 = vunpack.c.l.b16 %v3396
  %v4101 = vunpack.c.h.b16 %v3396
  %v4102 = vunpack.c.l.b16 %v3397
  %v4103 = vunpack.c.h.b16 %v3397
  %v4104 = vunpack.c.l.b16 %v3398
  %v4105 = vunpack.c.h.b16 %v3398
  %v4106 = vunpack.c.l.b16 %v3399
  %v4107 = vunpack.c.h.b16 %v3399
  %v4108 = vunpack.c.l.b16 %v3400
  %v4109 = vunpack.c.h.b16 %v3400
  %v4110 = vunpack.c.l.b16 %v3401
  %v4111 = vunpack.c.h.b16 %v3401
  %v4112 = vunpack.c.l.b16 %v3402
  %v4113 = vunpack.c.h.b16 %v3402
  %v4114 = vunpack.c.l.b16 %v3403
  %v4115 = vunpack.c.h.b16 %v3403
  %v4116 = vunpack.c.l.b16 %v3404
  %v4117 = vunpack.c.h.b16 %v3404
  %v4118 = vunpack.c.l.b16 %v3405
  %v4119 = vunpack.c.h.b16 %v3405
  %v4120 = vunpack.c.l.b16 %v3406
  %v4121 = vunpack.c.h.b16 %v3406
  %v4122 = vunpack.c.l.b16 %v3407
  %v4123 = vunpack.c.h.b16 %v3407
  %v4124 = vunpack.c.l.b16 %v3408
  %v4125 = vunpack.c.h.b16 %v3408
  %v4126 = vunpack.c.l.b16 %v3409
  %v4127 = vunpack.c.h.b16 %v3409
  %v4128 = vunpack.c.l.b16 %v3410
  %v4129 = vunpack.c.h.b16 %v3410
  %v4130 = vunpack.c.l.b16 %v3411
  %v4131 = vunpack.c.h.b16 %v3411
  %v4132 = vunpack.c.l.b16 %v3412
  %v4133 = vunpack.c.h.b16 %v3412
  %v4134 = vunpack.c.l.b16 %v3413
  %v4135 = vunpack.c.h.b16 %v3413
  %v4136 = vunpack.c.l.b16 %v3414
  %v4137 = vunpack.c.h.b16 %v3414
  %v4138 = vunpack.c.l.b16 %v3415
  %v4139 = vunpack.c.h.b16 %v3415
  %v4140 = vunpack.c.l.b16 %v3416
  %v4141 = vunpack.c.h.b16 %v3416
  %v4142 = vunpack.c.l.b16 %v3417
  %v4143 = vunpack.c.h.b16 %v3417
  %v4144 = vunpack.c.l.b16 %v3418
  %v4145 = vunpack.c.h.b16 %v3418
  %v4146 = vunpack.c.l.b16 %v3419
  %v4147 = vunpack.c.h.b16 %v3419
  %v4148 = vunpack.c.l.b16 %v3420
  %v4149 = vunpack.c.h.b16 %v3420
  %v4150 = vunpack.c.l.b16 %v3421
  %v4151 = vunpack.c.h.b16 %v3421
  %v4152 = vunpack.c.l.b16 %v3422
  %v4153 = vunpack.c.h.b16 %v3422
  %v4154 = vunpack.c.l.b16 %v3423
  %v4155 = vunpack.c.h.b16 %v3423
  %v4156 = vunpack.c.l.b16 %v3424
  %v4157 = vunpack.c.h.b16 %v3424
  %v4158 = vunpack.c.l.b16 %v3425
  %v4159 = vunpack.c.h.b16 %v3425
  %v4160 = vunpack.c.l.b16 %v3426
  %v4161 = vunpack.c.h.b16 %v3426
  %v4162 = vunpack.c.l.b16 %v3427
  %v4163 = vunpack.c.h.b16 %v3427
  %v4164 = vunpack.c.l.b16 %v3428
  %v4165 = vunpack.c.h.b16 %v3428
  %v4166 = vunpack.c.l.b16 %v3429
  %v4167 = vunpack.c.h.b16 %v3429
  %v4168 = vunpack.c.l.b16 %v3430
  %v4169 = vunpack.c.h.b16 %v3430
  %v4170 = vunpack.c.l.b16 %v3431
  %v4171 = vunpack.c.h.b16 %v3431
  %v4172 = vunpack.c.l.b16 %v3432
  %v4173 = vunpack.c.h.b16 %v3432
  %v4174 = vunpack.c.l.b16 %v3433
  %v4175 = vunpack.c.h.b16 %v3433
  %v4176 = vunpack.c.l.b16 %v3434
  %v4177 = vunpack.c.h.b16 %v3434
  %v4178 = vunpack.c.l.b16 %v3435
  %v4179 = vunpack.c.h.b16 %v3435
  %v4180 = vunpack.c.l.b16 %v3436
  %v4181 = vunpack.c.h.b16 %v3436
  %v4182 = vunpack.c.l.b16 %v3437
  %v4183 = vunpack.c.h.b16 %v3437
  %v4184 = vunpack.c.l.b16 %v3438
  %v4185 = vunpack.c.h.b16 %v3438
  %v4186 = vunpack.c.l.b16 %v3439
  %v4187 = vunpack.c.h.b16 %v3439
  %v4188 = vunpack.c.l.b16 %v3440
  %v4189 = vunpack.c.h.b16 %v3440
  %v4190 = vunpack.c.l.b16 %v3441
  %v4191 = vunpack.c.h.b16 %v3441
  %v4192 = vunpack.c.l.b16 %v3442
  %v4193 = vunpack.c.h.b16 %v3442
  %v4194 = vunpack.c.l.b16 %v3443
  %v4195 = vunpack.c.h.b16 %v3443
  %v4196 = vunpack.c.l.b16 %v3444
  %v4197 = vunpack.c.h.b16 %v3444
  %v4198 = vunpack.c.l.b16 %v3445
  %v4199 = vunpack.c.h.b16 %v3445
  %v4200 = vunpack.c.l.b16 %v3446
  %v4201 = vunpack.c.h.b16 %v3446
  %v4202 = vunpack.c.l.b16 %v3447
  %v4203 = vunpack.c.h.b16 %v3447
  %v4204 = vunpack.c.l.b16 %v3448
  %v4205 = vunpack.c.h.b16 %v3448
  %v4206 = vunpack.c.l.b16 %v3449
  %v4207 = vunpack.c.h.b16 %v3449
  %v4208 = vunpack.c.l.b16 %v3450
  %v4209 = vunpack.c.h.b16 %v3450
  %v4210 = vunpack.c.l.b16 %v3451
  %v4211 = vunpack.c.h.b16 %v3451
  %v4212 = vunpack.c.l.b16 %v3452
  %v4213 = vunpack.c.h.b16 %v3452
  %v4214 = vunpack.c.l.b16 %v3453
  %v4215 = vunpack.c.h.b16 %v3453
  %v4216 = vunpack.c.l.b16 %v3454
  %v4217 = vunpack.c.h.b16 %v3454
  %v4218 = vunpack.c.l.b16 %v3455
  %v4219 = vunpack.c.h.b16 %v3455
  %v4220 = vunpack.c.l.b16 %v3456
  %v4221 = vunpack.c.h.b16 %v3456
  %v4222 = vunpack.c.l.b16 %v3457
  %v4223 = vunpack.c.h.b16 %v3457
  %v4224 = vunpack.c.l.b16 %v3458
  %v4225 = vunpack.c.h.b16 %v3458
  %v4226 = vunpack.c.l.b16 %v3459
  %v4227 = vunpack.c.h.b16 %v3459
  %v4228 = vpack.c.b16 %v3720, %v3716
  %v4229 = vpack.c.b16 %v3721, %v3717
  %v4230 = vpack.c.b16 %v3722, %v3718
  %v4231 = vpack.c.b16 %v3723, %v3719
  %v4232 = vpack.c.b16 %v3728, %v3724
  %v4233 = vpack.c.b16 %v3729, %v3725
  %v4234 = vpack.c.b16 %v3730, %v3726
  %v4235 = vpack.c.b16 %v3731, %v3727
  %v4236 = vpack.c.b16 %v3736, %v3732
  %v4237 = vpack.c.b16 %v3737, %v3733
  %v4238 = vpack.c.b16 %v3738, %v3734
  %v4239 = vpack.c.b16 %v3739, %v3735
  %v4240 = vpack.c.b16 %v3744, %v3740
  %v4241 = vpack.c.b16 %v3745, %v3741
  %v4242 = vpack.c.b16 %v3746, %v3742
  %v4243 = vpack.c.b16 %v3747, %v3743
  %v4244 = vpack.c.b16 %v3752, %v3748
  %v4245 = vpack.c.b16 %v3753, %v3749
  %v4246 = vpack.c.b16 %v3754, %v3750
  %v4247 = vpack.c.b16 %v3755, %v3751
  %v4248 = vpack.c.b16 %v3760, %v3756
  %v4249 = vpack.c.b16 %v3761, %v3757
  %v4250 = vpack.c.b16 %v3762, %v3758
  %v4251 = vpack.c.b16 %v3763, %v3759
  %v4252 = vpack.c.b16 %v3768, %v3764
  %v4253 = vpack.c.b16 %v3769, %v3765
  %v4254 = vpack.c.b16 %v3770, %v3766
  %v4255 = vpack.c.b16 %v3771, %v3767
  %v4256 = vpack.c.b16 %v3776, %v3772
  %v4257 = vpack.c.b16 %v3777, %v3773
  %v4258 = vpack.c.b16 %v3778, %v3774
  %v4259 = vpack.c.b16 %v3779, %v3775
  %v4260 = vpack.c.b16 %v3784, %v3780
  %v4261 = vpack.c.b16 %v3785, %v3781
  %v4262 = vpack.c.b16 %v3786, %v3782
  %v4263 = vpack.c.b16 %v3787, %v3783
  %v4264 = vpack.c.b16 %v3792, %v3788
  %v4265 = vpack.c.b16 %v3793, %v3789
  %v4266 = vpack.c.b16 %v3794, %v3790
  %v4267 = vpack.c.b16 %v3795, %v3791
  %v4268 = vpack.c.b16 %v3800, %v3796
  %v4269 = vpack.c.b16 %v3801, %v3797
  %v4270 = vpack.c.b16 %v3802, %v3798
  %v4271 = vpack.c.b16 %v3803, %v3799
  %v4272 = vpack.c.b16 %v3808, %v3804
  %v4273 = vpack.c.b16 %v3809, %v3805
  %v4274 = vpack.c.b16 %v3810, %v3806
  %v4275 = vpack.c.b16 %v3811, %v3807
  %v4276 = vpack.c.b16 %v3816, %v3812
  %v4277 = vpack.c.b16 %v3817, %v3813
  %v4278 = vpack.c.b16 %v3818, %v3814
  %v4279 = vpack.c.b16 %v3819, %v3815
  %v4280 = vpack.c.b16 %v3824, %v3820
  %v4281 = vpack.c.b16 %v3825, %v3821
  %v4282 = vpack.c.b16 %v3826, %v3822
  %v4283 = vpack.c.b16 %v3827, %v3823
  %v4284 = vpack.c.b16 %v3832, %v3828
  %v4285 = vpack.c.b16 %v3833, %v3829
  %v4286 = vpack.c.b16 %v3834, %v3830
  %v4287 = vpack.c.b16 %v3835, %v3831
  %v4288 = vpack.c.b16 %v3840, %v3836
  %v4289 = vpack.c.b16 %v3841, %v3837
  %v4290 = vpack.c.b16 %v3842, %v3838
  %v4291 = vpack.c.b16 %v3843, %v3839
  %v4292 = vpack.c.b16 %v3848, %v3844
  %v4293 = vpack.c.b16 %v3849, %v3845
  %v4294 = vpack.c.b16 %v3850, %v3846
  %v4295 = vpack.c.b16 %v3851, %v3847
  %v4296 = vpack.c.b16 %v3856, %v3852
  %v4297 = vpack.c.b16 %v3857, %v3853
  %v4298 = vpack.c.b16 %v3858, %v3854
  %v4299 = vpack.c.b16 %v3859, %v3855
  %v4300 = vpack.c.b16 %v3864, %v3860
  %v4301 = vpack.c.b16 %v3865, %v3861
  %v4302 = vpack.c.b16 %v3866, %v3862
  %v4303 = vpack.c.b16 %v3867, %v3863
  %v4304 = vpack.c.b16 %v3872, %v3868
  %v4305 = vpack.c.b16 %v3873, %v3869
  %v4306 = vpack.c.b16 %v3874, %v3870
  %v4307 = vpack.c.b16 %v3875, %v3871
  %v4308 = vpack.c.b16 %v3880, %v3876
  %v4309 = vpack.c.b16 %v3881, %v3877
  %v4310 = vpack.c.b16 %v3882, %v3878
  %v4311 = vpack.c.b16 %v3883, %v3879
  %v4312 = vpack.c.b16 %v3888, %v3884
  %v4313 = vpack.c.b16 %v3889, %v3885
  %v4314 = vpack.c.b16 %v3890, %v3886
  %v4315 = vpack.c.b16 %v3891, %v3887
  %v4316 = vpack.c.b16 %v3896, %v3892
  %v4317 = vpack.c.b16 %v3897, %v3893
  %v4318 = vpack.c.b16 %v3898, %v3894
  %v4319 = vpack.c.b16 %v3899, %v3895
  %v4320 = vpack.c.b16 %v3904, %v3900
  %v4321 = vpack.c.b16 %v3905, %v3901
  %v4322 = vpack.c.b16 %v3906, %v3902
  %v4323 = vpack.c.b16 %v3907, %v3903
  %v4324 = vpack.c.b16 %v3912, %v3908
  %v4325 = vpack.c.b16 %v3913, %v3909
  %v4326 = vpack.c.b16 %v3914, %v3910
  %v4327 = vpack.c.b16 %v3915, %v3911
  %v4328 = vpack.c.b16 %v3920, %v3916
  %v4329 = vpack.c.b16 %v3921, %v3917
  %v4330 = vpack.c.b16 %v3922, %v3918
  %v4331 = vpack.c.b16 %v3923, %v3919
  %v4332 = vpack.c.b16 %v3928, %v3924
  %v4333 = vpack.c.b16 %v3929, %v3925
  %v4334 = vpack.c.b16 %v3930, %v3926
  %v4335 = vpack.c.b16 %v3931, %v3927
  %v4336 = vpack.c.b16 %v3936, %v3932
  %v4337 = vpack.c.b16 %v3937, %v3933
  %v4338 = vpack.c.b16 %v3938, %v3934
  %v4339 = vpack.c.b16 %v3939, %v3935
  %v4340 = vpack.c.b16 %v3944, %v3940
  %v4341 = vpack.c.b16 %v3945, %v3941
  %v4342 = vpack.c.b16 %v3946, %v3942
  %v4343 = vpack.c.b16 %v3947, %v3943
  %v4344 = vpack.c.b16 %v3952, %v3948
  %v4345 = vpack.c.b16 %v3953, %v3949
  %v4346 = vpack.c.b16 %v3954, %v3950
  %v4347 = vpack.c.b16 %v3955, %v3951
  %v4348 = vpack.c.b16 %v3960, %v3956
  %v4349 = vpack.c.b16 %v3961, %v3957
  %v4350 = vpack.c.b16 %v3962, %v3958
  %v4351 = vpack.c.b16 %v3963, %v3959
  %v4352 = vpack.c.b16 %v3968, %v3964
  %v4353 = vpack.c.b16 %v3969, %v3965
  %v4354 = vpack.c.b16 %v3970, %v3966
  %v4355 = vpack.c.b16 %v3971, %v3967
  %v4356 = vpack.c.b16 %v3976, %v3972
  %v4357 = vpack.c.b16 %v3977, %v3973
  %v4358 = vpack.c.b16 %v3978, %v3974
  %v4359 = vpack.c.b16 %v3979, %v3975
  %v4360 = vpack.c.b16 %v3984, %v3980
  %v4361 = vpack.c.b16 %v3985, %v3981
  %v4362 = vpack.c.b16 %v3986, %v3982
  %v4363 = vpack.c.b16 %v3987, %v3983
  %v4364 = vpack.c.b16 %v3992, %v3988
  %v4365 = vpack.c.b16 %v3993, %v3989
  %v4366 = vpack.c.b16 %v3994, %v3990
  %v4367 = vpack.c.b16 %v3995, %v3991
  %v4368 = vpack.c.b16 %v4000, %v3996
  %v4369 = vpack.c.b16 %v4001, %v3997
  %v4370 = vpack.c.b16 %v4002, %v3998
  %v4371 = vpack.c.b16 %v4003, %v3999
  %v4372 = vpack.c.b16 %v4008, %v4004
  %v4373 = vpack.c.b16 %v4009, %v4005
  %v4374 = vpack.c.b16 %v4010, %v4006
  %v4375 = vpack.c.b16 %v4011, %v4007
  %v4376 = vpack.c.b16 %v4016, %v4012
  %v4377 = vpack.c.b16 %v4017, %v4013
  %v4378 = vpack.c.b16 %v4018, %v4014
  %v4379 = vpack.c.b16 %v4019, %v4015
  %v4380 = vpack.c.b16 %v4024, %v4020
  %v4381 = vpack.c.b16 %v4025, %v4021
  %v4382 = vpack.c.b16 %v4026, %v4022
  %v4383 = vpack.c.b16 %v4027, %v4023
  %v4384 = vpack.c.b16 %v4032, %v4028
  %v4385 = vpack.c.b16 %v4033, %v4029
  %v4386 = vpack.c.b16 %v4034, %v4030
  %v4387 = vpack.c.b16 %v4035, %v4031
  %v4388 = vpack.c.b16 %v4040, %v4036
  %v4389 = vpack.c.b16 %v4041, %v4037
  %v4390 = vpack.c.b16 %v4042, %v4038
  %v4391 = vpack.c.b16 %v4043, %v4039
  %v4392 = vpack.c.b16 %v4048, %v4044
  %v4393 = vpack.c.b16 %v4049, %v4045
  %v4394 = vpack.c.b16 %v4050, %v4046
  %v4395 = vpack.c.b16 %v4051, %v4047
  %v4396 = vpack.c.b16 %v4056, %v4052
  %v4397 = vpack.c.b16 %v4057, %v4053
  %v4398 = vpack.c.b16 %v4058, %v4054
  %v4399 = vpack.c.b16 %v4059, %v4055
  %v4400 = vpack.c.b16 %v4064, %v4060
  %v4401 = vpack.c.b16 %v4065, %v4061
  %v4402 = vpack.c.b16 %v4066, %v4062
  %v4403 = vpack.c.b16 %v4067, %v4063
  %v4404 = vpack.c.b16 %v4072, %v4068
  %v4405 = vpack.c.b16 %v4073, %v4069
  %v4406 = vpack.c.b16 %v4074, %v4070
  %v4407 = vpack.c.b16 %v4075, %v4071
  %v4408 = vpack.c.b16 %v4080, %v4076
  %v4409 = vpack.c.b16 %v4081, %v4077
  %v4410 = vpack.c.b16 %v4082, %v4078
  %v4411 = vpack.c.b16 %v4083, %v4079
  %v4412 = vpack.c.b16 %v4088, %v4084
  %v4413 = vpack.c.b16 %v4089, %v4085
  %v4414 = vpack.c.b16 %v4090, %v4086
  %v4415 = vpack.c.b16 %v4091, %v4087
  %v4416 = vpack.c.b16 %v4096, %v4092
  %v4417 = vpack.c.b16 %v4097, %v4093
  %v4418 = vpack.c.b16 %v4098, %v4094
  %v4419 = vpack.c.b16 %v4099, %v4095
  %v4420 = vpack.c.b16 %v4104, %v4100
  %v4421 = vpack.c.b16 %v4105, %v4101
  %v4422 = vpack.c.b16 %v4106, %v4102
  %v4423 = vpack.c.b16 %v4107, %v4103
  %v4424 = vpack.c.b16 %v4112, %v4108
  %v4425 = vpack.c.b16 %v4113, %v4109
  %v4426 = vpack.c.b16 %v4114, %v4110
  %v4427 = vpack.c.b16 %v4115, %v4111
  %v4428 = vpack.c.b16 %v4120, %v4116
  %v4429 = vpack.c.b16 %v4121, %v4117
  %v4430 = vpack.c.b16 %v4122, %v4118
  %v4431 = vpack.c.b16 %v4123, %v4119
  %v4432 = vpack.c.b16 %v4128, %v4124
  %v4433 = vpack.c.b16 %v4129, %v4125
  %v4434 = vpack.c.b16 %v4130, %v4126
  %v4435 = vpack.c.b16 %v4131, %v4127
  %v4436 = vpack.c.b16 %v4136, %v4132
  %v4437 = vpack.c.b16 %v4137, %v4133
  %v4438 = vpack.c.b16 %v4138, %v4134
  %v4439 = vpack.c.b16 %v4139, %v4135
  %v4440 = vpack.c.b16 %v4144, %v4140
  %v4441 = vpack.c.b16 %v4145, %v4141
  %v4442 = vpack.c.b16 %v4146, %v4142
  %v4443 = vpack.c.b16 %v4147, %v4143
  %v4444 = vpack.c.b16 %v4152, %v4148
  %v4445 = vpack.c.b16 %v4153, %v4149
  %v4446 = vpack.c.b16 %v4154, %v4150
  %v4447 = vpack.c.b16 %v4155, %v4151
  %v4448 = vpack.c.b16 %v4160, %v4156
  %v4449 = vpack.c.b16 %v4161, %v4157
  %v4450 = vpack.c.b16 %v4162, %v4158
  %v4451 = vpack.c.b16 %v4163, %v4159
  %v4452 = vpack.c.b16 %v4168, %v4164
  %v4453 = vpack.c.b16 %v4169, %v4165
  %v4454 = vpack.c.b16 %v4170, %v4166
  %v4455 = vpack.c.b16 %v4171, %v4167
  %v4456 = vpack.c.b16 %v4176, %v4172
  %v4457 = vpack.c.b16 %v4177, %v4173
  %v4458 = vpack.c.b16 %v4178, %v4174
  %v4459 = vpack.c.b16 %v4179, %v4175
  %v4460 = vpack.c.b16 %v4184, %v4180
  %v4461 = vpack.c.b16 %v4185, %v4181
  %v4462 = vpack.c.b16 %v4186, %v4182
  %v4463 = vpack.c.b16 %v4187, %v4183
  %v4464 = vpack.c.b16 %v4192, %v4188
  %v4465 = vpack.c.b16 %v4193, %v4189
  %v4466 = vpack.c.b16 %v4194, %v4190
  %v4467 = vpack.c.b16 %v4195, %v4191
  %v4468 = vpack.c.b16 %v4200, %v4196
  %v4469 = vpack.c.b16 %v4201, %v4197
  %v4470 = vpack.c.b16 %v4202, %v4198
  %v4471 = vpack.c.b16 %v4203, %v4199
  %v4472 = vpack.c.b16 %v4208, %v4204
  %v4473 = vpack.c.b16 %v4209, %v4205
  %v4474 = vpack.c.b16 %v4210, %v4206
  %v4475 = vpack.c.b16 %v4211, %v4207
  %v4476 = vpack.c.b16 %v4216, %v4212
  %v4477 = vpack.c.b16 %v4217, %v4213
  %v4478 = vpack.c.b16 %v4218, %v4214
  %v4479 = vpack.c.b16 %v4219, %v4215
  %v4480 = vpack.c.b16 %v4224, %v4220
  %v4481 = vpack.c.b16 %v4225, %v4221
  %v4482 = vpack.c.b16 %v4226, %v4222
  %v4483 = vpack.c.b16 %v4227, %v4223
  %4740 = vmatprep.subr.bf16.mxu0 %v4257
  %4741 = vmatpush1.bf16.msra.mxu0 %v4256
  %4742 = vmatprep.subr.bf16.mxu0 %v4253
  %4743 = vmatpush1.bf16.msra.mxu0 %v4252
  %4744 = vmatprep.subr.bf16.mxu0 %v4249
  %4745 = vmatpush1.bf16.msra.mxu0 %v4248
  %4746 = vmatprep.subr.bf16.mxu0 %v4245
  %4747 = vmatpush1.bf16.msra.mxu0 %v4244
  %4748 = vmatprep.subr.bf16.mxu0 %v4241
  %4749 = vmatpush1.bf16.msra.mxu0 %v4240
  %4750 = vmatprep.subr.bf16.mxu0 %v4237
  %4751 = vmatpush1.bf16.msra.mxu0 %v4236
  %4752 = vmatprep.subr.bf16.mxu0 %v4233
  %4753 = vmatpush1.bf16.msra.mxu0 %v4232
  %4754 = vmatprep.subr.bf16.mxu0 %v4229
  %4755 = vmatpush1.bf16.msra.mxu0 %v4228
  %4756 = vmatprep.subr.bf16.mxu0 %v4289
  %4757 = vmatpush2.bf16.msra.mxu0 %v4288
  %4758 = vmatprep.subr.bf16.mxu0 %v4285
  %4759 = vmatpush2.bf16.msra.mxu0 %v4284
  %4760 = vmatprep.subr.bf16.mxu0 %v4281
  %4761 = vmatpush2.bf16.msra.mxu0 %v4280
  %4762 = vmatprep.subr.bf16.mxu0 %v4277
  %4763 = vmatpush2.bf16.msra.mxu0 %v4276
  %4764 = vmatprep.subr.bf16.mxu0 %v4273
  %4765 = vmatpush2.bf16.msra.mxu0 %v4272
  %4766 = vmatprep.subr.bf16.mxu0 %v4269
  %4767 = vmatpush2.bf16.msra.mxu0 %v4268
  %4768 = vmatprep.subr.bf16.mxu0 %v4265
  %4769 = vmatpush2.bf16.msra.mxu0 %v4264
  %4770 = vmatprep.subr.bf16.mxu0 %v4261
  %4771 = vmatpush2.bf16.msra.mxu0 %v4260
  %4772 = vmatprep.mubr.bf16.mxu0 %v3197
  %4773 = vmatmul.mubr.bf16.gmra.mxu0 %v3196
  %v4774 = vpop.f32.mrf.mxu0
  %v4775 = vadd.f32 0.0, %v4774
  %v4776 = vpop.f32.mrf.mxu0
  %v4777 = vadd.f32 0.0, %v4776
  %v4778 = vpop.f32.mrf.mxu0
  %v4779 = vpop.f32.mrf.mxu0
  %4780 = vdwg.mxu0
  %4781 = vmatprep.subr.bf16.mxu0 %v4321
  %4782 = vmatpush1.bf16.msra.mxu0 %v4320
  %4783 = vmatprep.subr.bf16.mxu0 %v4317
  %4784 = vmatpush1.bf16.msra.mxu0 %v4316
  %4785 = vmatprep.subr.bf16.mxu0 %v4313
  %4786 = vmatpush1.bf16.msra.mxu0 %v4312
  %4787 = vmatprep.subr.bf16.mxu0 %v4309
  %4788 = vmatpush1.bf16.msra.mxu0 %v4308
  %4789 = vmatprep.subr.bf16.mxu0 %v4305
  %4790 = vmatpush1.bf16.msra.mxu0 %v4304
  %4791 = vmatprep.subr.bf16.mxu0 %v4301
  %4792 = vmatpush1.bf16.msra.mxu0 %v4300
  %4793 = vmatprep.subr.bf16.mxu0 %v4297
  %4794 = vmatpush1.bf16.msra.mxu0 %v4296
  %4795 = vmatprep.subr.bf16.mxu0 %v4293
  %4796 = vmatpush1.bf16.msra.mxu0 %v4292
  %4797 = vmatprep.subr.bf16.mxu0 %v4353
  %4798 = vmatpush2.bf16.msra.mxu0 %v4352
  %4799 = vmatprep.subr.bf16.mxu0 %v4349
  %4800 = vmatpush2.bf16.msra.mxu0 %v4348
  %4801 = vmatprep.subr.bf16.mxu0 %v4345
  %4802 = vmatpush2.bf16.msra.mxu0 %v4344
  %4803 = vmatprep.subr.bf16.mxu0 %v4341
  %4804 = vmatpush2.bf16.msra.mxu0 %v4340
  %4805 = vmatprep.subr.bf16.mxu0 %v4337
  %4806 = vmatpush2.bf16.msra.mxu0 %v4336
  %4807 = vmatprep.subr.bf16.mxu0 %v4333
  %4808 = vmatpush2.bf16.msra.mxu0 %v4332
  %4809 = vmatprep.subr.bf16.mxu0 %v4329
  %4810 = vmatpush2.bf16.msra.mxu0 %v4328
  %4811 = vmatprep.subr.bf16.mxu0 %v4325
  %4812 = vmatpush2.bf16.msra.mxu0 %v4324
  %4813 = vmatprep.mubr.bf16.mxu0 %v3199
  %4814 = vmatmul.mubr.bf16.gmra.mxu0 %v3198
  %v4815 = vpop.f32.mrf.mxu0
  %v4816 = vadd.f32 %v4775, %v4815
  %v4817 = vpop.f32.mrf.mxu0
  %v4818 = vadd.f32 %v4777, %v4817
  %v4819 = vpop.f32.mrf.mxu0
  %v4820 = vpop.f32.mrf.mxu0
  %4821 = vdwg.mxu0
  %4822 = vmatprep.subr.bf16.mxu0 %v4385
  %4823 = vmatpush1.bf16.msra.mxu0 %v4384
  %4824 = vmatprep.subr.bf16.mxu0 %v4381
  %4825 = vmatpush1.bf16.msra.mxu0 %v4380
  %4826 = vmatprep.subr.bf16.mxu0 %v4377
  %4827 = vmatpush1.bf16.msra.mxu0 %v4376
  %4828 = vmatprep.subr.bf16.mxu0 %v4373
  %4829 = vmatpush1.bf16.msra.mxu0 %v4372
  %4830 = vmatprep.subr.bf16.mxu0 %v4369
  %4831 = vmatpush1.bf16.msra.mxu0 %v4368
  %4832 = vmatprep.subr.bf16.mxu0 %v4365
  %4833 = vmatpush1.bf16.msra.mxu0 %v4364
  %4834 = vmatprep.subr.bf16.mxu0 %v4361
  %4835 = vmatpush1.bf16.msra.mxu0 %v4360
  %4836 = vmatprep.subr.bf16.mxu0 %v4357
  %4837 = vmatpush1.bf16.msra.mxu0 %v4356
  %4838 = vmatprep.subr.bf16.mxu0 %v4417
  %4839 = vmatpush2.bf16.msra.mxu0 %v4416
  %4840 = vmatprep.subr.bf16.mxu0 %v4413
  %4841 = vmatpush2.bf16.msra.mxu0 %v4412
  %4842 = vmatprep.subr.bf16.mxu0 %v4409
  %4843 = vmatpush2.bf16.msra.mxu0 %v4408
  %4844 = vmatprep.subr.bf16.mxu0 %v4405
  %4845 = vmatpush2.bf16.msra.mxu0 %v4404
  %4846 = vmatprep.subr.bf16.mxu0 %v4401
  %4847 = vmatpush2.bf16.msra.mxu0 %v4400
  %4848 = vmatprep.subr.bf16.mxu0 %v4397
  %4849 = vmatpush2.bf16.msra.mxu0 %v4396
  %4850 = vmatprep.subr.bf16.mxu0 %v4393
  %4851 = vmatpush2.bf16.msra.mxu0 %v4392
  %4852 = vmatprep.subr.bf16.mxu0 %v4389
  %4853 = vmatpush2.bf16.msra.mxu0 %v4388
  %4854 = vmatprep.mubr.bf16.mxu0 %v3201
  %4855 = vmatmul.mubr.bf16.gmra.mxu0 %v3200
  %v4856 = vpop.f32.mrf.mxu0
  %v4857 = vadd.f32 %v4816, %v4856
  %v4858 = vpop.f32.mrf.mxu0
  %v4859 = vadd.f32 %v4818, %v4858
  %v4860 = vpop.f32.mrf.mxu0
  %v4861 = vpop.f32.mrf.mxu0
  %4862 = vdwg.mxu0
  %4863 = vmatprep.subr.bf16.mxu0 %v4449
  %4864 = vmatpush1.bf16.msra.mxu0 %v4448
  %4865 = vmatprep.subr.bf16.mxu0 %v4445
  %4866 = vmatpush1.bf16.msra.mxu0 %v4444
  %4867 = vmatprep.subr.bf16.mxu0 %v4441
  %4868 = vmatpush1.bf16.msra.mxu0 %v4440
  %4869 = vmatprep.subr.bf16.mxu0 %v4437
  %4870 = vmatpush1.bf16.msra.mxu0 %v4436
  %4871 = vmatprep.subr.bf16.mxu0 %v4433
  %4872 = vmatpush1.bf16.msra.mxu0 %v4432
  %4873 = vmatprep.subr.bf16.mxu0 %v4429
  %4874 = vmatpush1.bf16.msra.mxu0 %v4428
  %4875 = vmatprep.subr.bf16.mxu0 %v4425
  %4876 = vmatpush1.bf16.msra.mxu0 %v4424
  %4877 = vmatprep.subr.bf16.mxu0 %v4421
  %4878 = vmatpush1.bf16.msra.mxu0 %v4420
  %4879 = vmatprep.subr.bf16.mxu0 %v4481
  %4880 = vmatpush2.bf16.msra.mxu0 %v4480
  %4881 = vmatprep.subr.bf16.mxu0 %v4477
  %4882 = vmatpush2.bf16.msra.mxu0 %v4476
  %4883 = vmatprep.subr.bf16.mxu0 %v4473
  %4884 = vmatpush2.bf16.msra.mxu0 %v4472
  %4885 = vmatprep.subr.bf16.mxu0 %v4469
  %4886 = vmatpush2.bf16.msra.mxu0 %v4468
  %4887 = vmatprep.subr.bf16.mxu0 %v4465
  %4888 = vmatpush2.bf16.msra.mxu0 %v4464
  %4889 = vmatprep.subr.bf16.mxu0 %v4461
  %4890 = vmatpush2.bf16.msra.mxu0 %v4460
  %4891 = vmatprep.subr.bf16.mxu0 %v4457
  %4892 = vmatpush2.bf16.msra.mxu0 %v4456
  %4893 = vmatprep.subr.bf16.mxu0 %v4453
  %4894 = vmatpush2.bf16.msra.mxu0 %v4452
  %4895 = vmatprep.mubr.bf16.mxu0 %v3203
  %4896 = vmatmul.mubr.bf16.gmra.mxu0 %v3202
  %v4897 = vpop.f32.mrf.mxu0
  %v4898 = vadd.f32 %v4857, %v4897
  %v4899 = vpop.f32.mrf.mxu0
  %v4900 = vadd.f32 %v4859, %v4899
  %v4901 = vpop.f32.mrf.mxu0
  %v4902 = vpop.f32.mrf.mxu0
  %4903 = vdwg.mxu0
  %4904 = vmatprep.subr.bf16.mxu0 %v4259
  %4905 = vmatpush1.bf16.msra.mxu0 %v4258
  %4906 = vmatprep.subr.bf16.mxu0 %v4255
  %4907 = vmatpush1.bf16.msra.mxu0 %v4254
  %4908 = vmatprep.subr.bf16.mxu0 %v4251
  %4909 = vmatpush1.bf16.msra.mxu0 %v4250
  %4910 = vmatprep.subr.bf16.mxu0 %v4247
  %4911 = vmatpush1.bf16.msra.mxu0 %v4246
  %4912 = vmatprep.subr.bf16.mxu0 %v4243
  %4913 = vmatpush1.bf16.msra.mxu0 %v4242
  %4914 = vmatprep.subr.bf16.mxu0 %v4239
  %4915 = vmatpush1.bf16.msra.mxu0 %v4238
  %4916 = vmatprep.subr.bf16.mxu0 %v4235
  %4917 = vmatpush1.bf16.msra.mxu0 %v4234
  %4918 = vmatprep.subr.bf16.mxu0 %v4231
  %4919 = vmatpush1.bf16.msra.mxu0 %v4230
  %4920 = vmatprep.subr.bf16.mxu0 %v4291
  %4921 = vmatpush2.bf16.msra.mxu0 %v4290
  %4922 = vmatprep.subr.bf16.mxu0 %v4287
  %4923 = vmatpush2.bf16.msra.mxu0 %v4286
  %4924 = vmatprep.subr.bf16.mxu0 %v4283
  %4925 = vmatpush2.bf16.msra.mxu0 %v4282
  %4926 = vmatprep.subr.bf16.mxu0 %v4279
  %4927 = vmatpush2.bf16.msra.mxu0 %v4278
  %4928 = vmatprep.subr.bf16.mxu0 %v4275
  %4929 = vmatpush2.bf16.msra.mxu0 %v4274
  %4930 = vmatprep.subr.bf16.mxu0 %v4271
  %4931 = vmatpush2.bf16.msra.mxu0 %v4270
  %4932 = vmatprep.subr.bf16.mxu0 %v4267
  %4933 = vmatpush2.bf16.msra.mxu0 %v4266
  %4934 = vmatprep.subr.bf16.mxu0 %v4263
  %4935 = vmatpush2.bf16.msra.mxu0 %v4262
  %4936 = vmatprep.mubr.bf16.mxu0 %v3197
  %4937 = vmatmul.mubr.bf16.gmra.mxu0 %v3196
  %v4938 = vpop.f32.mrf.mxu0
  %v4939 = vadd.f32 0.0, %v4938
  %v4940 = vpop.f32.mrf.mxu0
  %v4941 = vadd.f32 0.0, %v4940
  %v4942 = vpop.f32.mrf.mxu0
  %v4943 = vpop.f32.mrf.mxu0
  %4944 = vdwg.mxu0
  %4945 = vmatprep.subr.bf16.mxu0 %v4323
  %4946 = vmatpush1.bf16.msra.mxu0 %v4322
  %4947 = vmatprep.subr.bf16.mxu0 %v4319
  %4948 = vmatpush1.bf16.msra.mxu0 %v4318
  %4949 = vmatprep.subr.bf16.mxu0 %v4315
  %4950 = vmatpush1.bf16.msra.mxu0 %v4314
  %4951 = vmatprep.subr.bf16.mxu0 %v4311
  %4952 = vmatpush1.bf16.msra.mxu0 %v4310
  %4953 = vmatprep.subr.bf16.mxu0 %v4307
  %4954 = vmatpush1.bf16.msra.mxu0 %v4306
  %4955 = vmatprep.subr.bf16.mxu0 %v4303
  %4956 = vmatpush1.bf16.msra.mxu0 %v4302
  %4957 = vmatprep.subr.bf16.mxu0 %v4299
  %4958 = vmatpush1.bf16.msra.mxu0 %v4298
  %4959 = vmatprep.subr.bf16.mxu0 %v4295
  %4960 = vmatpush1.bf16.msra.mxu0 %v4294
  %4961 = vmatprep.subr.bf16.mxu0 %v4355
  %4962 = vmatpush2.bf16.msra.mxu0 %v4354
  %4963 = vmatprep.subr.bf16.mxu0 %v4351
  %4964 = vmatpush2.bf16.msra.mxu0 %v4350
  %4965 = vmatprep.subr.bf16.mxu0 %v4347
  %4966 = vmatpush2.bf16.msra.mxu0 %v4346
  %4967 = vmatprep.subr.bf16.mxu0 %v4343
  %4968 = vmatpush2.bf16.msra.mxu0 %v4342
  %4969 = vmatprep.subr.bf16.mxu0 %v4339
  %4970 = vmatpush2.bf16.msra.mxu0 %v4338
  %4971 = vmatprep.subr.bf16.mxu0 %v4335
  %4972 = vmatpush2.bf16.msra.mxu0 %v4334
  %4973 = vmatprep.subr.bf16.mxu0 %v4331
  %4974 = vmatpush2.bf16.msra.mxu0 %v4330
  %4975 = vmatprep.subr.bf16.mxu0 %v4327
  %4976 = vmatpush2.bf16.msra.mxu0 %v4326
  %4977 = vmatprep.mubr.bf16.mxu0 %v3199
  %4978 = vmatmul.mubr.bf16.gmra.mxu0 %v3198
  %v4979 = vpop.f32.mrf.mxu0
  %v4980 = vadd.f32 %v4939, %v4979
  %v4981 = vpop.f32.mrf.mxu0
  %v4982 = vadd.f32 %v4941, %v4981
  %v4983 = vpop.f32.mrf.mxu0
  %v4984 = vpop.f32.mrf.mxu0
  %4985 = vdwg.mxu0
  %4986 = vmatprep.subr.bf16.mxu0 %v4387
  %4987 = vmatpush1.bf16.msra.mxu0 %v4386
  %4988 = vmatprep.subr.bf16.mxu0 %v4383
  %4989 = vmatpush1.bf16.msra.mxu0 %v4382
  %4990 = vmatprep.subr.bf16.mxu0 %v4379
  %4991 = vmatpush1.bf16.msra.mxu0 %v4378
  %4992 = vmatprep.subr.bf16.mxu0 %v4375
  %4993 = vmatpush1.bf16.msra.mxu0 %v4374
  %4994 = vmatprep.subr.bf16.mxu0 %v4371
  %4995 = vmatpush1.bf16.msra.mxu0 %v4370
  %4996 = vmatprep.subr.bf16.mxu0 %v4367
  %4997 = vmatpush1.bf16.msra.mxu0 %v4366
  %4998 = vmatprep.subr.bf16.mxu0 %v4363
  %4999 = vmatpush1.bf16.msra.mxu0 %v4362
  %5000 = vmatprep.subr.bf16.mxu0 %v4359
  %5001 = vmatpush1.bf16.msra.mxu0 %v4358
  %5002 = vmatprep.subr.bf16.mxu0 %v4419
  %5003 = vmatpush2.bf16.msra.mxu0 %v4418
  %5004 = vmatprep.subr.bf16.mxu0 %v4415
  %5005 = vmatpush2.bf16.msra.mxu0 %v4414
  %5006 = vmatprep.subr.bf16.mxu0 %v4411
  %5007 = vmatpush2.bf16.msra.mxu0 %v4410
  %5008 = vmatprep.subr.bf16.mxu0 %v4407
  %5009 = vmatpush2.bf16.msra.mxu0 %v4406
  %5010 = vmatprep.subr.bf16.mxu0 %v4403
  %5011 = vmatpush2.bf16.msra.mxu0 %v4402
  %5012 = vmatprep.subr.bf16.mxu0 %v4399
  %5013 = vmatpush2.bf16.msra.mxu0 %v4398
  %5014 = vmatprep.subr.bf16.mxu0 %v4395
  %5015 = vmatpush2.bf16.msra.mxu0 %v4394
  %5016 = vmatprep.subr.bf16.mxu0 %v4391
  %5017 = vmatpush2.bf16.msra.mxu0 %v4390
  %5018 = vmatprep.mubr.bf16.mxu0 %v3201
  %5019 = vmatmul.mubr.bf16.gmra.mxu0 %v3200
  %v5020 = vpop.f32.mrf.mxu0
  %v5021 = vadd.f32 %v4980, %v5020
  %v5022 = vpop.f32.mrf.mxu0
  %v5023 = vadd.f32 %v4982, %v5022
  %v5024 = vpop.f32.mrf.mxu0
  %v5025 = vpop.f32.mrf.mxu0
  %5026 = vdwg.mxu0
  %5027 = vmatprep.subr.bf16.mxu0 %v4451
  %5028 = vmatpush1.bf16.msra.mxu0 %v4450
  %5029 = vmatprep.subr.bf16.mxu0 %v4447
  %5030 = vmatpush1.bf16.msra.mxu0 %v4446
  %5031 = vmatprep.subr.bf16.mxu0 %v4443
  %5032 = vmatpush1.bf16.msra.mxu0 %v4442
  %5033 = vmatprep.subr.bf16.mxu0 %v4439
  %5034 = vmatpush1.bf16.msra.mxu0 %v4438
  %5035 = vmatprep.subr.bf16.mxu0 %v4435
  %5036 = vmatpush1.bf16.msra.mxu0 %v4434
  %5037 = vmatprep.subr.bf16.mxu0 %v4431
  %5038 = vmatpush1.bf16.msra.mxu0 %v4430
  %5039 = vmatprep.subr.bf16.mxu0 %v4427
  %5040 = vmatpush1.bf16.msra.mxu0 %v4426
  %5041 = vmatprep.subr.bf16.mxu0 %v4423
  %5042 = vmatpush1.bf16.msra.mxu0 %v4422
  %5043 = vmatprep.subr.bf16.mxu0 %v4483
  %5044 = vmatpush2.bf16.msra.mxu0 %v4482
  %5045 = vmatprep.subr.bf16.mxu0 %v4479
  %5046 = vmatpush2.bf16.msra.mxu0 %v4478
  %5047 = vmatprep.subr.bf16.mxu0 %v4475
  %5048 = vmatpush2.bf16.msra.mxu0 %v4474
  %5049 = vmatprep.subr.bf16.mxu0 %v4471
  %5050 = vmatpush2.bf16.msra.mxu0 %v4470
  %5051 = vmatprep.subr.bf16.mxu0 %v4467
  %5052 = vmatpush2.bf16.msra.mxu0 %v4466
  %5053 = vmatprep.subr.bf16.mxu0 %v4463
  %5054 = vmatpush2.bf16.msra.mxu0 %v4462
  %5055 = vmatprep.subr.bf16.mxu0 %v4459
  %5056 = vmatpush2.bf16.msra.mxu0 %v4458
  %5057 = vmatprep.subr.bf16.mxu0 %v4455
  %5058 = vmatpush2.bf16.msra.mxu0 %v4454
  %5059 = vmatprep.mubr.bf16.mxu0 %v3203
  %5060 = vmatmul.mubr.bf16.gmra.mxu0 %v3202
  %v5061 = vpop.f32.mrf.mxu0
  %v5062 = vadd.f32 %v5021, %v5061
  %v5063 = vpop.f32.mrf.mxu0
  %v5064 = vadd.f32 %v5023, %v5063
  %v5065 = vpop.f32.mrf.mxu0
  %v5066 = vpop.f32.mrf.mxu0
  %5067 = vdwg.mxu0
  %v5068 = vld [vmem:[%s11] sm:$0xf]
  %v5070 = vlaneseq
  %v5071 = vshrl.u32 %v5070, 7
  %v5072 = vsub.s32 0, %v5071
  %v5073 = vrot.slane %v5068, %v5072
  %v5074 = vlaneseq
  %v5075 = vshrl.u32 %v5074, 7
  %v5076 = vsub.s32 1, %v5075
  %v5077 = vrot.slane %v5068, %v5076
  %v5078 = vlaneseq
  %v5079 = vshrl.u32 %v5078, 7
  %v5080 = vsub.s32 2, %v5079
  %v5081 = vrot.slane %v5068, %v5080
  %v5082 = vlaneseq
  %v5083 = vshrl.u32 %v5082, 7
  %v5084 = vsub.s32 3, %v5083
  %v5085 = vrot.slane %v5068, %v5084
  %v5090 = vmul.f32 %v4898, %v5073
  %v5091 = vmul.f32 %v4900, %v5077
  %v5092 = vmul.f32 %v5062, %v5081
  %v5093 = vmul.f32 %v5064, %v5085
  %v5094 = vld [vmem:[%s12] sm:$0xf]
  %v5096 = vlaneseq
  %v5097 = vshrl.u32 %v5096, 7
  %v5098 = vsub.s32 0, %v5097
  %v5099 = vrot.slane %v5094, %v5098
  %v5100 = vlaneseq
  %v5101 = vshrl.u32 %v5100, 7
  %v5102 = vsub.s32 1, %v5101
  %v5103 = vrot.slane %v5094, %v5102
  %v5104 = vlaneseq
  %v5105 = vshrl.u32 %v5104, 7
  %v5106 = vsub.s32 2, %v5105
  %v5107 = vrot.slane %v5094, %v5106
  %v5108 = vlaneseq
  %v5109 = vshrl.u32 %v5108, 7
  %v5110 = vsub.s32 3, %v5109
  %v5111 = vrot.slane %v5094, %v5110
  %v5116 = vadd.f32 %v5090, %v5099
  %v5117 = vadd.f32 %v5091, %v5103
  %v5118 = vadd.f32 %v5092, %v5107
  %v5119 = vadd.f32 %v5093, %v5111
  %v5120 = vmax.f32 %v5116, 0.0
  %v5121 = vmax.f32 %v5117, 0.0
  %v5122 = vmax.f32 %v5118, 0.0
  %v5123 = vmax.f32 %v5119, 0.0
  %v5124 = vpack.c.bf16 %v5120, %v5120
  %v5125 = vpack.c.bf16 %v5121, %v5121
  %v5126 = vpack.c.bf16 %v5122, %v5122
  %v5127 = vpack.c.bf16 %v5123, %v5123
  %v5128 = vld [vmem:[%s13] sm:$0xff]
  %v5129 = vld [vmem:[%s13 + $0x8] sm:$0xff]
  %v5130 = vld [vmem:[%s13 + $0x10] sm:$0xff]
  %v5131 = vld [vmem:[%s13 + $0x18] sm:$0xff]
  %v5132 = vld [vmem:[%s13 + $0x20] sm:$0xff]
  %v5133 = vld [vmem:[%s13 + $0x28] sm:$0xff]
  %v5134 = vld [vmem:[%s13 + $0x30] sm:$0xff]
  %v5135 = vld [vmem:[%s13 + $0x38] sm:$0xff]
  %v5136 = vld [vmem:[%s13 + $0x40] sm:$0xff]
  %v5137 = vld [vmem:[%s13 + $0x48] sm:$0xff]
  %v5138 = vld [vmem:[%s13 + $0x50] sm:$0xff]
  %v5139 = vld [vmem:[%s13 + $0x58] sm:$0xff]
  %v5140 = vld [vmem:[%s13 + $0x60] sm:$0xff]
  %v5141 = vld [vmem:[%s13 + $0x68] sm:$0xff]
  %v5142 = vld [vmem:[%s13 + $0x70] sm:$0xff]
  %v5143 = vld [vmem:[%s13 + $0x78] sm:$0xff]
  %v5144 = vld [vmem:[%s13 + $0x80] sm:$0xff]
  %v5145 = vld [vmem:[%s13 + $0x88] sm:$0xff]
  %v5146 = vld [vmem:[%s13 + $0x90] sm:$0xff]
  %v5147 = vld [vmem:[%s13 + $0x98] sm:$0xff]
  %v5148 = vld [vmem:[%s13 + $0xa0] sm:$0xff]
  %v5149 = vld [vmem:[%s13 + $0xa8] sm:$0xff]
  %v5150 = vld [vmem:[%s13 + $0xb0] sm:$0xff]
  %v5151 = vld [vmem:[%s13 + $0xb8] sm:$0xff]
  %v5152 = vld [vmem:[%s13 + $0xc0] sm:$0xff]
  %v5153 = vld [vmem:[%s13 + $0xc8] sm:$0xff]
  %v5154 = vld [vmem:[%s13 + $0xd0] sm:$0xff]
  %v5155 = vld [vmem:[%s13 + $0xd8] sm:$0xff]
  %v5156 = vld [vmem:[%s13 + $0xe0] sm:$0xff]
  %v5157 = vld [vmem:[%s13 + $0xe8] sm:$0xff]
  %v5158 = vld [vmem:[%s13 + $0xf0] sm:$0xff]
  %v5159 = vld [vmem:[%s13 + $0xf8] sm:$0xff]
  %v5160 = vld [vmem:[%s13 + $0x100] sm:$0xff]
  %v5161 = vld [vmem:[%s13 + $0x108] sm:$0xff]
  %v5162 = vld [vmem:[%s13 + $0x110] sm:$0xff]
  %v5163 = vld [vmem:[%s13 + $0x118] sm:$0xff]
  %v5164 = vld [vmem:[%s13 + $0x120] sm:$0xff]
  %v5165 = vld [vmem:[%s13 + $0x128] sm:$0xff]
  %v5166 = vld [vmem:[%s13 + $0x130] sm:$0xff]
  %v5167 = vld [vmem:[%s13 + $0x138] sm:$0xff]
  %v5168 = vld [vmem:[%s13 + $0x140] sm:$0xff]
  %v5169 = vld [vmem:[%s13 + $0x148] sm:$0xff]
  %v5170 = vld [vmem:[%s13 + $0x150] sm:$0xff]
  %v5171 = vld [vmem:[%s13 + $0x158] sm:$0xff]
  %v5172 = vld [vmem:[%s13 + $0x160] sm:$0xff]
  %v5173 = vld [vmem:[%s13 + $0x168] sm:$0xff]
  %v5174 = vld [vmem:[%s13 + $0x170] sm:$0xff]
  %v5175 = vld [vmem:[%s13 + $0x178] sm:$0xff]
  %v5176 = vld [vmem:[%s13 + $0x180] sm:$0xff]
  %v5177 = vld [vmem:[%s13 + $0x188] sm:$0xff]
  %v5178 = vld [vmem:[%s13 + $0x190] sm:$0xff]
  %v5179 = vld [vmem:[%s13 + $0x198] sm:$0xff]
  %v5180 = vld [vmem:[%s13 + $0x1a0] sm:$0xff]
  %v5181 = vld [vmem:[%s13 + $0x1a8] sm:$0xff]
  %v5182 = vld [vmem:[%s13 + $0x1b0] sm:$0xff]
  %v5183 = vld [vmem:[%s13 + $0x1b8] sm:$0xff]
  %v5184 = vld [vmem:[%s13 + $0x1c0] sm:$0xff]
  %v5185 = vld [vmem:[%s13 + $0x1c8] sm:$0xff]
  %v5186 = vld [vmem:[%s13 + $0x1d0] sm:$0xff]
  %v5187 = vld [vmem:[%s13 + $0x1d8] sm:$0xff]
  %v5188 = vld [vmem:[%s13 + $0x1e0] sm:$0xff]
  %v5189 = vld [vmem:[%s13 + $0x1e8] sm:$0xff]
  %v5190 = vld [vmem:[%s13 + $0x1f0] sm:$0xff]
  %v5191 = vld [vmem:[%s13 + $0x1f8] sm:$0xff]
  %v5256 = vunpack.c.l.b16 %v5128
  %v5257 = vunpack.c.h.b16 %v5128
  %v5258 = vunpack.c.l.b16 %v5129
  %v5259 = vunpack.c.h.b16 %v5129
  %v5260 = vunpack.c.l.b16 %v5130
  %v5261 = vunpack.c.h.b16 %v5130
  %v5262 = vunpack.c.l.b16 %v5131
  %v5263 = vunpack.c.h.b16 %v5131
  %v5264 = vunpack.c.l.b16 %v5132
  %v5265 = vunpack.c.h.b16 %v5132
  %v5266 = vunpack.c.l.b16 %v5133
  %v5267 = vunpack.c.h.b16 %v5133
  %v5268 = vunpack.c.l.b16 %v5134
  %v5269 = vunpack.c.h.b16 %v5134
  %v5270 = vunpack.c.l.b16 %v5135
  %v5271 = vunpack.c.h.b16 %v5135
  %v5272 = vunpack.c.l.b16 %v5136
  %v5273 = vunpack.c.h.b16 %v5136
  %v5274 = vunpack.c.l.b16 %v5137
  %v5275 = vunpack.c.h.b16 %v5137
  %v5276 = vunpack.c.l.b16 %v5138
  %v5277 = vunpack.c.h.b16 %v5138
  %v5278 = vunpack.c.l.b16 %v5139
  %v5279 = vunpack.c.h.b16 %v5139
  %v5280 = vunpack.c.l.b16 %v5140
  %v5281 = vunpack.c.h.b16 %v5140
  %v5282 = vunpack.c.l.b16 %v5141
  %v5283 = vunpack.c.h.b16 %v5141
  %v5284 = vunpack.c.l.b16 %v5142
  %v5285 = vunpack.c.h.b16 %v5142
  %v5286 = vunpack.c.l.b16 %v5143
  %v5287 = vunpack.c.h.b16 %v5143
  %v5288 = vunpack.c.l.b16 %v5144
  %v5289 = vunpack.c.h.b16 %v5144
  %v5290 = vunpack.c.l.b16 %v5145
  %v5291 = vunpack.c.h.b16 %v5145
  %v5292 = vunpack.c.l.b16 %v5146
  %v5293 = vunpack.c.h.b16 %v5146
  %v5294 = vunpack.c.l.b16 %v5147
  %v5295 = vunpack.c.h.b16 %v5147
  %v5296 = vunpack.c.l.b16 %v5148
  %v5297 = vunpack.c.h.b16 %v5148
  %v5298 = vunpack.c.l.b16 %v5149
  %v5299 = vunpack.c.h.b16 %v5149
  %v5300 = vunpack.c.l.b16 %v5150
  %v5301 = vunpack.c.h.b16 %v5150
  %v5302 = vunpack.c.l.b16 %v5151
  %v5303 = vunpack.c.h.b16 %v5151
  %v5304 = vunpack.c.l.b16 %v5152
  %v5305 = vunpack.c.h.b16 %v5152
  %v5306 = vunpack.c.l.b16 %v5153
  %v5307 = vunpack.c.h.b16 %v5153
  %v5308 = vunpack.c.l.b16 %v5154
  %v5309 = vunpack.c.h.b16 %v5154
  %v5310 = vunpack.c.l.b16 %v5155
  %v5311 = vunpack.c.h.b16 %v5155
  %v5312 = vunpack.c.l.b16 %v5156
  %v5313 = vunpack.c.h.b16 %v5156
  %v5314 = vunpack.c.l.b16 %v5157
  %v5315 = vunpack.c.h.b16 %v5157
  %v5316 = vunpack.c.l.b16 %v5158
  %v5317 = vunpack.c.h.b16 %v5158
  %v5318 = vunpack.c.l.b16 %v5159
  %v5319 = vunpack.c.h.b16 %v5159
  %v5320 = vunpack.c.l.b16 %v5160
  %v5321 = vunpack.c.h.b16 %v5160
  %v5322 = vunpack.c.l.b16 %v5161
  %v5323 = vunpack.c.h.b16 %v5161
  %v5324 = vunpack.c.l.b16 %v5162
  %v5325 = vunpack.c.h.b16 %v5162
  %v5326 = vunpack.c.l.b16 %v5163
  %v5327 = vunpack.c.h.b16 %v5163
  %v5328 = vunpack.c.l.b16 %v5164
  %v5329 = vunpack.c.h.b16 %v5164
  %v5330 = vunpack.c.l.b16 %v5165
  %v5331 = vunpack.c.h.b16 %v5165
  %v5332 = vunpack.c.l.b16 %v5166
  %v5333 = vunpack.c.h.b16 %v5166
  %v5334 = vunpack.c.l.b16 %v5167
  %v5335 = vunpack.c.h.b16 %v5167
  %v5336 = vunpack.c.l.b16 %v5168
  %v5337 = vunpack.c.h.b16 %v5168
  %v5338 = vunpack.c.l.b16 %v5169
  %v5339 = vunpack.c.h.b16 %v5169
  %v5340 = vunpack.c.l.b16 %v5170
  %v5341 = vunpack.c.h.b16 %v5170
  %v5342 = vunpack.c.l.b16 %v5171
  %v5343 = vunpack.c.h.b16 %v5171
  %v5344 = vunpack.c.l.b16 %v5172
  %v5345 = vunpack.c.h.b16 %v5172
  %v5346 = vunpack.c.l.b16 %v5173
  %v5347 = vunpack.c.h.b16 %v5173
  %v5348 = vunpack.c.l.b16 %v5174
  %v5349 = vunpack.c.h.b16 %v5174
  %v5350 = vunpack.c.l.b16 %v5175
  %v5351 = vunpack.c.h.b16 %v5175
  %v5352 = vunpack.c.l.b16 %v5176
  %v5353 = vunpack.c.h.b16 %v5176
  %v5354 = vunpack.c.l.b16 %v5177
  %v5355 = vunpack.c.h.b16 %v5177
  %v5356 = vunpack.c.l.b16 %v5178
  %v5357 = vunpack.c.h.b16 %v5178
  %v5358 = vunpack.c.l.b16 %v5179
  %v5359 = vunpack.c.h.b16 %v5179
  %v5360 = vunpack.c.l.b16 %v5180
  %v5361 = vunpack.c.h.b16 %v5180
  %v5362 = vunpack.c.l.b16 %v5181
  %v5363 = vunpack.c.h.b16 %v5181
  %v5364 = vunpack.c.l.b16 %v5182
  %v5365 = vunpack.c.h.b16 %v5182
  %v5366 = vunpack.c.l.b16 %v5183
  %v5367 = vunpack.c.h.b16 %v5183
  %v5368 = vunpack.c.l.b16 %v5184
  %v5369 = vunpack.c.h.b16 %v5184
  %v5370 = vunpack.c.l.b16 %v5185
  %v5371 = vunpack.c.h.b16 %v5185
  %v5372 = vunpack.c.l.b16 %v5186
  %v5373 = vunpack.c.h.b16 %v5186
  %v5374 = vunpack.c.l.b16 %v5187
  %v5375 = vunpack.c.h.b16 %v5187
  %v5376 = vunpack.c.l.b16 %v5188
  %v5377 = vunpack.c.h.b16 %v5188
  %v5378 = vunpack.c.l.b16 %v5189
  %v5379 = vunpack.c.h.b16 %v5189
  %v5380 = vunpack.c.l.b16 %v5190
  %v5381 = vunpack.c.h.b16 %v5190
  %v5382 = vunpack.c.l.b16 %v5191
  %v5383 = vunpack.c.h.b16 %v5191
  %v5384 = vpack.c.b16 %v5258, %v5256
  %v5385 = vpack.c.b16 %v5259, %v5257
  %v5386 = vpack.c.b16 %v5262, %v5260
  %v5387 = vpack.c.b16 %v5263, %v5261
  %v5388 = vpack.c.b16 %v5266, %v5264
  %v5389 = vpack.c.b16 %v5267, %v5265
  %v5390 = vpack.c.b16 %v5270, %v5268
  %v5391 = vpack.c.b16 %v5271, %v5269
  %v5392 = vpack.c.b16 %v5274, %v5272
  %v5393 = vpack.c.b16 %v5275, %v5273
  %v5394 = vpack.c.b16 %v5278, %v5276
  %v5395 = vpack.c.b16 %v5279, %v5277
  %v5396 = vpack.c.b16 %v5282, %v5280
  %v5397 = vpack.c.b16 %v5283, %v5281
  %v5398 = vpack.c.b16 %v5286, %v5284
  %v5399 = vpack.c.b16 %v5287, %v5285
  %v5400 = vpack.c.b16 %v5290, %v5288
  %v5401 = vpack.c.b16 %v5291, %v5289
  %v5402 = vpack.c.b16 %v5294, %v5292
  %v5403 = vpack.c.b16 %v5295, %v5293
  %v5404 = vpack.c.b16 %v5298, %v5296
  %v5405 = vpack.c.b16 %v5299, %v5297
  %v5406 = vpack.c.b16 %v5302, %v5300
  %v5407 = vpack.c.b16 %v5303, %v5301
  %v5408 = vpack.c.b16 %v5306, %v5304
  %v5409 = vpack.c.b16 %v5307, %v5305
  %v5410 = vpack.c.b16 %v5310, %v5308
  %v5411 = vpack.c.b16 %v5311, %v5309
  %v5412 = vpack.c.b16 %v5314, %v5312
  %v5413 = vpack.c.b16 %v5315, %v5313
  %v5414 = vpack.c.b16 %v5318, %v5316
  %v5415 = vpack.c.b16 %v5319, %v5317
  %v5416 = vpack.c.b16 %v5322, %v5320
  %v5417 = vpack.c.b16 %v5323, %v5321
  %v5418 = vpack.c.b16 %v5326, %v5324
  %v5419 = vpack.c.b16 %v5327, %v5325
  %v5420 = vpack.c.b16 %v5330, %v5328
  %v5421 = vpack.c.b16 %v5331, %v5329
  %v5422 = vpack.c.b16 %v5334, %v5332
  %v5423 = vpack.c.b16 %v5335, %v5333
  %v5424 = vpack.c.b16 %v5338, %v5336
  %v5425 = vpack.c.b16 %v5339, %v5337
  %v5426 = vpack.c.b16 %v5342, %v5340
  %v5427 = vpack.c.b16 %v5343, %v5341
  %v5428 = vpack.c.b16 %v5346, %v5344
  %v5429 = vpack.c.b16 %v5347, %v5345
  %v5430 = vpack.c.b16 %v5350, %v5348
  %v5431 = vpack.c.b16 %v5351, %v5349
  %v5432 = vpack.c.b16 %v5354, %v5352
  %v5433 = vpack.c.b16 %v5355, %v5353
  %v5434 = vpack.c.b16 %v5358, %v5356
  %v5435 = vpack.c.b16 %v5359, %v5357
  %v5436 = vpack.c.b16 %v5362, %v5360
  %v5437 = vpack.c.b16 %v5363, %v5361
  %v5438 = vpack.c.b16 %v5366, %v5364
  %v5439 = vpack.c.b16 %v5367, %v5365
  %v5440 = vpack.c.b16 %v5370, %v5368
  %v5441 = vpack.c.b16 %v5371, %v5369
  %v5442 = vpack.c.b16 %v5374, %v5372
  %v5443 = vpack.c.b16 %v5375, %v5373
  %v5444 = vpack.c.b16 %v5378, %v5376
  %v5445 = vpack.c.b16 %v5379, %v5377
  %v5446 = vpack.c.b16 %v5382, %v5380
  %v5447 = vpack.c.b16 %v5383, %v5381
  %5512 = vmatprep.subr.bf16.mxu0 %v5399
  %5513 = vmatpush1.bf16.msra.mxu0 %v5398
  %5514 = vmatprep.subr.bf16.mxu0 %v5397
  %5515 = vmatpush1.bf16.msra.mxu0 %v5396
  %5516 = vmatprep.subr.bf16.mxu0 %v5395
  %5517 = vmatpush1.bf16.msra.mxu0 %v5394
  %5518 = vmatprep.subr.bf16.mxu0 %v5393
  %5519 = vmatpush1.bf16.msra.mxu0 %v5392
  %5520 = vmatprep.subr.bf16.mxu0 %v5391
  %5521 = vmatpush1.bf16.msra.mxu0 %v5390
  %5522 = vmatprep.subr.bf16.mxu0 %v5389
  %5523 = vmatpush1.bf16.msra.mxu0 %v5388
  %5524 = vmatprep.subr.bf16.mxu0 %v5387
  %5525 = vmatpush1.bf16.msra.mxu0 %v5386
  %5526 = vmatprep.subr.bf16.mxu0 %v5385
  %5527 = vmatpush1.bf16.msra.mxu0 %v5384
  %5528 = vmatprep.subr.bf16.mxu0 %v5415
  %5529 = vmatpush2.bf16.msra.mxu0 %v5414
  %5530 = vmatprep.subr.bf16.mxu0 %v5413
  %5531 = vmatpush2.bf16.msra.mxu0 %v5412
  %5532 = vmatprep.subr.bf16.mxu0 %v5411
  %5533 = vmatpush2.bf16.msra.mxu0 %v5410
  %5534 = vmatprep.subr.bf16.mxu0 %v5409
  %5535 = vmatpush2.bf16.msra.mxu0 %v5408
  %5536 = vmatprep.subr.bf16.mxu0 %v5407
  %5537 = vmatpush2.bf16.msra.mxu0 %v5406
  %5538 = vmatprep.subr.bf16.mxu0 %v5405
  %5539 = vmatpush2.bf16.msra.mxu0 %v5404
  %5540 = vmatprep.subr.bf16.mxu0 %v5403
  %5541 = vmatpush2.bf16.msra.mxu0 %v5402
  %5542 = vmatprep.subr.bf16.mxu0 %v5401
  %5543 = vmatpush2.bf16.msra.mxu0 %v5400
  %5544 = vmatprep.mubr.bf16.mxu0 %v5125
  %5545 = vmatmul.mubr.bf16.gmra.mxu0 %v5124
  %v5546 = vpop.f32.mrf.mxu0
  %v5547 = vadd.f32 0.0, %v5546
  %v5548 = vpop.f32.mrf.mxu0
  %v5549 = vadd.f32 0.0, %v5548
  %v5550 = vpop.f32.mrf.mxu0
  %v5551 = vpop.f32.mrf.mxu0
  %5552 = vdwg.mxu0
  %5553 = vmatprep.subr.bf16.mxu0 %v5431
  %5554 = vmatpush1.bf16.msra.mxu0 %v5430
  %5555 = vmatprep.subr.bf16.mxu0 %v5429
  %5556 = vmatpush1.bf16.msra.mxu0 %v5428
  %5557 = vmatprep.subr.bf16.mxu0 %v5427
  %5558 = vmatpush1.bf16.msra.mxu0 %v5426
  %5559 = vmatprep.subr.bf16.mxu0 %v5425
  %5560 = vmatpush1.bf16.msra.mxu0 %v5424
  %5561 = vmatprep.subr.bf16.mxu0 %v5423
  %5562 = vmatpush1.bf16.msra.mxu0 %v5422
  %5563 = vmatprep.subr.bf16.mxu0 %v5421
  %5564 = vmatpush1.bf16.msra.mxu0 %v5420
  %5565 = vmatprep.subr.bf16.mxu0 %v5419
  %5566 = vmatpush1.bf16.msra.mxu0 %v5418
  %5567 = vmatprep.subr.bf16.mxu0 %v5417
  %5568 = vmatpush1.bf16.msra.mxu0 %v5416
  %5569 = vmatprep.subr.bf16.mxu0 %v5447
  %5570 = vmatpush2.bf16.msra.mxu0 %v5446
  %5571 = vmatprep.subr.bf16.mxu0 %v5445
  %5572 = vmatpush2.bf16.msra.mxu0 %v5444
  %5573 = vmatprep.subr.bf16.mxu0 %v5443
  %5574 = vmatpush2.bf16.msra.mxu0 %v5442
  %5575 = vmatprep.subr.bf16.mxu0 %v5441
  %5576 = vmatpush2.bf16.msra.mxu0 %v5440
  %5577 = vmatprep.subr.bf16.mxu0 %v5439
  %5578 = vmatpush2.bf16.msra.mxu0 %v5438
  %5579 = vmatprep.subr.bf16.mxu0 %v5437
  %5580 = vmatpush2.bf16.msra.mxu0 %v5436
  %5581 = vmatprep.subr.bf16.mxu0 %v5435
  %5582 = vmatpush2.bf16.msra.mxu0 %v5434
  %5583 = vmatprep.subr.bf16.mxu0 %v5433
  %5584 = vmatpush2.bf16.msra.mxu0 %v5432
  %5585 = vmatprep.mubr.bf16.mxu0 %v5127
  %5586 = vmatmul.mubr.bf16.gmra.mxu0 %v5126
  %v5587 = vpop.f32.mrf.mxu0
  %v5588 = vadd.f32 %v5547, %v5587
  %v5589 = vpop.f32.mrf.mxu0
  %v5590 = vadd.f32 %v5549, %v5589
  %v5591 = vpop.f32.mrf.mxu0
  %v5592 = vpop.f32.mrf.mxu0
  %5593 = vdwg.mxu0
  %v5594 = vld [vmem:[%s14] sm:$0x3]
  %v5596 = vlaneseq
  %v5597 = vshrl.u32 %v5596, 7
  %v5598 = vsub.s32 0, %v5597
  %v5599 = vrot.slane %v5594, %v5598
  %v5600 = vlaneseq
  %v5601 = vshrl.u32 %v5600, 7
  %v5602 = vsub.s32 1, %v5601
  %v5603 = vrot.slane %v5594, %v5602
  %v5606 = vmul.f32 %v5588, %v5599
  %v5607 = vmul.f32 %v5590, %v5603
  %v5608 = vld [vmem:[%s15] sm:$0x3]
  %v5610 = vlaneseq
  %v5611 = vshrl.u32 %v5610, 7
  %v5612 = vsub.s32 0, %v5611
  %v5613 = vrot.slane %v5608, %v5612
  %v5614 = vlaneseq
  %v5615 = vshrl.u32 %v5614, 7
  %v5616 = vsub.s32 1, %v5615
  %v5617 = vrot.slane %v5608, %v5616
  %v5620 = vadd.f32 %v5606, %v5613
  %v5621 = vadd.f32 %v5607, %v5617
  %v5622 = vmax.f32 %v5620, 0.0
  %v5623 = vmax.f32 %v5621, 0.0
  %5624 = vst [vmem:[%s16] sm:$0xff] %v5622
  %5625 = vst [vmem:[%s16 + $0x8] sm:$0xff] %v5623
  // Predicated region
  $region66: #{forward.6} parent=0 // pred_check
    _
  $region67: #{forward.6} parent=0 // pred_check_branch
    %5627 = sbr.rel (0) target = $region69
  $region68: #{forward.6} parent=0 // pred_region
    _
  $region69: #{forward.6} parent=0 // pred_fallthru
    _
  // Predicated region
  $region70: #{forward.6} parent=0 // pred_check
    _
  $region71: #{forward.6} parent=0 // pred_check_branch
    %5629 = sbr.rel (0) target = $region73
  $region72: #{forward.6} parent=0 // pred_region
    _
  $region73: #{forward.6} parent=0 // pred_fallthru
    _

</llo_original>
